<compile_context>
chip_gen: v6e
topology: v6e:2x2x1
jax: 0.10.0
libtpu: 0.0.40
codegen_flags: <defaults>
</compile_context>

<pallas_src>
import functools

import numpy as np
import jax
import jax.numpy as jnp
from jax.experimental import pallas as pl
from jax.experimental.pallas import tpu as pltpu

# ---------------------------------------------------------------- config ----
N_UNITS = 30                       # params['N_units']  (latent dim)
N_EVALS = 30                       # params['N_evals']
N1_LAYERS = [80, 160, 320, 640, 320, 160, 80]   # == N2_layers
DEC_LAYERS = [200]                 # params['dec_layers']
N_POINTS = 16                      # small synthetic stand-in for pix.shape[1]
BATCH = 2

EPS = 1e-5
SELU_ALPHA = 1.6732632423543772
SELU_SCALE = 1.0507009873554805

BIG_LAYERS = (3, 4)                              # 320->640 and 640->320
SMALL_HID = (0, 1, 2, 5, 6)                      # hidden layers kept in VMEM

VMEM_SPEC = pl.BlockSpec(memory_space=pltpu.MemorySpace.VMEM)
ANY_SPEC = pl.BlockSpec(memory_space=pl.ANY)


def _ceil_to(x, m):
    return ((x + m - 1) // m) * m


# ------------------------------------------------------------ kernel math ---
def _bn_train(x, gamma, beta):
    """PyTorch BatchNorm (training mode): batch stats, biased variance, f32."""
    mean = jnp.mean(x, axis=0, keepdims=True)
    var = jnp.mean(jnp.square(x - mean), axis=0, keepdims=True)
    return (x - mean) * jax.lax.rsqrt(var + EPS) * gamma + beta


def _selu(x):
    return SELU_SCALE * jnp.where(x > 0, x, SELU_ALPHA * (jnp.exp(x) - 1.0))


# ------------------------------------------------------------ fused kernel --
def _ae_kernel(x_ref, eig_ref, pk_ref,
               e_w1, e_w2, e_wl1, e_wl2, d_w1, d_wo,
               n1_w0, n1_w1, n1_w2, n1_w5, n1_w6, n1_wo,
               n2_w0, n2_w1, n2_w2, n2_w5, n2_w6, n2_wo,
               n1_w3_hbm, n2_w3_hbm, n1_w4_hbm, n2_w4_hbm,
               out_ref,
               n1_buf3, n2_buf3, n1_buf4, n2_buf4, sem,
               *, B, N, offsets, out_slots):
    f32 = jnp.float32
    bf16 = jnp.bfloat16

    def gp(key):                                   # (1, d) f32 slice of packed params
        off, d = offsets[key]
        return pk_ref[:, off:off + d]

    def mm(a, w):                                  # bf16 matmul, f32 accumulation
        return jnp.dot(a.astype(bf16), w, preferred_element_type=f32)

    # --- start big-weight DMAs immediately (overlap enc/dec/early-MLP compute);
    #     layer-3 weights (needed first) are issued before layer-4.
    copies = []
    for i, (hbm, buf) in enumerate(((n1_w3_hbm, n1_buf3), (n2_w3_hbm, n2_buf3),
                                    (n1_w4_hbm, n1_buf4), (n2_w4_hbm, n2_buf4))):
        cp = pltpu.make_async_copy(hbm, buf, sem.at[i])
        cp.start()
        copies.append(cp)

    # ---------------- Encoder ----------------
    x = x_ref[...]                                                   # (B*N, 3)
    # Conv2d(1,64,(1,3),'valid') == per-point Linear(3 -> 64)
    h = mm(x, e_w1[...]) + gp('e_b1')
    h = _bn_train(h, gp('e_g1'), gp('e_be1'))                        # BatchNorm2d(64)
    # Conv2d(64,128,(1,1)) == per-point Linear(64 -> 128)
    h = mm(h, e_w2[...]) + gp('e_b2')
    h = _bn_train(h, gp('e_g2'), gp('e_be2'))                        # BatchNorm2d(128)
    # MaxPool2d((n_points,1)): max over the point axis per batch element.
    h = jnp.max(h.reshape(B, N, h.shape[-1]), axis=1)                # (B, 128)
    h = jnp.tanh(mm(h, e_wl1[...]) + gp('e_bl1'))
    lat = jnp.tanh(mm(h, e_wl2[...]) + gp('e_bl2'))                  # (B, N_UNITS)

    # ---------------- Decoder ----------------
    h = jnp.tanh(mm(lat, d_w1[...]) + gp('d_b1'))
    mesh = mm(h, d_wo[...]) + gp('d_bo')                             # (B, N*3)

    # ---------------- N1 (eig -> lat_rec) and N2 (lat -> eval_rec), interleaved
    h1 = _bn_train(eig_ref[...], gp('n1_bn0_g'), gp('n1_bn0_b'))
    h2 = _bn_train(lat, gp('n2_bn0_g'), gp('n2_bn0_b'))

    def stage(i, a1, a2, w1, w2):
        # Both layer-i matmuls, then ONE SELU + ONE BatchNorm over the
        # lane-concatenated (B, 2d) block (per-lane BN stats -> exact).
        y1 = mm(a1, w1) + gp(f'n1_b{i}')
        y2 = mm(a2, w2) + gp(f'n2_b{i}')
        d = y1.shape[-1]
        y = jnp.concatenate([y1, y2], axis=-1)
        y = _selu(y)
        g = jnp.concatenate([gp(f'n1_g{i}'), gp(f'n2_g{i}')], axis=-1)
        be = jnp.concatenate([gp(f'n1_be{i}'), gp(f'n2_be{i}')], axis=-1)
        y = _bn_train(y, g, be)
        return y[:, :d], y[:, d:]

    h1, h2 = stage(0, h1, h2, n1_w0[...], n2_w0[...])                # 30  -> 80
    h1, h2 = stage(1, h1, h2, n1_w1[...], n2_w1[...])                # 80  -> 160
    h1, h2 = stage(2, h1, h2, n1_w2[...], n2_w2[...])                # 160 -> 320
    copies[0].wait(); copies[1].wait()                               # layer-3 weights landed
    h1, h2 = stage(3, h1, h2, n1_buf3[...], n2_buf3[...])            # 320 -> 640
    copies[2].wait(); copies[3].wait()                               # layer-4 weights landed
    h1, h2 = stage(4, h1, h2, n1_buf4[...], n2_buf4[...])            # 640 -> 320
    h1, h2 = stage(5, h1, h2, n1_w5[...], n2_w5[...])                # 320 -> 160
    h1, h2 = stage(6, h1, h2, n1_w6[...], n2_w6[...])                # 160 -> 80

    lat_rec = mm(h1, n1_wo[...]) + gp('n1_bo')                       # (B, N_UNITS)
    eval_rec = mm(h2, n2_wo[...]) + gp('n2_bo')                      # (B, N_EVALS)

    # ---------------- lane-dense packed output (single writeback DMA) -------
    def slot_pad(v, slot):
        pad = slot - v.shape[-1]
        if pad == 0:
            return v
        return jnp.concatenate([v, jnp.zeros((v.shape[0], pad), f32)], axis=-1)

    out_ref[...] = jnp.concatenate(
        [slot_pad(mesh, out_slots[0]),
         slot_pad(eval_rec, out_slots[1]),
         slot_pad(lat_rec, out_slots[2]),
         slot_pad(lat, out_slots[3])], axis=-1)


# ----------------------------------------------------------- param packing --
def _pack_small(named):
    """Concat (1,d) params into one lane-dense f32 array with 128-aligned offsets."""
    offsets, pieces, off = {}, [], 0
    for key, arr in named:
        v = jnp.asarray(arr, jnp.float32).reshape(1, -1)
        d = v.shape[-1]
        offsets[key] = (off, d)
        pad = _ceil_to(d, 128) - d
        if pad:
            v = jnp.concatenate([v, jnp.zeros((1, pad), jnp.float32)], axis=-1)
        pieces.append(v)
        off += d + pad
    return jnp.concatenate(pieces, axis=-1), offsets


# ---------------------------------------------------------------- AE forward
def ae_forward(x, eig, params):
    B, N, _ = x.shape
    x2d = x.reshape(B * N, 3)
    enc, dec, n1, n2 = params['enc'], params['dec'], params['n1'], params['n2']

    # ---- pack all tiny bias / BN params into one array ----
    small = [
        ('e_b1', enc['b1']), ('e_g1', enc['g1']), ('e_be1', enc['be1']),
        ('e_b2', enc['b2']), ('e_g2', enc['g2']), ('e_be2', enc['be2']),
        ('e_bl1', enc['bl1']), ('e_bl2', enc['bl2']),
        ('d_b1', dec['b1']), ('d_bo', dec['bo']),
    ]
    for name, p in (('n1', n1), ('n2', n2)):
        small.append((f'{name}_bn0_g', p['bn0_g']))
        small.append((f'{name}_bn0_b', p['bn0_b']))
        for i, (_, b, g, be) in enumerate(p['hidden']):
            small.extend([(f'{name}_b{i}', b), (f'{name}_g{i}', g),
                          (f'{name}_be{i}', be)])
        small.append((f'{name}_bo', p['bo']))
    packed, offsets = _pack_small(small)

    # ---- weight matrices (bf16) that live in VMEM ----
    weight_args = [enc['w1'], enc['w2'], enc['wl1'], enc['wl2'],
                   dec['w1'], dec['wo']]
    for p in (n1, n2):
        weight_args.extend(p['hidden'][i][0] for i in SMALL_HID)
        weight_args.append(p['wo'])

    # ---- big weights streamed from HBM (layer-3 of both nets first) ----
    big_args = [n1['hidden'][3][0], n2['hidden'][3][0],
                n1['hidden'][4][0], n2['hidden'][4][0]]

    # ---- lane-dense output slab layout ----
    slots = [_ceil_to(w, 64) for w in (N * 3, N_EVALS, N_UNITS, N_UNITS)]
    slots[-1] += _ceil_to(sum(slots), 128) - sum(slots)
    total = sum(slots)

    args = [x2d, eig, packed] + weight_args + big_args
    in_specs = [VMEM_SPEC] * (3 + len(weight_args)) + [ANY_SPEC] * len(big_args)
    scratch_shapes = [pltpu.VMEM(w.shape, w.dtype) for w in big_args]
    scratch_shapes.append(pltpu.SemaphoreType.DMA((len(big_args),)))

    out = pl.pallas_call(
        functools.partial(_ae_kernel, B=B, N=N, offsets=offsets,
                          out_slots=tuple(slots)),
        out_shape=jax.ShapeDtypeStruct((B, total), jnp.float32),
        in_specs=in_specs,
        out_specs=VMEM_SPEC,
        scratch_shapes=scratch_shapes,
    )(*args)

    o1 = slots[0]
    o2 = o1 + slots[1]
    o3 = o2 + slots[2]
    mesh_rec = out[:, :N * 3].reshape(B, N, 3)
    eval_rec = out[:, o1:o1 + N_EVALS]
    lat_rec = out[:, o2:o2 + N_UNITS]
    lat = out[:, o3:o3 + N_UNITS]
    return mesh_rec, eval_rec, lat_rec, lat


# ----------------------------------------------------------- parameter init -
def _init_linear(key, din, dout):
    kw, kb = jax.random.split(key)
    lim = 1.0 / np.sqrt(din)
    w = jax.random.uniform(kw, (din, dout), jnp.float32, -lim, lim)
    b = jax.random.uniform(kb, (1, dout), jnp.float32, -lim, lim)
    return w, b


def _init_bn(key, dim):
    kg, kb = jax.random.split(key)
    g = 1.0 + 0.05 * jax.random.normal(kg, (1, dim), dtype=jnp.float32)
    b = 0.05 * jax.random.normal(kb, (1, dim), dtype=jnp.float32)
    return g, b


def init_encoder(key):
    ks = jax.random.split(key, 6)
    w1, b1 = _init_linear(ks[0], 3, 64)          # conv1 weight (64,1,1,3) -> (3,64)
    g1, be1 = _init_bn(ks[1], 64)
    w2, b2 = _init_linear(ks[2], 64, 128)        # conv2 weight (128,64,1,1) -> (64,128)
    g2, be2 = _init_bn(ks[3], 128)
    wl1, bl1 = _init_linear(ks[4], 128, 64)
    wl2, bl2 = _init_linear(ks[5], 64, N_UNITS)
    bf16 = jnp.bfloat16
    return dict(w1=w1.astype(bf16), b1=b1, g1=g1, be1=be1,
                w2=w2.astype(bf16), b2=b2, g2=g2, be2=be2,
                wl1=wl1.astype(bf16), bl1=bl1,
                wl2=wl2.astype(bf16), bl2=bl2)


def init_decoder(key, n_points, latent_dim):
    k1, k2 = jax.random.split(key)
    w1, b1 = _init_linear(k1, latent_dim, DEC_LAYERS[0])
    wo, bo = _init_linear(k2, DEC_LAYERS[0], n_points * 3)
    return dict(w1=w1.astype(jnp.bfloat16), b1=b1,
                wo=wo.astype(jnp.bfloat16), bo=bo)


def init_mlp(key, in_dim, hidden_dims, out_dim):
    keys = jax.random.split(key, 2 * len(hidden_dims) + 2)
    bn0_g, bn0_b = _init_bn(keys[0], in_dim)
    hidden, d = [], in_dim
    for i, n in enumerate(hidden_dims):
        w, b = _init_linear(keys[1 + 2 * i], d, n)
        g, be = _init_bn(keys[2 + 2 * i], n)
        hidden.append((w.astype(jnp.bfloat16), b, g, be))
        d = n
    wo, bo = _init_linear(keys[-1], d, out_dim)
    return dict(bn0_g=bn0_g, bn0_b=bn0_b, hidden=hidden,
                wo=wo.astype(jnp.bfloat16), bo=bo)


# ----------------------------------------------------------------------- main
if __name__ == "__main__":
    key = jax.random.PRNGKey(0)
    kx, keig, kp = jax.random.split(key, 3)
    x = jax.random.normal(kx, (BATCH, N_POINTS, 3), dtype=jnp.float32)
    eig = jax.random.normal(keig, (BATCH, N_EVALS), dtype=jnp.float32)

    kenc, kdec, kn1, kn2 = jax.random.split(kp, 4)
    params = dict(
        enc=init_encoder(kenc),
        dec=init_decoder(kdec, N_POINTS, N_UNITS),
        n1=init_mlp(kn1, N_EVALS, N1_LAYERS, N_UNITS),
        n2=init_mlp(kn2, N_UNITS, N1_LAYERS, N_EVALS),
    )

    mesh_rec, eval_rec, lat_rec, lat = jax.jit(ae_forward)(x, eig, params)
    jax.block_until_ready((mesh_rec, eval_rec, lat_rec, lat))

    assert mesh_rec.shape == (BATCH, N_POINTS, 3)
    assert eval_rec.shape == (BATCH, N_EVALS)
    assert lat_rec.shape == (BATCH, N_UNITS)
    assert lat.shape == (BATCH, N_UNITS)
    assert all(bool(jnp.all(jnp.isfinite(a)))
               for a in (mesh_rec, eval_rec, lat_rec, lat))
    print("KERNEL_OK")
</pallas_src>

<mosaic_0001>
module attributes {stable_mosaic.version = 11 : i64} {
  func.func @_ae_kernel(%arg0: memref<32x3xf32, #tpu.memory_space<vmem>>, %arg1: memref<2x30xf32, #tpu.memory_space<vmem>>, %arg2: memref<1x15232xf32, #tpu.memory_space<vmem>>, %arg3: memref<3x64xbf16, #tpu.memory_space<vmem>>, %arg4: memref<64x128xbf16, #tpu.memory_space<vmem>>, %arg5: memref<128x64xbf16, #tpu.memory_space<vmem>>, %arg6: memref<64x30xbf16, #tpu.memory_space<vmem>>, %arg7: memref<30x200xbf16, #tpu.memory_space<vmem>>, %arg8: memref<200x48xbf16, #tpu.memory_space<vmem>>, %arg9: memref<30x80xbf16, #tpu.memory_space<vmem>>, %arg10: memref<80x160xbf16, #tpu.memory_space<vmem>>, %arg11: memref<160x320xbf16, #tpu.memory_space<vmem>>, %arg12: memref<320x160xbf16, #tpu.memory_space<vmem>>, %arg13: memref<160x80xbf16, #tpu.memory_space<vmem>>, %arg14: memref<80x30xbf16, #tpu.memory_space<vmem>>, %arg15: memref<30x80xbf16, #tpu.memory_space<vmem>>, %arg16: memref<80x160xbf16, #tpu.memory_space<vmem>>, %arg17: memref<160x320xbf16, #tpu.memory_space<vmem>>, %arg18: memref<320x160xbf16, #tpu.memory_space<vmem>>, %arg19: memref<160x80xbf16, #tpu.memory_space<vmem>>, %arg20: memref<80x30xbf16, #tpu.memory_space<vmem>>, %arg21: memref<320x640xbf16, #tpu.memory_space<any>>, %arg22: memref<320x640xbf16, #tpu.memory_space<any>>, %arg23: memref<640x320xbf16, #tpu.memory_space<any>>, %arg24: memref<640x320xbf16, #tpu.memory_space<any>>, %arg25: memref<2x256xf32, #tpu.memory_space<vmem>>, %arg26: memref<320x640xbf16, #tpu.memory_space<vmem>>, %arg27: memref<320x640xbf16, #tpu.memory_space<vmem>>, %arg28: memref<640x320xbf16, #tpu.memory_space<vmem>>, %arg29: memref<640x320xbf16, #tpu.memory_space<vmem>>, %arg30: memref<4x!tpu.dma_semaphore, #tpu.memory_space<semaphore_mem>>) attributes {dimension_semantics = [], scalar_prefetch = 0 : i64, scratch_operands = 5 : i64, tpu.core_type = #tpu.core_type<tc>} {
    %c0_i32 = arith.constant 0 : i32
    %0 = tpu.memref_slice %arg30[%c0_i32] : memref<4x!tpu.dma_semaphore, #tpu.memory_space<semaphore_mem>> -> memref<1x!tpu.dma_semaphore, #tpu.memory_space<semaphore_mem>>
    %1 = tpu.memref_squeeze %0 : memref<1x!tpu.dma_semaphore, #tpu.memory_space<semaphore_mem>> -> memref<!tpu.dma_semaphore, #tpu.memory_space<semaphore_mem>>
    tpu.enqueue_dma source(%arg21 : memref<320x640xbf16, #tpu.memory_space<any>>) target(%arg26 : memref<320x640xbf16, #tpu.memory_space<vmem>>) target_semaphore(%1 : memref<!tpu.dma_semaphore, #tpu.memory_space<semaphore_mem>>)
    %c1_i32 = arith.constant 1 : i32
    %2 = tpu.memref_slice %arg30[%c1_i32] : memref<4x!tpu.dma_semaphore, #tpu.memory_space<semaphore_mem>> -> memref<1x!tpu.dma_semaphore, #tpu.memory_space<semaphore_mem>>
    %3 = tpu.memref_squeeze %2 : memref<1x!tpu.dma_semaphore, #tpu.memory_space<semaphore_mem>> -> memref<!tpu.dma_semaphore, #tpu.memory_space<semaphore_mem>>
    tpu.enqueue_dma source(%arg22 : memref<320x640xbf16, #tpu.memory_space<any>>) target(%arg27 : memref<320x640xbf16, #tpu.memory_space<vmem>>) target_semaphore(%3 : memref<!tpu.dma_semaphore, #tpu.memory_space<semaphore_mem>>)
    %c2_i32 = arith.constant 2 : i32
    %4 = tpu.memref_slice %arg30[%c2_i32] : memref<4x!tpu.dma_semaphore, #tpu.memory_space<semaphore_mem>> -> memref<1x!tpu.dma_semaphore, #tpu.memory_space<semaphore_mem>>
    %5 = tpu.memref_squeeze %4 : memref<1x!tpu.dma_semaphore, #tpu.memory_space<semaphore_mem>> -> memref<!tpu.dma_semaphore, #tpu.memory_space<semaphore_mem>>
    tpu.enqueue_dma source(%arg23 : memref<640x320xbf16, #tpu.memory_space<any>>) target(%arg28 : memref<640x320xbf16, #tpu.memory_space<vmem>>) target_semaphore(%5 : memref<!tpu.dma_semaphore, #tpu.memory_space<semaphore_mem>>)
    %c3_i32 = arith.constant 3 : i32
    %6 = tpu.memref_slice %arg30[%c3_i32] : memref<4x!tpu.dma_semaphore, #tpu.memory_space<semaphore_mem>> -> memref<1x!tpu.dma_semaphore, #tpu.memory_space<semaphore_mem>>
    %7 = tpu.memref_squeeze %6 : memref<1x!tpu.dma_semaphore, #tpu.memory_space<semaphore_mem>> -> memref<!tpu.dma_semaphore, #tpu.memory_space<semaphore_mem>>
    tpu.enqueue_dma source(%arg24 : memref<640x320xbf16, #tpu.memory_space<any>>) target(%arg29 : memref<640x320xbf16, #tpu.memory_space<vmem>>) target_semaphore(%7 : memref<!tpu.dma_semaphore, #tpu.memory_space<semaphore_mem>>)
    %c0 = arith.constant 0 : index
    %c0_0 = arith.constant 0 : index
    %8 = vector.load %arg0[%c0, %c0_0] : memref<32x3xf32, #tpu.memory_space<vmem>>, vector<32x3xf32>
    %c0_1 = arith.constant 0 : index
    %c0_2 = arith.constant 0 : index
    %9 = vector.load %arg3[%c0_1, %c0_2] : memref<3x64xbf16, #tpu.memory_space<vmem>>, vector<3x64xbf16>
    %10 = arith.truncf %8 : vector<32x3xf32> to vector<32x3xbf16>
    %cst = arith.constant dense<0.000000e+00> : vector<32x64xf32>
    %11 = tpu.matmul %10, %9, %cst {dimension_numbers = #tpu.dot_dimension_numbers<[1], [0], [0], [1], [0, 0, 1, 1], [], []>} : vector<32x3xbf16>, vector<3x64xbf16>, vector<32x64xf32> -> vector<32x64xf32>
    %c0_3 = arith.constant 0 : index
    %c0_4 = arith.constant 0 : index
    %12 = vector.load %arg2[%c0_3, %c0_4] : memref<1x15232xf32, #tpu.memory_space<vmem>>, vector<1x64xf32>
    %13 = vector.broadcast %12 : vector<1x64xf32> to vector<32x64xf32>
    %14 = arith.addf %11, %13 : vector<32x64xf32>
    %c0_5 = arith.constant 0 : index
    %c128 = arith.constant 128 : index
    %15 = vector.load %arg2[%c0_5, %c128] : memref<1x15232xf32, #tpu.memory_space<vmem>>, vector<1x64xf32>
    %c0_6 = arith.constant 0 : index
    %c256 = arith.constant 256 : index
    %16 = vector.load %arg2[%c0_6, %c256] : memref<1x15232xf32, #tpu.memory_space<vmem>>, vector<1x64xf32>
    %cst_7 = arith.constant dense<0.000000e+00> : vector<64xf32>
    %17 = vector.multi_reduction <add>, %14, %cst_7 [0] : vector<32x64xf32> to vector<64xf32>
    %18 = vector.shape_cast %17 : vector<64xf32> to vector<1x64xf32>
    %cst_8 = arith.constant 3.200000e+01 : f32
    %19 = vector.broadcast %cst_8 : f32 to vector<1x64xf32>
    %20 = arith.divf %18, %19 : vector<1x64xf32>
    %21 = vector.broadcast %20 : vector<1x64xf32> to vector<32x64xf32>
    %22 = arith.subf %14, %21 : vector<32x64xf32>
    %23 = arith.mulf %22, %22 : vector<32x64xf32>
    %cst_9 = arith.constant dense<0.000000e+00> : vector<64xf32>
    %24 = vector.multi_reduction <add>, %23, %cst_9 [0] : vector<32x64xf32> to vector<64xf32>
    %25 = vector.shape_cast %24 : vector<64xf32> to vector<1x64xf32>
    %cst_10 = arith.constant 3.200000e+01 : f32
    %26 = vector.broadcast %cst_10 : f32 to vector<1x64xf32>
    %27 = arith.divf %25, %26 : vector<1x64xf32>
    %28 = vector.broadcast %20 : vector<1x64xf32> to vector<32x64xf32>
    %29 = arith.subf %14, %28 : vector<32x64xf32>
    %cst_11 = arith.constant 9.99999974E-6 : f32
    %30 = vector.broadcast %cst_11 : f32 to vector<1x64xf32>
    %31 = arith.addf %27, %30 : vector<1x64xf32>
    %32 = math.rsqrt %31 : vector<1x64xf32>
    %33 = vector.broadcast %32 : vector<1x64xf32> to vector<32x64xf32>
    %34 = arith.mulf %29, %33 : vector<32x64xf32>
    %35 = vector.broadcast %15 : vector<1x64xf32> to vector<32x64xf32>
    %36 = arith.mulf %34, %35 : vector<32x64xf32>
    %37 = vector.broadcast %16 : vector<1x64xf32> to vector<32x64xf32>
    %38 = arith.addf %36, %37 : vector<32x64xf32>
    %c0_12 = arith.constant 0 : index
    %c0_13 = arith.constant 0 : index
    %39 = vector.load %arg4[%c0_12, %c0_13] : memref<64x128xbf16, #tpu.memory_space<vmem>>, vector<64x128xbf16>
    %40 = arith.truncf %38 : vector<32x64xf32> to vector<32x64xbf16>
    %cst_14 = arith.constant dense<0.000000e+00> : vector<32x128xf32>
    %41 = tpu.matmul %40, %39, %cst_14 {dimension_numbers = #tpu.dot_dimension_numbers<[1], [0], [0], [1], [0, 0, 1, 1], [], []>} : vector<32x64xbf16>, vector<64x128xbf16>, vector<32x128xf32> -> vector<32x128xf32>
    %c0_15 = arith.constant 0 : index
    %c384 = arith.constant 384 : index
    %42 = vector.load %arg2[%c0_15, %c384] : memref<1x15232xf32, #tpu.memory_space<vmem>>, vector<1x128xf32>
    %43 = vector.broadcast %42 : vector<1x128xf32> to vector<32x128xf32>
    %44 = arith.addf %41, %43 : vector<32x128xf32>
    %c0_16 = arith.constant 0 : index
    %c512 = arith.constant 512 : index
    %45 = vector.load %arg2[%c0_16, %c512] : memref<1x15232xf32, #tpu.memory_space<vmem>>, vector<1x128xf32>
    %c0_17 = arith.constant 0 : index
    %c640 = arith.constant 640 : index
    %46 = vector.load %arg2[%c0_17, %c640] : memref<1x15232xf32, #tpu.memory_space<vmem>>, vector<1x128xf32>
    %cst_18 = arith.constant dense<0.000000e+00> : vector<128xf32>
    %47 = vector.multi_reduction <add>, %44, %cst_18 [0] : vector<32x128xf32> to vector<128xf32>
    %48 = vector.shape_cast %47 : vector<128xf32> to vector<1x128xf32>
    %cst_19 = arith.constant 3.200000e+01 : f32
    %49 = vector.broadcast %cst_19 : f32 to vector<1x128xf32>
    %50 = arith.divf %48, %49 : vector<1x128xf32>
    %51 = vector.broadcast %50 : vector<1x128xf32> to vector<32x128xf32>
    %52 = arith.subf %44, %51 : vector<32x128xf32>
    %53 = arith.mulf %52, %52 : vector<32x128xf32>
    %cst_20 = arith.constant dense<0.000000e+00> : vector<128xf32>
    %54 = vector.multi_reduction <add>, %53, %cst_20 [0] : vector<32x128xf32> to vector<128xf32>
    %55 = vector.shape_cast %54 : vector<128xf32> to vector<1x128xf32>
    %cst_21 = arith.constant 3.200000e+01 : f32
    %56 = vector.broadcast %cst_21 : f32 to vector<1x128xf32>
    %57 = arith.divf %55, %56 : vector<1x128xf32>
    %58 = vector.broadcast %50 : vector<1x128xf32> to vector<32x128xf32>
    %59 = arith.subf %44, %58 : vector<32x128xf32>
    %cst_22 = arith.constant 9.99999974E-6 : f32
    %60 = vector.broadcast %cst_22 : f32 to vector<1x128xf32>
    %61 = arith.addf %57, %60 : vector<1x128xf32>
    %62 = math.rsqrt %61 : vector<1x128xf32>
    %63 = vector.broadcast %62 : vector<1x128xf32> to vector<32x128xf32>
    %64 = arith.mulf %59, %63 : vector<32x128xf32>
    %65 = vector.broadcast %45 : vector<1x128xf32> to vector<32x128xf32>
    %66 = arith.mulf %64, %65 : vector<32x128xf32>
    %67 = vector.broadcast %46 : vector<1x128xf32> to vector<32x128xf32>
    %68 = arith.addf %66, %67 : vector<32x128xf32>
    %69 = vector.shape_cast %68 : vector<32x128xf32> to vector<2x16x128xf32>
    %cst_23 = arith.constant dense<0xFF800000> : vector<2x128xf32>
    %70 = vector.multi_reduction <maximumf>, %69, %cst_23 [1] : vector<2x16x128xf32> to vector<2x128xf32>
    %c0_24 = arith.constant 0 : index
    %c0_25 = arith.constant 0 : index
    %71 = vector.load %arg5[%c0_24, %c0_25] : memref<128x64xbf16, #tpu.memory_space<vmem>>, vector<128x64xbf16>
    %72 = arith.truncf %70 : vector<2x128xf32> to vector<2x128xbf16>
    %cst_26 = arith.constant dense<0.000000e+00> : vector<2x64xf32>
    %73 = tpu.matmul %72, %71, %cst_26 {dimension_numbers = #tpu.dot_dimension_numbers<[1], [0], [0], [1], [0, 0, 1, 1], [], []>} : vector<2x128xbf16>, vector<128x64xbf16>, vector<2x64xf32> -> vector<2x64xf32>
    %c0_27 = arith.constant 0 : index
    %c768 = arith.constant 768 : index
    %74 = vector.load %arg2[%c0_27, %c768] : memref<1x15232xf32, #tpu.memory_space<vmem>>, vector<1x64xf32>
    %75 = vector.broadcast %74 : vector<1x64xf32> to vector<2x64xf32>
    %76 = arith.addf %73, %75 : vector<2x64xf32>
    %77 = math.tanh %76 : vector<2x64xf32>
    %c0_28 = arith.constant 0 : index
    %c0_29 = arith.constant 0 : index
    %78 = vector.load %arg6[%c0_28, %c0_29] : memref<64x30xbf16, #tpu.memory_space<vmem>>, vector<64x30xbf16>
    %79 = arith.truncf %77 : vector<2x64xf32> to vector<2x64xbf16>
    %cst_30 = arith.constant dense<0.000000e+00> : vector<2x30xf32>
    %80 = tpu.matmul %79, %78, %cst_30 {dimension_numbers = #tpu.dot_dimension_numbers<[1], [0], [0], [1], [0, 0, 1, 1], [], []>} : vector<2x64xbf16>, vector<64x30xbf16>, vector<2x30xf32> -> vector<2x30xf32>
    %c0_31 = arith.constant 0 : index
    %c896 = arith.constant 896 : index
    %81 = vector.load %arg2[%c0_31, %c896] : memref<1x15232xf32, #tpu.memory_space<vmem>>, vector<1x30xf32>
    %82 = vector.broadcast %81 : vector<1x30xf32> to vector<2x30xf32>
    %83 = arith.addf %80, %82 : vector<2x30xf32>
    %84 = math.tanh %83 : vector<2x30xf32>
    %c0_32 = arith.constant 0 : index
    %c0_33 = arith.constant 0 : index
    %85 = vector.load %arg7[%c0_32, %c0_33] : memref<30x200xbf16, #tpu.memory_space<vmem>>, vector<30x200xbf16>
    %86 = arith.truncf %84 : vector<2x30xf32> to vector<2x30xbf16>
    %cst_34 = arith.constant dense<0.000000e+00> : vector<2x200xf32>
    %87 = tpu.matmul %86, %85, %cst_34 {dimension_numbers = #tpu.dot_dimension_numbers<[1], [0], [0], [1], [0, 0, 1, 1], [], []>} : vector<2x30xbf16>, vector<30x200xbf16>, vector<2x200xf32> -> vector<2x200xf32>
    %c0_35 = arith.constant 0 : index
    %c1024 = arith.constant 1024 : index
    %88 = vector.load %arg2[%c0_35, %c1024] : memref<1x15232xf32, #tpu.memory_space<vmem>>, vector<1x200xf32>
    %89 = vector.broadcast %88 : vector<1x200xf32> to vector<2x200xf32>
    %90 = arith.addf %87, %89 : vector<2x200xf32>
    %91 = math.tanh %90 : vector<2x200xf32>
    %c0_36 = arith.constant 0 : index
    %c0_37 = arith.constant 0 : index
    %92 = vector.load %arg8[%c0_36, %c0_37] : memref<200x48xbf16, #tpu.memory_space<vmem>>, vector<200x48xbf16>
    %93 = arith.truncf %91 : vector<2x200xf32> to vector<2x200xbf16>
    %cst_38 = arith.constant dense<0.000000e+00> : vector<2x48xf32>
    %94 = tpu.matmul %93, %92, %cst_38 {dimension_numbers = #tpu.dot_dimension_numbers<[1], [0], [0], [1], [0, 0, 1, 1], [], []>} : vector<2x200xbf16>, vector<200x48xbf16>, vector<2x48xf32> -> vector<2x48xf32>
    %c0_39 = arith.constant 0 : index
    %c1280 = arith.constant 1280 : index
    %95 = vector.load %arg2[%c0_39, %c1280] : memref<1x15232xf32, #tpu.memory_space<vmem>>, vector<1x48xf32>
    %96 = vector.broadcast %95 : vector<1x48xf32> to vector<2x48xf32>
    %97 = arith.addf %94, %96 : vector<2x48xf32>
    %c0_40 = arith.constant 0 : index
    %c0_41 = arith.constant 0 : index
    %98 = vector.load %arg1[%c0_40, %c0_41] : memref<2x30xf32, #tpu.memory_space<vmem>>, vector<2x30xf32>
    %c0_42 = arith.constant 0 : index
    %c1408 = arith.constant 1408 : index
    %99 = vector.load %arg2[%c0_42, %c1408] : memref<1x15232xf32, #tpu.memory_space<vmem>>, vector<1x30xf32>
    %c0_43 = arith.constant 0 : index
    %c1536 = arith.constant 1536 : index
    %100 = vector.load %arg2[%c0_43, %c1536] : memref<1x15232xf32, #tpu.memory_space<vmem>>, vector<1x30xf32>
    %cst_44 = arith.constant dense<0.000000e+00> : vector<30xf32>
    %101 = vector.multi_reduction <add>, %98, %cst_44 [0] : vector<2x30xf32> to vector<30xf32>
    %102 = vector.shape_cast %101 : vector<30xf32> to vector<1x30xf32>
    %cst_45 = arith.constant 2.000000e+00 : f32
    %103 = vector.broadcast %cst_45 : f32 to vector<1x30xf32>
    %104 = arith.divf %102, %103 : vector<1x30xf32>
    %105 = vector.broadcast %104 : vector<1x30xf32> to vector<2x30xf32>
    %106 = arith.subf %98, %105 : vector<2x30xf32>
    %107 = arith.mulf %106, %106 : vector<2x30xf32>
    %cst_46 = arith.constant dense<0.000000e+00> : vector<30xf32>
    %108 = vector.multi_reduction <add>, %107, %cst_46 [0] : vector<2x30xf32> to vector<30xf32>
    %109 = vector.shape_cast %108 : vector<30xf32> to vector<1x30xf32>
    %cst_47 = arith.constant 2.000000e+00 : f32
    %110 = vector.broadcast %cst_47 : f32 to vector<1x30xf32>
    %111 = arith.divf %109, %110 : vector<1x30xf32>
    %112 = vector.broadcast %104 : vector<1x30xf32> to vector<2x30xf32>
    %113 = arith.subf %98, %112 : vector<2x30xf32>
    %cst_48 = arith.constant 9.99999974E-6 : f32
    %114 = vector.broadcast %cst_48 : f32 to vector<1x30xf32>
    %115 = arith.addf %111, %114 : vector<1x30xf32>
    %116 = math.rsqrt %115 : vector<1x30xf32>
    %117 = vector.broadcast %116 : vector<1x30xf32> to vector<2x30xf32>
    %118 = arith.mulf %113, %117 : vector<2x30xf32>
    %119 = vector.broadcast %99 : vector<1x30xf32> to vector<2x30xf32>
    %120 = arith.mulf %118, %119 : vector<2x30xf32>
    %121 = vector.broadcast %100 : vector<1x30xf32> to vector<2x30xf32>
    %122 = arith.addf %120, %121 : vector<2x30xf32>
    %c0_49 = arith.constant 0 : index
    %c8320 = arith.constant 8320 : index
    %123 = vector.load %arg2[%c0_49, %c8320] : memref<1x15232xf32, #tpu.memory_space<vmem>>, vector<1x30xf32>
    %c0_50 = arith.constant 0 : index
    %c8448 = arith.constant 8448 : index
    %124 = vector.load %arg2[%c0_50, %c8448] : memref<1x15232xf32, #tpu.memory_space<vmem>>, vector<1x30xf32>
    %cst_51 = arith.constant dense<0.000000e+00> : vector<30xf32>
    %125 = vector.multi_reduction <add>, %84, %cst_51 [0] : vector<2x30xf32> to vector<30xf32>
    %126 = vector.shape_cast %125 : vector<30xf32> to vector<1x30xf32>
    %cst_52 = arith.constant 2.000000e+00 : f32
    %127 = vector.broadcast %cst_52 : f32 to vector<1x30xf32>
    %128 = arith.divf %126, %127 : vector<1x30xf32>
    %129 = vector.broadcast %128 : vector<1x30xf32> to vector<2x30xf32>
    %130 = arith.subf %84, %129 : vector<2x30xf32>
    %131 = arith.mulf %130, %130 : vector<2x30xf32>
    %cst_53 = arith.constant dense<0.000000e+00> : vector<30xf32>
    %132 = vector.multi_reduction <add>, %131, %cst_53 [0] : vector<2x30xf32> to vector<30xf32>
    %133 = vector.shape_cast %132 : vector<30xf32> to vector<1x30xf32>
    %cst_54 = arith.constant 2.000000e+00 : f32
    %134 = vector.broadcast %cst_54 : f32 to vector<1x30xf32>
    %135 = arith.divf %133, %134 : vector<1x30xf32>
    %136 = vector.broadcast %128 : vector<1x30xf32> to vector<2x30xf32>
    %137 = arith.subf %84, %136 : vector<2x30xf32>
    %cst_55 = arith.constant 9.99999974E-6 : f32
    %138 = vector.broadcast %cst_55 : f32 to vector<1x30xf32>
    %139 = arith.addf %135, %138 : vector<1x30xf32>
    %140 = math.rsqrt %139 : vector<1x30xf32>
    %141 = vector.broadcast %140 : vector<1x30xf32> to vector<2x30xf32>
    %142 = arith.mulf %137, %141 : vector<2x30xf32>
    %143 = vector.broadcast %123 : vector<1x30xf32> to vector<2x30xf32>
    %144 = arith.mulf %142, %143 : vector<2x30xf32>
    %145 = vector.broadcast %124 : vector<1x30xf32> to vector<2x30xf32>
    %146 = arith.addf %144, %145 : vector<2x30xf32>
    %c0_56 = arith.constant 0 : index
    %c0_57 = arith.constant 0 : index
    %147 = vector.load %arg9[%c0_56, %c0_57] : memref<30x80xbf16, #tpu.memory_space<vmem>>, vector<30x80xbf16>
    %c0_58 = arith.constant 0 : index
    %c0_59 = arith.constant 0 : index
    %148 = vector.load %arg15[%c0_58, %c0_59] : memref<30x80xbf16, #tpu.memory_space<vmem>>, vector<30x80xbf16>
    %149 = arith.truncf %122 : vector<2x30xf32> to vector<2x30xbf16>
    %cst_60 = arith.constant dense<0.000000e+00> : vector<2x80xf32>
    %150 = tpu.matmul %149, %147, %cst_60 {dimension_numbers = #tpu.dot_dimension_numbers<[1], [0], [0], [1], [0, 0, 1, 1], [], []>} : vector<2x30xbf16>, vector<30x80xbf16>, vector<2x80xf32> -> vector<2x80xf32>
    %c0_61 = arith.constant 0 : index
    %c1664 = arith.constant 1664 : index
    %151 = vector.load %arg2[%c0_61, %c1664] : memref<1x15232xf32, #tpu.memory_space<vmem>>, vector<1x80xf32>
    %152 = vector.broadcast %151 : vector<1x80xf32> to vector<2x80xf32>
    %153 = arith.addf %150, %152 : vector<2x80xf32>
    %154 = arith.truncf %146 : vector<2x30xf32> to vector<2x30xbf16>
    %cst_62 = arith.constant dense<0.000000e+00> : vector<2x80xf32>
    %155 = tpu.matmul %154, %148, %cst_62 {dimension_numbers = #tpu.dot_dimension_numbers<[1], [0], [0], [1], [0, 0, 1, 1], [], []>} : vector<2x30xbf16>, vector<30x80xbf16>, vector<2x80xf32> -> vector<2x80xf32>
    %c0_63 = arith.constant 0 : index
    %c8576 = arith.constant 8576 : index
    %156 = vector.load %arg2[%c0_63, %c8576] : memref<1x15232xf32, #tpu.memory_space<vmem>>, vector<1x80xf32>
    %157 = vector.broadcast %156 : vector<1x80xf32> to vector<2x80xf32>
    %158 = arith.addf %155, %157 : vector<2x80xf32>
    %159 = tpu.concatenate %153, %158 in 1 : vector<2x80xf32>, vector<2x80xf32> -> vector<2x160xf32>
    %cst_64 = arith.constant 0.000000e+00 : f32
    %160 = vector.broadcast %cst_64 : f32 to vector<2x160xf32>
    %161 = arith.cmpf ogt, %159, %160 : vector<2x160xf32>
    %162 = math.exp %159 : vector<2x160xf32>
    %cst_65 = arith.constant 1.000000e+00 : f32
    %163 = vector.broadcast %cst_65 : f32 to vector<2x160xf32>
    %164 = arith.subf %162, %163 : vector<2x160xf32>
    %cst_66 = arith.constant 1.67326319 : f32
    %165 = vector.broadcast %cst_66 : f32 to vector<2x160xf32>
    %166 = arith.mulf %165, %164 : vector<2x160xf32>
    %167 = arith.select %161, %159, %166 : vector<2x160xi1>, vector<2x160xf32>
    %cst_67 = arith.constant 1.05070102 : f32
    %168 = vector.broadcast %cst_67 : f32 to vector<2x160xf32>
    %169 = arith.mulf %168, %167 : vector<2x160xf32>
    %c0_68 = arith.constant 0 : index
    %c1792 = arith.constant 1792 : index
    %170 = vector.load %arg2[%c0_68, %c1792] : memref<1x15232xf32, #tpu.memory_space<vmem>>, vector<1x80xf32>
    %c0_69 = arith.constant 0 : index
    %c8704 = arith.constant 8704 : index
    %171 = vector.load %arg2[%c0_69, %c8704] : memref<1x15232xf32, #tpu.memory_space<vmem>>, vector<1x80xf32>
    %172 = tpu.concatenate %170, %171 in 1 : vector<1x80xf32>, vector<1x80xf32> -> vector<1x160xf32>
    %c0_70 = arith.constant 0 : index
    %c1920 = arith.constant 1920 : index
    %173 = vector.load %arg2[%c0_70, %c1920] : memref<1x15232xf32, #tpu.memory_space<vmem>>, vector<1x80xf32>
    %c0_71 = arith.constant 0 : index
    %c8832 = arith.constant 8832 : index
    %174 = vector.load %arg2[%c0_71, %c8832] : memref<1x15232xf32, #tpu.memory_space<vmem>>, vector<1x80xf32>
    %175 = tpu.concatenate %173, %174 in 1 : vector<1x80xf32>, vector<1x80xf32> -> vector<1x160xf32>
    %cst_72 = arith.constant dense<0.000000e+00> : vector<160xf32>
    %176 = vector.multi_reduction <add>, %169, %cst_72 [0] : vector<2x160xf32> to vector<160xf32>
    %177 = vector.shape_cast %176 : vector<160xf32> to vector<1x160xf32>
    %cst_73 = arith.constant 2.000000e+00 : f32
    %178 = vector.broadcast %cst_73 : f32 to vector<1x160xf32>
    %179 = arith.divf %177, %178 : vector<1x160xf32>
    %180 = vector.broadcast %179 : vector<1x160xf32> to vector<2x160xf32>
    %181 = arith.subf %169, %180 : vector<2x160xf32>
    %182 = arith.mulf %181, %181 : vector<2x160xf32>
    %cst_74 = arith.constant dense<0.000000e+00> : vector<160xf32>
    %183 = vector.multi_reduction <add>, %182, %cst_74 [0] : vector<2x160xf32> to vector<160xf32>
    %184 = vector.shape_cast %183 : vector<160xf32> to vector<1x160xf32>
    %cst_75 = arith.constant 2.000000e+00 : f32
    %185 = vector.broadcast %cst_75 : f32 to vector<1x160xf32>
    %186 = arith.divf %184, %185 : vector<1x160xf32>
    %187 = vector.broadcast %179 : vector<1x160xf32> to vector<2x160xf32>
    %188 = arith.subf %169, %187 : vector<2x160xf32>
    %cst_76 = arith.constant 9.99999974E-6 : f32
    %189 = vector.broadcast %cst_76 : f32 to vector<1x160xf32>
    %190 = arith.addf %186, %189 : vector<1x160xf32>
    %191 = math.rsqrt %190 : vector<1x160xf32>
    %192 = vector.broadcast %191 : vector<1x160xf32> to vector<2x160xf32>
    %193 = arith.mulf %188, %192 : vector<2x160xf32>
    %194 = vector.broadcast %172 : vector<1x160xf32> to vector<2x160xf32>
    %195 = arith.mulf %193, %194 : vector<2x160xf32>
    %196 = vector.broadcast %175 : vector<1x160xf32> to vector<2x160xf32>
    %197 = arith.addf %195, %196 : vector<2x160xf32>
    %198 = vector.extract_strided_slice %197 {offsets = [0, 0], sizes = [2, 80], strides = [1, 1]} : vector<2x160xf32> to vector<2x80xf32>
    %199 = vector.extract_strided_slice %197 {offsets = [0, 80], sizes = [2, 80], strides = [1, 1]} : vector<2x160xf32> to vector<2x80xf32>
    %c0_77 = arith.constant 0 : index
    %c0_78 = arith.constant 0 : index
    %200 = vector.load %arg10[%c0_77, %c0_78] : memref<80x160xbf16, #tpu.memory_space<vmem>>, vector<80x160xbf16>
    %c0_79 = arith.constant 0 : index
    %c0_80 = arith.constant 0 : index
    %201 = vector.load %arg16[%c0_79, %c0_80] : memref<80x160xbf16, #tpu.memory_space<vmem>>, vector<80x160xbf16>
    %202 = arith.truncf %198 : vector<2x80xf32> to vector<2x80xbf16>
    %cst_81 = arith.constant dense<0.000000e+00> : vector<2x160xf32>
    %203 = tpu.matmul %202, %200, %cst_81 {dimension_numbers = #tpu.dot_dimension_numbers<[1], [0], [0], [1], [0, 0, 1, 1], [], []>} : vector<2x80xbf16>, vector<80x160xbf16>, vector<2x160xf32> -> vector<2x160xf32>
    %c0_82 = arith.constant 0 : index
    %c2048 = arith.constant 2048 : index
    %204 = vector.load %arg2[%c0_82, %c2048] : memref<1x15232xf32, #tpu.memory_space<vmem>>, vector<1x160xf32>
    %205 = vector.broadcast %204 : vector<1x160xf32> to vector<2x160xf32>
    %206 = arith.addf %203, %205 : vector<2x160xf32>
    %207 = arith.truncf %199 : vector<2x80xf32> to vector<2x80xbf16>
    %cst_83 = arith.constant dense<0.000000e+00> : vector<2x160xf32>
    %208 = tpu.matmul %207, %201, %cst_83 {dimension_numbers = #tpu.dot_dimension_numbers<[1], [0], [0], [1], [0, 0, 1, 1], [], []>} : vector<2x80xbf16>, vector<80x160xbf16>, vector<2x160xf32> -> vector<2x160xf32>
    %c0_84 = arith.constant 0 : index
    %c8960 = arith.constant 8960 : index
    %209 = vector.load %arg2[%c0_84, %c8960] : memref<1x15232xf32, #tpu.memory_space<vmem>>, vector<1x160xf32>
    %210 = vector.broadcast %209 : vector<1x160xf32> to vector<2x160xf32>
    %211 = arith.addf %208, %210 : vector<2x160xf32>
    %212 = tpu.concatenate %206, %211 in 1 : vector<2x160xf32>, vector<2x160xf32> -> vector<2x320xf32>
    %cst_85 = arith.constant 0.000000e+00 : f32
    %213 = vector.broadcast %cst_85 : f32 to vector<2x320xf32>
    %214 = arith.cmpf ogt, %212, %213 : vector<2x320xf32>
    %215 = math.exp %212 : vector<2x320xf32>
    %cst_86 = arith.constant 1.000000e+00 : f32
    %216 = vector.broadcast %cst_86 : f32 to vector<2x320xf32>
    %217 = arith.subf %215, %216 : vector<2x320xf32>
    %cst_87 = arith.constant 1.67326319 : f32
    %218 = vector.broadcast %cst_87 : f32 to vector<2x320xf32>
    %219 = arith.mulf %218, %217 : vector<2x320xf32>
    %220 = arith.select %214, %212, %219 : vector<2x320xi1>, vector<2x320xf32>
    %cst_88 = arith.constant 1.05070102 : f32
    %221 = vector.broadcast %cst_88 : f32 to vector<2x320xf32>
    %222 = arith.mulf %221, %220 : vector<2x320xf32>
    %c0_89 = arith.constant 0 : index
    %c2304 = arith.constant 2304 : index
    %223 = vector.load %arg2[%c0_89, %c2304] : memref<1x15232xf32, #tpu.memory_space<vmem>>, vector<1x160xf32>
    %c0_90 = arith.constant 0 : index
    %c9216 = arith.constant 9216 : index
    %224 = vector.load %arg2[%c0_90, %c9216] : memref<1x15232xf32, #tpu.memory_space<vmem>>, vector<1x160xf32>
    %225 = tpu.concatenate %223, %224 in 1 : vector<1x160xf32>, vector<1x160xf32> -> vector<1x320xf32>
    %c0_91 = arith.constant 0 : index
    %c2560 = arith.constant 2560 : index
    %226 = vector.load %arg2[%c0_91, %c2560] : memref<1x15232xf32, #tpu.memory_space<vmem>>, vector<1x160xf32>
    %c0_92 = arith.constant 0 : index
    %c9472 = arith.constant 9472 : index
    %227 = vector.load %arg2[%c0_92, %c9472] : memref<1x15232xf32, #tpu.memory_space<vmem>>, vector<1x160xf32>
    %228 = tpu.concatenate %226, %227 in 1 : vector<1x160xf32>, vector<1x160xf32> -> vector<1x320xf32>
    %cst_93 = arith.constant dense<0.000000e+00> : vector<320xf32>
    %229 = vector.multi_reduction <add>, %222, %cst_93 [0] : vector<2x320xf32> to vector<320xf32>
    %230 = vector.shape_cast %229 : vector<320xf32> to vector<1x320xf32>
    %cst_94 = arith.constant 2.000000e+00 : f32
    %231 = vector.broadcast %cst_94 : f32 to vector<1x320xf32>
    %232 = arith.divf %230, %231 : vector<1x320xf32>
    %233 = vector.broadcast %232 : vector<1x320xf32> to vector<2x320xf32>
    %234 = arith.subf %222, %233 : vector<2x320xf32>
    %235 = arith.mulf %234, %234 : vector<2x320xf32>
    %cst_95 = arith.constant dense<0.000000e+00> : vector<320xf32>
    %236 = vector.multi_reduction <add>, %235, %cst_95 [0] : vector<2x320xf32> to vector<320xf32>
    %237 = vector.shape_cast %236 : vector<320xf32> to vector<1x320xf32>
    %cst_96 = arith.constant 2.000000e+00 : f32
    %238 = vector.broadcast %cst_96 : f32 to vector<1x320xf32>
    %239 = arith.divf %237, %238 : vector<1x320xf32>
    %240 = vector.broadcast %232 : vector<1x320xf32> to vector<2x320xf32>
    %241 = arith.subf %222, %240 : vector<2x320xf32>
    %cst_97 = arith.constant 9.99999974E-6 : f32
    %242 = vector.broadcast %cst_97 : f32 to vector<1x320xf32>
    %243 = arith.addf %239, %242 : vector<1x320xf32>
    %244 = math.rsqrt %243 : vector<1x320xf32>
    %245 = vector.broadcast %244 : vector<1x320xf32> to vector<2x320xf32>
    %246 = arith.mulf %241, %245 : vector<2x320xf32>
    %247 = vector.broadcast %225 : vector<1x320xf32> to vector<2x320xf32>
    %248 = arith.mulf %246, %247 : vector<2x320xf32>
    %249 = vector.broadcast %228 : vector<1x320xf32> to vector<2x320xf32>
    %250 = arith.addf %248, %249 : vector<2x320xf32>
    %251 = vector.extract_strided_slice %250 {offsets = [0, 0], sizes = [2, 160], strides = [1, 1]} : vector<2x320xf32> to vector<2x160xf32>
    %252 = vector.extract_strided_slice %250 {offsets = [0, 160], sizes = [2, 160], strides = [1, 1]} : vector<2x320xf32> to vector<2x160xf32>
    %c0_98 = arith.constant 0 : index
    %c0_99 = arith.constant 0 : index
    %253 = vector.load %arg11[%c0_98, %c0_99] : memref<160x320xbf16, #tpu.memory_space<vmem>>, vector<160x320xbf16>
    %c0_100 = arith.constant 0 : index
    %c0_101 = arith.constant 0 : index
    %254 = vector.load %arg17[%c0_100, %c0_101] : memref<160x320xbf16, #tpu.memory_space<vmem>>, vector<160x320xbf16>
    %255 = arith.truncf %251 : vector<2x160xf32> to vector<2x160xbf16>
    %cst_102 = arith.constant dense<0.000000e+00> : vector<2x320xf32>
    %256 = tpu.matmul %255, %253, %cst_102 {dimension_numbers = #tpu.dot_dimension_numbers<[1], [0], [0], [1], [0, 0, 1, 1], [], []>} : vector<2x160xbf16>, vector<160x320xbf16>, vector<2x320xf32> -> vector<2x320xf32>
    %c0_103 = arith.constant 0 : index
    %c2816 = arith.constant 2816 : index
    %257 = vector.load %arg2[%c0_103, %c2816] : memref<1x15232xf32, #tpu.memory_space<vmem>>, vector<1x320xf32>
    %258 = vector.broadcast %257 : vector<1x320xf32> to vector<2x320xf32>
    %259 = arith.addf %256, %258 : vector<2x320xf32>
    %260 = arith.truncf %252 : vector<2x160xf32> to vector<2x160xbf16>
    %cst_104 = arith.constant dense<0.000000e+00> : vector<2x320xf32>
    %261 = tpu.matmul %260, %254, %cst_104 {dimension_numbers = #tpu.dot_dimension_numbers<[1], [0], [0], [1], [0, 0, 1, 1], [], []>} : vector<2x160xbf16>, vector<160x320xbf16>, vector<2x320xf32> -> vector<2x320xf32>
    %c0_105 = arith.constant 0 : index
    %c9728 = arith.constant 9728 : index
    %262 = vector.load %arg2[%c0_105, %c9728] : memref<1x15232xf32, #tpu.memory_space<vmem>>, vector<1x320xf32>
    %263 = vector.broadcast %262 : vector<1x320xf32> to vector<2x320xf32>
    %264 = arith.addf %261, %263 : vector<2x320xf32>
    %265 = tpu.concatenate %259, %264 in 1 : vector<2x320xf32>, vector<2x320xf32> -> vector<2x640xf32>
    %cst_106 = arith.constant 0.000000e+00 : f32
    %266 = vector.broadcast %cst_106 : f32 to vector<2x640xf32>
    %267 = arith.cmpf ogt, %265, %266 : vector<2x640xf32>
    %268 = math.exp %265 : vector<2x640xf32>
    %cst_107 = arith.constant 1.000000e+00 : f32
    %269 = vector.broadcast %cst_107 : f32 to vector<2x640xf32>
    %270 = arith.subf %268, %269 : vector<2x640xf32>
    %cst_108 = arith.constant 1.67326319 : f32
    %271 = vector.broadcast %cst_108 : f32 to vector<2x640xf32>
    %272 = arith.mulf %271, %270 : vector<2x640xf32>
    %273 = arith.select %267, %265, %272 : vector<2x640xi1>, vector<2x640xf32>
    %cst_109 = arith.constant 1.05070102 : f32
    %274 = vector.broadcast %cst_109 : f32 to vector<2x640xf32>
    %275 = arith.mulf %274, %273 : vector<2x640xf32>
    %c0_110 = arith.constant 0 : index
    %c3200 = arith.constant 3200 : index
    %276 = vector.load %arg2[%c0_110, %c3200] : memref<1x15232xf32, #tpu.memory_space<vmem>>, vector<1x320xf32>
    %c0_111 = arith.constant 0 : index
    %c10112 = arith.constant 10112 : index
    %277 = vector.load %arg2[%c0_111, %c10112] : memref<1x15232xf32, #tpu.memory_space<vmem>>, vector<1x320xf32>
    %278 = tpu.concatenate %276, %277 in 1 : vector<1x320xf32>, vector<1x320xf32> -> vector<1x640xf32>
    %c0_112 = arith.constant 0 : index
    %c3584 = arith.constant 3584 : index
    %279 = vector.load %arg2[%c0_112, %c3584] : memref<1x15232xf32, #tpu.memory_space<vmem>>, vector<1x320xf32>
    %c0_113 = arith.constant 0 : index
    %c10496 = arith.constant 10496 : index
    %280 = vector.load %arg2[%c0_113, %c10496] : memref<1x15232xf32, #tpu.memory_space<vmem>>, vector<1x320xf32>
    %281 = tpu.concatenate %279, %280 in 1 : vector<1x320xf32>, vector<1x320xf32> -> vector<1x640xf32>
    %cst_114 = arith.constant dense<0.000000e+00> : vector<640xf32>
    %282 = vector.multi_reduction <add>, %275, %cst_114 [0] : vector<2x640xf32> to vector<640xf32>
    %283 = vector.shape_cast %282 : vector<640xf32> to vector<1x640xf32>
    %cst_115 = arith.constant 2.000000e+00 : f32
    %284 = vector.broadcast %cst_115 : f32 to vector<1x640xf32>
    %285 = arith.divf %283, %284 : vector<1x640xf32>
    %286 = vector.broadcast %285 : vector<1x640xf32> to vector<2x640xf32>
    %287 = arith.subf %275, %286 : vector<2x640xf32>
    %288 = arith.mulf %287, %287 : vector<2x640xf32>
    %cst_116 = arith.constant dense<0.000000e+00> : vector<640xf32>
    %289 = vector.multi_reduction <add>, %288, %cst_116 [0] : vector<2x640xf32> to vector<640xf32>
    %290 = vector.shape_cast %289 : vector<640xf32> to vector<1x640xf32>
    %cst_117 = arith.constant 2.000000e+00 : f32
    %291 = vector.broadcast %cst_117 : f32 to vector<1x640xf32>
    %292 = arith.divf %290, %291 : vector<1x640xf32>
    %293 = vector.broadcast %285 : vector<1x640xf32> to vector<2x640xf32>
    %294 = arith.subf %275, %293 : vector<2x640xf32>
    %cst_118 = arith.constant 9.99999974E-6 : f32
    %295 = vector.broadcast %cst_118 : f32 to vector<1x640xf32>
    %296 = arith.addf %292, %295 : vector<1x640xf32>
    %297 = math.rsqrt %296 : vector<1x640xf32>
    %298 = vector.broadcast %297 : vector<1x640xf32> to vector<2x640xf32>
    %299 = arith.mulf %294, %298 : vector<2x640xf32>
    %300 = vector.broadcast %278 : vector<1x640xf32> to vector<2x640xf32>
    %301 = arith.mulf %299, %300 : vector<2x640xf32>
    %302 = vector.broadcast %281 : vector<1x640xf32> to vector<2x640xf32>
    %303 = arith.addf %301, %302 : vector<2x640xf32>
    %304 = vector.extract_strided_slice %303 {offsets = [0, 0], sizes = [2, 320], strides = [1, 1]} : vector<2x640xf32> to vector<2x320xf32>
    %305 = vector.extract_strided_slice %303 {offsets = [0, 320], sizes = [2, 320], strides = [1, 1]} : vector<2x640xf32> to vector<2x320xf32>
    %c0_i32_119 = arith.constant 0 : i32
    %306 = tpu.memref_slice %arg30[%c0_i32_119] : memref<4x!tpu.dma_semaphore, #tpu.memory_space<semaphore_mem>> -> memref<1x!tpu.dma_semaphore, #tpu.memory_space<semaphore_mem>>
    %307 = tpu.memref_squeeze %306 : memref<1x!tpu.dma_semaphore, #tpu.memory_space<semaphore_mem>> -> memref<!tpu.dma_semaphore, #tpu.memory_space<semaphore_mem>>
    tpu.wait_dma2 semaphore(%307 : memref<!tpu.dma_semaphore, #tpu.memory_space<semaphore_mem>>) src(%arg21 : memref<320x640xbf16, #tpu.memory_space<any>>) dst(%arg26 : memref<320x640xbf16, #tpu.memory_space<vmem>>)
    %c1_i32_120 = arith.constant 1 : i32
    %308 = tpu.memref_slice %arg30[%c1_i32_120] : memref<4x!tpu.dma_semaphore, #tpu.memory_space<semaphore_mem>> -> memref<1x!tpu.dma_semaphore, #tpu.memory_space<semaphore_mem>>
    %309 = tpu.memref_squeeze %308 : memref<1x!tpu.dma_semaphore, #tpu.memory_space<semaphore_mem>> -> memref<!tpu.dma_semaphore, #tpu.memory_space<semaphore_mem>>
    tpu.wait_dma2 semaphore(%309 : memref<!tpu.dma_semaphore, #tpu.memory_space<semaphore_mem>>) src(%arg22 : memref<320x640xbf16, #tpu.memory_space<any>>) dst(%arg27 : memref<320x640xbf16, #tpu.memory_space<vmem>>)
    %c0_121 = arith.constant 0 : index
    %c0_122 = arith.constant 0 : index
    %310 = vector.load %arg26[%c0_121, %c0_122] : memref<320x640xbf16, #tpu.memory_space<vmem>>, vector<320x640xbf16>
    %c0_123 = arith.constant 0 : index
    %c0_124 = arith.constant 0 : index
    %311 = vector.load %arg27[%c0_123, %c0_124] : memref<320x640xbf16, #tpu.memory_space<vmem>>, vector<320x640xbf16>
    %312 = arith.truncf %304 : vector<2x320xf32> to vector<2x320xbf16>
    %cst_125 = arith.constant dense<0.000000e+00> : vector<2x640xf32>
    %313 = tpu.matmul %312, %310, %cst_125 {dimension_numbers = #tpu.dot_dimension_numbers<[1], [0], [0], [1], [0, 0, 1, 1], [], []>} : vector<2x320xbf16>, vector<320x640xbf16>, vector<2x640xf32> -> vector<2x640xf32>
    %c0_126 = arith.constant 0 : index
    %c3968 = arith.constant 3968 : index
    %314 = vector.load %arg2[%c0_126, %c3968] : memref<1x15232xf32, #tpu.memory_space<vmem>>, vector<1x640xf32>
    %315 = vector.broadcast %314 : vector<1x640xf32> to vector<2x640xf32>
    %316 = arith.addf %313, %315 : vector<2x640xf32>
    %317 = arith.truncf %305 : vector<2x320xf32> to vector<2x320xbf16>
    %cst_127 = arith.constant dense<0.000000e+00> : vector<2x640xf32>
    %318 = tpu.matmul %317, %311, %cst_127 {dimension_numbers = #tpu.dot_dimension_numbers<[1], [0], [0], [1], [0, 0, 1, 1], [], []>} : vector<2x320xbf16>, vector<320x640xbf16>, vector<2x640xf32> -> vector<2x640xf32>
    %c0_128 = arith.constant 0 : index
    %c10880 = arith.constant 10880 : index
    %319 = vector.load %arg2[%c0_128, %c10880] : memref<1x15232xf32, #tpu.memory_space<vmem>>, vector<1x640xf32>
    %320 = vector.broadcast %319 : vector<1x640xf32> to vector<2x640xf32>
    %321 = arith.addf %318, %320 : vector<2x640xf32>
    %322 = tpu.concatenate %316, %321 in 1 : vector<2x640xf32>, vector<2x640xf32> -> vector<2x1280xf32>
    %cst_129 = arith.constant 0.000000e+00 : f32
    %323 = vector.broadcast %cst_129 : f32 to vector<2x1280xf32>
    %324 = arith.cmpf ogt, %322, %323 : vector<2x1280xf32>
    %325 = math.exp %322 : vector<2x1280xf32>
    %cst_130 = arith.constant 1.000000e+00 : f32
    %326 = vector.broadcast %cst_130 : f32 to vector<2x1280xf32>
    %327 = arith.subf %325, %326 : vector<2x1280xf32>
    %cst_131 = arith.constant 1.67326319 : f32
    %328 = vector.broadcast %cst_131 : f32 to vector<2x1280xf32>
    %329 = arith.mulf %328, %327 : vector<2x1280xf32>
    %330 = arith.select %324, %322, %329 : vector<2x1280xi1>, vector<2x1280xf32>
    %cst_132 = arith.constant 1.05070102 : f32
    %331 = vector.broadcast %cst_132 : f32 to vector<2x1280xf32>
    %332 = arith.mulf %331, %330 : vector<2x1280xf32>
    %c0_133 = arith.constant 0 : index
    %c4608 = arith.constant 4608 : index
    %333 = vector.load %arg2[%c0_133, %c4608] : memref<1x15232xf32, #tpu.memory_space<vmem>>, vector<1x640xf32>
    %c0_134 = arith.constant 0 : index
    %c11520 = arith.constant 11520 : index
    %334 = vector.load %arg2[%c0_134, %c11520] : memref<1x15232xf32, #tpu.memory_space<vmem>>, vector<1x640xf32>
    %335 = tpu.concatenate %333, %334 in 1 : vector<1x640xf32>, vector<1x640xf32> -> vector<1x1280xf32>
    %c0_135 = arith.constant 0 : index
    %c5248 = arith.constant 5248 : index
    %336 = vector.load %arg2[%c0_135, %c5248] : memref<1x15232xf32, #tpu.memory_space<vmem>>, vector<1x640xf32>
    %c0_136 = arith.constant 0 : index
    %c12160 = arith.constant 12160 : index
    %337 = vector.load %arg2[%c0_136, %c12160] : memref<1x15232xf32, #tpu.memory_space<vmem>>, vector<1x640xf32>
    %338 = tpu.concatenate %336, %337 in 1 : vector<1x640xf32>, vector<1x640xf32> -> vector<1x1280xf32>
    %cst_137 = arith.constant dense<0.000000e+00> : vector<1280xf32>
    %339 = vector.multi_reduction <add>, %332, %cst_137 [0] : vector<2x1280xf32> to vector<1280xf32>
    %340 = vector.shape_cast %339 : vector<1280xf32> to vector<1x1280xf32>
    %cst_138 = arith.constant 2.000000e+00 : f32
    %341 = vector.broadcast %cst_138 : f32 to vector<1x1280xf32>
    %342 = arith.divf %340, %341 : vector<1x1280xf32>
    %343 = vector.broadcast %342 : vector<1x1280xf32> to vector<2x1280xf32>
    %344 = arith.subf %332, %343 : vector<2x1280xf32>
    %345 = arith.mulf %344, %344 : vector<2x1280xf32>
    %cst_139 = arith.constant dense<0.000000e+00> : vector<1280xf32>
    %346 = vector.multi_reduction <add>, %345, %cst_139 [0] : vector<2x1280xf32> to vector<1280xf32>
    %347 = vector.shape_cast %346 : vector<1280xf32> to vector<1x1280xf32>
    %cst_140 = arith.constant 2.000000e+00 : f32
    %348 = vector.broadcast %cst_140 : f32 to vector<1x1280xf32>
    %349 = arith.divf %347, %348 : vector<1x1280xf32>
    %350 = vector.broadcast %342 : vector<1x1280xf32> to vector<2x1280xf32>
    %351 = arith.subf %332, %350 : vector<2x1280xf32>
    %cst_141 = arith.constant 9.99999974E-6 : f32
    %352 = vector.broadcast %cst_141 : f32 to vector<1x1280xf32>
    %353 = arith.addf %349, %352 : vector<1x1280xf32>
    %354 = math.rsqrt %353 : vector<1x1280xf32>
    %355 = vector.broadcast %354 : vector<1x1280xf32> to vector<2x1280xf32>
    %356 = arith.mulf %351, %355 : vector<2x1280xf32>
    %357 = vector.broadcast %335 : vector<1x1280xf32> to vector<2x1280xf32>
    %358 = arith.mulf %356, %357 : vector<2x1280xf32>
    %359 = vector.broadcast %338 : vector<1x1280xf32> to vector<2x1280xf32>
    %360 = arith.addf %358, %359 : vector<2x1280xf32>
    %361 = vector.extract_strided_slice %360 {offsets = [0, 0], sizes = [2, 640], strides = [1, 1]} : vector<2x1280xf32> to vector<2x640xf32>
    %362 = vector.extract_strided_slice %360 {offsets = [0, 640], sizes = [2, 640], strides = [1, 1]} : vector<2x1280xf32> to vector<2x640xf32>
    %c2_i32_142 = arith.constant 2 : i32
    %363 = tpu.memref_slice %arg30[%c2_i32_142] : memref<4x!tpu.dma_semaphore, #tpu.memory_space<semaphore_mem>> -> memref<1x!tpu.dma_semaphore, #tpu.memory_space<semaphore_mem>>
    %364 = tpu.memref_squeeze %363 : memref<1x!tpu.dma_semaphore, #tpu.memory_space<semaphore_mem>> -> memref<!tpu.dma_semaphore, #tpu.memory_space<semaphore_mem>>
    tpu.wait_dma2 semaphore(%364 : memref<!tpu.dma_semaphore, #tpu.memory_space<semaphore_mem>>) src(%arg23 : memref<640x320xbf16, #tpu.memory_space<any>>) dst(%arg28 : memref<640x320xbf16, #tpu.memory_space<vmem>>)
    %c3_i32_143 = arith.constant 3 : i32
    %365 = tpu.memref_slice %arg30[%c3_i32_143] : memref<4x!tpu.dma_semaphore, #tpu.memory_space<semaphore_mem>> -> memref<1x!tpu.dma_semaphore, #tpu.memory_space<semaphore_mem>>
    %366 = tpu.memref_squeeze %365 : memref<1x!tpu.dma_semaphore, #tpu.memory_space<semaphore_mem>> -> memref<!tpu.dma_semaphore, #tpu.memory_space<semaphore_mem>>
    tpu.wait_dma2 semaphore(%366 : memref<!tpu.dma_semaphore, #tpu.memory_space<semaphore_mem>>) src(%arg24 : memref<640x320xbf16, #tpu.memory_space<any>>) dst(%arg29 : memref<640x320xbf16, #tpu.memory_space<vmem>>)
    %c0_144 = arith.constant 0 : index
    %c0_145 = arith.constant 0 : index
    %367 = vector.load %arg28[%c0_144, %c0_145] : memref<640x320xbf16, #tpu.memory_space<vmem>>, vector<640x320xbf16>
    %c0_146 = arith.constant 0 : index
    %c0_147 = arith.constant 0 : index
    %368 = vector.load %arg29[%c0_146, %c0_147] : memref<640x320xbf16, #tpu.memory_space<vmem>>, vector<640x320xbf16>
    %369 = arith.truncf %361 : vector<2x640xf32> to vector<2x640xbf16>
    %cst_148 = arith.constant dense<0.000000e+00> : vector<2x320xf32>
    %370 = tpu.matmul %369, %367, %cst_148 {dimension_numbers = #tpu.dot_dimension_numbers<[1], [0], [0], [1], [0, 0, 1, 1], [], []>} : vector<2x640xbf16>, vector<640x320xbf16>, vector<2x320xf32> -> vector<2x320xf32>
    %c0_149 = arith.constant 0 : index
    %c5888 = arith.constant 5888 : index
    %371 = vector.load %arg2[%c0_149, %c5888] : memref<1x15232xf32, #tpu.memory_space<vmem>>, vector<1x320xf32>
    %372 = vector.broadcast %371 : vector<1x320xf32> to vector<2x320xf32>
    %373 = arith.addf %370, %372 : vector<2x320xf32>
    %374 = arith.truncf %362 : vector<2x640xf32> to vector<2x640xbf16>
    %cst_150 = arith.constant dense<0.000000e+00> : vector<2x320xf32>
    %375 = tpu.matmul %374, %368, %cst_150 {dimension_numbers = #tpu.dot_dimension_numbers<[1], [0], [0], [1], [0, 0, 1, 1], [], []>} : vector<2x640xbf16>, vector<640x320xbf16>, vector<2x320xf32> -> vector<2x320xf32>
    %c0_151 = arith.constant 0 : index
    %c12800 = arith.constant 12800 : index
    %376 = vector.load %arg2[%c0_151, %c12800] : memref<1x15232xf32, #tpu.memory_space<vmem>>, vector<1x320xf32>
    %377 = vector.broadcast %376 : vector<1x320xf32> to vector<2x320xf32>
    %378 = arith.addf %375, %377 : vector<2x320xf32>
    %379 = tpu.concatenate %373, %378 in 1 : vector<2x320xf32>, vector<2x320xf32> -> vector<2x640xf32>
    %cst_152 = arith.constant 0.000000e+00 : f32
    %380 = vector.broadcast %cst_152 : f32 to vector<2x640xf32>
    %381 = arith.cmpf ogt, %379, %380 : vector<2x640xf32>
    %382 = math.exp %379 : vector<2x640xf32>
    %cst_153 = arith.constant 1.000000e+00 : f32
    %383 = vector.broadcast %cst_153 : f32 to vector<2x640xf32>
    %384 = arith.subf %382, %383 : vector<2x640xf32>
    %cst_154 = arith.constant 1.67326319 : f32
    %385 = vector.broadcast %cst_154 : f32 to vector<2x640xf32>
    %386 = arith.mulf %385, %384 : vector<2x640xf32>
    %387 = arith.select %381, %379, %386 : vector<2x640xi1>, vector<2x640xf32>
    %cst_155 = arith.constant 1.05070102 : f32
    %388 = vector.broadcast %cst_155 : f32 to vector<2x640xf32>
    %389 = arith.mulf %388, %387 : vector<2x640xf32>
    %c0_156 = arith.constant 0 : index
    %c6272 = arith.constant 6272 : index
    %390 = vector.load %arg2[%c0_156, %c6272] : memref<1x15232xf32, #tpu.memory_space<vmem>>, vector<1x320xf32>
    %c0_157 = arith.constant 0 : index
    %c13184 = arith.constant 13184 : index
    %391 = vector.load %arg2[%c0_157, %c13184] : memref<1x15232xf32, #tpu.memory_space<vmem>>, vector<1x320xf32>
    %392 = tpu.concatenate %390, %391 in 1 : vector<1x320xf32>, vector<1x320xf32> -> vector<1x640xf32>
    %c0_158 = arith.constant 0 : index
    %c6656 = arith.constant 6656 : index
    %393 = vector.load %arg2[%c0_158, %c6656] : memref<1x15232xf32, #tpu.memory_space<vmem>>, vector<1x320xf32>
    %c0_159 = arith.constant 0 : index
    %c13568 = arith.constant 13568 : index
    %394 = vector.load %arg2[%c0_159, %c13568] : memref<1x15232xf32, #tpu.memory_space<vmem>>, vector<1x320xf32>
    %395 = tpu.concatenate %393, %394 in 1 : vector<1x320xf32>, vector<1x320xf32> -> vector<1x640xf32>
    %cst_160 = arith.constant dense<0.000000e+00> : vector<640xf32>
    %396 = vector.multi_reduction <add>, %389, %cst_160 [0] : vector<2x640xf32> to vector<640xf32>
    %397 = vector.shape_cast %396 : vector<640xf32> to vector<1x640xf32>
    %cst_161 = arith.constant 2.000000e+00 : f32
    %398 = vector.broadcast %cst_161 : f32 to vector<1x640xf32>
    %399 = arith.divf %397, %398 : vector<1x640xf32>
    %400 = vector.broadcast %399 : vector<1x640xf32> to vector<2x640xf32>
    %401 = arith.subf %389, %400 : vector<2x640xf32>
    %402 = arith.mulf %401, %401 : vector<2x640xf32>
    %cst_162 = arith.constant dense<0.000000e+00> : vector<640xf32>
    %403 = vector.multi_reduction <add>, %402, %cst_162 [0] : vector<2x640xf32> to vector<640xf32>
    %404 = vector.shape_cast %403 : vector<640xf32> to vector<1x640xf32>
    %cst_163 = arith.constant 2.000000e+00 : f32
    %405 = vector.broadcast %cst_163 : f32 to vector<1x640xf32>
    %406 = arith.divf %404, %405 : vector<1x640xf32>
    %407 = vector.broadcast %399 : vector<1x640xf32> to vector<2x640xf32>
    %408 = arith.subf %389, %407 : vector<2x640xf32>
    %cst_164 = arith.constant 9.99999974E-6 : f32
    %409 = vector.broadcast %cst_164 : f32 to vector<1x640xf32>
    %410 = arith.addf %406, %409 : vector<1x640xf32>
    %411 = math.rsqrt %410 : vector<1x640xf32>
    %412 = vector.broadcast %411 : vector<1x640xf32> to vector<2x640xf32>
    %413 = arith.mulf %408, %412 : vector<2x640xf32>
    %414 = vector.broadcast %392 : vector<1x640xf32> to vector<2x640xf32>
    %415 = arith.mulf %413, %414 : vector<2x640xf32>
    %416 = vector.broadcast %395 : vector<1x640xf32> to vector<2x640xf32>
    %417 = arith.addf %415, %416 : vector<2x640xf32>
    %418 = vector.extract_strided_slice %417 {offsets = [0, 0], sizes = [2, 320], strides = [1, 1]} : vector<2x640xf32> to vector<2x320xf32>
    %419 = vector.extract_strided_slice %417 {offsets = [0, 320], sizes = [2, 320], strides = [1, 1]} : vector<2x640xf32> to vector<2x320xf32>
    %c0_165 = arith.constant 0 : index
    %c0_166 = arith.constant 0 : index
    %420 = vector.load %arg12[%c0_165, %c0_166] : memref<320x160xbf16, #tpu.memory_space<vmem>>, vector<320x160xbf16>
    %c0_167 = arith.constant 0 : index
    %c0_168 = arith.constant 0 : index
    %421 = vector.load %arg18[%c0_167, %c0_168] : memref<320x160xbf16, #tpu.memory_space<vmem>>, vector<320x160xbf16>
    %422 = arith.truncf %418 : vector<2x320xf32> to vector<2x320xbf16>
    %cst_169 = arith.constant dense<0.000000e+00> : vector<2x160xf32>
    %423 = tpu.matmul %422, %420, %cst_169 {dimension_numbers = #tpu.dot_dimension_numbers<[1], [0], [0], [1], [0, 0, 1, 1], [], []>} : vector<2x320xbf16>, vector<320x160xbf16>, vector<2x160xf32> -> vector<2x160xf32>
    %c0_170 = arith.constant 0 : index
    %c7040 = arith.constant 7040 : index
    %424 = vector.load %arg2[%c0_170, %c7040] : memref<1x15232xf32, #tpu.memory_space<vmem>>, vector<1x160xf32>
    %425 = vector.broadcast %424 : vector<1x160xf32> to vector<2x160xf32>
    %426 = arith.addf %423, %425 : vector<2x160xf32>
    %427 = arith.truncf %419 : vector<2x320xf32> to vector<2x320xbf16>
    %cst_171 = arith.constant dense<0.000000e+00> : vector<2x160xf32>
    %428 = tpu.matmul %427, %421, %cst_171 {dimension_numbers = #tpu.dot_dimension_numbers<[1], [0], [0], [1], [0, 0, 1, 1], [], []>} : vector<2x320xbf16>, vector<320x160xbf16>, vector<2x160xf32> -> vector<2x160xf32>
    %c0_172 = arith.constant 0 : index
    %c13952 = arith.constant 13952 : index
    %429 = vector.load %arg2[%c0_172, %c13952] : memref<1x15232xf32, #tpu.memory_space<vmem>>, vector<1x160xf32>
    %430 = vector.broadcast %429 : vector<1x160xf32> to vector<2x160xf32>
    %431 = arith.addf %428, %430 : vector<2x160xf32>
    %432 = tpu.concatenate %426, %431 in 1 : vector<2x160xf32>, vector<2x160xf32> -> vector<2x320xf32>
    %cst_173 = arith.constant 0.000000e+00 : f32
    %433 = vector.broadcast %cst_173 : f32 to vector<2x320xf32>
    %434 = arith.cmpf ogt, %432, %433 : vector<2x320xf32>
    %435 = math.exp %432 : vector<2x320xf32>
    %cst_174 = arith.constant 1.000000e+00 : f32
    %436 = vector.broadcast %cst_174 : f32 to vector<2x320xf32>
    %437 = arith.subf %435, %436 : vector<2x320xf32>
    %cst_175 = arith.constant 1.67326319 : f32
    %438 = vector.broadcast %cst_175 : f32 to vector<2x320xf32>
    %439 = arith.mulf %438, %437 : vector<2x320xf32>
    %440 = arith.select %434, %432, %439 : vector<2x320xi1>, vector<2x320xf32>
    %cst_176 = arith.constant 1.05070102 : f32
    %441 = vector.broadcast %cst_176 : f32 to vector<2x320xf32>
    %442 = arith.mulf %441, %440 : vector<2x320xf32>
    %c0_177 = arith.constant 0 : index
    %c7296 = arith.constant 7296 : index
    %443 = vector.load %arg2[%c0_177, %c7296] : memref<1x15232xf32, #tpu.memory_space<vmem>>, vector<1x160xf32>
    %c0_178 = arith.constant 0 : index
    %c14208 = arith.constant 14208 : index
    %444 = vector.load %arg2[%c0_178, %c14208] : memref<1x15232xf32, #tpu.memory_space<vmem>>, vector<1x160xf32>
    %445 = tpu.concatenate %443, %444 in 1 : vector<1x160xf32>, vector<1x160xf32> -> vector<1x320xf32>
    %c0_179 = arith.constant 0 : index
    %c7552 = arith.constant 7552 : index
    %446 = vector.load %arg2[%c0_179, %c7552] : memref<1x15232xf32, #tpu.memory_space<vmem>>, vector<1x160xf32>
    %c0_180 = arith.constant 0 : index
    %c14464 = arith.constant 14464 : index
    %447 = vector.load %arg2[%c0_180, %c14464] : memref<1x15232xf32, #tpu.memory_space<vmem>>, vector<1x160xf32>
    %448 = tpu.concatenate %446, %447 in 1 : vector<1x160xf32>, vector<1x160xf32> -> vector<1x320xf32>
    %cst_181 = arith.constant dense<0.000000e+00> : vector<320xf32>
    %449 = vector.multi_reduction <add>, %442, %cst_181 [0] : vector<2x320xf32> to vector<320xf32>
    %450 = vector.shape_cast %449 : vector<320xf32> to vector<1x320xf32>
    %cst_182 = arith.constant 2.000000e+00 : f32
    %451 = vector.broadcast %cst_182 : f32 to vector<1x320xf32>
    %452 = arith.divf %450, %451 : vector<1x320xf32>
    %453 = vector.broadcast %452 : vector<1x320xf32> to vector<2x320xf32>
    %454 = arith.subf %442, %453 : vector<2x320xf32>
    %455 = arith.mulf %454, %454 : vector<2x320xf32>
    %cst_183 = arith.constant dense<0.000000e+00> : vector<320xf32>
    %456 = vector.multi_reduction <add>, %455, %cst_183 [0] : vector<2x320xf32> to vector<320xf32>
    %457 = vector.shape_cast %456 : vector<320xf32> to vector<1x320xf32>
    %cst_184 = arith.constant 2.000000e+00 : f32
    %458 = vector.broadcast %cst_184 : f32 to vector<1x320xf32>
    %459 = arith.divf %457, %458 : vector<1x320xf32>
    %460 = vector.broadcast %452 : vector<1x320xf32> to vector<2x320xf32>
    %461 = arith.subf %442, %460 : vector<2x320xf32>
    %cst_185 = arith.constant 9.99999974E-6 : f32
    %462 = vector.broadcast %cst_185 : f32 to vector<1x320xf32>
    %463 = arith.addf %459, %462 : vector<1x320xf32>
    %464 = math.rsqrt %463 : vector<1x320xf32>
    %465 = vector.broadcast %464 : vector<1x320xf32> to vector<2x320xf32>
    %466 = arith.mulf %461, %465 : vector<2x320xf32>
    %467 = vector.broadcast %445 : vector<1x320xf32> to vector<2x320xf32>
    %468 = arith.mulf %466, %467 : vector<2x320xf32>
    %469 = vector.broadcast %448 : vector<1x320xf32> to vector<2x320xf32>
    %470 = arith.addf %468, %469 : vector<2x320xf32>
    %471 = vector.extract_strided_slice %470 {offsets = [0, 0], sizes = [2, 160], strides = [1, 1]} : vector<2x320xf32> to vector<2x160xf32>
    %472 = vector.extract_strided_slice %470 {offsets = [0, 160], sizes = [2, 160], strides = [1, 1]} : vector<2x320xf32> to vector<2x160xf32>
    %c0_186 = arith.constant 0 : index
    %c0_187 = arith.constant 0 : index
    %473 = vector.load %arg13[%c0_186, %c0_187] : memref<160x80xbf16, #tpu.memory_space<vmem>>, vector<160x80xbf16>
    %c0_188 = arith.constant 0 : index
    %c0_189 = arith.constant 0 : index
    %474 = vector.load %arg19[%c0_188, %c0_189] : memref<160x80xbf16, #tpu.memory_space<vmem>>, vector<160x80xbf16>
    %475 = arith.truncf %471 : vector<2x160xf32> to vector<2x160xbf16>
    %cst_190 = arith.constant dense<0.000000e+00> : vector<2x80xf32>
    %476 = tpu.matmul %475, %473, %cst_190 {dimension_numbers = #tpu.dot_dimension_numbers<[1], [0], [0], [1], [0, 0, 1, 1], [], []>} : vector<2x160xbf16>, vector<160x80xbf16>, vector<2x80xf32> -> vector<2x80xf32>
    %c0_191 = arith.constant 0 : index
    %c7808 = arith.constant 7808 : index
    %477 = vector.load %arg2[%c0_191, %c7808] : memref<1x15232xf32, #tpu.memory_space<vmem>>, vector<1x80xf32>
    %478 = vector.broadcast %477 : vector<1x80xf32> to vector<2x80xf32>
    %479 = arith.addf %476, %478 : vector<2x80xf32>
    %480 = arith.truncf %472 : vector<2x160xf32> to vector<2x160xbf16>
    %cst_192 = arith.constant dense<0.000000e+00> : vector<2x80xf32>
    %481 = tpu.matmul %480, %474, %cst_192 {dimension_numbers = #tpu.dot_dimension_numbers<[1], [0], [0], [1], [0, 0, 1, 1], [], []>} : vector<2x160xbf16>, vector<160x80xbf16>, vector<2x80xf32> -> vector<2x80xf32>
    %c0_193 = arith.constant 0 : index
    %c14720 = arith.constant 14720 : index
    %482 = vector.load %arg2[%c0_193, %c14720] : memref<1x15232xf32, #tpu.memory_space<vmem>>, vector<1x80xf32>
    %483 = vector.broadcast %482 : vector<1x80xf32> to vector<2x80xf32>
    %484 = arith.addf %481, %483 : vector<2x80xf32>
    %485 = tpu.concatenate %479, %484 in 1 : vector<2x80xf32>, vector<2x80xf32> -> vector<2x160xf32>
    %cst_194 = arith.constant 0.000000e+00 : f32
    %486 = vector.broadcast %cst_194 : f32 to vector<2x160xf32>
    %487 = arith.cmpf ogt, %485, %486 : vector<2x160xf32>
    %488 = math.exp %485 : vector<2x160xf32>
    %cst_195 = arith.constant 1.000000e+00 : f32
    %489 = vector.broadcast %cst_195 : f32 to vector<2x160xf32>
    %490 = arith.subf %488, %489 : vector<2x160xf32>
    %cst_196 = arith.constant 1.67326319 : f32
    %491 = vector.broadcast %cst_196 : f32 to vector<2x160xf32>
    %492 = arith.mulf %491, %490 : vector<2x160xf32>
    %493 = arith.select %487, %485, %492 : vector<2x160xi1>, vector<2x160xf32>
    %cst_197 = arith.constant 1.05070102 : f32
    %494 = vector.broadcast %cst_197 : f32 to vector<2x160xf32>
    %495 = arith.mulf %494, %493 : vector<2x160xf32>
    %c0_198 = arith.constant 0 : index
    %c7936 = arith.constant 7936 : index
    %496 = vector.load %arg2[%c0_198, %c7936] : memref<1x15232xf32, #tpu.memory_space<vmem>>, vector<1x80xf32>
    %c0_199 = arith.constant 0 : index
    %c14848 = arith.constant 14848 : index
    %497 = vector.load %arg2[%c0_199, %c14848] : memref<1x15232xf32, #tpu.memory_space<vmem>>, vector<1x80xf32>
    %498 = tpu.concatenate %496, %497 in 1 : vector<1x80xf32>, vector<1x80xf32> -> vector<1x160xf32>
    %c0_200 = arith.constant 0 : index
    %c8064 = arith.constant 8064 : index
    %499 = vector.load %arg2[%c0_200, %c8064] : memref<1x15232xf32, #tpu.memory_space<vmem>>, vector<1x80xf32>
    %c0_201 = arith.constant 0 : index
    %c14976 = arith.constant 14976 : index
    %500 = vector.load %arg2[%c0_201, %c14976] : memref<1x15232xf32, #tpu.memory_space<vmem>>, vector<1x80xf32>
    %501 = tpu.concatenate %499, %500 in 1 : vector<1x80xf32>, vector<1x80xf32> -> vector<1x160xf32>
    %cst_202 = arith.constant dense<0.000000e+00> : vector<160xf32>
    %502 = vector.multi_reduction <add>, %495, %cst_202 [0] : vector<2x160xf32> to vector<160xf32>
    %503 = vector.shape_cast %502 : vector<160xf32> to vector<1x160xf32>
    %cst_203 = arith.constant 2.000000e+00 : f32
    %504 = vector.broadcast %cst_203 : f32 to vector<1x160xf32>
    %505 = arith.divf %503, %504 : vector<1x160xf32>
    %506 = vector.broadcast %505 : vector<1x160xf32> to vector<2x160xf32>
    %507 = arith.subf %495, %506 : vector<2x160xf32>
    %508 = arith.mulf %507, %507 : vector<2x160xf32>
    %cst_204 = arith.constant dense<0.000000e+00> : vector<160xf32>
    %509 = vector.multi_reduction <add>, %508, %cst_204 [0] : vector<2x160xf32> to vector<160xf32>
    %510 = vector.shape_cast %509 : vector<160xf32> to vector<1x160xf32>
    %cst_205 = arith.constant 2.000000e+00 : f32
    %511 = vector.broadcast %cst_205 : f32 to vector<1x160xf32>
    %512 = arith.divf %510, %511 : vector<1x160xf32>
    %513 = vector.broadcast %505 : vector<1x160xf32> to vector<2x160xf32>
    %514 = arith.subf %495, %513 : vector<2x160xf32>
    %cst_206 = arith.constant 9.99999974E-6 : f32
    %515 = vector.broadcast %cst_206 : f32 to vector<1x160xf32>
    %516 = arith.addf %512, %515 : vector<1x160xf32>
    %517 = math.rsqrt %516 : vector<1x160xf32>
    %518 = vector.broadcast %517 : vector<1x160xf32> to vector<2x160xf32>
    %519 = arith.mulf %514, %518 : vector<2x160xf32>
    %520 = vector.broadcast %498 : vector<1x160xf32> to vector<2x160xf32>
    %521 = arith.mulf %519, %520 : vector<2x160xf32>
    %522 = vector.broadcast %501 : vector<1x160xf32> to vector<2x160xf32>
    %523 = arith.addf %521, %522 : vector<2x160xf32>
    %524 = vector.extract_strided_slice %523 {offsets = [0, 0], sizes = [2, 80], strides = [1, 1]} : vector<2x160xf32> to vector<2x80xf32>
    %525 = vector.extract_strided_slice %523 {offsets = [0, 80], sizes = [2, 80], strides = [1, 1]} : vector<2x160xf32> to vector<2x80xf32>
    %c0_207 = arith.constant 0 : index
    %c0_208 = arith.constant 0 : index
    %526 = vector.load %arg14[%c0_207, %c0_208] : memref<80x30xbf16, #tpu.memory_space<vmem>>, vector<80x30xbf16>
    %527 = arith.truncf %524 : vector<2x80xf32> to vector<2x80xbf16>
    %cst_209 = arith.constant dense<0.000000e+00> : vector<2x30xf32>
    %528 = tpu.matmul %527, %526, %cst_209 {dimension_numbers = #tpu.dot_dimension_numbers<[1], [0], [0], [1], [0, 0, 1, 1], [], []>} : vector<2x80xbf16>, vector<80x30xbf16>, vector<2x30xf32> -> vector<2x30xf32>
    %c0_210 = arith.constant 0 : index
    %c8192 = arith.constant 8192 : index
    %529 = vector.load %arg2[%c0_210, %c8192] : memref<1x15232xf32, #tpu.memory_space<vmem>>, vector<1x30xf32>
    %530 = vector.broadcast %529 : vector<1x30xf32> to vector<2x30xf32>
    %531 = arith.addf %528, %530 : vector<2x30xf32>
    %c0_211 = arith.constant 0 : index
    %c0_212 = arith.constant 0 : index
    %532 = vector.load %arg20[%c0_211, %c0_212] : memref<80x30xbf16, #tpu.memory_space<vmem>>, vector<80x30xbf16>
    %533 = arith.truncf %525 : vector<2x80xf32> to vector<2x80xbf16>
    %cst_213 = arith.constant dense<0.000000e+00> : vector<2x30xf32>
    %534 = tpu.matmul %533, %532, %cst_213 {dimension_numbers = #tpu.dot_dimension_numbers<[1], [0], [0], [1], [0, 0, 1, 1], [], []>} : vector<2x80xbf16>, vector<80x30xbf16>, vector<2x30xf32> -> vector<2x30xf32>
    %c0_214 = arith.constant 0 : index
    %c15104 = arith.constant 15104 : index
    %535 = vector.load %arg2[%c0_214, %c15104] : memref<1x15232xf32, #tpu.memory_space<vmem>>, vector<1x30xf32>
    %536 = vector.broadcast %535 : vector<1x30xf32> to vector<2x30xf32>
    %537 = arith.addf %534, %536 : vector<2x30xf32>
    %cst_215 = arith.constant 0.000000e+00 : f32
    %538 = vector.broadcast %cst_215 : f32 to vector<2x16xf32>
    %539 = tpu.concatenate %97, %538 in 1 : vector<2x48xf32>, vector<2x16xf32> -> vector<2x64xf32>
    %cst_216 = arith.constant 0.000000e+00 : f32
    %540 = vector.broadcast %cst_216 : f32 to vector<2x34xf32>
    %541 = tpu.concatenate %537, %540 in 1 : vector<2x30xf32>, vector<2x34xf32> -> vector<2x64xf32>
    %cst_217 = arith.constant 0.000000e+00 : f32
    %542 = vector.broadcast %cst_217 : f32 to vector<2x34xf32>
    %543 = tpu.concatenate %531, %542 in 1 : vector<2x30xf32>, vector<2x34xf32> -> vector<2x64xf32>
    %cst_218 = arith.constant 0.000000e+00 : f32
    %544 = vector.broadcast %cst_218 : f32 to vector<2x34xf32>
    %545 = tpu.concatenate %84, %544 in 1 : vector<2x30xf32>, vector<2x34xf32> -> vector<2x64xf32>
    %546 = tpu.concatenate %539, %541, %543, %545 in 1 : vector<2x64xf32>, vector<2x64xf32>, vector<2x64xf32>, vector<2x64xf32> -> vector<2x256xf32>
    %c0_219 = arith.constant 0 : index
    %c0_220 = arith.constant 0 : index
    %547 = vector.load %arg25[%c0_219, %c0_220] : memref<2x256xf32, #tpu.memory_space<vmem>>, vector<2x256xf32>
    tpu.vector_store %arg25[%c0_219, %c0_220], %546 {strides = array<i32>} : memref<2x256xf32, #tpu.memory_space<vmem>>, vector<2x256xf32>,
    return
  }
}

</mosaic_0001>

<llo_original>
// kernel: ae_forward.1
$region0: #{ae_forward.1}
  #allocation0 [shape = 'u32[]', space=smem, size = 0x4, offset = 0x4, fixed_abs, tag = 'smem constant byte address 0x4 - core index']
  #allocation1 [shape = 'u32[144,128]{1,0:T(1,128)}', space=vmem, size = 0x12000, scoped, tag = 'internal scratch']
  #allocation2 [shape = 'bf16[320,640]{1,0:T(8,128)(2,1)}', space=vmem, size = 0x64000, scoped, tag = 'scratch operand']
  #allocation3 [shape = 'bf16[320,640]{1,0:T(8,128)(2,1)}', space=vmem, size = 0x64000, scoped, tag = 'scratch operand']
  #allocation4 [shape = 'bf16[640,320]{1,0:T(8,128)(2,1)}', space=vmem, size = 0x78000, scoped, tag = 'scratch operand']
  #allocation5 [shape = 'bf16[640,320]{1,0:T(8,128)(2,1)}', space=vmem, size = 0x78000, scoped, tag = 'scratch operand']
  #allocation6 [shape = 's32[4]{0}', space=sflag, size = 0x10, scoped, tag = 'scratch operand']
  #allocation7 [shape = 's32[]', space=sflag, size = 0x4, offset = 0, fixed_abs, tag = 'sflag constant byte address 0x0 - dummy sync flag']
  #allocation8 [shape = 's32[]', space=sflag, size = 0x4, offset = 0, fixed_abs, tag = 'sflag constant byte address 0x0 - dummy sync flag']
  #allocation9 [shape = 's32[]', space=sflag, size = 0x4, offset = 0, fixed_abs, tag = 'sflag constant byte address 0x0 - dummy sync flag']
  #allocation10 [shape = 's32[]', space=sflag, size = 0x4, offset = 0, fixed_abs, tag = 'sflag constant byte address 0x0 - dummy sync flag']
  %s0 = inlined_call_operand.vmem [shape: f32[32,3], index: 0, kind: input, shape index: {}]
  %s1 = inlined_call_operand.vmem [shape: f32[2,30], index: 1, kind: input, shape index: {}]
  %s2 = inlined_call_operand.vmem [shape: f32[1,15232], index: 2, kind: input, shape index: {}]
  %s3 = inlined_call_operand.vmem [shape: bf16[3,64], index: 3, kind: input, shape index: {}]
  %s4 = inlined_call_operand.vmem [shape: bf16[64,128], index: 4, kind: input, shape index: {}]
  %s5 = inlined_call_operand.vmem [shape: bf16[128,64], index: 5, kind: input, shape index: {}]
  %s6 = inlined_call_operand.vmem [shape: bf16[64,30], index: 6, kind: input, shape index: {}]
  %s7 = inlined_call_operand.vmem [shape: bf16[30,200], index: 7, kind: input, shape index: {}]
  %s8 = inlined_call_operand.vmem [shape: bf16[200,48], index: 8, kind: input, shape index: {}]
  %s9 = inlined_call_operand.vmem [shape: bf16[30,80], index: 9, kind: input, shape index: {}]
  %s10 = inlined_call_operand.vmem [shape: bf16[80,160], index: 10, kind: input, shape index: {}]
  %s11 = inlined_call_operand.vmem [shape: bf16[160,320], index: 11, kind: input, shape index: {}]
  %s12 = inlined_call_operand.vmem [shape: bf16[320,160], index: 12, kind: input, shape index: {}]
  %s13 = inlined_call_operand.vmem [shape: bf16[160,80], index: 13, kind: input, shape index: {}]
  %s14 = inlined_call_operand.vmem [shape: bf16[80,30], index: 14, kind: input, shape index: {}]
  %s15 = inlined_call_operand.vmem [shape: bf16[30,80], index: 15, kind: input, shape index: {}]
  %s16 = inlined_call_operand.vmem [shape: bf16[80,160], index: 16, kind: input, shape index: {}]
  %s17 = inlined_call_operand.vmem [shape: bf16[160,320], index: 17, kind: input, shape index: {}]
  %s18 = inlined_call_operand.vmem [shape: bf16[320,160], index: 18, kind: input, shape index: {}]
  %s19 = inlined_call_operand.vmem [shape: bf16[160,80], index: 19, kind: input, shape index: {}]
  %s20 = inlined_call_operand.vmem [shape: bf16[80,30], index: 20, kind: input, shape index: {}]
  %s21 = inlined_call_operand.vmem [shape: bf16[320,640], index: 21, kind: input, shape index: {}]
  %s22 = inlined_call_operand.vmem [shape: bf16[320,640], index: 22, kind: input, shape index: {}]
  %s23 = inlined_call_operand.vmem [shape: bf16[640,320], index: 23, kind: input, shape index: {}]
  %s24 = inlined_call_operand.vmem [shape: bf16[640,320], index: 24, kind: input, shape index: {}]
  %s25 = inlined_call_operand.vmem [shape: f32[2,256], index: 25, kind: output, shape index: {}]
  %s26 = sld [smem:[#allocation0]]
  $region230: #{ae_forward.1} parent=0
    _
  %s28 = ssub.s32 1, %s26
  %s29 = scalar_select 0, %s28, %s26
  // Predicated region
  $region2: #{ae_forward.1} parent=0 // pred_check
    _
  $region3: #{ae_forward.1} parent=0 // pred_check_branch
    %31 = sbr.rel (0) target = $region5
  $region4: #{ae_forward.1} parent=0 // pred_region
    _
  $region5: #{ae_forward.1} parent=0 // pred_fallthru
    _
  // Predicated region
  $region6: #{ae_forward.1} parent=0 // pred_check
    _
  $region7: #{ae_forward.1} parent=0 // pred_check_branch
    %33 = sbr.rel (0) target = $region9
  $region8: #{ae_forward.1} parent=0 // pred_region
    _
  $region9: #{ae_forward.1} parent=0 // pred_fallthru
    _
  // Predicated region
  $region10: #{ae_forward.1} parent=0 // pred_check
    _
  $region11: #{ae_forward.1} parent=0 // pred_check_branch
    %35 = sbr.rel (0) target = $region13
  $region12: #{ae_forward.1} parent=0 // pred_region
    _
  $region13: #{ae_forward.1} parent=0 // pred_fallthru
    _
  // Predicated region
  $region14: #{ae_forward.1} parent=0 // pred_check
    _
  $region15: #{ae_forward.1} parent=0 // pred_check_branch
    %37 = sbr.rel (0) target = $region17
  $region16: #{ae_forward.1} parent=0 // pred_region
    _
  $region17: #{ae_forward.1} parent=0 // pred_fallthru
    _
  // Predicated region
  $region18: #{ae_forward.1} parent=0 // pred_check
    _
  $region19: #{ae_forward.1} parent=0 // pred_check_branch
    %39 = sbr.rel (0) target = $region21
  $region20: #{ae_forward.1} parent=0 // pred_region
    _
  $region21: #{ae_forward.1} parent=0 // pred_fallthru
    _
  // Predicated region
  $region22: #{ae_forward.1} parent=0 // pred_check
    _
  $region23: #{ae_forward.1} parent=0 // pred_check_branch
    %41 = sbr.rel (0) target = $region25
  $region24: #{ae_forward.1} parent=0 // pred_region
    _
  $region25: #{ae_forward.1} parent=0 // pred_fallthru
    _
  // Predicated region
  $region26: #{ae_forward.1} parent=0 // pred_check
    _
  $region27: #{ae_forward.1} parent=0 // pred_check_branch
    %43 = sbr.rel (0) target = $region29
  $region28: #{ae_forward.1} parent=0 // pred_region
    _
  $region29: #{ae_forward.1} parent=0 // pred_fallthru
    _
  // Predicated region
  $region30: #{ae_forward.1} parent=0 // pred_check
    _
  $region31: #{ae_forward.1} parent=0 // pred_check_branch
    %45 = sbr.rel (0) target = $region33
  $region32: #{ae_forward.1} parent=0 // pred_region
    _
  $region33: #{ae_forward.1} parent=0 // pred_fallthru
    _
  // Predicated region
  $region34: #{ae_forward.1} parent=0 // pred_check
    _
  $region35: #{ae_forward.1} parent=0 // pred_check_branch
    %47 = sbr.rel (0) target = $region37
  $region36: #{ae_forward.1} parent=0 // pred_region
    _
  $region37: #{ae_forward.1} parent=0 // pred_fallthru
    _
  // Predicated region
  $region38: #{ae_forward.1} parent=0 // pred_check
    _
  $region39: #{ae_forward.1} parent=0 // pred_check_branch
    %49 = sbr.rel (0) target = $region41
  $region40: #{ae_forward.1} parent=0 // pred_region
    _
  $region41: #{ae_forward.1} parent=0 // pred_fallthru
    _
  // Predicated region
  $region42: #{ae_forward.1} parent=0 // pred_check
    _
  $region43: #{ae_forward.1} parent=0 // pred_check_branch
    %51 = sbr.rel (0) target = $region45
  $region44: #{ae_forward.1} parent=0 // pred_region
    _
  $region45: #{ae_forward.1} parent=0 // pred_fallthru
    _
  // Predicated region
  $region46: #{ae_forward.1} parent=0 // pred_check
    _
  $region47: #{ae_forward.1} parent=0 // pred_check_branch
    %53 = sbr.rel (0) target = $region49
  $region48: #{ae_forward.1} parent=0 // pred_region
    _
  $region49: #{ae_forward.1} parent=0 // pred_fallthru
    _
  // Predicated region
  $region50: #{ae_forward.1} parent=0 // pred_check
    _
  $region51: #{ae_forward.1} parent=0 // pred_check_branch
    %55 = sbr.rel (0) target = $region53
  $region52: #{ae_forward.1} parent=0 // pred_region
    _
  $region53: #{ae_forward.1} parent=0 // pred_fallthru
    _
  // Predicated region
  $region54: #{ae_forward.1} parent=0 // pred_check
    _
  $region55: #{ae_forward.1} parent=0 // pred_check_branch
    %57 = sbr.rel (0) target = $region57
  $region56: #{ae_forward.1} parent=0 // pred_region
    _
  $region57: #{ae_forward.1} parent=0 // pred_fallthru
    _
  // Predicated region
  $region58: #{ae_forward.1} parent=0 // pred_check
    _
  $region59: #{ae_forward.1} parent=0 // pred_check_branch
    %59 = sbr.rel (0) target = $region61
  $region60: #{ae_forward.1} parent=0 // pred_region
    _
  $region61: #{ae_forward.1} parent=0 // pred_fallthru
    _
  // Predicated region
  $region62: #{ae_forward.1} parent=0 // pred_check
    _
  $region63: #{ae_forward.1} parent=0 // pred_check_branch
    %61 = sbr.rel (0) target = $region65
  $region64: #{ae_forward.1} parent=0 // pred_region
    _
  $region65: #{ae_forward.1} parent=0 // pred_fallthru
    _
  // Predicated region
  $region66: #{ae_forward.1} parent=0 // pred_check
    _
  $region67: #{ae_forward.1} parent=0 // pred_check_branch
    %63 = sbr.rel (0) target = $region69
  $region68: #{ae_forward.1} parent=0 // pred_region
    _
  $region69: #{ae_forward.1} parent=0 // pred_fallthru
    _
  // Predicated region
  $region70: #{ae_forward.1} parent=0 // pred_check
    _
  $region71: #{ae_forward.1} parent=0 // pred_check_branch
    %65 = sbr.rel (0) target = $region73
  $region72: #{ae_forward.1} parent=0 // pred_region
    _
  $region73: #{ae_forward.1} parent=0 // pred_fallthru
    _
  // Predicated region
  $region74: #{ae_forward.1} parent=0 // pred_check
    _
  $region75: #{ae_forward.1} parent=0 // pred_check_branch
    %67 = sbr.rel (0) target = $region77
  $region76: #{ae_forward.1} parent=0 // pred_region
    _
  $region77: #{ae_forward.1} parent=0 // pred_fallthru
    _
  // Predicated region
  $region78: #{ae_forward.1} parent=0 // pred_check
    _
  $region79: #{ae_forward.1} parent=0 // pred_check_branch
    %69 = sbr.rel (0) target = $region81
  $region80: #{ae_forward.1} parent=0 // pred_region
    _
  $region81: #{ae_forward.1} parent=0 // pred_fallthru
    _
  // Predicated region
  $region82: #{ae_forward.1} parent=0 // pred_check
    _
  $region83: #{ae_forward.1} parent=0 // pred_check_branch
    %71 = sbr.rel (0) target = $region85
  $region84: #{ae_forward.1} parent=0 // pred_region
    _
  $region85: #{ae_forward.1} parent=0 // pred_fallthru
    _
  %p74 = scmp.lt.u32.totalorder 800, 8
  %p75 = pneg %p74
  // Predicated region
  $region86: #{ae_forward.1} parent=0 // pred_check
    _
  $region87: #{ae_forward.1} parent=0 // pred_check_branch
    %77 = sbr.rel (%p74) target = $region89
  $region88: #{ae_forward.1} parent=0 // pred_region
    %s93 = sand.u32 800, 7
    %p94 = scmp.eq.s32.totalorder %s93, 0
    // Predicated region
    $region101: #{ae_forward.1} parent=88 // pred_check
      %p95 = pneg %p94
    $region102: #{ae_forward.1} parent=88 // pred_check_branch
      %97 = sbr.rel (%p95) target = $region104
    $region103: #{ae_forward.1} parent=88 // pred_region
      loop: start=0, step=1, limit=1
      $region105: #{ae_forward.1} parent=103 // loop_pre_header
        _
      $region106: #{ae_forward.1} parent=103 // loop_header
        %s99 = sphi 0, %s103
        %p100 = scmp.ge.s32.totalorder %s99, 1
        %s104 = sphi %s21, %s21
        %s105 = sphi [#allocation2], [#allocation2]
      $region107: #{ae_forward.1} parent=103 // loop_header_branch
        %102 = sbr.rel (%p100) target = $region111
      $region108: #{ae_forward.1} parent=103 // loop_body
        %v106 = vld [vmem:[%s104] sm:$0xff]
        %107 = vst [vmem:[%s105] sm:$0xff] %v106
        %v108 = vld [vmem:[%s104 + $0x8] sm:$0xff]
        %109 = vst [vmem:[%s105 + $0x8] sm:$0xff] %v108
        %v110 = vld [vmem:[%s104 + $0x10] sm:$0xff]
        %111 = vst [vmem:[%s105 + $0x10] sm:$0xff] %v110
        %v112 = vld [vmem:[%s104 + $0x18] sm:$0xff]
        %113 = vst [vmem:[%s105 + $0x18] sm:$0xff] %v112
        %v114 = vld [vmem:[%s104 + $0x20] sm:$0xff]
        %115 = vst [vmem:[%s105 + $0x20] sm:$0xff] %v114
        %v116 = vld [vmem:[%s104 + $0x28] sm:$0xff]
        %117 = vst [vmem:[%s105 + $0x28] sm:$0xff] %v116
        %v118 = vld [vmem:[%s104 + $0x30] sm:$0xff]
        %119 = vst [vmem:[%s105 + $0x30] sm:$0xff] %v118
        %v120 = vld [vmem:[%s104 + $0x38] sm:$0xff]
        %121 = vst [vmem:[%s105 + $0x38] sm:$0xff] %v120
        %v122 = vld [vmem:[%s104 + $0x40] sm:$0xff]
        %123 = vst [vmem:[%s105 + $0x40] sm:$0xff] %v122
        %v124 = vld [vmem:[%s104 + $0x48] sm:$0xff]
        %125 = vst [vmem:[%s105 + $0x48] sm:$0xff] %v124
        %v126 = vld [vmem:[%s104 + $0x50] sm:$0xff]
        %127 = vst [vmem:[%s105 + $0x50] sm:$0xff] %v126
        %v128 = vld [vmem:[%s104 + $0x58] sm:$0xff]
        %129 = vst [vmem:[%s105 + $0x58] sm:$0xff] %v128
        %v130 = vld [vmem:[%s104 + $0x60] sm:$0xff]
        %131 = vst [vmem:[%s105 + $0x60] sm:$0xff] %v130
        %v132 = vld [vmem:[%s104 + $0x68] sm:$0xff]
        %133 = vst [vmem:[%s105 + $0x68] sm:$0xff] %v132
        %v134 = vld [vmem:[%s104 + $0x70] sm:$0xff]
        %135 = vst [vmem:[%s105 + $0x70] sm:$0xff] %v134
        %v136 = vld [vmem:[%s104 + $0x78] sm:$0xff]
        %137 = vst [vmem:[%s105 + $0x78] sm:$0xff] %v136
        %v138 = vld [vmem:[%s104 + $0x80] sm:$0xff]
        %139 = vst [vmem:[%s105 + $0x80] sm:$0xff] %v138
        %v140 = vld [vmem:[%s104 + $0x88] sm:$0xff]
        %141 = vst [vmem:[%s105 + $0x88] sm:$0xff] %v140
        %v142 = vld [vmem:[%s104 + $0x90] sm:$0xff]
        %143 = vst [vmem:[%s105 + $0x90] sm:$0xff] %v142
        %v144 = vld [vmem:[%s104 + $0x98] sm:$0xff]
        %145 = vst [vmem:[%s105 + $0x98] sm:$0xff] %v144
        %v146 = vld [vmem:[%s104 + $0xa0] sm:$0xff]
        %147 = vst [vmem:[%s105 + $0xa0] sm:$0xff] %v146
        %v148 = vld [vmem:[%s104 + $0xa8] sm:$0xff]
        %149 = vst [vmem:[%s105 + $0xa8] sm:$0xff] %v148
        %v150 = vld [vmem:[%s104 + $0xb0] sm:$0xff]
        %151 = vst [vmem:[%s105 + $0xb0] sm:$0xff] %v150
        %v152 = vld [vmem:[%s104 + $0xb8] sm:$0xff]
        %153 = vst [vmem:[%s105 + $0xb8] sm:$0xff] %v152
        %v154 = vld [vmem:[%s104 + $0xc0] sm:$0xff]
        %155 = vst [vmem:[%s105 + $0xc0] sm:$0xff] %v154
        %v156 = vld [vmem:[%s104 + $0xc8] sm:$0xff]
        %157 = vst [vmem:[%s105 + $0xc8] sm:$0xff] %v156
        %v158 = vld [vmem:[%s104 + $0xd0] sm:$0xff]
        %159 = vst [vmem:[%s105 + $0xd0] sm:$0xff] %v158
        %v160 = vld [vmem:[%s104 + $0xd8] sm:$0xff]
        %161 = vst [vmem:[%s105 + $0xd8] sm:$0xff] %v160
        %v162 = vld [vmem:[%s104 + $0xe0] sm:$0xff]
        %163 = vst [vmem:[%s105 + $0xe0] sm:$0xff] %v162
        %v164 = vld [vmem:[%s104 + $0xe8] sm:$0xff]
        %165 = vst [vmem:[%s105 + $0xe8] sm:$0xff] %v164
        %v166 = vld [vmem:[%s104 + $0xf0] sm:$0xff]
        %167 = vst [vmem:[%s105 + $0xf0] sm:$0xff] %v166
        %v168 = vld [vmem:[%s104 + $0xf8] sm:$0xff]
        %169 = vst [vmem:[%s105 + $0xf8] sm:$0xff] %v168
        %v170 = vld [vmem:[%s104 + $0x100] sm:$0xff]
        %171 = vst [vmem:[%s105 + $0x100] sm:$0xff] %v170
        %v172 = vld [vmem:[%s104 + $0x108] sm:$0xff]
        %173 = vst [vmem:[%s105 + $0x108] sm:$0xff] %v172
        %v174 = vld [vmem:[%s104 + $0x110] sm:$0xff]
        %175 = vst [vmem:[%s105 + $0x110] sm:$0xff] %v174
        %v176 = vld [vmem:[%s104 + $0x118] sm:$0xff]
        %177 = vst [vmem:[%s105 + $0x118] sm:$0xff] %v176
        %v178 = vld [vmem:[%s104 + $0x120] sm:$0xff]
        %179 = vst [vmem:[%s105 + $0x120] sm:$0xff] %v178
        %v180 = vld [vmem:[%s104 + $0x128] sm:$0xff]
        %181 = vst [vmem:[%s105 + $0x128] sm:$0xff] %v180
        %v182 = vld [vmem:[%s104 + $0x130] sm:$0xff]
        %183 = vst [vmem:[%s105 + $0x130] sm:$0xff] %v182
        %v184 = vld [vmem:[%s104 + $0x138] sm:$0xff]
        %185 = vst [vmem:[%s105 + $0x138] sm:$0xff] %v184
        %v186 = vld [vmem:[%s104 + $0x140] sm:$0xff]
        %187 = vst [vmem:[%s105 + $0x140] sm:$0xff] %v186
        %v188 = vld [vmem:[%s104 + $0x148] sm:$0xff]
        %189 = vst [vmem:[%s105 + $0x148] sm:$0xff] %v188
        %v190 = vld [vmem:[%s104 + $0x150] sm:$0xff]
        %191 = vst [vmem:[%s105 + $0x150] sm:$0xff] %v190
        %v192 = vld [vmem:[%s104 + $0x158] sm:$0xff]
        %193 = vst [vmem:[%s105 + $0x158] sm:$0xff] %v192
        %v194 = vld [vmem:[%s104 + $0x160] sm:$0xff]
        %195 = vst [vmem:[%s105 + $0x160] sm:$0xff] %v194
        %v196 = vld [vmem:[%s104 + $0x168] sm:$0xff]
        %197 = vst [vmem:[%s105 + $0x168] sm:$0xff] %v196
        %v198 = vld [vmem:[%s104 + $0x170] sm:$0xff]
        %199 = vst [vmem:[%s105 + $0x170] sm:$0xff] %v198
        %v200 = vld [vmem:[%s104 + $0x178] sm:$0xff]
        %201 = vst [vmem:[%s105 + $0x178] sm:$0xff] %v200
        %v202 = vld [vmem:[%s104 + $0x180] sm:$0xff]
        %203 = vst [vmem:[%s105 + $0x180] sm:$0xff] %v202
        %v204 = vld [vmem:[%s104 + $0x188] sm:$0xff]
        %205 = vst [vmem:[%s105 + $0x188] sm:$0xff] %v204
        %v206 = vld [vmem:[%s104 + $0x190] sm:$0xff]
        %207 = vst [vmem:[%s105 + $0x190] sm:$0xff] %v206
        %v208 = vld [vmem:[%s104 + $0x198] sm:$0xff]
        %209 = vst [vmem:[%s105 + $0x198] sm:$0xff] %v208
        %v210 = vld [vmem:[%s104 + $0x1a0] sm:$0xff]
        %211 = vst [vmem:[%s105 + $0x1a0] sm:$0xff] %v210
        %v212 = vld [vmem:[%s104 + $0x1a8] sm:$0xff]
        %213 = vst [vmem:[%s105 + $0x1a8] sm:$0xff] %v212
        %v214 = vld [vmem:[%s104 + $0x1b0] sm:$0xff]
        %215 = vst [vmem:[%s105 + $0x1b0] sm:$0xff] %v214
        %v216 = vld [vmem:[%s104 + $0x1b8] sm:$0xff]
        %217 = vst [vmem:[%s105 + $0x1b8] sm:$0xff] %v216
        %v218 = vld [vmem:[%s104 + $0x1c0] sm:$0xff]
        %219 = vst [vmem:[%s105 + $0x1c0] sm:$0xff] %v218
        %v220 = vld [vmem:[%s104 + $0x1c8] sm:$0xff]
        %221 = vst [vmem:[%s105 + $0x1c8] sm:$0xff] %v220
        %v222 = vld [vmem:[%s104 + $0x1d0] sm:$0xff]
        %223 = vst [vmem:[%s105 + $0x1d0] sm:$0xff] %v222
        %v224 = vld [vmem:[%s104 + $0x1d8] sm:$0xff]
        %225 = vst [vmem:[%s105 + $0x1d8] sm:$0xff] %v224
        %v226 = vld [vmem:[%s104 + $0x1e0] sm:$0xff]
        %227 = vst [vmem:[%s105 + $0x1e0] sm:$0xff] %v226
        %v228 = vld [vmem:[%s104 + $0x1e8] sm:$0xff]
        %229 = vst [vmem:[%s105 + $0x1e8] sm:$0xff] %v228
        %v230 = vld [vmem:[%s104 + $0x1f0] sm:$0xff]
        %231 = vst [vmem:[%s105 + $0x1f0] sm:$0xff] %v230
        %v232 = vld [vmem:[%s104 + $0x1f8] sm:$0xff]
        %233 = vst [vmem:[%s105 + $0x1f8] sm:$0xff] %v232
        %v234 = vld [vmem:[%s104 + $0x200] sm:$0xff]
        %235 = vst [vmem:[%s105 + $0x200] sm:$0xff] %v234
        %v236 = vld [vmem:[%s104 + $0x208] sm:$0xff]
        %237 = vst [vmem:[%s105 + $0x208] sm:$0xff] %v236
        %v238 = vld [vmem:[%s104 + $0x210] sm:$0xff]
        %239 = vst [vmem:[%s105 + $0x210] sm:$0xff] %v238
        %v240 = vld [vmem:[%s104 + $0x218] sm:$0xff]
        %241 = vst [vmem:[%s105 + $0x218] sm:$0xff] %v240
        %v242 = vld [vmem:[%s104 + $0x220] sm:$0xff]
        %243 = vst [vmem:[%s105 + $0x220] sm:$0xff] %v242
        %v244 = vld [vmem:[%s104 + $0x228] sm:$0xff]
        %245 = vst [vmem:[%s105 + $0x228] sm:$0xff] %v244
        %v246 = vld [vmem:[%s104 + $0x230] sm:$0xff]
        %247 = vst [vmem:[%s105 + $0x230] sm:$0xff] %v246
        %v248 = vld [vmem:[%s104 + $0x238] sm:$0xff]
        %249 = vst [vmem:[%s105 + $0x238] sm:$0xff] %v248
        %v250 = vld [vmem:[%s104 + $0x240] sm:$0xff]
        %251 = vst [vmem:[%s105 + $0x240] sm:$0xff] %v250
        %v252 = vld [vmem:[%s104 + $0x248] sm:$0xff]
        %253 = vst [vmem:[%s105 + $0x248] sm:$0xff] %v252
        %v254 = vld [vmem:[%s104 + $0x250] sm:$0xff]
        %255 = vst [vmem:[%s105 + $0x250] sm:$0xff] %v254
        %v256 = vld [vmem:[%s104 + $0x258] sm:$0xff]
        %257 = vst [vmem:[%s105 + $0x258] sm:$0xff] %v256
        %v258 = vld [vmem:[%s104 + $0x260] sm:$0xff]
        %259 = vst [vmem:[%s105 + $0x260] sm:$0xff] %v258
        %v260 = vld [vmem:[%s104 + $0x268] sm:$0xff]
        %261 = vst [vmem:[%s105 + $0x268] sm:$0xff] %v260
        %v262 = vld [vmem:[%s104 + $0x270] sm:$0xff]
        %263 = vst [vmem:[%s105 + $0x270] sm:$0xff] %v262
        %v264 = vld [vmem:[%s104 + $0x278] sm:$0xff]
        %265 = vst [vmem:[%s105 + $0x278] sm:$0xff] %v264
        %v266 = vld [vmem:[%s104 + $0x280] sm:$0xff]
        %267 = vst [vmem:[%s105 + $0x280] sm:$0xff] %v266
        %v268 = vld [vmem:[%s104 + $0x288] sm:$0xff]
        %269 = vst [vmem:[%s105 + $0x288] sm:$0xff] %v268
        %v270 = vld [vmem:[%s104 + $0x290] sm:$0xff]
        %271 = vst [vmem:[%s105 + $0x290] sm:$0xff] %v270
        %v272 = vld [vmem:[%s104 + $0x298] sm:$0xff]
        %273 = vst [vmem:[%s105 + $0x298] sm:$0xff] %v272
        %v274 = vld [vmem:[%s104 + $0x2a0] sm:$0xff]
        %275 = vst [vmem:[%s105 + $0x2a0] sm:$0xff] %v274
        %v276 = vld [vmem:[%s104 + $0x2a8] sm:$0xff]
        %277 = vst [vmem:[%s105 + $0x2a8] sm:$0xff] %v276
        %v278 = vld [vmem:[%s104 + $0x2b0] sm:$0xff]
        %279 = vst [vmem:[%s105 + $0x2b0] sm:$0xff] %v278
        %v280 = vld [vmem:[%s104 + $0x2b8] sm:$0xff]
        %281 = vst [vmem:[%s105 + $0x2b8] sm:$0xff] %v280
        %v282 = vld [vmem:[%s104 + $0x2c0] sm:$0xff]
        %283 = vst [vmem:[%s105 + $0x2c0] sm:$0xff] %v282
        %v284 = vld [vmem:[%s104 + $0x2c8] sm:$0xff]
        %285 = vst [vmem:[%s105 + $0x2c8] sm:$0xff] %v284
        %v286 = vld [vmem:[%s104 + $0x2d0] sm:$0xff]
        %287 = vst [vmem:[%s105 + $0x2d0] sm:$0xff] %v286
        %v288 = vld [vmem:[%s104 + $0x2d8] sm:$0xff]
        %289 = vst [vmem:[%s105 + $0x2d8] sm:$0xff] %v288
        %v290 = vld [vmem:[%s104 + $0x2e0] sm:$0xff]
        %291 = vst [vmem:[%s105 + $0x2e0] sm:$0xff] %v290
        %v292 = vld [vmem:[%s104 + $0x2e8] sm:$0xff]
        %293 = vst [vmem:[%s105 + $0x2e8] sm:$0xff] %v292
        %v294 = vld [vmem:[%s104 + $0x2f0] sm:$0xff]
        %295 = vst [vmem:[%s105 + $0x2f0] sm:$0xff] %v294
        %v296 = vld [vmem:[%s104 + $0x2f8] sm:$0xff]
        %297 = vst [vmem:[%s105 + $0x2f8] sm:$0xff] %v296
        %v298 = vld [vmem:[%s104 + $0x300] sm:$0xff]
        %299 = vst [vmem:[%s105 + $0x300] sm:$0xff] %v298
        %v300 = vld [vmem:[%s104 + $0x308] sm:$0xff]
        %301 = vst [vmem:[%s105 + $0x308] sm:$0xff] %v300
        %v302 = vld [vmem:[%s104 + $0x310] sm:$0xff]
        %303 = vst [vmem:[%s105 + $0x310] sm:$0xff] %v302
        %v304 = vld [vmem:[%s104 + $0x318] sm:$0xff]
        %305 = vst [vmem:[%s105 + $0x318] sm:$0xff] %v304
      $region109: #{ae_forward.1} parent=103 // loop_footer
        %s103 = sadd.s32 1, %s99
      $region110: #{ae_forward.1} parent=103 // loop_footer_branch
        %98 = sbr.rel target = $region106
      $region111: #{ae_forward.1} parent=103 // loop_exit
        _
    $region104: #{ae_forward.1} parent=88 // pred_fallthru
      _
    %p306 = pneg %p94
    // Predicated region
    $region112: #{ae_forward.1} parent=88 // pred_check
      _
    $region113: #{ae_forward.1} parent=88 // pred_check_branch
      %308 = sbr.rel (%p94) target = $region115
    $region114: #{ae_forward.1} parent=88 // pred_region
      %s309 = sand.u32 800, 7
    $region115: #{ae_forward.1} parent=88 // pred_fallthru
      _
  $region89: #{ae_forward.1} parent=0 // pred_fallthru
    _
  // Predicated region
  $region90: #{ae_forward.1} parent=0 // pred_check
    %p78 = pneg %p74
  $region91: #{ae_forward.1} parent=0 // pred_check_branch
    %80 = sbr.rel (%p78) target = $region93
  $region92: #{ae_forward.1} parent=0 // pred_region
    %s81 = sshll.u32 1, 800
    %s82 = ssub.s32 %s81, 1
    loop: start=0, step=1, limit=1
    $region94: #{ae_forward.1} parent=92 // loop_pre_header
      _
    $region95: #{ae_forward.1} parent=92 // loop_header
      %s84 = sphi 0, %s88
      %p85 = scmp.ge.s32.totalorder %s84, 1
      %s89 = sphi %s21, %s21
      %s90 = sphi [#allocation2], [#allocation2]
    $region96: #{ae_forward.1} parent=92 // loop_header_branch
      %87 = sbr.rel (%p85) target = $region100
    $region97: #{ae_forward.1} parent=92 // loop_body
      %v91 = vld [vmem:[%s89] sm:%s82]
      %92 = vst [vmem:[%s90] sm:%s82] %v91
    $region98: #{ae_forward.1} parent=92 // loop_footer
      %s88 = sadd.s32 1, %s84
    $region99: #{ae_forward.1} parent=92 // loop_footer_branch
      %83 = sbr.rel target = $region95
    $region100: #{ae_forward.1} parent=92 // loop_exit
      _
  $region93: #{ae_forward.1} parent=0 // pred_fallthru
    _
  // Predicated region
  $region116: #{ae_forward.1} parent=0 // pred_check
    _
  $region117: #{ae_forward.1} parent=0 // pred_check_branch
    %312 = sbr.rel (0) target = $region119
  $region118: #{ae_forward.1} parent=0 // pred_region
    %313 = vsyncadd [#allocation6], 12800
  $region119: #{ae_forward.1} parent=0 // pred_fallthru
    _
  %s314 = scalar_lea.sflag [#allocation6], 1
  %p316 = scmp.lt.u32.totalorder 800, 8
  %p317 = pneg %p316
  // Predicated region
  $region120: #{ae_forward.1} parent=0 // pred_check
    _
  $region121: #{ae_forward.1} parent=0 // pred_check_branch
    %319 = sbr.rel (%p316) target = $region123
  $region122: #{ae_forward.1} parent=0 // pred_region
    %s335 = sand.u32 800, 7
    %p336 = scmp.eq.s32.totalorder %s335, 0
    // Predicated region
    $region135: #{ae_forward.1} parent=122 // pred_check
      %p337 = pneg %p336
    $region136: #{ae_forward.1} parent=122 // pred_check_branch
      %339 = sbr.rel (%p337) target = $region138
    $region137: #{ae_forward.1} parent=122 // pred_region
      loop: start=0, step=1, limit=1
      $region139: #{ae_forward.1} parent=137 // loop_pre_header
        _
      $region140: #{ae_forward.1} parent=137 // loop_header
        %s341 = sphi 0, %s345
        %p342 = scmp.ge.s32.totalorder %s341, 1
        %s346 = sphi %s22, %s22
        %s347 = sphi [#allocation3], [#allocation3]
      $region141: #{ae_forward.1} parent=137 // loop_header_branch
        %344 = sbr.rel (%p342) target = $region145
      $region142: #{ae_forward.1} parent=137 // loop_body
        %v348 = vld [vmem:[%s346] sm:$0xff]
        %349 = vst [vmem:[%s347] sm:$0xff] %v348
        %v350 = vld [vmem:[%s346 + $0x8] sm:$0xff]
        %351 = vst [vmem:[%s347 + $0x8] sm:$0xff] %v350
        %v352 = vld [vmem:[%s346 + $0x10] sm:$0xff]
        %353 = vst [vmem:[%s347 + $0x10] sm:$0xff] %v352
        %v354 = vld [vmem:[%s346 + $0x18] sm:$0xff]
        %355 = vst [vmem:[%s347 + $0x18] sm:$0xff] %v354
        %v356 = vld [vmem:[%s346 + $0x20] sm:$0xff]
        %357 = vst [vmem:[%s347 + $0x20] sm:$0xff] %v356
        %v358 = vld [vmem:[%s346 + $0x28] sm:$0xff]
        %359 = vst [vmem:[%s347 + $0x28] sm:$0xff] %v358
        %v360 = vld [vmem:[%s346 + $0x30] sm:$0xff]
        %361 = vst [vmem:[%s347 + $0x30] sm:$0xff] %v360
        %v362 = vld [vmem:[%s346 + $0x38] sm:$0xff]
        %363 = vst [vmem:[%s347 + $0x38] sm:$0xff] %v362
        %v364 = vld [vmem:[%s346 + $0x40] sm:$0xff]
        %365 = vst [vmem:[%s347 + $0x40] sm:$0xff] %v364
        %v366 = vld [vmem:[%s346 + $0x48] sm:$0xff]
        %367 = vst [vmem:[%s347 + $0x48] sm:$0xff] %v366
        %v368 = vld [vmem:[%s346 + $0x50] sm:$0xff]
        %369 = vst [vmem:[%s347 + $0x50] sm:$0xff] %v368
        %v370 = vld [vmem:[%s346 + $0x58] sm:$0xff]
        %371 = vst [vmem:[%s347 + $0x58] sm:$0xff] %v370
        %v372 = vld [vmem:[%s346 + $0x60] sm:$0xff]
        %373 = vst [vmem:[%s347 + $0x60] sm:$0xff] %v372
        %v374 = vld [vmem:[%s346 + $0x68] sm:$0xff]
        %375 = vst [vmem:[%s347 + $0x68] sm:$0xff] %v374
        %v376 = vld [vmem:[%s346 + $0x70] sm:$0xff]
        %377 = vst [vmem:[%s347 + $0x70] sm:$0xff] %v376
        %v378 = vld [vmem:[%s346 + $0x78] sm:$0xff]
        %379 = vst [vmem:[%s347 + $0x78] sm:$0xff] %v378
        %v380 = vld [vmem:[%s346 + $0x80] sm:$0xff]
        %381 = vst [vmem:[%s347 + $0x80] sm:$0xff] %v380
        %v382 = vld [vmem:[%s346 + $0x88] sm:$0xff]
        %383 = vst [vmem:[%s347 + $0x88] sm:$0xff] %v382
        %v384 = vld [vmem:[%s346 + $0x90] sm:$0xff]
        %385 = vst [vmem:[%s347 + $0x90] sm:$0xff] %v384
        %v386 = vld [vmem:[%s346 + $0x98] sm:$0xff]
        %387 = vst [vmem:[%s347 + $0x98] sm:$0xff] %v386
        %v388 = vld [vmem:[%s346 + $0xa0] sm:$0xff]
        %389 = vst [vmem:[%s347 + $0xa0] sm:$0xff] %v388
        %v390 = vld [vmem:[%s346 + $0xa8] sm:$0xff]
        %391 = vst [vmem:[%s347 + $0xa8] sm:$0xff] %v390
        %v392 = vld [vmem:[%s346 + $0xb0] sm:$0xff]
        %393 = vst [vmem:[%s347 + $0xb0] sm:$0xff] %v392
        %v394 = vld [vmem:[%s346 + $0xb8] sm:$0xff]
        %395 = vst [vmem:[%s347 + $0xb8] sm:$0xff] %v394
        %v396 = vld [vmem:[%s346 + $0xc0] sm:$0xff]
        %397 = vst [vmem:[%s347 + $0xc0] sm:$0xff] %v396
        %v398 = vld [vmem:[%s346 + $0xc8] sm:$0xff]
        %399 = vst [vmem:[%s347 + $0xc8] sm:$0xff] %v398
        %v400 = vld [vmem:[%s346 + $0xd0] sm:$0xff]
        %401 = vst [vmem:[%s347 + $0xd0] sm:$0xff] %v400
        %v402 = vld [vmem:[%s346 + $0xd8] sm:$0xff]
        %403 = vst [vmem:[%s347 + $0xd8] sm:$0xff] %v402
        %v404 = vld [vmem:[%s346 + $0xe0] sm:$0xff]
        %405 = vst [vmem:[%s347 + $0xe0] sm:$0xff] %v404
        %v406 = vld [vmem:[%s346 + $0xe8] sm:$0xff]
        %407 = vst [vmem:[%s347 + $0xe8] sm:$0xff] %v406
        %v408 = vld [vmem:[%s346 + $0xf0] sm:$0xff]
        %409 = vst [vmem:[%s347 + $0xf0] sm:$0xff] %v408
        %v410 = vld [vmem:[%s346 + $0xf8] sm:$0xff]
        %411 = vst [vmem:[%s347 + $0xf8] sm:$0xff] %v410
        %v412 = vld [vmem:[%s346 + $0x100] sm:$0xff]
        %413 = vst [vmem:[%s347 + $0x100] sm:$0xff] %v412
        %v414 = vld [vmem:[%s346 + $0x108] sm:$0xff]
        %415 = vst [vmem:[%s347 + $0x108] sm:$0xff] %v414
        %v416 = vld [vmem:[%s346 + $0x110] sm:$0xff]
        %417 = vst [vmem:[%s347 + $0x110] sm:$0xff] %v416
        %v418 = vld [vmem:[%s346 + $0x118] sm:$0xff]
        %419 = vst [vmem:[%s347 + $0x118] sm:$0xff] %v418
        %v420 = vld [vmem:[%s346 + $0x120] sm:$0xff]
        %421 = vst [vmem:[%s347 + $0x120] sm:$0xff] %v420
        %v422 = vld [vmem:[%s346 + $0x128] sm:$0xff]
        %423 = vst [vmem:[%s347 + $0x128] sm:$0xff] %v422
        %v424 = vld [vmem:[%s346 + $0x130] sm:$0xff]
        %425 = vst [vmem:[%s347 + $0x130] sm:$0xff] %v424
        %v426 = vld [vmem:[%s346 + $0x138] sm:$0xff]
        %427 = vst [vmem:[%s347 + $0x138] sm:$0xff] %v426
        %v428 = vld [vmem:[%s346 + $0x140] sm:$0xff]
        %429 = vst [vmem:[%s347 + $0x140] sm:$0xff] %v428
        %v430 = vld [vmem:[%s346 + $0x148] sm:$0xff]
        %431 = vst [vmem:[%s347 + $0x148] sm:$0xff] %v430
        %v432 = vld [vmem:[%s346 + $0x150] sm:$0xff]
        %433 = vst [vmem:[%s347 + $0x150] sm:$0xff] %v432
        %v434 = vld [vmem:[%s346 + $0x158] sm:$0xff]
        %435 = vst [vmem:[%s347 + $0x158] sm:$0xff] %v434
        %v436 = vld [vmem:[%s346 + $0x160] sm:$0xff]
        %437 = vst [vmem:[%s347 + $0x160] sm:$0xff] %v436
        %v438 = vld [vmem:[%s346 + $0x168] sm:$0xff]
        %439 = vst [vmem:[%s347 + $0x168] sm:$0xff] %v438
        %v440 = vld [vmem:[%s346 + $0x170] sm:$0xff]
        %441 = vst [vmem:[%s347 + $0x170] sm:$0xff] %v440
        %v442 = vld [vmem:[%s346 + $0x178] sm:$0xff]
        %443 = vst [vmem:[%s347 + $0x178] sm:$0xff] %v442
        %v444 = vld [vmem:[%s346 + $0x180] sm:$0xff]
        %445 = vst [vmem:[%s347 + $0x180] sm:$0xff] %v444
        %v446 = vld [vmem:[%s346 + $0x188] sm:$0xff]
        %447 = vst [vmem:[%s347 + $0x188] sm:$0xff] %v446
        %v448 = vld [vmem:[%s346 + $0x190] sm:$0xff]
        %449 = vst [vmem:[%s347 + $0x190] sm:$0xff] %v448
        %v450 = vld [vmem:[%s346 + $0x198] sm:$0xff]
        %451 = vst [vmem:[%s347 + $0x198] sm:$0xff] %v450
        %v452 = vld [vmem:[%s346 + $0x1a0] sm:$0xff]
        %453 = vst [vmem:[%s347 + $0x1a0] sm:$0xff] %v452
        %v454 = vld [vmem:[%s346 + $0x1a8] sm:$0xff]
        %455 = vst [vmem:[%s347 + $0x1a8] sm:$0xff] %v454
        %v456 = vld [vmem:[%s346 + $0x1b0] sm:$0xff]
        %457 = vst [vmem:[%s347 + $0x1b0] sm:$0xff] %v456
        %v458 = vld [vmem:[%s346 + $0x1b8] sm:$0xff]
        %459 = vst [vmem:[%s347 + $0x1b8] sm:$0xff] %v458
        %v460 = vld [vmem:[%s346 + $0x1c0] sm:$0xff]
        %461 = vst [vmem:[%s347 + $0x1c0] sm:$0xff] %v460
        %v462 = vld [vmem:[%s346 + $0x1c8] sm:$0xff]
        %463 = vst [vmem:[%s347 + $0x1c8] sm:$0xff] %v462
        %v464 = vld [vmem:[%s346 + $0x1d0] sm:$0xff]
        %465 = vst [vmem:[%s347 + $0x1d0] sm:$0xff] %v464
        %v466 = vld [vmem:[%s346 + $0x1d8] sm:$0xff]
        %467 = vst [vmem:[%s347 + $0x1d8] sm:$0xff] %v466
        %v468 = vld [vmem:[%s346 + $0x1e0] sm:$0xff]
        %469 = vst [vmem:[%s347 + $0x1e0] sm:$0xff] %v468
        %v470 = vld [vmem:[%s346 + $0x1e8] sm:$0xff]
        %471 = vst [vmem:[%s347 + $0x1e8] sm:$0xff] %v470
        %v472 = vld [vmem:[%s346 + $0x1f0] sm:$0xff]
        %473 = vst [vmem:[%s347 + $0x1f0] sm:$0xff] %v472
        %v474 = vld [vmem:[%s346 + $0x1f8] sm:$0xff]
        %475 = vst [vmem:[%s347 + $0x1f8] sm:$0xff] %v474
        %v476 = vld [vmem:[%s346 + $0x200] sm:$0xff]
        %477 = vst [vmem:[%s347 + $0x200] sm:$0xff] %v476
        %v478 = vld [vmem:[%s346 + $0x208] sm:$0xff]
        %479 = vst [vmem:[%s347 + $0x208] sm:$0xff] %v478
        %v480 = vld [vmem:[%s346 + $0x210] sm:$0xff]
        %481 = vst [vmem:[%s347 + $0x210] sm:$0xff] %v480
        %v482 = vld [vmem:[%s346 + $0x218] sm:$0xff]
        %483 = vst [vmem:[%s347 + $0x218] sm:$0xff] %v482
        %v484 = vld [vmem:[%s346 + $0x220] sm:$0xff]
        %485 = vst [vmem:[%s347 + $0x220] sm:$0xff] %v484
        %v486 = vld [vmem:[%s346 + $0x228] sm:$0xff]
        %487 = vst [vmem:[%s347 + $0x228] sm:$0xff] %v486
        %v488 = vld [vmem:[%s346 + $0x230] sm:$0xff]
        %489 = vst [vmem:[%s347 + $0x230] sm:$0xff] %v488
        %v490 = vld [vmem:[%s346 + $0x238] sm:$0xff]
        %491 = vst [vmem:[%s347 + $0x238] sm:$0xff] %v490
        %v492 = vld [vmem:[%s346 + $0x240] sm:$0xff]
        %493 = vst [vmem:[%s347 + $0x240] sm:$0xff] %v492
        %v494 = vld [vmem:[%s346 + $0x248] sm:$0xff]
        %495 = vst [vmem:[%s347 + $0x248] sm:$0xff] %v494
        %v496 = vld [vmem:[%s346 + $0x250] sm:$0xff]
        %497 = vst [vmem:[%s347 + $0x250] sm:$0xff] %v496
        %v498 = vld [vmem:[%s346 + $0x258] sm:$0xff]
        %499 = vst [vmem:[%s347 + $0x258] sm:$0xff] %v498
        %v500 = vld [vmem:[%s346 + $0x260] sm:$0xff]
        %501 = vst [vmem:[%s347 + $0x260] sm:$0xff] %v500
        %v502 = vld [vmem:[%s346 + $0x268] sm:$0xff]
        %503 = vst [vmem:[%s347 + $0x268] sm:$0xff] %v502
        %v504 = vld [vmem:[%s346 + $0x270] sm:$0xff]
        %505 = vst [vmem:[%s347 + $0x270] sm:$0xff] %v504
        %v506 = vld [vmem:[%s346 + $0x278] sm:$0xff]
        %507 = vst [vmem:[%s347 + $0x278] sm:$0xff] %v506
        %v508 = vld [vmem:[%s346 + $0x280] sm:$0xff]
        %509 = vst [vmem:[%s347 + $0x280] sm:$0xff] %v508
        %v510 = vld [vmem:[%s346 + $0x288] sm:$0xff]
        %511 = vst [vmem:[%s347 + $0x288] sm:$0xff] %v510
        %v512 = vld [vmem:[%s346 + $0x290] sm:$0xff]
        %513 = vst [vmem:[%s347 + $0x290] sm:$0xff] %v512
        %v514 = vld [vmem:[%s346 + $0x298] sm:$0xff]
        %515 = vst [vmem:[%s347 + $0x298] sm:$0xff] %v514
        %v516 = vld [vmem:[%s346 + $0x2a0] sm:$0xff]
        %517 = vst [vmem:[%s347 + $0x2a0] sm:$0xff] %v516
        %v518 = vld [vmem:[%s346 + $0x2a8] sm:$0xff]
        %519 = vst [vmem:[%s347 + $0x2a8] sm:$0xff] %v518
        %v520 = vld [vmem:[%s346 + $0x2b0] sm:$0xff]
        %521 = vst [vmem:[%s347 + $0x2b0] sm:$0xff] %v520
        %v522 = vld [vmem:[%s346 + $0x2b8] sm:$0xff]
        %523 = vst [vmem:[%s347 + $0x2b8] sm:$0xff] %v522
        %v524 = vld [vmem:[%s346 + $0x2c0] sm:$0xff]
        %525 = vst [vmem:[%s347 + $0x2c0] sm:$0xff] %v524
        %v526 = vld [vmem:[%s346 + $0x2c8] sm:$0xff]
        %527 = vst [vmem:[%s347 + $0x2c8] sm:$0xff] %v526
        %v528 = vld [vmem:[%s346 + $0x2d0] sm:$0xff]
        %529 = vst [vmem:[%s347 + $0x2d0] sm:$0xff] %v528
        %v530 = vld [vmem:[%s346 + $0x2d8] sm:$0xff]
        %531 = vst [vmem:[%s347 + $0x2d8] sm:$0xff] %v530
        %v532 = vld [vmem:[%s346 + $0x2e0] sm:$0xff]
        %533 = vst [vmem:[%s347 + $0x2e0] sm:$0xff] %v532
        %v534 = vld [vmem:[%s346 + $0x2e8] sm:$0xff]
        %535 = vst [vmem:[%s347 + $0x2e8] sm:$0xff] %v534
        %v536 = vld [vmem:[%s346 + $0x2f0] sm:$0xff]
        %537 = vst [vmem:[%s347 + $0x2f0] sm:$0xff] %v536
        %v538 = vld [vmem:[%s346 + $0x2f8] sm:$0xff]
        %539 = vst [vmem:[%s347 + $0x2f8] sm:$0xff] %v538
        %v540 = vld [vmem:[%s346 + $0x300] sm:$0xff]
        %541 = vst [vmem:[%s347 + $0x300] sm:$0xff] %v540
        %v542 = vld [vmem:[%s346 + $0x308] sm:$0xff]
        %543 = vst [vmem:[%s347 + $0x308] sm:$0xff] %v542
        %v544 = vld [vmem:[%s346 + $0x310] sm:$0xff]
        %545 = vst [vmem:[%s347 + $0x310] sm:$0xff] %v544
        %v546 = vld [vmem:[%s346 + $0x318] sm:$0xff]
        %547 = vst [vmem:[%s347 + $0x318] sm:$0xff] %v546
      $region143: #{ae_forward.1} parent=137 // loop_footer
        %s345 = sadd.s32 1, %s341
      $region144: #{ae_forward.1} parent=137 // loop_footer_branch
        %340 = sbr.rel target = $region140
      $region145: #{ae_forward.1} parent=137 // loop_exit
        _
    $region138: #{ae_forward.1} parent=122 // pred_fallthru
      _
    %p548 = pneg %p336
    // Predicated region
    $region146: #{ae_forward.1} parent=122 // pred_check
      _
    $region147: #{ae_forward.1} parent=122 // pred_check_branch
      %550 = sbr.rel (%p336) target = $region149
    $region148: #{ae_forward.1} parent=122 // pred_region
      %s551 = sand.u32 800, 7
    $region149: #{ae_forward.1} parent=122 // pred_fallthru
      _
  $region123: #{ae_forward.1} parent=0 // pred_fallthru
    _
  // Predicated region
  $region124: #{ae_forward.1} parent=0 // pred_check
    %p320 = pneg %p316
  $region125: #{ae_forward.1} parent=0 // pred_check_branch
    %322 = sbr.rel (%p320) target = $region127
  $region126: #{ae_forward.1} parent=0 // pred_region
    %s323 = sshll.u32 1, 800
    %s324 = ssub.s32 %s323, 1
    loop: start=0, step=1, limit=1
    $region128: #{ae_forward.1} parent=126 // loop_pre_header
      _
    $region129: #{ae_forward.1} parent=126 // loop_header
      %s326 = sphi 0, %s330
      %p327 = scmp.ge.s32.totalorder %s326, 1
      %s331 = sphi %s22, %s22
      %s332 = sphi [#allocation3], [#allocation3]
    $region130: #{ae_forward.1} parent=126 // loop_header_branch
      %329 = sbr.rel (%p327) target = $region134
    $region131: #{ae_forward.1} parent=126 // loop_body
      %v333 = vld [vmem:[%s331] sm:%s324]
      %334 = vst [vmem:[%s332] sm:%s324] %v333
    $region132: #{ae_forward.1} parent=126 // loop_footer
      %s330 = sadd.s32 1, %s326
    $region133: #{ae_forward.1} parent=126 // loop_footer_branch
      %325 = sbr.rel target = $region129
    $region134: #{ae_forward.1} parent=126 // loop_exit
      _
  $region127: #{ae_forward.1} parent=0 // pred_fallthru
    _
  // Predicated region
  $region150: #{ae_forward.1} parent=0 // pred_check
    _
  $region151: #{ae_forward.1} parent=0 // pred_check_branch
    %554 = sbr.rel (0) target = $region153
  $region152: #{ae_forward.1} parent=0 // pred_region
    %555 = vsyncadd %s314, 12800
  $region153: #{ae_forward.1} parent=0 // pred_fallthru
    _
  %s556 = scalar_lea.sflag [#allocation6], 2
  %p558 = scmp.lt.u32.totalorder 960, 8
  %p559 = pneg %p558
  // Predicated region
  $region154: #{ae_forward.1} parent=0 // pred_check
    _
  $region155: #{ae_forward.1} parent=0 // pred_check_branch
    %561 = sbr.rel (%p558) target = $region157
  $region156: #{ae_forward.1} parent=0 // pred_region
    %s577 = sand.u32 960, 7
    %p578 = scmp.eq.s32.totalorder %s577, 0
    // Predicated region
    $region169: #{ae_forward.1} parent=156 // pred_check
      %p579 = pneg %p578
    $region170: #{ae_forward.1} parent=156 // pred_check_branch
      %581 = sbr.rel (%p579) target = $region172
    $region171: #{ae_forward.1} parent=156 // pred_region
      loop: start=0, step=1, limit=1
      $region173: #{ae_forward.1} parent=171 // loop_pre_header
        _
      $region174: #{ae_forward.1} parent=171 // loop_header
        %s583 = sphi 0, %s587
        %p584 = scmp.ge.s32.totalorder %s583, 1
        %s588 = sphi %s23, %s23
        %s589 = sphi [#allocation4], [#allocation4]
      $region175: #{ae_forward.1} parent=171 // loop_header_branch
        %586 = sbr.rel (%p584) target = $region179
      $region176: #{ae_forward.1} parent=171 // loop_body
        %v590 = vld [vmem:[%s588] sm:$0xff]
        %591 = vst [vmem:[%s589] sm:$0xff] %v590
        %v592 = vld [vmem:[%s588 + $0x8] sm:$0xff]
        %593 = vst [vmem:[%s589 + $0x8] sm:$0xff] %v592
        %v594 = vld [vmem:[%s588 + $0x10] sm:$0xff]
        %595 = vst [vmem:[%s589 + $0x10] sm:$0xff] %v594
        %v596 = vld [vmem:[%s588 + $0x18] sm:$0xff]
        %597 = vst [vmem:[%s589 + $0x18] sm:$0xff] %v596
        %v598 = vld [vmem:[%s588 + $0x20] sm:$0xff]
        %599 = vst [vmem:[%s589 + $0x20] sm:$0xff] %v598
        %v600 = vld [vmem:[%s588 + $0x28] sm:$0xff]
        %601 = vst [vmem:[%s589 + $0x28] sm:$0xff] %v600
        %v602 = vld [vmem:[%s588 + $0x30] sm:$0xff]
        %603 = vst [vmem:[%s589 + $0x30] sm:$0xff] %v602
        %v604 = vld [vmem:[%s588 + $0x38] sm:$0xff]
        %605 = vst [vmem:[%s589 + $0x38] sm:$0xff] %v604
        %v606 = vld [vmem:[%s588 + $0x40] sm:$0xff]
        %607 = vst [vmem:[%s589 + $0x40] sm:$0xff] %v606
        %v608 = vld [vmem:[%s588 + $0x48] sm:$0xff]
        %609 = vst [vmem:[%s589 + $0x48] sm:$0xff] %v608
        %v610 = vld [vmem:[%s588 + $0x50] sm:$0xff]
        %611 = vst [vmem:[%s589 + $0x50] sm:$0xff] %v610
        %v612 = vld [vmem:[%s588 + $0x58] sm:$0xff]
        %613 = vst [vmem:[%s589 + $0x58] sm:$0xff] %v612
        %v614 = vld [vmem:[%s588 + $0x60] sm:$0xff]
        %615 = vst [vmem:[%s589 + $0x60] sm:$0xff] %v614
        %v616 = vld [vmem:[%s588 + $0x68] sm:$0xff]
        %617 = vst [vmem:[%s589 + $0x68] sm:$0xff] %v616
        %v618 = vld [vmem:[%s588 + $0x70] sm:$0xff]
        %619 = vst [vmem:[%s589 + $0x70] sm:$0xff] %v618
        %v620 = vld [vmem:[%s588 + $0x78] sm:$0xff]
        %621 = vst [vmem:[%s589 + $0x78] sm:$0xff] %v620
        %v622 = vld [vmem:[%s588 + $0x80] sm:$0xff]
        %623 = vst [vmem:[%s589 + $0x80] sm:$0xff] %v622
        %v624 = vld [vmem:[%s588 + $0x88] sm:$0xff]
        %625 = vst [vmem:[%s589 + $0x88] sm:$0xff] %v624
        %v626 = vld [vmem:[%s588 + $0x90] sm:$0xff]
        %627 = vst [vmem:[%s589 + $0x90] sm:$0xff] %v626
        %v628 = vld [vmem:[%s588 + $0x98] sm:$0xff]
        %629 = vst [vmem:[%s589 + $0x98] sm:$0xff] %v628
        %v630 = vld [vmem:[%s588 + $0xa0] sm:$0xff]
        %631 = vst [vmem:[%s589 + $0xa0] sm:$0xff] %v630
        %v632 = vld [vmem:[%s588 + $0xa8] sm:$0xff]
        %633 = vst [vmem:[%s589 + $0xa8] sm:$0xff] %v632
        %v634 = vld [vmem:[%s588 + $0xb0] sm:$0xff]
        %635 = vst [vmem:[%s589 + $0xb0] sm:$0xff] %v634
        %v636 = vld [vmem:[%s588 + $0xb8] sm:$0xff]
        %637 = vst [vmem:[%s589 + $0xb8] sm:$0xff] %v636
        %v638 = vld [vmem:[%s588 + $0xc0] sm:$0xff]
        %639 = vst [vmem:[%s589 + $0xc0] sm:$0xff] %v638
        %v640 = vld [vmem:[%s588 + $0xc8] sm:$0xff]
        %641 = vst [vmem:[%s589 + $0xc8] sm:$0xff] %v640
        %v642 = vld [vmem:[%s588 + $0xd0] sm:$0xff]
        %643 = vst [vmem:[%s589 + $0xd0] sm:$0xff] %v642
        %v644 = vld [vmem:[%s588 + $0xd8] sm:$0xff]
        %645 = vst [vmem:[%s589 + $0xd8] sm:$0xff] %v644
        %v646 = vld [vmem:[%s588 + $0xe0] sm:$0xff]
        %647 = vst [vmem:[%s589 + $0xe0] sm:$0xff] %v646
        %v648 = vld [vmem:[%s588 + $0xe8] sm:$0xff]
        %649 = vst [vmem:[%s589 + $0xe8] sm:$0xff] %v648
        %v650 = vld [vmem:[%s588 + $0xf0] sm:$0xff]
        %651 = vst [vmem:[%s589 + $0xf0] sm:$0xff] %v650
        %v652 = vld [vmem:[%s588 + $0xf8] sm:$0xff]
        %653 = vst [vmem:[%s589 + $0xf8] sm:$0xff] %v652
        %v654 = vld [vmem:[%s588 + $0x100] sm:$0xff]
        %655 = vst [vmem:[%s589 + $0x100] sm:$0xff] %v654
        %v656 = vld [vmem:[%s588 + $0x108] sm:$0xff]
        %657 = vst [vmem:[%s589 + $0x108] sm:$0xff] %v656
        %v658 = vld [vmem:[%s588 + $0x110] sm:$0xff]
        %659 = vst [vmem:[%s589 + $0x110] sm:$0xff] %v658
        %v660 = vld [vmem:[%s588 + $0x118] sm:$0xff]
        %661 = vst [vmem:[%s589 + $0x118] sm:$0xff] %v660
        %v662 = vld [vmem:[%s588 + $0x120] sm:$0xff]
        %663 = vst [vmem:[%s589 + $0x120] sm:$0xff] %v662
        %v664 = vld [vmem:[%s588 + $0x128] sm:$0xff]
        %665 = vst [vmem:[%s589 + $0x128] sm:$0xff] %v664
        %v666 = vld [vmem:[%s588 + $0x130] sm:$0xff]
        %667 = vst [vmem:[%s589 + $0x130] sm:$0xff] %v666
        %v668 = vld [vmem:[%s588 + $0x138] sm:$0xff]
        %669 = vst [vmem:[%s589 + $0x138] sm:$0xff] %v668
        %v670 = vld [vmem:[%s588 + $0x140] sm:$0xff]
        %671 = vst [vmem:[%s589 + $0x140] sm:$0xff] %v670
        %v672 = vld [vmem:[%s588 + $0x148] sm:$0xff]
        %673 = vst [vmem:[%s589 + $0x148] sm:$0xff] %v672
        %v674 = vld [vmem:[%s588 + $0x150] sm:$0xff]
        %675 = vst [vmem:[%s589 + $0x150] sm:$0xff] %v674
        %v676 = vld [vmem:[%s588 + $0x158] sm:$0xff]
        %677 = vst [vmem:[%s589 + $0x158] sm:$0xff] %v676
        %v678 = vld [vmem:[%s588 + $0x160] sm:$0xff]
        %679 = vst [vmem:[%s589 + $0x160] sm:$0xff] %v678
        %v680 = vld [vmem:[%s588 + $0x168] sm:$0xff]
        %681 = vst [vmem:[%s589 + $0x168] sm:$0xff] %v680
        %v682 = vld [vmem:[%s588 + $0x170] sm:$0xff]
        %683 = vst [vmem:[%s589 + $0x170] sm:$0xff] %v682
        %v684 = vld [vmem:[%s588 + $0x178] sm:$0xff]
        %685 = vst [vmem:[%s589 + $0x178] sm:$0xff] %v684
        %v686 = vld [vmem:[%s588 + $0x180] sm:$0xff]
        %687 = vst [vmem:[%s589 + $0x180] sm:$0xff] %v686
        %v688 = vld [vmem:[%s588 + $0x188] sm:$0xff]
        %689 = vst [vmem:[%s589 + $0x188] sm:$0xff] %v688
        %v690 = vld [vmem:[%s588 + $0x190] sm:$0xff]
        %691 = vst [vmem:[%s589 + $0x190] sm:$0xff] %v690
        %v692 = vld [vmem:[%s588 + $0x198] sm:$0xff]
        %693 = vst [vmem:[%s589 + $0x198] sm:$0xff] %v692
        %v694 = vld [vmem:[%s588 + $0x1a0] sm:$0xff]
        %695 = vst [vmem:[%s589 + $0x1a0] sm:$0xff] %v694
        %v696 = vld [vmem:[%s588 + $0x1a8] sm:$0xff]
        %697 = vst [vmem:[%s589 + $0x1a8] sm:$0xff] %v696
        %v698 = vld [vmem:[%s588 + $0x1b0] sm:$0xff]
        %699 = vst [vmem:[%s589 + $0x1b0] sm:$0xff] %v698
        %v700 = vld [vmem:[%s588 + $0x1b8] sm:$0xff]
        %701 = vst [vmem:[%s589 + $0x1b8] sm:$0xff] %v700
        %v702 = vld [vmem:[%s588 + $0x1c0] sm:$0xff]
        %703 = vst [vmem:[%s589 + $0x1c0] sm:$0xff] %v702
        %v704 = vld [vmem:[%s588 + $0x1c8] sm:$0xff]
        %705 = vst [vmem:[%s589 + $0x1c8] sm:$0xff] %v704
        %v706 = vld [vmem:[%s588 + $0x1d0] sm:$0xff]
        %707 = vst [vmem:[%s589 + $0x1d0] sm:$0xff] %v706
        %v708 = vld [vmem:[%s588 + $0x1d8] sm:$0xff]
        %709 = vst [vmem:[%s589 + $0x1d8] sm:$0xff] %v708
        %v710 = vld [vmem:[%s588 + $0x1e0] sm:$0xff]
        %711 = vst [vmem:[%s589 + $0x1e0] sm:$0xff] %v710
        %v712 = vld [vmem:[%s588 + $0x1e8] sm:$0xff]
        %713 = vst [vmem:[%s589 + $0x1e8] sm:$0xff] %v712
        %v714 = vld [vmem:[%s588 + $0x1f0] sm:$0xff]
        %715 = vst [vmem:[%s589 + $0x1f0] sm:$0xff] %v714
        %v716 = vld [vmem:[%s588 + $0x1f8] sm:$0xff]
        %717 = vst [vmem:[%s589 + $0x1f8] sm:$0xff] %v716
        %v718 = vld [vmem:[%s588 + $0x200] sm:$0xff]
        %719 = vst [vmem:[%s589 + $0x200] sm:$0xff] %v718
        %v720 = vld [vmem:[%s588 + $0x208] sm:$0xff]
        %721 = vst [vmem:[%s589 + $0x208] sm:$0xff] %v720
        %v722 = vld [vmem:[%s588 + $0x210] sm:$0xff]
        %723 = vst [vmem:[%s589 + $0x210] sm:$0xff] %v722
        %v724 = vld [vmem:[%s588 + $0x218] sm:$0xff]
        %725 = vst [vmem:[%s589 + $0x218] sm:$0xff] %v724
        %v726 = vld [vmem:[%s588 + $0x220] sm:$0xff]
        %727 = vst [vmem:[%s589 + $0x220] sm:$0xff] %v726
        %v728 = vld [vmem:[%s588 + $0x228] sm:$0xff]
        %729 = vst [vmem:[%s589 + $0x228] sm:$0xff] %v728
        %v730 = vld [vmem:[%s588 + $0x230] sm:$0xff]
        %731 = vst [vmem:[%s589 + $0x230] sm:$0xff] %v730
        %v732 = vld [vmem:[%s588 + $0x238] sm:$0xff]
        %733 = vst [vmem:[%s589 + $0x238] sm:$0xff] %v732
        %v734 = vld [vmem:[%s588 + $0x240] sm:$0xff]
        %735 = vst [vmem:[%s589 + $0x240] sm:$0xff] %v734
        %v736 = vld [vmem:[%s588 + $0x248] sm:$0xff]
        %737 = vst [vmem:[%s589 + $0x248] sm:$0xff] %v736
        %v738 = vld [vmem:[%s588 + $0x250] sm:$0xff]
        %739 = vst [vmem:[%s589 + $0x250] sm:$0xff] %v738
        %v740 = vld [vmem:[%s588 + $0x258] sm:$0xff]
        %741 = vst [vmem:[%s589 + $0x258] sm:$0xff] %v740
        %v742 = vld [vmem:[%s588 + $0x260] sm:$0xff]
        %743 = vst [vmem:[%s589 + $0x260] sm:$0xff] %v742
        %v744 = vld [vmem:[%s588 + $0x268] sm:$0xff]
        %745 = vst [vmem:[%s589 + $0x268] sm:$0xff] %v744
        %v746 = vld [vmem:[%s588 + $0x270] sm:$0xff]
        %747 = vst [vmem:[%s589 + $0x270] sm:$0xff] %v746
        %v748 = vld [vmem:[%s588 + $0x278] sm:$0xff]
        %749 = vst [vmem:[%s589 + $0x278] sm:$0xff] %v748
        %v750 = vld [vmem:[%s588 + $0x280] sm:$0xff]
        %751 = vst [vmem:[%s589 + $0x280] sm:$0xff] %v750
        %v752 = vld [vmem:[%s588 + $0x288] sm:$0xff]
        %753 = vst [vmem:[%s589 + $0x288] sm:$0xff] %v752
        %v754 = vld [vmem:[%s588 + $0x290] sm:$0xff]
        %755 = vst [vmem:[%s589 + $0x290] sm:$0xff] %v754
        %v756 = vld [vmem:[%s588 + $0x298] sm:$0xff]
        %757 = vst [vmem:[%s589 + $0x298] sm:$0xff] %v756
        %v758 = vld [vmem:[%s588 + $0x2a0] sm:$0xff]
        %759 = vst [vmem:[%s589 + $0x2a0] sm:$0xff] %v758
        %v760 = vld [vmem:[%s588 + $0x2a8] sm:$0xff]
        %761 = vst [vmem:[%s589 + $0x2a8] sm:$0xff] %v760
        %v762 = vld [vmem:[%s588 + $0x2b0] sm:$0xff]
        %763 = vst [vmem:[%s589 + $0x2b0] sm:$0xff] %v762
        %v764 = vld [vmem:[%s588 + $0x2b8] sm:$0xff]
        %765 = vst [vmem:[%s589 + $0x2b8] sm:$0xff] %v764
        %v766 = vld [vmem:[%s588 + $0x2c0] sm:$0xff]
        %767 = vst [vmem:[%s589 + $0x2c0] sm:$0xff] %v766
        %v768 = vld [vmem:[%s588 + $0x2c8] sm:$0xff]
        %769 = vst [vmem:[%s589 + $0x2c8] sm:$0xff] %v768
        %v770 = vld [vmem:[%s588 + $0x2d0] sm:$0xff]
        %771 = vst [vmem:[%s589 + $0x2d0] sm:$0xff] %v770
        %v772 = vld [vmem:[%s588 + $0x2d8] sm:$0xff]
        %773 = vst [vmem:[%s589 + $0x2d8] sm:$0xff] %v772
        %v774 = vld [vmem:[%s588 + $0x2e0] sm:$0xff]
        %775 = vst [vmem:[%s589 + $0x2e0] sm:$0xff] %v774
        %v776 = vld [vmem:[%s588 + $0x2e8] sm:$0xff]
        %777 = vst [vmem:[%s589 + $0x2e8] sm:$0xff] %v776
        %v778 = vld [vmem:[%s588 + $0x2f0] sm:$0xff]
        %779 = vst [vmem:[%s589 + $0x2f0] sm:$0xff] %v778
        %v780 = vld [vmem:[%s588 + $0x2f8] sm:$0xff]
        %781 = vst [vmem:[%s589 + $0x2f8] sm:$0xff] %v780
        %v782 = vld [vmem:[%s588 + $0x300] sm:$0xff]
        %783 = vst [vmem:[%s589 + $0x300] sm:$0xff] %v782
        %v784 = vld [vmem:[%s588 + $0x308] sm:$0xff]
        %785 = vst [vmem:[%s589 + $0x308] sm:$0xff] %v784
        %v786 = vld [vmem:[%s588 + $0x310] sm:$0xff]
        %787 = vst [vmem:[%s589 + $0x310] sm:$0xff] %v786
        %v788 = vld [vmem:[%s588 + $0x318] sm:$0xff]
        %789 = vst [vmem:[%s589 + $0x318] sm:$0xff] %v788
        %v790 = vld [vmem:[%s588 + $0x320] sm:$0xff]
        %791 = vst [vmem:[%s589 + $0x320] sm:$0xff] %v790
        %v792 = vld [vmem:[%s588 + $0x328] sm:$0xff]
        %793 = vst [vmem:[%s589 + $0x328] sm:$0xff] %v792
        %v794 = vld [vmem:[%s588 + $0x330] sm:$0xff]
        %795 = vst [vmem:[%s589 + $0x330] sm:$0xff] %v794
        %v796 = vld [vmem:[%s588 + $0x338] sm:$0xff]
        %797 = vst [vmem:[%s589 + $0x338] sm:$0xff] %v796
        %v798 = vld [vmem:[%s588 + $0x340] sm:$0xff]
        %799 = vst [vmem:[%s589 + $0x340] sm:$0xff] %v798
        %v800 = vld [vmem:[%s588 + $0x348] sm:$0xff]
        %801 = vst [vmem:[%s589 + $0x348] sm:$0xff] %v800
        %v802 = vld [vmem:[%s588 + $0x350] sm:$0xff]
        %803 = vst [vmem:[%s589 + $0x350] sm:$0xff] %v802
        %v804 = vld [vmem:[%s588 + $0x358] sm:$0xff]
        %805 = vst [vmem:[%s589 + $0x358] sm:$0xff] %v804
        %v806 = vld [vmem:[%s588 + $0x360] sm:$0xff]
        %807 = vst [vmem:[%s589 + $0x360] sm:$0xff] %v806
        %v808 = vld [vmem:[%s588 + $0x368] sm:$0xff]
        %809 = vst [vmem:[%s589 + $0x368] sm:$0xff] %v808
        %v810 = vld [vmem:[%s588 + $0x370] sm:$0xff]
        %811 = vst [vmem:[%s589 + $0x370] sm:$0xff] %v810
        %v812 = vld [vmem:[%s588 + $0x378] sm:$0xff]
        %813 = vst [vmem:[%s589 + $0x378] sm:$0xff] %v812
        %v814 = vld [vmem:[%s588 + $0x380] sm:$0xff]
        %815 = vst [vmem:[%s589 + $0x380] sm:$0xff] %v814
        %v816 = vld [vmem:[%s588 + $0x388] sm:$0xff]
        %817 = vst [vmem:[%s589 + $0x388] sm:$0xff] %v816
        %v818 = vld [vmem:[%s588 + $0x390] sm:$0xff]
        %819 = vst [vmem:[%s589 + $0x390] sm:$0xff] %v818
        %v820 = vld [vmem:[%s588 + $0x398] sm:$0xff]
        %821 = vst [vmem:[%s589 + $0x398] sm:$0xff] %v820
        %v822 = vld [vmem:[%s588 + $0x3a0] sm:$0xff]
        %823 = vst [vmem:[%s589 + $0x3a0] sm:$0xff] %v822
        %v824 = vld [vmem:[%s588 + $0x3a8] sm:$0xff]
        %825 = vst [vmem:[%s589 + $0x3a8] sm:$0xff] %v824
        %v826 = vld [vmem:[%s588 + $0x3b0] sm:$0xff]
        %827 = vst [vmem:[%s589 + $0x3b0] sm:$0xff] %v826
        %v828 = vld [vmem:[%s588 + $0x3b8] sm:$0xff]
        %829 = vst [vmem:[%s589 + $0x3b8] sm:$0xff] %v828
      $region177: #{ae_forward.1} parent=171 // loop_footer
        %s587 = sadd.s32 1, %s583
      $region178: #{ae_forward.1} parent=171 // loop_footer_branch
        %582 = sbr.rel target = $region174
      $region179: #{ae_forward.1} parent=171 // loop_exit
        _
    $region172: #{ae_forward.1} parent=156 // pred_fallthru
      _
    %p830 = pneg %p578
    // Predicated region
    $region180: #{ae_forward.1} parent=156 // pred_check
      _
    $region181: #{ae_forward.1} parent=156 // pred_check_branch
      %832 = sbr.rel (%p578) target = $region183
    $region182: #{ae_forward.1} parent=156 // pred_region
      %s833 = sand.u32 960, 7
    $region183: #{ae_forward.1} parent=156 // pred_fallthru
      _
  $region157: #{ae_forward.1} parent=0 // pred_fallthru
    _
  // Predicated region
  $region158: #{ae_forward.1} parent=0 // pred_check
    %p562 = pneg %p558
  $region159: #{ae_forward.1} parent=0 // pred_check_branch
    %564 = sbr.rel (%p562) target = $region161
  $region160: #{ae_forward.1} parent=0 // pred_region
    %s565 = sshll.u32 1, 960
    %s566 = ssub.s32 %s565, 1
    loop: start=0, step=1, limit=1
    $region162: #{ae_forward.1} parent=160 // loop_pre_header
      _
    $region163: #{ae_forward.1} parent=160 // loop_header
      %s568 = sphi 0, %s572
      %p569 = scmp.ge.s32.totalorder %s568, 1
      %s573 = sphi %s23, %s23
      %s574 = sphi [#allocation4], [#allocation4]
    $region164: #{ae_forward.1} parent=160 // loop_header_branch
      %571 = sbr.rel (%p569) target = $region168
    $region165: #{ae_forward.1} parent=160 // loop_body
      %v575 = vld [vmem:[%s573] sm:%s566]
      %576 = vst [vmem:[%s574] sm:%s566] %v575
    $region166: #{ae_forward.1} parent=160 // loop_footer
      %s572 = sadd.s32 1, %s568
    $region167: #{ae_forward.1} parent=160 // loop_footer_branch
      %567 = sbr.rel target = $region163
    $region168: #{ae_forward.1} parent=160 // loop_exit
      _
  $region161: #{ae_forward.1} parent=0 // pred_fallthru
    _
  // Predicated region
  $region184: #{ae_forward.1} parent=0 // pred_check
    _
  $region185: #{ae_forward.1} parent=0 // pred_check_branch
    %836 = sbr.rel (0) target = $region187
  $region186: #{ae_forward.1} parent=0 // pred_region
    %837 = vsyncadd %s556, 15360
  $region187: #{ae_forward.1} parent=0 // pred_fallthru
    _
  %s838 = scalar_lea.sflag [#allocation6], 3
  %p840 = scmp.lt.u32.totalorder 960, 8
  %p841 = pneg %p840
  // Predicated region
  $region188: #{ae_forward.1} parent=0 // pred_check
    _
  $region189: #{ae_forward.1} parent=0 // pred_check_branch
    %843 = sbr.rel (%p840) target = $region191
  $region190: #{ae_forward.1} parent=0 // pred_region
    %s859 = sand.u32 960, 7
    %p860 = scmp.eq.s32.totalorder %s859, 0
    // Predicated region
    $region203: #{ae_forward.1} parent=190 // pred_check
      %p861 = pneg %p860
    $region204: #{ae_forward.1} parent=190 // pred_check_branch
      %863 = sbr.rel (%p861) target = $region206
    $region205: #{ae_forward.1} parent=190 // pred_region
      loop: start=0, step=1, limit=1
      $region207: #{ae_forward.1} parent=205 // loop_pre_header
        _
      $region208: #{ae_forward.1} parent=205 // loop_header
        %s865 = sphi 0, %s869
        %p866 = scmp.ge.s32.totalorder %s865, 1
        %s870 = sphi %s24, %s24
        %s871 = sphi [#allocation5], [#allocation5]
      $region209: #{ae_forward.1} parent=205 // loop_header_branch
        %868 = sbr.rel (%p866) target = $region213
      $region210: #{ae_forward.1} parent=205 // loop_body
        %v872 = vld [vmem:[%s870] sm:$0xff]
        %873 = vst [vmem:[%s871] sm:$0xff] %v872
        %v874 = vld [vmem:[%s870 + $0x8] sm:$0xff]
        %875 = vst [vmem:[%s871 + $0x8] sm:$0xff] %v874
        %v876 = vld [vmem:[%s870 + $0x10] sm:$0xff]
        %877 = vst [vmem:[%s871 + $0x10] sm:$0xff] %v876
        %v878 = vld [vmem:[%s870 + $0x18] sm:$0xff]
        %879 = vst [vmem:[%s871 + $0x18] sm:$0xff] %v878
        %v880 = vld [vmem:[%s870 + $0x20] sm:$0xff]
        %881 = vst [vmem:[%s871 + $0x20] sm:$0xff] %v880
        %v882 = vld [vmem:[%s870 + $0x28] sm:$0xff]
        %883 = vst [vmem:[%s871 + $0x28] sm:$0xff] %v882
        %v884 = vld [vmem:[%s870 + $0x30] sm:$0xff]
        %885 = vst [vmem:[%s871 + $0x30] sm:$0xff] %v884
        %v886 = vld [vmem:[%s870 + $0x38] sm:$0xff]
        %887 = vst [vmem:[%s871 + $0x38] sm:$0xff] %v886
        %v888 = vld [vmem:[%s870 + $0x40] sm:$0xff]
        %889 = vst [vmem:[%s871 + $0x40] sm:$0xff] %v888
        %v890 = vld [vmem:[%s870 + $0x48] sm:$0xff]
        %891 = vst [vmem:[%s871 + $0x48] sm:$0xff] %v890
        %v892 = vld [vmem:[%s870 + $0x50] sm:$0xff]
        %893 = vst [vmem:[%s871 + $0x50] sm:$0xff] %v892
        %v894 = vld [vmem:[%s870 + $0x58] sm:$0xff]
        %895 = vst [vmem:[%s871 + $0x58] sm:$0xff] %v894
        %v896 = vld [vmem:[%s870 + $0x60] sm:$0xff]
        %897 = vst [vmem:[%s871 + $0x60] sm:$0xff] %v896
        %v898 = vld [vmem:[%s870 + $0x68] sm:$0xff]
        %899 = vst [vmem:[%s871 + $0x68] sm:$0xff] %v898
        %v900 = vld [vmem:[%s870 + $0x70] sm:$0xff]
        %901 = vst [vmem:[%s871 + $0x70] sm:$0xff] %v900
        %v902 = vld [vmem:[%s870 + $0x78] sm:$0xff]
        %903 = vst [vmem:[%s871 + $0x78] sm:$0xff] %v902
        %v904 = vld [vmem:[%s870 + $0x80] sm:$0xff]
        %905 = vst [vmem:[%s871 + $0x80] sm:$0xff] %v904
        %v906 = vld [vmem:[%s870 + $0x88] sm:$0xff]
        %907 = vst [vmem:[%s871 + $0x88] sm:$0xff] %v906
        %v908 = vld [vmem:[%s870 + $0x90] sm:$0xff]
        %909 = vst [vmem:[%s871 + $0x90] sm:$0xff] %v908
        %v910 = vld [vmem:[%s870 + $0x98] sm:$0xff]
        %911 = vst [vmem:[%s871 + $0x98] sm:$0xff] %v910
        %v912 = vld [vmem:[%s870 + $0xa0] sm:$0xff]
        %913 = vst [vmem:[%s871 + $0xa0] sm:$0xff] %v912
        %v914 = vld [vmem:[%s870 + $0xa8] sm:$0xff]
        %915 = vst [vmem:[%s871 + $0xa8] sm:$0xff] %v914
        %v916 = vld [vmem:[%s870 + $0xb0] sm:$0xff]
        %917 = vst [vmem:[%s871 + $0xb0] sm:$0xff] %v916
        %v918 = vld [vmem:[%s870 + $0xb8] sm:$0xff]
        %919 = vst [vmem:[%s871 + $0xb8] sm:$0xff] %v918
        %v920 = vld [vmem:[%s870 + $0xc0] sm:$0xff]
        %921 = vst [vmem:[%s871 + $0xc0] sm:$0xff] %v920
        %v922 = vld [vmem:[%s870 + $0xc8] sm:$0xff]
        %923 = vst [vmem:[%s871 + $0xc8] sm:$0xff] %v922
        %v924 = vld [vmem:[%s870 + $0xd0] sm:$0xff]
        %925 = vst [vmem:[%s871 + $0xd0] sm:$0xff] %v924
        %v926 = vld [vmem:[%s870 + $0xd8] sm:$0xff]
        %927 = vst [vmem:[%s871 + $0xd8] sm:$0xff] %v926
        %v928 = vld [vmem:[%s870 + $0xe0] sm:$0xff]
        %929 = vst [vmem:[%s871 + $0xe0] sm:$0xff] %v928
        %v930 = vld [vmem:[%s870 + $0xe8] sm:$0xff]
        %931 = vst [vmem:[%s871 + $0xe8] sm:$0xff] %v930
        %v932 = vld [vmem:[%s870 + $0xf0] sm:$0xff]
        %933 = vst [vmem:[%s871 + $0xf0] sm:$0xff] %v932
        %v934 = vld [vmem:[%s870 + $0xf8] sm:$0xff]
        %935 = vst [vmem:[%s871 + $0xf8] sm:$0xff] %v934
        %v936 = vld [vmem:[%s870 + $0x100] sm:$0xff]
        %937 = vst [vmem:[%s871 + $0x100] sm:$0xff] %v936
        %v938 = vld [vmem:[%s870 + $0x108] sm:$0xff]
        %939 = vst [vmem:[%s871 + $0x108] sm:$0xff] %v938
        %v940 = vld [vmem:[%s870 + $0x110] sm:$0xff]
        %941 = vst [vmem:[%s871 + $0x110] sm:$0xff] %v940
        %v942 = vld [vmem:[%s870 + $0x118] sm:$0xff]
        %943 = vst [vmem:[%s871 + $0x118] sm:$0xff] %v942
        %v944 = vld [vmem:[%s870 + $0x120] sm:$0xff]
        %945 = vst [vmem:[%s871 + $0x120] sm:$0xff] %v944
        %v946 = vld [vmem:[%s870 + $0x128] sm:$0xff]
        %947 = vst [vmem:[%s871 + $0x128] sm:$0xff] %v946
        %v948 = vld [vmem:[%s870 + $0x130] sm:$0xff]
        %949 = vst [vmem:[%s871 + $0x130] sm:$0xff] %v948
        %v950 = vld [vmem:[%s870 + $0x138] sm:$0xff]
        %951 = vst [vmem:[%s871 + $0x138] sm:$0xff] %v950
        %v952 = vld [vmem:[%s870 + $0x140] sm:$0xff]
        %953 = vst [vmem:[%s871 + $0x140] sm:$0xff] %v952
        %v954 = vld [vmem:[%s870 + $0x148] sm:$0xff]
        %955 = vst [vmem:[%s871 + $0x148] sm:$0xff] %v954
        %v956 = vld [vmem:[%s870 + $0x150] sm:$0xff]
        %957 = vst [vmem:[%s871 + $0x150] sm:$0xff] %v956
        %v958 = vld [vmem:[%s870 + $0x158] sm:$0xff]
        %959 = vst [vmem:[%s871 + $0x158] sm:$0xff] %v958
        %v960 = vld [vmem:[%s870 + $0x160] sm:$0xff]
        %961 = vst [vmem:[%s871 + $0x160] sm:$0xff] %v960
        %v962 = vld [vmem:[%s870 + $0x168] sm:$0xff]
        %963 = vst [vmem:[%s871 + $0x168] sm:$0xff] %v962
        %v964 = vld [vmem:[%s870 + $0x170] sm:$0xff]
        %965 = vst [vmem:[%s871 + $0x170] sm:$0xff] %v964
        %v966 = vld [vmem:[%s870 + $0x178] sm:$0xff]
        %967 = vst [vmem:[%s871 + $0x178] sm:$0xff] %v966
        %v968 = vld [vmem:[%s870 + $0x180] sm:$0xff]
        %969 = vst [vmem:[%s871 + $0x180] sm:$0xff] %v968
        %v970 = vld [vmem:[%s870 + $0x188] sm:$0xff]
        %971 = vst [vmem:[%s871 + $0x188] sm:$0xff] %v970
        %v972 = vld [vmem:[%s870 + $0x190] sm:$0xff]
        %973 = vst [vmem:[%s871 + $0x190] sm:$0xff] %v972
        %v974 = vld [vmem:[%s870 + $0x198] sm:$0xff]
        %975 = vst [vmem:[%s871 + $0x198] sm:$0xff] %v974
        %v976 = vld [vmem:[%s870 + $0x1a0] sm:$0xff]
        %977 = vst [vmem:[%s871 + $0x1a0] sm:$0xff] %v976
        %v978 = vld [vmem:[%s870 + $0x1a8] sm:$0xff]
        %979 = vst [vmem:[%s871 + $0x1a8] sm:$0xff] %v978
        %v980 = vld [vmem:[%s870 + $0x1b0] sm:$0xff]
        %981 = vst [vmem:[%s871 + $0x1b0] sm:$0xff] %v980
        %v982 = vld [vmem:[%s870 + $0x1b8] sm:$0xff]
        %983 = vst [vmem:[%s871 + $0x1b8] sm:$0xff] %v982
        %v984 = vld [vmem:[%s870 + $0x1c0] sm:$0xff]
        %985 = vst [vmem:[%s871 + $0x1c0] sm:$0xff] %v984
        %v986 = vld [vmem:[%s870 + $0x1c8] sm:$0xff]
        %987 = vst [vmem:[%s871 + $0x1c8] sm:$0xff] %v986
        %v988 = vld [vmem:[%s870 + $0x1d0] sm:$0xff]
        %989 = vst [vmem:[%s871 + $0x1d0] sm:$0xff] %v988
        %v990 = vld [vmem:[%s870 + $0x1d8] sm:$0xff]
        %991 = vst [vmem:[%s871 + $0x1d8] sm:$0xff] %v990
        %v992 = vld [vmem:[%s870 + $0x1e0] sm:$0xff]
        %993 = vst [vmem:[%s871 + $0x1e0] sm:$0xff] %v992
        %v994 = vld [vmem:[%s870 + $0x1e8] sm:$0xff]
        %995 = vst [vmem:[%s871 + $0x1e8] sm:$0xff] %v994
        %v996 = vld [vmem:[%s870 + $0x1f0] sm:$0xff]
        %997 = vst [vmem:[%s871 + $0x1f0] sm:$0xff] %v996
        %v998 = vld [vmem:[%s870 + $0x1f8] sm:$0xff]
        %999 = vst [vmem:[%s871 + $0x1f8] sm:$0xff] %v998
        %v1000 = vld [vmem:[%s870 + $0x200] sm:$0xff]
        %1001 = vst [vmem:[%s871 + $0x200] sm:$0xff] %v1000
        %v1002 = vld [vmem:[%s870 + $0x208] sm:$0xff]
        %1003 = vst [vmem:[%s871 + $0x208] sm:$0xff] %v1002
        %v1004 = vld [vmem:[%s870 + $0x210] sm:$0xff]
        %1005 = vst [vmem:[%s871 + $0x210] sm:$0xff] %v1004
        %v1006 = vld [vmem:[%s870 + $0x218] sm:$0xff]
        %1007 = vst [vmem:[%s871 + $0x218] sm:$0xff] %v1006
        %v1008 = vld [vmem:[%s870 + $0x220] sm:$0xff]
        %1009 = vst [vmem:[%s871 + $0x220] sm:$0xff] %v1008
        %v1010 = vld [vmem:[%s870 + $0x228] sm:$0xff]
        %1011 = vst [vmem:[%s871 + $0x228] sm:$0xff] %v1010
        %v1012 = vld [vmem:[%s870 + $0x230] sm:$0xff]
        %1013 = vst [vmem:[%s871 + $0x230] sm:$0xff] %v1012
        %v1014 = vld [vmem:[%s870 + $0x238] sm:$0xff]
        %1015 = vst [vmem:[%s871 + $0x238] sm:$0xff] %v1014
        %v1016 = vld [vmem:[%s870 + $0x240] sm:$0xff]
        %1017 = vst [vmem:[%s871 + $0x240] sm:$0xff] %v1016
        %v1018 = vld [vmem:[%s870 + $0x248] sm:$0xff]
        %1019 = vst [vmem:[%s871 + $0x248] sm:$0xff] %v1018
        %v1020 = vld [vmem:[%s870 + $0x250] sm:$0xff]
        %1021 = vst [vmem:[%s871 + $0x250] sm:$0xff] %v1020
        %v1022 = vld [vmem:[%s870 + $0x258] sm:$0xff]
        %1023 = vst [vmem:[%s871 + $0x258] sm:$0xff] %v1022
        %v1024 = vld [vmem:[%s870 + $0x260] sm:$0xff]
        %1025 = vst [vmem:[%s871 + $0x260] sm:$0xff] %v1024
        %v1026 = vld [vmem:[%s870 + $0x268] sm:$0xff]
        %1027 = vst [vmem:[%s871 + $0x268] sm:$0xff] %v1026
        %v1028 = vld [vmem:[%s870 + $0x270] sm:$0xff]
        %1029 = vst [vmem:[%s871 + $0x270] sm:$0xff] %v1028
        %v1030 = vld [vmem:[%s870 + $0x278] sm:$0xff]
        %1031 = vst [vmem:[%s871 + $0x278] sm:$0xff] %v1030
        %v1032 = vld [vmem:[%s870 + $0x280] sm:$0xff]
        %1033 = vst [vmem:[%s871 + $0x280] sm:$0xff] %v1032
        %v1034 = vld [vmem:[%s870 + $0x288] sm:$0xff]
        %1035 = vst [vmem:[%s871 + $0x288] sm:$0xff] %v1034
        %v1036 = vld [vmem:[%s870 + $0x290] sm:$0xff]
        %1037 = vst [vmem:[%s871 + $0x290] sm:$0xff] %v1036
        %v1038 = vld [vmem:[%s870 + $0x298] sm:$0xff]
        %1039 = vst [vmem:[%s871 + $0x298] sm:$0xff] %v1038
        %v1040 = vld [vmem:[%s870 + $0x2a0] sm:$0xff]
        %1041 = vst [vmem:[%s871 + $0x2a0] sm:$0xff] %v1040
        %v1042 = vld [vmem:[%s870 + $0x2a8] sm:$0xff]
        %1043 = vst [vmem:[%s871 + $0x2a8] sm:$0xff] %v1042
        %v1044 = vld [vmem:[%s870 + $0x2b0] sm:$0xff]
        %1045 = vst [vmem:[%s871 + $0x2b0] sm:$0xff] %v1044
        %v1046 = vld [vmem:[%s870 + $0x2b8] sm:$0xff]
        %1047 = vst [vmem:[%s871 + $0x2b8] sm:$0xff] %v1046
        %v1048 = vld [vmem:[%s870 + $0x2c0] sm:$0xff]
        %1049 = vst [vmem:[%s871 + $0x2c0] sm:$0xff] %v1048
        %v1050 = vld [vmem:[%s870 + $0x2c8] sm:$0xff]
        %1051 = vst [vmem:[%s871 + $0x2c8] sm:$0xff] %v1050
        %v1052 = vld [vmem:[%s870 + $0x2d0] sm:$0xff]
        %1053 = vst [vmem:[%s871 + $0x2d0] sm:$0xff] %v1052
        %v1054 = vld [vmem:[%s870 + $0x2d8] sm:$0xff]
        %1055 = vst [vmem:[%s871 + $0x2d8] sm:$0xff] %v1054
        %v1056 = vld [vmem:[%s870 + $0x2e0] sm:$0xff]
        %1057 = vst [vmem:[%s871 + $0x2e0] sm:$0xff] %v1056
        %v1058 = vld [vmem:[%s870 + $0x2e8] sm:$0xff]
        %1059 = vst [vmem:[%s871 + $0x2e8] sm:$0xff] %v1058
        %v1060 = vld [vmem:[%s870 + $0x2f0] sm:$0xff]
        %1061 = vst [vmem:[%s871 + $0x2f0] sm:$0xff] %v1060
        %v1062 = vld [vmem:[%s870 + $0x2f8] sm:$0xff]
        %1063 = vst [vmem:[%s871 + $0x2f8] sm:$0xff] %v1062
        %v1064 = vld [vmem:[%s870 + $0x300] sm:$0xff]
        %1065 = vst [vmem:[%s871 + $0x300] sm:$0xff] %v1064
        %v1066 = vld [vmem:[%s870 + $0x308] sm:$0xff]
        %1067 = vst [vmem:[%s871 + $0x308] sm:$0xff] %v1066
        %v1068 = vld [vmem:[%s870 + $0x310] sm:$0xff]
        %1069 = vst [vmem:[%s871 + $0x310] sm:$0xff] %v1068
        %v1070 = vld [vmem:[%s870 + $0x318] sm:$0xff]
        %1071 = vst [vmem:[%s871 + $0x318] sm:$0xff] %v1070
        %v1072 = vld [vmem:[%s870 + $0x320] sm:$0xff]
        %1073 = vst [vmem:[%s871 + $0x320] sm:$0xff] %v1072
        %v1074 = vld [vmem:[%s870 + $0x328] sm:$0xff]
        %1075 = vst [vmem:[%s871 + $0x328] sm:$0xff] %v1074
        %v1076 = vld [vmem:[%s870 + $0x330] sm:$0xff]
        %1077 = vst [vmem:[%s871 + $0x330] sm:$0xff] %v1076
        %v1078 = vld [vmem:[%s870 + $0x338] sm:$0xff]
        %1079 = vst [vmem:[%s871 + $0x338] sm:$0xff] %v1078
        %v1080 = vld [vmem:[%s870 + $0x340] sm:$0xff]
        %1081 = vst [vmem:[%s871 + $0x340] sm:$0xff] %v1080
        %v1082 = vld [vmem:[%s870 + $0x348] sm:$0xff]
        %1083 = vst [vmem:[%s871 + $0x348] sm:$0xff] %v1082
        %v1084 = vld [vmem:[%s870 + $0x350] sm:$0xff]
        %1085 = vst [vmem:[%s871 + $0x350] sm:$0xff] %v1084
        %v1086 = vld [vmem:[%s870 + $0x358] sm:$0xff]
        %1087 = vst [vmem:[%s871 + $0x358] sm:$0xff] %v1086
        %v1088 = vld [vmem:[%s870 + $0x360] sm:$0xff]
        %1089 = vst [vmem:[%s871 + $0x360] sm:$0xff] %v1088
        %v1090 = vld [vmem:[%s870 + $0x368] sm:$0xff]
        %1091 = vst [vmem:[%s871 + $0x368] sm:$0xff] %v1090
        %v1092 = vld [vmem:[%s870 + $0x370] sm:$0xff]
        %1093 = vst [vmem:[%s871 + $0x370] sm:$0xff] %v1092
        %v1094 = vld [vmem:[%s870 + $0x378] sm:$0xff]
        %1095 = vst [vmem:[%s871 + $0x378] sm:$0xff] %v1094
        %v1096 = vld [vmem:[%s870 + $0x380] sm:$0xff]
        %1097 = vst [vmem:[%s871 + $0x380] sm:$0xff] %v1096
        %v1098 = vld [vmem:[%s870 + $0x388] sm:$0xff]
        %1099 = vst [vmem:[%s871 + $0x388] sm:$0xff] %v1098
        %v1100 = vld [vmem:[%s870 + $0x390] sm:$0xff]
        %1101 = vst [vmem:[%s871 + $0x390] sm:$0xff] %v1100
        %v1102 = vld [vmem:[%s870 + $0x398] sm:$0xff]
        %1103 = vst [vmem:[%s871 + $0x398] sm:$0xff] %v1102
        %v1104 = vld [vmem:[%s870 + $0x3a0] sm:$0xff]
        %1105 = vst [vmem:[%s871 + $0x3a0] sm:$0xff] %v1104
        %v1106 = vld [vmem:[%s870 + $0x3a8] sm:$0xff]
        %1107 = vst [vmem:[%s871 + $0x3a8] sm:$0xff] %v1106
        %v1108 = vld [vmem:[%s870 + $0x3b0] sm:$0xff]
        %1109 = vst [vmem:[%s871 + $0x3b0] sm:$0xff] %v1108
        %v1110 = vld [vmem:[%s870 + $0x3b8] sm:$0xff]
        %1111 = vst [vmem:[%s871 + $0x3b8] sm:$0xff] %v1110
      $region211: #{ae_forward.1} parent=205 // loop_footer
        %s869 = sadd.s32 1, %s865
      $region212: #{ae_forward.1} parent=205 // loop_footer_branch
        %864 = sbr.rel target = $region208
      $region213: #{ae_forward.1} parent=205 // loop_exit
        _
    $region206: #{ae_forward.1} parent=190 // pred_fallthru
      _
    %p1112 = pneg %p860
    // Predicated region
    $region214: #{ae_forward.1} parent=190 // pred_check
      _
    $region215: #{ae_forward.1} parent=190 // pred_check_branch
      %1114 = sbr.rel (%p860) target = $region217
    $region216: #{ae_forward.1} parent=190 // pred_region
      %s1115 = sand.u32 960, 7
    $region217: #{ae_forward.1} parent=190 // pred_fallthru
      _
  $region191: #{ae_forward.1} parent=0 // pred_fallthru
    _
  // Predicated region
  $region192: #{ae_forward.1} parent=0 // pred_check
    %p844 = pneg %p840
  $region193: #{ae_forward.1} parent=0 // pred_check_branch
    %846 = sbr.rel (%p844) target = $region195
  $region194: #{ae_forward.1} parent=0 // pred_region
    %s847 = sshll.u32 1, 960
    %s848 = ssub.s32 %s847, 1
    loop: start=0, step=1, limit=1
    $region196: #{ae_forward.1} parent=194 // loop_pre_header
      _
    $region197: #{ae_forward.1} parent=194 // loop_header
      %s850 = sphi 0, %s854
      %p851 = scmp.ge.s32.totalorder %s850, 1
      %s855 = sphi %s24, %s24
      %s856 = sphi [#allocation5], [#allocation5]
    $region198: #{ae_forward.1} parent=194 // loop_header_branch
      %853 = sbr.rel (%p851) target = $region202
    $region199: #{ae_forward.1} parent=194 // loop_body
      %v857 = vld [vmem:[%s855] sm:%s848]
      %858 = vst [vmem:[%s856] sm:%s848] %v857
    $region200: #{ae_forward.1} parent=194 // loop_footer
      %s854 = sadd.s32 1, %s850
    $region201: #{ae_forward.1} parent=194 // loop_footer_branch
      %849 = sbr.rel target = $region197
    $region202: #{ae_forward.1} parent=194 // loop_exit
      _
  $region195: #{ae_forward.1} parent=0 // pred_fallthru
    _
  // Predicated region
  $region218: #{ae_forward.1} parent=0 // pred_check
    _
  $region219: #{ae_forward.1} parent=0 // pred_check_branch
    %1118 = sbr.rel (0) target = $region221
  $region220: #{ae_forward.1} parent=0 // pred_region
    %1119 = vsyncadd %s838, 15360
  $region221: #{ae_forward.1} parent=0 // pred_fallthru
    _
  %v1120 = vld [vmem:[%s0] sm:$0xff]
  %v1121 = vld [vmem:[%s0 + $0x8] sm:$0xff]
  %v1122 = vld [vmem:[%s0 + $0x10] sm:$0xff]
  %v1123 = vld [vmem:[%s0 + $0x18] sm:$0xff]
  %v1124 = vld [vmem:[%s3] sm:$0x3]
  %v1125 = vpack.c.bf16 %v1121, %v1120
  %v1126 = vpack.c.bf16 %v1123, %v1122
  %v1127 = vld [vmem:[%s2] sm:$0x1]
  %v1129 = vlaneseq
  %v1130 = vshrl.u32 %v1129, 7
  %v1131 = vsub.s32 0, %v1130
  %v1132 = vrot.slane %v1127, %v1131
  %vm1134 = vcmask 23552
  %v1136 = vsel %vm1134, %v1125, 0
  %v1139 = vsel %vm1134, %v1126, 0
  %vm1141 = vcmask 1040384
  %vm1142 = vcmask 1041408
  %v1143 = vsel %vm1141, 4294967295, 65535
  %v1144 = vsel %vm1142, %v1143, 0
  %v1146 = vand.u32 %v1124, %v1144
  %1148 = vmatprep.subr.bf16.mxu0 0
  %1149 = vmatpush1.bf16.msra.mxu0 0
  %1150 = vmatprep.subr.bf16.mxu0 0
  %1151 = vmatpush1.bf16.msra.mxu0 0
  %1152 = vmatprep.subr.bf16.mxu0 0
  %1153 = vmatpush1.bf16.msra.mxu0 0
  %1154 = vmatprep.subr.bf16.mxu0 0
  %1155 = vmatpush1.bf16.msra.mxu0 0
  %1156 = vmatprep.subr.bf16.mxu0 0
  %1157 = vmatpush1.bf16.msra.mxu0 0
  %1158 = vmatprep.subr.bf16.mxu0 0
  %1159 = vmatpush1.bf16.msra.mxu0 0
  %1160 = vmatprep.subr.bf16.mxu0 0
  %1161 = vmatpush1.bf16.msra.mxu0 0
  %1162 = vmatprep.subr.bf16.mxu0 0
  %1163 = vmatpush1.bf16.msra.mxu0 %v1146
  %1164 = vmatprep.subr.bf16.mxu0 0
  %1165 = vmatpush2.bf16.msra.mxu0 0
  %1166 = vmatprep.subr.bf16.mxu0 0
  %1167 = vmatpush2.bf16.msra.mxu0 0
  %1168 = vmatprep.subr.bf16.mxu0 0
  %1169 = vmatpush2.bf16.msra.mxu0 0
  %1170 = vmatprep.subr.bf16.mxu0 0
  %1171 = vmatpush2.bf16.msra.mxu0 0
  %1172 = vmatprep.subr.bf16.mxu0 0
  %1173 = vmatpush2.bf16.msra.mxu0 0
  %1174 = vmatprep.subr.bf16.mxu0 0
  %1175 = vmatpush2.bf16.msra.mxu0 0
  %1176 = vmatprep.subr.bf16.mxu0 0
  %1177 = vmatpush2.bf16.msra.mxu0 0
  %1178 = vmatprep.subr.bf16.mxu0 0
  %1179 = vmatpush2.bf16.msra.mxu0 0
  %1180 = vmatprep.mubr.bf16.mxu0 0
  %1181 = vmatmul.mubr.bf16.gmra.mxu0 %v1136
  %v1182 = vpop.f32.mrf.mxu0
  %v1183 = vadd.f32 %v1132, %v1182
  %v1184 = vpop.f32.mrf.mxu0
  %v1185 = vpop.f32.mrf.mxu0
  %v1186 = vadd.f32 %v1132, %v1185
  %v1187 = vpop.f32.mrf.mxu0
  %1188 = vmatprep.mubr.bf16.mxu0 0
  %1189 = vmatmul.mubr.bf16.gmra.mxu0 %v1139
  %v1190 = vpop.f32.mrf.mxu0
  %v1191 = vadd.f32 %v1132, %v1190
  %v1192 = vpop.f32.mrf.mxu0
  %v1193 = vpop.f32.mrf.mxu0
  %v1194 = vadd.f32 %v1132, %v1193
  %v1195 = vpop.f32.mrf.mxu0
  %1196 = vdwg.mxu0
  %v1197 = vld [vmem:[%s2 + $0x1] sm:$0x1]
  %v1198 = vld [vmem:[%s2 + $0x2] sm:$0x1]
  %vm1199 = vcmask 523264
  %v1200 = vsel %vm1199, %v1183, 0.0
  %v1201 = vsel %vm1199, %v1186, 0.0
  %v1202 = vadd.f32 %v1200, %v1201
  %v1203 = vsel %vm1199, %v1191, 0.0
  %v1204 = vadd.f32 %v1202, %v1203
  %v1205 = vsel %vm1199, %v1194, 0.0
  %v1206 = vadd.f32 %v1204, %v1205
  %v1207 = vrot.slane %v1206, 4
  %v1208 = vadd.f32 %v1206, %v1207
  %v1209 = vrot.slane %v1208, 2
  %v1210 = vadd.f32 %v1208, %v1209
  %v1211 = vrot.slane %v1210, 1
  %v1212 = vadd.f32 %v1210, %v1211
  %v1213 = vrcp.pop 32.0
  %v1214 = vmul.f32 %v1212, %v1213
  %v1215 = vsub.f32 %v1183, %v1214
  %v1216 = vsub.f32 %v1186, %v1214
  %v1217 = vsub.f32 %v1191, %v1214
  %v1218 = vsub.f32 %v1194, %v1214
  %v1219 = vmul.f32 %v1215, %v1215
  %v1220 = vmul.f32 %v1216, %v1216
  %v1221 = vmul.f32 %v1217, %v1217
  %v1222 = vmul.f32 %v1218, %v1218
  %v1223 = vsel %vm1199, %v1219, 0.0
  %v1224 = vsel %vm1199, %v1220, 0.0
  %v1225 = vadd.f32 %v1223, %v1224
  %v1226 = vsel %vm1199, %v1221, 0.0
  %v1227 = vadd.f32 %v1225, %v1226
  %v1228 = vsel %vm1199, %v1222, 0.0
  %v1229 = vadd.f32 %v1227, %v1228
  %v1230 = vrot.slane %v1229, 4
  %v1231 = vadd.f32 %v1229, %v1230
  %v1232 = vrot.slane %v1231, 2
  %v1233 = vadd.f32 %v1231, %v1232
  %v1234 = vrot.slane %v1233, 1
  %v1235 = vadd.f32 %v1233, %v1234
  %v1236 = vmul.f32 %v1235, %v1213
  %v1237 = vadd.f32 %v1236, 1e-05
  %v1238 = vrsqrt.pop %v1237
  %v1239 = vmul.f32 %v1215, %v1238
  %v1240 = vmul.f32 %v1216, %v1238
  %v1241 = vmul.f32 %v1217, %v1238
  %v1242 = vmul.f32 %v1218, %v1238
  %v1244 = vlaneseq
  %v1245 = vshrl.u32 %v1244, 7
  %v1246 = vsub.s32 0, %v1245
  %v1247 = vrot.slane %v1197, %v1246
  %v1249 = vmul.f32 %v1239, %v1247
  %v1250 = vmul.f32 %v1240, %v1247
  %v1251 = vmul.f32 %v1241, %v1247
  %v1252 = vmul.f32 %v1242, %v1247
  %v1254 = vlaneseq
  %v1255 = vshrl.u32 %v1254, 7
  %v1256 = vsub.s32 0, %v1255
  %v1257 = vrot.slane %v1198, %v1256
  %v1259 = vadd.f32 %v1249, %v1257
  %v1260 = vadd.f32 %v1250, %v1257
  %v1261 = vadd.f32 %v1251, %v1257
  %v1262 = vadd.f32 %v1252, %v1257
  %v1263 = vld [vmem:[%s4] sm:$0xf]
  %v1264 = vld [vmem:[%s4 + $0x4] sm:$0xf]
  %v1265 = vld [vmem:[%s4 + $0x8] sm:$0xf]
  %v1266 = vld [vmem:[%s4 + $0xc] sm:$0xf]
  %v1267 = vld [vmem:[%s4 + $0x10] sm:$0xf]
  %v1268 = vld [vmem:[%s4 + $0x14] sm:$0xf]
  %v1269 = vld [vmem:[%s4 + $0x18] sm:$0xf]
  %v1270 = vld [vmem:[%s4 + $0x1c] sm:$0xf]
  %v1271 = vpack.c.bf16 %v1260, %v1259
  %v1272 = vpack.c.bf16 %v1262, %v1261
  %v1273 = vld [vmem:[%s2 + $0x3] sm:$0x1]
  %v1275 = vlaneseq
  %v1276 = vshrl.u32 %v1275, 7
  %v1277 = vsub.s32 0, %v1276
  %v1278 = vrot.slane %v1273, %v1277
  %v1288 = vunpack.c.l.b16 %v1263
  %v1289 = vunpack.c.l.b16 %v1264
  %v1290 = vunpack.c.l.b16 %v1265
  %v1291 = vunpack.c.l.b16 %v1266
  %v1292 = vunpack.c.l.b16 %v1267
  %v1293 = vunpack.c.l.b16 %v1268
  %v1294 = vunpack.c.l.b16 %v1269
  %v1295 = vunpack.c.l.b16 %v1270
  %v1296 = vpack.c.b16 %v1289, %v1288
  %v1297 = vpack.c.b16 %v1291, %v1290
  %v1298 = vpack.c.b16 %v1293, %v1292
  %v1299 = vpack.c.b16 %v1295, %v1294
  %v1305 = vsel %vm1199, %v1271, 0
  %v1308 = vsel %vm1199, %v1272, 0
  %1310 = vmatprep.subr.bf16.mxu0 0
  %1311 = vmatpush1.bf16.msra.mxu0 0
  %1312 = vmatprep.subr.bf16.mxu0 0
  %1313 = vmatpush1.bf16.msra.mxu0 0
  %1314 = vmatprep.subr.bf16.mxu0 0
  %1315 = vmatpush1.bf16.msra.mxu0 0
  %1316 = vmatprep.subr.bf16.mxu0 0
  %1317 = vmatpush1.bf16.msra.mxu0 0
  %1318 = vmatprep.subr.bf16.mxu0 0
  %1319 = vmatpush1.bf16.msra.mxu0 %v1299
  %1320 = vmatprep.subr.bf16.mxu0 0
  %1321 = vmatpush1.bf16.msra.mxu0 %v1298
  %1322 = vmatprep.subr.bf16.mxu0 0
  %1323 = vmatpush1.bf16.msra.mxu0 %v1297
  %1324 = vmatprep.subr.bf16.mxu0 0
  %1325 = vmatpush1.bf16.msra.mxu0 %v1296
  %1326 = vmatprep.subr.bf16.mxu0 0
  %1327 = vmatpush2.bf16.msra.mxu0 0
  %1328 = vmatprep.subr.bf16.mxu0 0
  %1329 = vmatpush2.bf16.msra.mxu0 0
  %1330 = vmatprep.subr.bf16.mxu0 0
  %1331 = vmatpush2.bf16.msra.mxu0 0
  %1332 = vmatprep.subr.bf16.mxu0 0
  %1333 = vmatpush2.bf16.msra.mxu0 0
  %1334 = vmatprep.subr.bf16.mxu0 0
  %1335 = vmatpush2.bf16.msra.mxu0 0
  %1336 = vmatprep.subr.bf16.mxu0 0
  %1337 = vmatpush2.bf16.msra.mxu0 0
  %1338 = vmatprep.subr.bf16.mxu0 0
  %1339 = vmatpush2.bf16.msra.mxu0 0
  %1340 = vmatprep.subr.bf16.mxu0 0
  %1341 = vmatpush2.bf16.msra.mxu0 0
  %1342 = vmatprep.mubr.bf16.mxu0 0
  %1343 = vmatmul.mubr.bf16.gmra.mxu0 %v1305
  %v1344 = vpop.f32.mrf.mxu0
  %v1345 = vadd.f32 %v1278, %v1344
  %v1346 = vpop.f32.mrf.mxu0
  %v1347 = vpop.f32.mrf.mxu0
  %v1348 = vadd.f32 %v1278, %v1347
  %v1349 = vpop.f32.mrf.mxu0
  %1350 = vmatprep.mubr.bf16.mxu0 0
  %1351 = vmatmul.mubr.bf16.gmra.mxu0 %v1308
  %v1352 = vpop.f32.mrf.mxu0
  %v1353 = vadd.f32 %v1278, %v1352
  %v1354 = vpop.f32.mrf.mxu0
  %v1355 = vpop.f32.mrf.mxu0
  %v1356 = vadd.f32 %v1278, %v1355
  %v1357 = vpop.f32.mrf.mxu0
  %1358 = vdwg.mxu0
  %v1359 = vld [vmem:[%s2 + $0x4] sm:$0x1]
  %v1360 = vld [vmem:[%s2 + $0x5] sm:$0x1]
  %v1361 = vadd.f32 %v1345, %v1348
  %v1362 = vadd.f32 %v1361, %v1353
  %v1363 = vadd.f32 %v1362, %v1356
  %v1364 = vrot.slane %v1363, 4
  %v1365 = vadd.f32 %v1363, %v1364
  %v1366 = vrot.slane %v1365, 2
  %v1367 = vadd.f32 %v1365, %v1366
  %v1368 = vrot.slane %v1367, 1
  %v1369 = vadd.f32 %v1367, %v1368
  %v1370 = vmul.f32 %v1369, %v1213
  %v1371 = vsub.f32 %v1345, %v1370
  %v1372 = vsub.f32 %v1348, %v1370
  %v1373 = vsub.f32 %v1353, %v1370
  %v1374 = vsub.f32 %v1356, %v1370
  %v1375 = vmul.f32 %v1371, %v1371
  %v1376 = vmul.f32 %v1372, %v1372
  %v1377 = vmul.f32 %v1373, %v1373
  %v1378 = vmul.f32 %v1374, %v1374
  %v1379 = vadd.f32 %v1375, %v1376
  %v1380 = vadd.f32 %v1379, %v1377
  %v1381 = vadd.f32 %v1380, %v1378
  %v1382 = vrot.slane %v1381, 4
  %v1383 = vadd.f32 %v1381, %v1382
  %v1384 = vrot.slane %v1383, 2
  %v1385 = vadd.f32 %v1383, %v1384
  %v1386 = vrot.slane %v1385, 1
  %v1387 = vadd.f32 %v1385, %v1386
  %v1388 = vmul.f32 %v1387, %v1213
  %v1389 = vadd.f32 %v1388, 1e-05
  %v1390 = vrsqrt.pop %v1389
  %v1391 = vmul.f32 %v1371, %v1390
  %v1392 = vmul.f32 %v1372, %v1390
  %v1393 = vmul.f32 %v1373, %v1390
  %v1394 = vmul.f32 %v1374, %v1390
  %v1396 = vlaneseq
  %v1397 = vshrl.u32 %v1396, 7
  %v1398 = vsub.s32 0, %v1397
  %v1399 = vrot.slane %v1359, %v1398
  %v1401 = vmul.f32 %v1391, %v1399
  %v1402 = vmul.f32 %v1392, %v1399
  %v1403 = vmul.f32 %v1393, %v1399
  %v1404 = vmul.f32 %v1394, %v1399
  %v1406 = vlaneseq
  %v1407 = vshrl.u32 %v1406, 7
  %v1408 = vsub.s32 0, %v1407
  %v1409 = vrot.slane %v1360, %v1408
  %v1411 = vadd.f32 %v1401, %v1409
  %v1412 = vadd.f32 %v1402, %v1409
  %v1413 = vadd.f32 %v1403, %v1409
  %v1414 = vadd.f32 %v1404, %v1409
  %v1415 = vmax.f32 %v1411, %v1412
  %v1416 = vrot.slane %v1415, 4
  %v1417 = vmax.f32 %v1415, %v1416
  %v1418 = vrot.slane %v1417, 2
  %v1419 = vmax.f32 %v1417, %v1418
  %v1420 = vrot.slane %v1419, 1
  %v1421 = vmax.f32 %v1419, %v1420
  %v1422 = vmax.f32 %v1413, %v1414
  %v1423 = vrot.slane %v1422, 4
  %v1424 = vmax.f32 %v1422, %v1423
  %v1425 = vrot.slane %v1424, 2
  %v1426 = vmax.f32 %v1424, %v1425
  %v1427 = vrot.slane %v1426, 1
  %v1428 = vmax.f32 %v1426, %v1427
  %v1429 = vld [vmem:[%s5] sm:$0xf]
  %v1430 = vld [vmem:[%s5 + $0x4] sm:$0xf]
  %v1431 = vld [vmem:[%s5 + $0x8] sm:$0xf]
  %v1432 = vld [vmem:[%s5 + $0xc] sm:$0xf]
  %v1433 = vld [vmem:[%s5 + $0x10] sm:$0xf]
  %v1434 = vld [vmem:[%s5 + $0x14] sm:$0xf]
  %v1435 = vld [vmem:[%s5 + $0x18] sm:$0xf]
  %v1436 = vld [vmem:[%s5 + $0x1c] sm:$0xf]
  %v1437 = vld [vmem:[%s5 + $0x20] sm:$0xf]
  %v1438 = vld [vmem:[%s5 + $0x24] sm:$0xf]
  %v1439 = vld [vmem:[%s5 + $0x28] sm:$0xf]
  %v1440 = vld [vmem:[%s5 + $0x2c] sm:$0xf]
  %v1441 = vld [vmem:[%s5 + $0x30] sm:$0xf]
  %v1442 = vld [vmem:[%s5 + $0x34] sm:$0xf]
  %v1443 = vld [vmem:[%s5 + $0x38] sm:$0xf]
  %v1444 = vld [vmem:[%s5 + $0x3c] sm:$0xf]
  %v1445 = vpack.c.bf16 %v1421, %v1421
  %v1446 = vpack.c.bf16 %v1428, %v1428
  %v1447 = vld [vmem:[%s2 + $0x6] sm:$0x1]
  %v1449 = vlaneseq
  %v1450 = vshrl.u32 %v1449, 7
  %v1451 = vsub.s32 0, %v1450
  %v1452 = vrot.slane %v1447, %v1451
  %v1456 = vunpack.c.l.b16 %v1445
  %v1457 = vunpack.c.l.b16 %v1446
  %vm1458 = vcmask 1041409
  %v1459 = vsel %vm1458, %v1457, %v1456
  %v1460 = vpack.c.b16 %v1459, %v1459
  %v1478 = vunpack.c.l.b16 %v1429
  %v1479 = vunpack.c.l.b16 %v1430
  %v1480 = vunpack.c.l.b16 %v1431
  %v1481 = vunpack.c.l.b16 %v1432
  %v1482 = vunpack.c.l.b16 %v1433
  %v1483 = vunpack.c.l.b16 %v1434
  %v1484 = vunpack.c.l.b16 %v1435
  %v1485 = vunpack.c.l.b16 %v1436
  %v1486 = vunpack.c.l.b16 %v1437
  %v1487 = vunpack.c.l.b16 %v1438
  %v1488 = vunpack.c.l.b16 %v1439
  %v1489 = vunpack.c.l.b16 %v1440
  %v1490 = vunpack.c.l.b16 %v1441
  %v1491 = vunpack.c.l.b16 %v1442
  %v1492 = vunpack.c.l.b16 %v1443
  %v1493 = vunpack.c.l.b16 %v1444
  %v1494 = vpack.c.b16 %v1479, %v1478
  %v1495 = vpack.c.b16 %v1481, %v1480
  %v1496 = vpack.c.b16 %v1483, %v1482
  %v1497 = vpack.c.b16 %v1485, %v1484
  %v1498 = vpack.c.b16 %v1487, %v1486
  %v1499 = vpack.c.b16 %v1489, %v1488
  %v1500 = vpack.c.b16 %v1491, %v1490
  %v1501 = vpack.c.b16 %v1493, %v1492
  %1510 = vmatprep.subr.bf16.mxu0 0
  %1511 = vmatpush1.bf16.msra.mxu0 %v1501
  %1512 = vmatprep.subr.bf16.mxu0 0
  %1513 = vmatpush1.bf16.msra.mxu0 %v1500
  %1514 = vmatprep.subr.bf16.mxu0 0
  %1515 = vmatpush1.bf16.msra.mxu0 %v1499
  %1516 = vmatprep.subr.bf16.mxu0 0
  %1517 = vmatpush1.bf16.msra.mxu0 %v1498
  %1518 = vmatprep.subr.bf16.mxu0 0
  %1519 = vmatpush1.bf16.msra.mxu0 %v1497
  %1520 = vmatprep.subr.bf16.mxu0 0
  %1521 = vmatpush1.bf16.msra.mxu0 %v1496
  %1522 = vmatprep.subr.bf16.mxu0 0
  %1523 = vmatpush1.bf16.msra.mxu0 %v1495
  %1524 = vmatprep.subr.bf16.mxu0 0
  %1525 = vmatpush1.bf16.msra.mxu0 %v1494
  %1526 = vmatprep.subr.bf16.mxu0 0
  %1527 = vmatpush2.bf16.msra.mxu0 0
  %1528 = vmatprep.subr.bf16.mxu0 0
  %1529 = vmatpush2.bf16.msra.mxu0 0
  %1530 = vmatprep.subr.bf16.mxu0 0
  %1531 = vmatpush2.bf16.msra.mxu0 0
  %1532 = vmatprep.subr.bf16.mxu0 0
  %1533 = vmatpush2.bf16.msra.mxu0 0
  %1534 = vmatprep.subr.bf16.mxu0 0
  %1535 = vmatpush2.bf16.msra.mxu0 0
  %1536 = vmatprep.subr.bf16.mxu0 0
  %1537 = vmatpush2.bf16.msra.mxu0 0
  %1538 = vmatprep.subr.bf16.mxu0 0
  %1539 = vmatpush2.bf16.msra.mxu0 0
  %1540 = vmatprep.subr.bf16.mxu0 0
  %1541 = vmatpush2.bf16.msra.mxu0 0
  %1542 = vmatprep.mubr.bf16.mxu0 0
  %1543 = vmatmul.mubr.bf16.gmra.mxu0 %v1460
  %v1544 = vpop.f32.mrf.mxu0
  %v1545 = vadd.f32 %v1452, %v1544
  %v1546 = vpop.f32.mrf.mxu0
  %v1547 = vpop.f32.mrf.mxu0
  %v1548 = vpop.f32.mrf.mxu0
  %1549 = vdwg.mxu0
  %v1550 = vtanh.pop %v1545
  %v1551 = vld [vmem:[%s6] sm:$0xf]
  %v1552 = vld [vmem:[%s6 + $0x4] sm:$0xf]
  %v1553 = vld [vmem:[%s6 + $0x8] sm:$0xf]
  %v1554 = vld [vmem:[%s6 + $0xc] sm:$0xf]
  %v1555 = vld [vmem:[%s6 + $0x10] sm:$0xf]
  %v1556 = vld [vmem:[%s6 + $0x14] sm:$0xf]
  %v1557 = vld [vmem:[%s6 + $0x18] sm:$0xf]
  %v1558 = vld [vmem:[%s6 + $0x1c] sm:$0xf]
  %v1559 = vpack.c.bf16 %v1550, %v1550
  %v1560 = vld [vmem:[%s2 + $0x7] sm:$0x1]
  %v1562 = vlaneseq
  %v1563 = vshrl.u32 %v1562, 7
  %v1564 = vsub.s32 0, %v1563
  %v1565 = vrot.slane %v1560, %v1564
  %v1575 = vunpack.c.l.b16 %v1551
  %v1576 = vunpack.c.l.b16 %v1552
  %v1577 = vunpack.c.l.b16 %v1553
  %v1578 = vunpack.c.l.b16 %v1554
  %v1579 = vunpack.c.l.b16 %v1555
  %v1580 = vunpack.c.l.b16 %v1556
  %v1581 = vunpack.c.l.b16 %v1557
  %v1582 = vunpack.c.l.b16 %v1558
  %v1583 = vpack.c.b16 %v1576, %v1575
  %v1584 = vpack.c.b16 %v1578, %v1577
  %v1585 = vpack.c.b16 %v1580, %v1579
  %v1586 = vpack.c.b16 %v1582, %v1581
  %v1592 = vsel %vm1199, %v1559, 0
  %1594 = vmatprep.subr.bf16.mxu0 0
  %1595 = vmatpush1.bf16.msra.mxu0 0
  %1596 = vmatprep.subr.bf16.mxu0 0
  %1597 = vmatpush1.bf16.msra.mxu0 0
  %1598 = vmatprep.subr.bf16.mxu0 0
  %1599 = vmatpush1.bf16.msra.mxu0 0
  %1600 = vmatprep.subr.bf16.mxu0 0
  %1601 = vmatpush1.bf16.msra.mxu0 0
  %1602 = vmatprep.subr.bf16.mxu0 0
  %1603 = vmatpush1.bf16.msra.mxu0 %v1586
  %1604 = vmatprep.subr.bf16.mxu0 0
  %1605 = vmatpush1.bf16.msra.mxu0 %v1585
  %1606 = vmatprep.subr.bf16.mxu0 0
  %1607 = vmatpush1.bf16.msra.mxu0 %v1584
  %1608 = vmatprep.subr.bf16.mxu0 0
  %1609 = vmatpush1.bf16.msra.mxu0 %v1583
  %1610 = vmatprep.subr.bf16.mxu0 0
  %1611 = vmatpush2.bf16.msra.mxu0 0
  %1612 = vmatprep.subr.bf16.mxu0 0
  %1613 = vmatpush2.bf16.msra.mxu0 0
  %1614 = vmatprep.subr.bf16.mxu0 0
  %1615 = vmatpush2.bf16.msra.mxu0 0
  %1616 = vmatprep.subr.bf16.mxu0 0
  %1617 = vmatpush2.bf16.msra.mxu0 0
  %1618 = vmatprep.subr.bf16.mxu0 0
  %1619 = vmatpush2.bf16.msra.mxu0 0
  %1620 = vmatprep.subr.bf16.mxu0 0
  %1621 = vmatpush2.bf16.msra.mxu0 0
  %1622 = vmatprep.subr.bf16.mxu0 0
  %1623 = vmatpush2.bf16.msra.mxu0 0
  %1624 = vmatprep.subr.bf16.mxu0 0
  %1625 = vmatpush2.bf16.msra.mxu0 0
  %1626 = vmatprep.mubr.bf16.mxu0 0
  %1627 = vmatmul.mubr.bf16.gmra.mxu0 %v1592
  %v1628 = vpop.f32.mrf.mxu0
  %v1629 = vadd.f32 %v1565, %v1628
  %v1630 = vpop.f32.mrf.mxu0
  %v1631 = vpop.f32.mrf.mxu0
  %v1632 = vpop.f32.mrf.mxu0
  %1633 = vdwg.mxu0
  %v1634 = vtanh.pop %v1629
  %v1635 = vld [vmem:[%s7] sm:$0xff]
  %v1636 = vld [vmem:[%s7 + $0x8] sm:$0xff]
  %v1637 = vld [vmem:[%s7 + $0x10] sm:$0xff]
  %v1638 = vld [vmem:[%s7 + $0x18] sm:$0x77]
  %v1639 = vpack.c.bf16 %v1634, %v1634
  %v1640 = vld [vmem:[%s2 + $0x8] sm:$0x3]
  %v1642 = vlaneseq
  %v1643 = vshrl.u32 %v1642, 7
  %v1644 = vsub.s32 0, %v1643
  %v1645 = vrot.slane %v1640, %v1644
  %v1646 = vlaneseq
  %v1647 = vshrl.u32 %v1646, 7
  %v1648 = vsub.s32 1, %v1647
  %v1649 = vrot.slane %v1640, %v1648
  %v1656 = vunpack.c.l.b16 %v1635
  %v1657 = vunpack.c.h.b16 %v1635
  %v1658 = vunpack.c.l.b16 %v1636
  %v1659 = vunpack.c.h.b16 %v1636
  %v1660 = vunpack.c.l.b16 %v1637
  %v1661 = vunpack.c.h.b16 %v1637
  %v1662 = vunpack.c.l.b16 %v1638
  %v1663 = vunpack.c.h.b16 %v1638
  %v1664 = vpack.c.b16 %v1658, %v1656
  %v1665 = vpack.c.b16 %v1659, %v1657
  %v1666 = vpack.c.b16 %v1662, %v1660
  %v1667 = vpack.c.b16 %v1663, %v1661
  %vm1670 = vcmask 244736
  %v1672 = vsel %vm1670, %v1639, 0
  %vm1674 = vcmask 1046528
  %v1676 = vsel %vm1674, %v1666, 0
  %v1679 = vsel %vm1674, %v1667, 0
  %1681 = vmatprep.subr.bf16.mxu0 0
  %1682 = vmatpush1.bf16.msra.mxu0 0
  %1683 = vmatprep.subr.bf16.mxu0 0
  %1684 = vmatpush1.bf16.msra.mxu0 0
  %1685 = vmatprep.subr.bf16.mxu0 0
  %1686 = vmatpush1.bf16.msra.mxu0 0
  %1687 = vmatprep.subr.bf16.mxu0 0
  %1688 = vmatpush1.bf16.msra.mxu0 0
  %1689 = vmatprep.subr.bf16.mxu0 0
  %1690 = vmatpush1.bf16.msra.mxu0 0
  %1691 = vmatprep.subr.bf16.mxu0 0
  %1692 = vmatpush1.bf16.msra.mxu0 0
  %1693 = vmatprep.subr.bf16.mxu0 %v1679
  %1694 = vmatpush1.bf16.msra.mxu0 %v1676
  %1695 = vmatprep.subr.bf16.mxu0 %v1665
  %1696 = vmatpush1.bf16.msra.mxu0 %v1664
  %1697 = vmatprep.subr.bf16.mxu0 0
  %1698 = vmatpush2.bf16.msra.mxu0 0
  %1699 = vmatprep.subr.bf16.mxu0 0
  %1700 = vmatpush2.bf16.msra.mxu0 0
  %1701 = vmatprep.subr.bf16.mxu0 0
  %1702 = vmatpush2.bf16.msra.mxu0 0
  %1703 = vmatprep.subr.bf16.mxu0 0
  %1704 = vmatpush2.bf16.msra.mxu0 0
  %1705 = vmatprep.subr.bf16.mxu0 0
  %1706 = vmatpush2.bf16.msra.mxu0 0
  %1707 = vmatprep.subr.bf16.mxu0 0
  %1708 = vmatpush2.bf16.msra.mxu0 0
  %1709 = vmatprep.subr.bf16.mxu0 0
  %1710 = vmatpush2.bf16.msra.mxu0 0
  %1711 = vmatprep.subr.bf16.mxu0 0
  %1712 = vmatpush2.bf16.msra.mxu0 0
  %1713 = vmatprep.mubr.bf16.mxu0 0
  %1714 = vmatmul.mubr.bf16.gmra.mxu0 %v1672
  %v1715 = vpop.f32.mrf.mxu0
  %v1716 = vadd.f32 %v1645, %v1715
  %v1717 = vpop.f32.mrf.mxu0
  %v1718 = vadd.f32 %v1649, %v1717
  %v1719 = vpop.f32.mrf.mxu0
  %v1720 = vpop.f32.mrf.mxu0
  %1721 = vdwg.mxu0
  %v1722 = vtanh.pop %v1716
  %v1723 = vtanh.pop %v1718
  %v1724 = vld [vmem:[%s8] sm:$0xf]
  %v1725 = vld [vmem:[%s8 + $0x4] sm:$0xf]
  %v1726 = vld [vmem:[%s8 + $0x8] sm:$0xf]
  %v1727 = vld [vmem:[%s8 + $0xc] sm:$0xf]
  %v1728 = vld [vmem:[%s8 + $0x10] sm:$0xf]
  %v1729 = vld [vmem:[%s8 + $0x14] sm:$0xf]
  %v1730 = vld [vmem:[%s8 + $0x18] sm:$0xf]
  %v1731 = vld [vmem:[%s8 + $0x1c] sm:$0xf]
  %v1732 = vld [vmem:[%s8 + $0x20] sm:$0xf]
  %v1733 = vld [vmem:[%s8 + $0x24] sm:$0xf]
  %v1734 = vld [vmem:[%s8 + $0x28] sm:$0xf]
  %v1735 = vld [vmem:[%s8 + $0x2c] sm:$0xf]
  %v1736 = vld [vmem:[%s8 + $0x30] sm:$0xf]
  %v1737 = vld [vmem:[%s8 + $0x34] sm:$0xf]
  %v1738 = vld [vmem:[%s8 + $0x38] sm:$0xf]
  %v1739 = vld [vmem:[%s8 + $0x3c] sm:$0xf]
  %v1740 = vld [vmem:[%s8 + $0x40] sm:$0xf]
  %v1741 = vld [vmem:[%s8 + $0x44] sm:$0xf]
  %v1742 = vld [vmem:[%s8 + $0x48] sm:$0xf]
  %v1743 = vld [vmem:[%s8 + $0x4c] sm:$0xf]
  %v1744 = vld [vmem:[%s8 + $0x50] sm:$0xf]
  %v1745 = vld [vmem:[%s8 + $0x54] sm:$0xf]
  %v1746 = vld [vmem:[%s8 + $0x58] sm:$0xf]
  %v1747 = vld [vmem:[%s8 + $0x5c] sm:$0xf]
  %v1748 = vld [vmem:[%s8 + $0x60] sm:$0xf]
  %v1749 = vpack.c.bf16 %v1722, %v1722
  %v1750 = vpack.c.bf16 %v1723, %v1723
  %v1751 = vld [vmem:[%s2 + $0xa] sm:$0x1]
  %v1753 = vlaneseq
  %v1754 = vshrl.u32 %v1753, 7
  %v1755 = vsub.s32 0, %v1754
  %v1756 = vrot.slane %v1751, %v1755
  %v1783 = vunpack.c.l.b16 %v1724
  %v1784 = vunpack.c.l.b16 %v1725
  %v1785 = vunpack.c.l.b16 %v1726
  %v1786 = vunpack.c.l.b16 %v1727
  %v1787 = vunpack.c.l.b16 %v1728
  %v1788 = vunpack.c.l.b16 %v1729
  %v1789 = vunpack.c.l.b16 %v1730
  %v1790 = vunpack.c.l.b16 %v1731
  %v1791 = vunpack.c.l.b16 %v1732
  %v1792 = vunpack.c.l.b16 %v1733
  %v1793 = vunpack.c.l.b16 %v1734
  %v1794 = vunpack.c.l.b16 %v1735
  %v1795 = vunpack.c.l.b16 %v1736
  %v1796 = vunpack.c.l.b16 %v1737
  %v1797 = vunpack.c.l.b16 %v1738
  %v1798 = vunpack.c.l.b16 %v1739
  %v1799 = vunpack.c.l.b16 %v1740
  %v1800 = vunpack.c.l.b16 %v1741
  %v1801 = vunpack.c.l.b16 %v1742
  %v1802 = vunpack.c.l.b16 %v1743
  %v1803 = vunpack.c.l.b16 %v1744
  %v1804 = vunpack.c.l.b16 %v1745
  %v1805 = vunpack.c.l.b16 %v1746
  %v1806 = vunpack.c.l.b16 %v1747
  %v1807 = vunpack.c.l.b16 %v1748
  %v1808 = vpack.c.b16 %v1784, %v1783
  %v1809 = vpack.c.b16 %v1786, %v1785
  %v1810 = vpack.c.b16 %v1788, %v1787
  %v1811 = vpack.c.b16 %v1790, %v1789
  %v1812 = vpack.c.b16 %v1792, %v1791
  %v1813 = vpack.c.b16 %v1794, %v1793
  %v1814 = vpack.c.b16 %v1796, %v1795
  %v1815 = vpack.c.b16 %v1798, %v1797
  %v1816 = vpack.c.b16 %v1800, %v1799
  %v1817 = vpack.c.b16 %v1802, %v1801
  %v1818 = vpack.c.b16 %v1804, %v1803
  %v1819 = vpack.c.b16 %v1806, %v1805
  %v1820 = vpack.c.b16 %v1807, %v1807
  %vm1833 = vcmask 588800
  %v1835 = vsel %vm1833, %v1750, 0
  %vm1837 = vcmask 1043456
  %v1839 = vsel %vm1837, %v1820, 0
  %1841 = vmatprep.subr.bf16.mxu0 0
  %1842 = vmatpush1.bf16.msra.mxu0 %v1815
  %1843 = vmatprep.subr.bf16.mxu0 0
  %1844 = vmatpush1.bf16.msra.mxu0 %v1814
  %1845 = vmatprep.subr.bf16.mxu0 0
  %1846 = vmatpush1.bf16.msra.mxu0 %v1813
  %1847 = vmatprep.subr.bf16.mxu0 0
  %1848 = vmatpush1.bf16.msra.mxu0 %v1812
  %1849 = vmatprep.subr.bf16.mxu0 0
  %1850 = vmatpush1.bf16.msra.mxu0 %v1811
  %1851 = vmatprep.subr.bf16.mxu0 0
  %1852 = vmatpush1.bf16.msra.mxu0 %v1810
  %1853 = vmatprep.subr.bf16.mxu0 0
  %1854 = vmatpush1.bf16.msra.mxu0 %v1809
  %1855 = vmatprep.subr.bf16.mxu0 0
  %1856 = vmatpush1.bf16.msra.mxu0 %v1808
  %1857 = vmatprep.subr.bf16.mxu0 0
  %1858 = vmatpush2.bf16.msra.mxu0 0
  %1859 = vmatprep.subr.bf16.mxu0 0
  %1860 = vmatpush2.bf16.msra.mxu0 0
  %1861 = vmatprep.subr.bf16.mxu0 0
  %1862 = vmatpush2.bf16.msra.mxu0 0
  %1863 = vmatprep.subr.bf16.mxu0 0
  %1864 = vmatpush2.bf16.msra.mxu0 %v1839
  %1865 = vmatprep.subr.bf16.mxu0 0
  %1866 = vmatpush2.bf16.msra.mxu0 %v1819
  %1867 = vmatprep.subr.bf16.mxu0 0
  %1868 = vmatpush2.bf16.msra.mxu0 %v1818
  %1869 = vmatprep.subr.bf16.mxu0 0
  %1870 = vmatpush2.bf16.msra.mxu0 %v1817
  %1871 = vmatprep.subr.bf16.mxu0 0
  %1872 = vmatpush2.bf16.msra.mxu0 %v1816
  %1873 = vmatprep.mubr.bf16.mxu0 %v1835
  %1874 = vmatmul.mubr.bf16.gmra.mxu0 %v1749
  %v1875 = vpop.f32.mrf.mxu0
  %v1876 = vadd.f32 %v1756, %v1875
  %v1877 = vpop.f32.mrf.mxu0
  %v1878 = vpop.f32.mrf.mxu0
  %v1879 = vpop.f32.mrf.mxu0
  %1880 = vdwg.mxu0
  %v1881 = vld [vmem:[%s1] sm:$0x3]
  %v1882 = vld [vmem:[%s2 + $0xb] sm:$0x1]
  %v1883 = vld [vmem:[%s2 + $0xc] sm:$0x1]
  %vm1884 = vcmask 238592
  %v1885 = vsel %vm1884, %v1881, 0.0
  %v1886 = vrot.slane %v1885, 4
  %v1887 = vadd.f32 %v1885, %v1886
  %v1888 = vrot.slane %v1887, 2
  %v1889 = vadd.f32 %v1887, %v1888
  %v1890 = vrot.slane %v1889, 1
  %v1891 = vadd.f32 %v1889, %v1890
  %v1892 = vrcp.pop 2.0
  %v1893 = vmul.f32 %v1891, %v1892
  %v1894 = vsub.f32 %v1881, %v1893
  %v1895 = vmul.f32 %v1894, %v1894
  %v1896 = vsel %vm1884, %v1895, 0.0
  %v1897 = vrot.slane %v1896, 4
  %v1898 = vadd.f32 %v1896, %v1897
  %v1899 = vrot.slane %v1898, 2
  %v1900 = vadd.f32 %v1898, %v1899
  %v1901 = vrot.slane %v1900, 1
  %v1902 = vadd.f32 %v1900, %v1901
  %v1903 = vmul.f32 %v1902, %v1892
  %v1904 = vadd.f32 %v1903, 1e-05
  %v1905 = vrsqrt.pop %v1904
  %v1906 = vmul.f32 %v1894, %v1905
  %v1908 = vlaneseq
  %v1909 = vshrl.u32 %v1908, 7
  %v1910 = vsub.s32 0, %v1909
  %v1911 = vrot.slane %v1882, %v1910
  %v1913 = vmul.f32 %v1906, %v1911
  %v1915 = vlaneseq
  %v1916 = vshrl.u32 %v1915, 7
  %v1917 = vsub.s32 0, %v1916
  %v1918 = vrot.slane %v1883, %v1917
  %v1920 = vadd.f32 %v1913, %v1918
  %v1921 = vld [vmem:[%s2 + $0x41] sm:$0x1]
  %v1922 = vld [vmem:[%s2 + $0x42] sm:$0x1]
  %v1923 = vsel %vm1884, %v1634, 0.0
  %v1924 = vrot.slane %v1923, 4
  %v1925 = vadd.f32 %v1923, %v1924
  %v1926 = vrot.slane %v1925, 2
  %v1927 = vadd.f32 %v1925, %v1926
  %v1928 = vrot.slane %v1927, 1
  %v1929 = vadd.f32 %v1927, %v1928
  %v1930 = vmul.f32 %v1929, %v1892
  %v1931 = vsub.f32 %v1634, %v1930
  %v1932 = vmul.f32 %v1931, %v1931
  %v1933 = vsel %vm1884, %v1932, 0.0
  %v1934 = vrot.slane %v1933, 4
  %v1935 = vadd.f32 %v1933, %v1934
  %v1936 = vrot.slane %v1935, 2
  %v1937 = vadd.f32 %v1935, %v1936
  %v1938 = vrot.slane %v1937, 1
  %v1939 = vadd.f32 %v1937, %v1938
  %v1940 = vmul.f32 %v1939, %v1892
  %v1941 = vadd.f32 %v1940, 1e-05
  %v1942 = vrsqrt.pop %v1941
  %v1943 = vmul.f32 %v1931, %v1942
  %v1945 = vlaneseq
  %v1946 = vshrl.u32 %v1945, 7
  %v1947 = vsub.s32 0, %v1946
  %v1948 = vrot.slane %v1921, %v1947
  %v1950 = vmul.f32 %v1943, %v1948
  %v1952 = vlaneseq
  %v1953 = vshrl.u32 %v1952, 7
  %v1954 = vsub.s32 0, %v1953
  %v1955 = vrot.slane %v1922, %v1954
  %v1957 = vadd.f32 %v1950, %v1955
  %v1958 = vld [vmem:[%s9] sm:$0xf]
  %v1959 = vld [vmem:[%s9 + $0x4] sm:$0xf]
  %v1960 = vld [vmem:[%s9 + $0x8] sm:$0xf]
  %v1961 = vld [vmem:[%s9 + $0xc] sm:$0x7]
  %v1962 = vld [vmem:[%s15] sm:$0xf]
  %v1963 = vld [vmem:[%s15 + $0x4] sm:$0xf]
  %v1964 = vld [vmem:[%s15 + $0x8] sm:$0xf]
  %v1965 = vld [vmem:[%s15 + $0xc] sm:$0x7]
  %v1966 = vpack.c.bf16 %v1920, %v1920
  %v1967 = vld [vmem:[%s2 + $0xd] sm:$0x1]
  %v1969 = vlaneseq
  %v1970 = vshrl.u32 %v1969, 7
  %v1971 = vsub.s32 0, %v1970
  %v1972 = vrot.slane %v1967, %v1971
  %v1978 = vunpack.c.l.b16 %v1958
  %v1979 = vunpack.c.l.b16 %v1959
  %v1980 = vunpack.c.l.b16 %v1960
  %v1981 = vunpack.c.l.b16 %v1961
  %v1982 = vpack.c.b16 %v1979, %v1978
  %v1983 = vpack.c.b16 %v1981, %v1980
  %v1986 = vsel %vm1670, %v1966, 0
  %v1989 = vsel %vm1674, %v1983, 0
  %1991 = vmatprep.subr.bf16.mxu0 0
  %1992 = vmatpush1.bf16.msra.mxu0 0
  %1993 = vmatprep.subr.bf16.mxu0 0
  %1994 = vmatpush1.bf16.msra.mxu0 0
  %1995 = vmatprep.subr.bf16.mxu0 0
  %1996 = vmatpush1.bf16.msra.mxu0 0
  %1997 = vmatprep.subr.bf16.mxu0 0
  %1998 = vmatpush1.bf16.msra.mxu0 0
  %1999 = vmatprep.subr.bf16.mxu0 0
  %2000 = vmatpush1.bf16.msra.mxu0 0
  %2001 = vmatprep.subr.bf16.mxu0 0
  %2002 = vmatpush1.bf16.msra.mxu0 0
  %2003 = vmatprep.subr.bf16.mxu0 0
  %2004 = vmatpush1.bf16.msra.mxu0 %v1989
  %2005 = vmatprep.subr.bf16.mxu0 0
  %2006 = vmatpush1.bf16.msra.mxu0 %v1982
  %2007 = vmatprep.subr.bf16.mxu0 0
  %2008 = vmatpush2.bf16.msra.mxu0 0
  %2009 = vmatprep.subr.bf16.mxu0 0
  %2010 = vmatpush2.bf16.msra.mxu0 0
  %2011 = vmatprep.subr.bf16.mxu0 0
  %2012 = vmatpush2.bf16.msra.mxu0 0
  %2013 = vmatprep.subr.bf16.mxu0 0
  %2014 = vmatpush2.bf16.msra.mxu0 0
  %2015 = vmatprep.subr.bf16.mxu0 0
  %2016 = vmatpush2.bf16.msra.mxu0 0
  %2017 = vmatprep.subr.bf16.mxu0 0
  %2018 = vmatpush2.bf16.msra.mxu0 0
  %2019 = vmatprep.subr.bf16.mxu0 0
  %2020 = vmatpush2.bf16.msra.mxu0 0
  %2021 = vmatprep.subr.bf16.mxu0 0
  %2022 = vmatpush2.bf16.msra.mxu0 0
  %2023 = vmatprep.mubr.bf16.mxu0 0
  %2024 = vmatmul.mubr.bf16.gmra.mxu0 %v1986
  %v2025 = vpop.f32.mrf.mxu0
  %v2026 = vadd.f32 %v1972, %v2025
  %v2027 = vpop.f32.mrf.mxu0
  %v2028 = vpop.f32.mrf.mxu0
  %v2029 = vpop.f32.mrf.mxu0
  %2030 = vdwg.mxu0
  %v2031 = vpack.c.bf16 %v1957, %v1957
  %v2032 = vld [vmem:[%s2 + $0x43] sm:$0x1]
  %v2034 = vlaneseq
  %v2035 = vshrl.u32 %v2034, 7
  %v2036 = vsub.s32 0, %v2035
  %v2037 = vrot.slane %v2032, %v2036
  %v2043 = vunpack.c.l.b16 %v1962
  %v2044 = vunpack.c.l.b16 %v1963
  %v2045 = vunpack.c.l.b16 %v1964
  %v2046 = vunpack.c.l.b16 %v1965
  %v2047 = vpack.c.b16 %v2044, %v2043
  %v2048 = vpack.c.b16 %v2046, %v2045
  %v2051 = vsel %vm1670, %v2031, 0
  %v2054 = vsel %vm1674, %v2048, 0
  %2056 = vmatprep.subr.bf16.mxu0 0
  %2057 = vmatpush1.bf16.msra.mxu0 0
  %2058 = vmatprep.subr.bf16.mxu0 0
  %2059 = vmatpush1.bf16.msra.mxu0 0
  %2060 = vmatprep.subr.bf16.mxu0 0
  %2061 = vmatpush1.bf16.msra.mxu0 0
  %2062 = vmatprep.subr.bf16.mxu0 0
  %2063 = vmatpush1.bf16.msra.mxu0 0
  %2064 = vmatprep.subr.bf16.mxu0 0
  %2065 = vmatpush1.bf16.msra.mxu0 0
  %2066 = vmatprep.subr.bf16.mxu0 0
  %2067 = vmatpush1.bf16.msra.mxu0 0
  %2068 = vmatprep.subr.bf16.mxu0 0
  %2069 = vmatpush1.bf16.msra.mxu0 %v2054
  %2070 = vmatprep.subr.bf16.mxu0 0
  %2071 = vmatpush1.bf16.msra.mxu0 %v2047
  %2072 = vmatprep.subr.bf16.mxu0 0
  %2073 = vmatpush2.bf16.msra.mxu0 0
  %2074 = vmatprep.subr.bf16.mxu0 0
  %2075 = vmatpush2.bf16.msra.mxu0 0
  %2076 = vmatprep.subr.bf16.mxu0 0
  %2077 = vmatpush2.bf16.msra.mxu0 0
  %2078 = vmatprep.subr.bf16.mxu0 0
  %2079 = vmatpush2.bf16.msra.mxu0 0
  %2080 = vmatprep.subr.bf16.mxu0 0
  %2081 = vmatpush2.bf16.msra.mxu0 0
  %2082 = vmatprep.subr.bf16.mxu0 0
  %2083 = vmatpush2.bf16.msra.mxu0 0
  %2084 = vmatprep.subr.bf16.mxu0 0
  %2085 = vmatpush2.bf16.msra.mxu0 0
  %2086 = vmatprep.subr.bf16.mxu0 0
  %2087 = vmatpush2.bf16.msra.mxu0 0
  %2088 = vmatprep.mubr.bf16.mxu0 0
  %2089 = vmatmul.mubr.bf16.gmra.mxu0 %v2051
  %v2090 = vpop.f32.mrf.mxu0
  %v2091 = vadd.f32 %v2037, %v2090
  %v2092 = vpop.f32.mrf.mxu0
  %v2093 = vpop.f32.mrf.mxu0
  %v2094 = vpop.f32.mrf.mxu0
  %2095 = vdwg.mxu0
  %2097 = vrot.lane.b32.xlu0 %v2091, 80
  %v2098 = vpop.permute.xlu0 %2097
  %vm2100 = vcmask 654336
  %v2101 = vsel %vm2100, %v2026, %v2098
  %vm2102 = vcmp.gt.f32.partialorder %v2101, 0.0
  %vm2103 = vcmp.gt.f32.partialorder %v2098, 0.0
  %v2104 = vmul.f32 %v2101, 1.442695
  %v2105 = vpow.pop %v2104
  %v2106 = vmul.f32 %v2098, 1.442695
  %v2107 = vpow.pop %v2106
  %v2108 = vsub.f32 %v2105, 1.0
  %v2109 = vsub.f32 %v2107, 1.0
  %v2110 = vmul.f32 %v2108, 1.6732632
  %v2111 = vmul.f32 %v2109, 1.6732632
  %v2112 = vsel %vm2102, %v2101, %v2110
  %v2113 = vsel %vm2103, %v2098, %v2111
  %v2114 = vmul.f32 %v2112, 1.050701
  %v2115 = vmul.f32 %v2113, 1.050701
  %v2116 = vld [vmem:[%s2 + $0xe] sm:$0x1]
  %v2117 = vld [vmem:[%s2 + $0x44] sm:$0x1]
  %v2119 = vlaneseq
  %v2120 = vshrl.u32 %v2119, 7
  %v2121 = vsub.s32 0, %v2120
  %v2122 = vrot.slane %v2117, %v2121
  %2123 = vrot.lane.b32.xlu0 %v2122, 80
  %v2124 = vpop.permute.xlu0 %2123
  %v2126 = vsel %vm2100, %v2116, %v2124
  %v2127 = vld [vmem:[%s2 + $0xf] sm:$0x1]
  %v2128 = vld [vmem:[%s2 + $0x45] sm:$0x1]
  %v2130 = vlaneseq
  %v2131 = vshrl.u32 %v2130, 7
  %v2132 = vsub.s32 0, %v2131
  %v2133 = vrot.slane %v2128, %v2132
  %2134 = vrot.lane.b32.xlu0 %v2133, 80
  %v2135 = vpop.permute.xlu0 %2134
  %v2137 = vsel %vm2100, %v2127, %v2135
  %v2138 = vsel %vm1142, %v2114, 0.0
  %v2139 = vrot.slane %v2138, 4
  %v2140 = vadd.f32 %v2138, %v2139
  %v2141 = vrot.slane %v2140, 2
  %v2142 = vadd.f32 %v2140, %v2141
  %v2143 = vrot.slane %v2142, 1
  %v2144 = vadd.f32 %v2142, %v2143
  %vm2145 = vcmask 254976
  %v2146 = vsel %vm2145, %v2115, 0.0
  %v2147 = vrot.slane %v2146, 4
  %v2148 = vadd.f32 %v2146, %v2147
  %v2149 = vrot.slane %v2148, 2
  %v2150 = vadd.f32 %v2148, %v2149
  %v2151 = vrot.slane %v2150, 1
  %v2152 = vadd.f32 %v2150, %v2151
  %v2153 = vmul.f32 %v2144, %v1892
  %v2154 = vmul.f32 %v2152, %v1892
  %v2155 = vsub.f32 %v2114, %v2153
  %v2156 = vsub.f32 %v2115, %v2154
  %v2157 = vmul.f32 %v2155, %v2155
  %v2158 = vmul.f32 %v2156, %v2156
  %v2159 = vsel %vm1142, %v2157, 0.0
  %v2160 = vrot.slane %v2159, 4
  %v2161 = vadd.f32 %v2159, %v2160
  %v2162 = vrot.slane %v2161, 2
  %v2163 = vadd.f32 %v2161, %v2162
  %v2164 = vrot.slane %v2163, 1
  %v2165 = vadd.f32 %v2163, %v2164
  %v2166 = vsel %vm2145, %v2158, 0.0
  %v2167 = vrot.slane %v2166, 4
  %v2168 = vadd.f32 %v2166, %v2167
  %v2169 = vrot.slane %v2168, 2
  %v2170 = vadd.f32 %v2168, %v2169
  %v2171 = vrot.slane %v2170, 1
  %v2172 = vadd.f32 %v2170, %v2171
  %v2173 = vmul.f32 %v2165, %v1892
  %v2174 = vmul.f32 %v2172, %v1892
  %v2175 = vadd.f32 %v2173, 1e-05
  %v2176 = vadd.f32 %v2174, 1e-05
  %v2177 = vrsqrt.pop %v2175
  %v2178 = vrsqrt.pop %v2176
  %v2179 = vmul.f32 %v2155, %v2177
  %v2180 = vmul.f32 %v2156, %v2178
  %v2181 = vlaneseq
  %v2182 = vshrl.u32 %v2181, 7
  %v2183 = vsub.s32 0, %v2182
  %v2184 = vrot.slane %v2126, %v2183
  %v2185 = vlaneseq
  %v2186 = vshrl.u32 %v2185, 7
  %v2187 = vsub.s32 0, %v2186
  %v2188 = vrot.slane %v2124, %v2187
  %v2189 = vmul.f32 %v2179, %v2184
  %v2190 = vmul.f32 %v2180, %v2188
  %v2191 = vlaneseq
  %v2192 = vshrl.u32 %v2191, 7
  %v2193 = vsub.s32 0, %v2192
  %v2194 = vrot.slane %v2137, %v2193
  %v2195 = vlaneseq
  %v2196 = vshrl.u32 %v2195, 7
  %v2197 = vsub.s32 0, %v2196
  %v2198 = vrot.slane %v2135, %v2197
  %v2199 = vadd.f32 %v2189, %v2194
  %v2200 = vadd.f32 %v2190, %v2198
  %v2201 = vld [vmem:[%s10] sm:$0xff]
  %v2202 = vld [vmem:[%s10 + $0x8] sm:$0xff]
  %v2203 = vld [vmem:[%s10 + $0x10] sm:$0xff]
  %v2204 = vld [vmem:[%s10 + $0x18] sm:$0xff]
  %v2205 = vld [vmem:[%s10 + $0x20] sm:$0xff]
  %v2206 = vld [vmem:[%s10 + $0x28] sm:$0xff]
  %v2207 = vld [vmem:[%s10 + $0x30] sm:$0xff]
  %v2208 = vld [vmem:[%s10 + $0x38] sm:$0xff]
  %v2209 = vld [vmem:[%s10 + $0x40] sm:$0xff]
  %v2210 = vld [vmem:[%s10 + $0x48] sm:$0xff]
  %v2211 = vld [vmem:[%s16] sm:$0xff]
  %v2212 = vld [vmem:[%s16 + $0x8] sm:$0xff]
  %v2213 = vld [vmem:[%s16 + $0x10] sm:$0xff]
  %v2214 = vld [vmem:[%s16 + $0x18] sm:$0xff]
  %v2215 = vld [vmem:[%s16 + $0x20] sm:$0xff]
  %v2216 = vld [vmem:[%s16 + $0x28] sm:$0xff]
  %v2217 = vld [vmem:[%s16 + $0x30] sm:$0xff]
  %v2218 = vld [vmem:[%s16 + $0x38] sm:$0xff]
  %v2219 = vld [vmem:[%s16 + $0x40] sm:$0xff]
  %v2220 = vld [vmem:[%s16 + $0x48] sm:$0xff]
  %v2221 = vpack.c.bf16 %v2199, %v2199
  %v2222 = vld [vmem:[%s2 + $0x10] sm:$0x3]
  %v2224 = vlaneseq
  %v2225 = vshrl.u32 %v2224, 7
  %v2226 = vsub.s32 0, %v2225
  %v2227 = vrot.slane %v2222, %v2226
  %v2228 = vlaneseq
  %v2229 = vshrl.u32 %v2228, 7
  %v2230 = vsub.s32 1, %v2229
  %v2231 = vrot.slane %v2222, %v2230
  %v2244 = vunpack.c.l.b16 %v2201
  %v2245 = vunpack.c.h.b16 %v2201
  %v2246 = vunpack.c.l.b16 %v2202
  %v2247 = vunpack.c.h.b16 %v2202
  %v2248 = vunpack.c.l.b16 %v2203
  %v2249 = vunpack.c.h.b16 %v2203
  %v2250 = vunpack.c.l.b16 %v2204
  %v2251 = vunpack.c.h.b16 %v2204
  %v2252 = vunpack.c.l.b16 %v2205
  %v2253 = vunpack.c.h.b16 %v2205
  %v2254 = vunpack.c.l.b16 %v2206
  %v2255 = vunpack.c.h.b16 %v2206
  %v2256 = vunpack.c.l.b16 %v2207
  %v2257 = vunpack.c.h.b16 %v2207
  %v2258 = vunpack.c.l.b16 %v2208
  %v2259 = vunpack.c.h.b16 %v2208
  %v2260 = vunpack.c.l.b16 %v2209
  %v2261 = vunpack.c.h.b16 %v2209
  %v2262 = vunpack.c.l.b16 %v2210
  %v2263 = vunpack.c.h.b16 %v2210
  %v2264 = vpack.c.b16 %v2246, %v2244
  %v2265 = vpack.c.b16 %v2247, %v2245
  %v2266 = vpack.c.b16 %v2250, %v2248
  %v2267 = vpack.c.b16 %v2251, %v2249
  %v2268 = vpack.c.b16 %v2254, %v2252
  %v2269 = vpack.c.b16 %v2255, %v2253
  %v2270 = vpack.c.b16 %v2258, %v2256
  %v2271 = vpack.c.b16 %v2259, %v2257
  %v2272 = vpack.c.b16 %v2262, %v2260
  %v2273 = vpack.c.b16 %v2263, %v2261
  %v2285 = vsel %vm2100, %v2221, 0
  %2287 = vmatprep.subr.bf16.mxu0 0
  %2288 = vmatpush1.bf16.msra.mxu0 0
  %2289 = vmatprep.subr.bf16.mxu0 0
  %2290 = vmatpush1.bf16.msra.mxu0 0
  %2291 = vmatprep.subr.bf16.mxu0 0
  %2292 = vmatpush1.bf16.msra.mxu0 0
  %2293 = vmatprep.subr.bf16.mxu0 %v2273
  %2294 = vmatpush1.bf16.msra.mxu0 %v2272
  %2295 = vmatprep.subr.bf16.mxu0 %v2271
  %2296 = vmatpush1.bf16.msra.mxu0 %v2270
  %2297 = vmatprep.subr.bf16.mxu0 %v2269
  %2298 = vmatpush1.bf16.msra.mxu0 %v2268
  %2299 = vmatprep.subr.bf16.mxu0 %v2267
  %2300 = vmatpush1.bf16.msra.mxu0 %v2266
  %2301 = vmatprep.subr.bf16.mxu0 %v2265
  %2302 = vmatpush1.bf16.msra.mxu0 %v2264
  %2303 = vmatprep.subr.bf16.mxu0 0
  %2304 = vmatpush2.bf16.msra.mxu0 0
  %2305 = vmatprep.subr.bf16.mxu0 0
  %2306 = vmatpush2.bf16.msra.mxu0 0
  %2307 = vmatprep.subr.bf16.mxu0 0
  %2308 = vmatpush2.bf16.msra.mxu0 0
  %2309 = vmatprep.subr.bf16.mxu0 0
  %2310 = vmatpush2.bf16.msra.mxu0 0
  %2311 = vmatprep.subr.bf16.mxu0 0
  %2312 = vmatpush2.bf16.msra.mxu0 0
  %2313 = vmatprep.subr.bf16.mxu0 0
  %2314 = vmatpush2.bf16.msra.mxu0 0
  %2315 = vmatprep.subr.bf16.mxu0 0
  %2316 = vmatpush2.bf16.msra.mxu0 0
  %2317 = vmatprep.subr.bf16.mxu0 0
  %2318 = vmatpush2.bf16.msra.mxu0 0
  %2319 = vmatprep.mubr.bf16.mxu0 0
  %2320 = vmatmul.mubr.bf16.gmra.mxu0 %v2285
  %v2321 = vpop.f32.mrf.mxu0
  %v2322 = vadd.f32 %v2227, %v2321
  %v2323 = vpop.f32.mrf.mxu0
  %v2324 = vadd.f32 %v2231, %v2323
  %v2325 = vpop.f32.mrf.mxu0
  %v2326 = vpop.f32.mrf.mxu0
  %2327 = vdwg.mxu0
  %v2328 = vpack.c.bf16 %v2200, %v2200
  %v2329 = vld [vmem:[%s2 + $0x46] sm:$0x3]
  %v2331 = vlaneseq
  %v2332 = vshrl.u32 %v2331, 7
  %v2333 = vsub.s32 0, %v2332
  %v2334 = vrot.slane %v2329, %v2333
  %v2335 = vlaneseq
  %v2336 = vshrl.u32 %v2335, 7
  %v2337 = vsub.s32 1, %v2336
  %v2338 = vrot.slane %v2329, %v2337
  %2343 = vrot.lane.b32.xlu0 %v2221, 48
  %v2344 = vpop.permute.xlu0 %2343
  %2345 = vrot.lane.b32.xlu0 %v2328, 48
  %v2346 = vpop.permute.xlu0 %2345
  %vm2347 = vcmask 392192
  %v2348 = vsel %vm2347, %v2344, %v2346
  %v2359 = vunpack.c.l.b16 %v2211
  %v2360 = vunpack.c.h.b16 %v2211
  %v2361 = vunpack.c.l.b16 %v2212
  %v2362 = vunpack.c.h.b16 %v2212
  %v2363 = vunpack.c.l.b16 %v2213
  %v2364 = vunpack.c.h.b16 %v2213
  %v2365 = vunpack.c.l.b16 %v2214
  %v2366 = vunpack.c.h.b16 %v2214
  %v2367 = vunpack.c.l.b16 %v2215
  %v2368 = vunpack.c.h.b16 %v2215
  %v2369 = vunpack.c.l.b16 %v2216
  %v2370 = vunpack.c.h.b16 %v2216
  %v2371 = vunpack.c.l.b16 %v2217
  %v2372 = vunpack.c.h.b16 %v2217
  %v2373 = vunpack.c.l.b16 %v2218
  %v2374 = vunpack.c.h.b16 %v2218
  %v2375 = vunpack.c.l.b16 %v2219
  %v2376 = vunpack.c.h.b16 %v2219
  %v2377 = vunpack.c.l.b16 %v2220
  %v2378 = vunpack.c.h.b16 %v2220
  %v2379 = vpack.c.b16 %v2361, %v2359
  %v2380 = vpack.c.b16 %v2362, %v2360
  %v2381 = vpack.c.b16 %v2365, %v2363
  %v2382 = vpack.c.b16 %v2366, %v2364
  %v2383 = vpack.c.b16 %v2369, %v2367
  %v2384 = vpack.c.b16 %v2370, %v2368
  %v2385 = vpack.c.b16 %v2373, %v2371
  %v2386 = vpack.c.b16 %v2374, %v2372
  %v2387 = vpack.c.b16 %v2377, %v2375
  %v2388 = vpack.c.b16 %v2378, %v2376
  %v2400 = vsel %vm2100, %v2348, 0
  %2402 = vmatprep.subr.bf16.mxu0 0
  %2403 = vmatpush1.bf16.msra.mxu0 0
  %2404 = vmatprep.subr.bf16.mxu0 0
  %2405 = vmatpush1.bf16.msra.mxu0 0
  %2406 = vmatprep.subr.bf16.mxu0 0
  %2407 = vmatpush1.bf16.msra.mxu0 0
  %2408 = vmatprep.subr.bf16.mxu0 %v2388
  %2409 = vmatpush1.bf16.msra.mxu0 %v2387
  %2410 = vmatprep.subr.bf16.mxu0 %v2386
  %2411 = vmatpush1.bf16.msra.mxu0 %v2385
  %2412 = vmatprep.subr.bf16.mxu0 %v2384
  %2413 = vmatpush1.bf16.msra.mxu0 %v2383
  %2414 = vmatprep.subr.bf16.mxu0 %v2382
  %2415 = vmatpush1.bf16.msra.mxu0 %v2381
  %2416 = vmatprep.subr.bf16.mxu0 %v2380
  %2417 = vmatpush1.bf16.msra.mxu0 %v2379
  %2418 = vmatprep.subr.bf16.mxu0 0
  %2419 = vmatpush2.bf16.msra.mxu0 0
  %2420 = vmatprep.subr.bf16.mxu0 0
  %2421 = vmatpush2.bf16.msra.mxu0 0
  %2422 = vmatprep.subr.bf16.mxu0 0
  %2423 = vmatpush2.bf16.msra.mxu0 0
  %2424 = vmatprep.subr.bf16.mxu0 0
  %2425 = vmatpush2.bf16.msra.mxu0 0
  %2426 = vmatprep.subr.bf16.mxu0 0
  %2427 = vmatpush2.bf16.msra.mxu0 0
  %2428 = vmatprep.subr.bf16.mxu0 0
  %2429 = vmatpush2.bf16.msra.mxu0 0
  %2430 = vmatprep.subr.bf16.mxu0 0
  %2431 = vmatpush2.bf16.msra.mxu0 0
  %2432 = vmatprep.subr.bf16.mxu0 0
  %2433 = vmatpush2.bf16.msra.mxu0 0
  %2434 = vmatprep.mubr.bf16.mxu0 0
  %2435 = vmatmul.mubr.bf16.gmra.mxu0 %v2400
  %v2436 = vpop.f32.mrf.mxu0
  %v2437 = vadd.f32 %v2334, %v2436
  %v2438 = vpop.f32.mrf.mxu0
  %v2439 = vadd.f32 %v2338, %v2438
  %v2440 = vpop.f32.mrf.mxu0
  %v2441 = vpop.f32.mrf.mxu0
  %2442 = vdwg.mxu0
  %2445 = vrot.lane.b32.xlu0 %v2437, 32
  %v2446 = vpop.permute.xlu0 %2445
  %2447 = vrot.lane.b32.xlu0 %v2439, 32
  %v2448 = vpop.permute.xlu0 %2447
  %vm2449 = vcmask 261120
  %v2450 = vsel %vm2449, %v2446, %v2448
  %v2453 = vsel %vm2449, %v2324, %v2446
  %vm2454 = vcmp.gt.f32.partialorder %v2322, 0.0
  %vm2455 = vcmp.gt.f32.partialorder %v2453, 0.0
  %vm2456 = vcmp.gt.f32.partialorder %v2450, 0.0
  %v2457 = vmul.f32 %v2322, 1.442695
  %v2458 = vpow.pop %v2457
  %v2459 = vmul.f32 %v2453, 1.442695
  %v2460 = vpow.pop %v2459
  %v2461 = vmul.f32 %v2450, 1.442695
  %v2462 = vpow.pop %v2461
  %v2463 = vsub.f32 %v2458, 1.0
  %v2464 = vsub.f32 %v2460, 1.0
  %v2465 = vsub.f32 %v2462, 1.0
  %v2466 = vmul.f32 %v2463, 1.6732632
  %v2467 = vmul.f32 %v2464, 1.6732632
  %v2468 = vmul.f32 %v2465, 1.6732632
  %v2469 = vsel %vm2454, %v2322, %v2466
  %v2470 = vsel %vm2455, %v2453, %v2467
  %v2471 = vsel %vm2456, %v2450, %v2468
  %v2472 = vmul.f32 %v2469, 1.050701
  %v2473 = vmul.f32 %v2470, 1.050701
  %v2474 = vmul.f32 %v2471, 1.050701
  %v2475 = vld [vmem:[%s2 + $0x12] sm:$0x3]
  %v2476 = vld [vmem:[%s2 + $0x48] sm:$0x3]
  %v2478 = vlaneseq
  %v2479 = vshrl.u32 %v2478, 7
  %v2480 = vsub.s32 0, %v2479
  %v2481 = vrot.slane %v2475, %v2480
  %v2482 = vlaneseq
  %v2483 = vshrl.u32 %v2482, 7
  %v2484 = vsub.s32 1, %v2483
  %v2485 = vrot.slane %v2475, %v2484
  %v2489 = vlaneseq
  %v2490 = vshrl.u32 %v2489, 7
  %v2491 = vsub.s32 0, %v2490
  %v2492 = vrot.slane %v2476, %v2491
  %v2493 = vlaneseq
  %v2494 = vshrl.u32 %v2493, 7
  %v2495 = vsub.s32 1, %v2494
  %v2496 = vrot.slane %v2476, %v2495
  %2497 = vrot.lane.b32.xlu0 %v2492, 32
  %v2498 = vpop.permute.xlu0 %2497
  %2499 = vrot.lane.b32.xlu0 %v2496, 32
  %v2500 = vpop.permute.xlu0 %2499
  %v2501 = vsel %vm2449, %v2498, %v2500
  %v2504 = vsel %vm2449, %v2485, %v2498
  %v2505 = vld [vmem:[%s2 + $0x14] sm:$0x3]
  %v2506 = vld [vmem:[%s2 + $0x4a] sm:$0x3]
  %v2508 = vlaneseq
  %v2509 = vshrl.u32 %v2508, 7
  %v2510 = vsub.s32 0, %v2509
  %v2511 = vrot.slane %v2505, %v2510
  %v2512 = vlaneseq
  %v2513 = vshrl.u32 %v2512, 7
  %v2514 = vsub.s32 1, %v2513
  %v2515 = vrot.slane %v2505, %v2514
  %v2519 = vlaneseq
  %v2520 = vshrl.u32 %v2519, 7
  %v2521 = vsub.s32 0, %v2520
  %v2522 = vrot.slane %v2506, %v2521
  %v2523 = vlaneseq
  %v2524 = vshrl.u32 %v2523, 7
  %v2525 = vsub.s32 1, %v2524
  %v2526 = vrot.slane %v2506, %v2525
  %2527 = vrot.lane.b32.xlu0 %v2522, 32
  %v2528 = vpop.permute.xlu0 %2527
  %2529 = vrot.lane.b32.xlu0 %v2526, 32
  %v2530 = vpop.permute.xlu0 %2529
  %v2531 = vsel %vm2449, %v2528, %v2530
  %v2534 = vsel %vm2449, %v2515, %v2528
  %v2535 = vsel %vm1142, %v2472, 0.0
  %v2536 = vrot.slane %v2535, 4
  %v2537 = vadd.f32 %v2535, %v2536
  %v2538 = vrot.slane %v2537, 2
  %v2539 = vadd.f32 %v2537, %v2538
  %v2540 = vrot.slane %v2539, 1
  %v2541 = vadd.f32 %v2539, %v2540
  %v2542 = vsel %vm1142, %v2473, 0.0
  %v2543 = vrot.slane %v2542, 4
  %v2544 = vadd.f32 %v2542, %v2543
  %v2545 = vrot.slane %v2544, 2
  %v2546 = vadd.f32 %v2544, %v2545
  %v2547 = vrot.slane %v2546, 1
  %v2548 = vadd.f32 %v2546, %v2547
  %vm2549 = vcmask 517120
  %v2550 = vsel %vm2549, %v2474, 0.0
  %v2551 = vrot.slane %v2550, 4
  %v2552 = vadd.f32 %v2550, %v2551
  %v2553 = vrot.slane %v2552, 2
  %v2554 = vadd.f32 %v2552, %v2553
  %v2555 = vrot.slane %v2554, 1
  %v2556 = vadd.f32 %v2554, %v2555
  %v2557 = vmul.f32 %v2541, %v1892
  %v2558 = vmul.f32 %v2548, %v1892
  %v2559 = vmul.f32 %v2556, %v1892
  %v2560 = vsub.f32 %v2472, %v2557
  %v2561 = vsub.f32 %v2473, %v2558
  %v2562 = vsub.f32 %v2474, %v2559
  %v2563 = vmul.f32 %v2560, %v2560
  %v2564 = vmul.f32 %v2561, %v2561
  %v2565 = vmul.f32 %v2562, %v2562
  %v2566 = vsel %vm1142, %v2563, 0.0
  %v2567 = vrot.slane %v2566, 4
  %v2568 = vadd.f32 %v2566, %v2567
  %v2569 = vrot.slane %v2568, 2
  %v2570 = vadd.f32 %v2568, %v2569
  %v2571 = vrot.slane %v2570, 1
  %v2572 = vadd.f32 %v2570, %v2571
  %v2573 = vsel %vm1142, %v2564, 0.0
  %v2574 = vrot.slane %v2573, 4
  %v2575 = vadd.f32 %v2573, %v2574
  %v2576 = vrot.slane %v2575, 2
  %v2577 = vadd.f32 %v2575, %v2576
  %v2578 = vrot.slane %v2577, 1
  %v2579 = vadd.f32 %v2577, %v2578
  %v2580 = vsel %vm2549, %v2565, 0.0
  %v2581 = vrot.slane %v2580, 4
  %v2582 = vadd.f32 %v2580, %v2581
  %v2583 = vrot.slane %v2582, 2
  %v2584 = vadd.f32 %v2582, %v2583
  %v2585 = vrot.slane %v2584, 1
  %v2586 = vadd.f32 %v2584, %v2585
  %v2587 = vmul.f32 %v2572, %v1892
  %v2588 = vmul.f32 %v2579, %v1892
  %v2589 = vmul.f32 %v2586, %v1892
  %v2590 = vadd.f32 %v2587, 1e-05
  %v2591 = vadd.f32 %v2588, 1e-05
  %v2592 = vadd.f32 %v2589, 1e-05
  %v2593 = vrsqrt.pop %v2590
  %v2594 = vrsqrt.pop %v2591
  %v2595 = vrsqrt.pop %v2592
  %v2596 = vmul.f32 %v2560, %v2593
  %v2597 = vmul.f32 %v2561, %v2594
  %v2598 = vmul.f32 %v2562, %v2595
  %v2599 = vlaneseq
  %v2600 = vshrl.u32 %v2599, 7
  %v2601 = vsub.s32 0, %v2600
  %v2602 = vrot.slane %v2481, %v2601
  %v2603 = vlaneseq
  %v2604 = vshrl.u32 %v2603, 7
  %v2605 = vsub.s32 0, %v2604
  %v2606 = vrot.slane %v2504, %v2605
  %v2607 = vlaneseq
  %v2608 = vshrl.u32 %v2607, 7
  %v2609 = vsub.s32 0, %v2608
  %v2610 = vrot.slane %v2501, %v2609
  %v2611 = vmul.f32 %v2596, %v2602
  %v2612 = vmul.f32 %v2597, %v2606
  %v2613 = vmul.f32 %v2598, %v2610
  %v2614 = vlaneseq
  %v2615 = vshrl.u32 %v2614, 7
  %v2616 = vsub.s32 0, %v2615
  %v2617 = vrot.slane %v2511, %v2616
  %v2618 = vlaneseq
  %v2619 = vshrl.u32 %v2618, 7
  %v2620 = vsub.s32 0, %v2619
  %v2621 = vrot.slane %v2534, %v2620
  %v2622 = vlaneseq
  %v2623 = vshrl.u32 %v2622, 7
  %v2624 = vsub.s32 0, %v2623
  %v2625 = vrot.slane %v2531, %v2624
  %v2626 = vadd.f32 %v2611, %v2617
  %v2627 = vadd.f32 %v2612, %v2621
  %v2628 = vadd.f32 %v2613, %v2625
  %v2629 = vld [vmem:[%s11] sm:$0xff]
  %v2630 = vld [vmem:[%s11 + $0x8] sm:$0xf]
  %v2631 = vld [vmem:[%s11 + $0xc] sm:$0xff]
  %v2632 = vld [vmem:[%s11 + $0x14] sm:$0xf]
  %v2633 = vld [vmem:[%s11 + $0x18] sm:$0xff]
  %v2634 = vld [vmem:[%s11 + $0x20] sm:$0xf]
  %v2635 = vld [vmem:[%s11 + $0x24] sm:$0xff]
  %v2636 = vld [vmem:[%s11 + $0x2c] sm:$0xf]
  %v2637 = vld [vmem:[%s11 + $0x30] sm:$0xff]
  %v2638 = vld [vmem:[%s11 + $0x38] sm:$0xf]
  %v2639 = vld [vmem:[%s11 + $0x3c] sm:$0xff]
  %v2640 = vld [vmem:[%s11 + $0x44] sm:$0xf]
  %v2641 = vld [vmem:[%s11 + $0x48] sm:$0xff]
  %v2642 = vld [vmem:[%s11 + $0x50] sm:$0xf]
  %v2643 = vld [vmem:[%s11 + $0x54] sm:$0xff]
  %v2644 = vld [vmem:[%s11 + $0x5c] sm:$0xf]
  %v2645 = vld [vmem:[%s11 + $0x60] sm:$0xff]
  %v2646 = vld [vmem:[%s11 + $0x68] sm:$0xf]
  %v2647 = vld [vmem:[%s11 + $0x6c] sm:$0xff]
  %v2648 = vld [vmem:[%s11 + $0x74] sm:$0xf]
  %v2649 = vld [vmem:[%s11 + $0x78] sm:$0xff]
  %v2650 = vld [vmem:[%s11 + $0x80] sm:$0xf]
  %v2651 = vld [vmem:[%s11 + $0x84] sm:$0xff]
  %v2652 = vld [vmem:[%s11 + $0x8c] sm:$0xf]
  %v2653 = vld [vmem:[%s11 + $0x90] sm:$0xff]
  %v2654 = vld [vmem:[%s11 + $0x98] sm:$0xf]
  %v2655 = vld [vmem:[%s11 + $0x9c] sm:$0xff]
  %v2656 = vld [vmem:[%s11 + $0xa4] sm:$0xf]
  %v2657 = vld [vmem:[%s11 + $0xa8] sm:$0xff]
  %v2658 = vld [vmem:[%s11 + $0xb0] sm:$0xf]
  %v2659 = vld [vmem:[%s11 + $0xb4] sm:$0xff]
  %v2660 = vld [vmem:[%s11 + $0xbc] sm:$0xf]
  %v2661 = vld [vmem:[%s11 + $0xc0] sm:$0xff]
  %v2662 = vld [vmem:[%s11 + $0xc8] sm:$0xf]
  %v2663 = vld [vmem:[%s11 + $0xcc] sm:$0xff]
  %v2664 = vld [vmem:[%s11 + $0xd4] sm:$0xf]
  %v2665 = vld [vmem:[%s11 + $0xd8] sm:$0xff]
  %v2666 = vld [vmem:[%s11 + $0xe0] sm:$0xf]
  %v2667 = vld [vmem:[%s11 + $0xe4] sm:$0xff]
  %v2668 = vld [vmem:[%s11 + $0xec] sm:$0xf]
  %v2669 = vld [vmem:[%s17] sm:$0xff]
  %v2670 = vld [vmem:[%s17 + $0x8] sm:$0xf]
  %v2671 = vld [vmem:[%s17 + $0xc] sm:$0xff]
  %v2672 = vld [vmem:[%s17 + $0x14] sm:$0xf]
  %v2673 = vld [vmem:[%s17 + $0x18] sm:$0xff]
  %v2674 = vld [vmem:[%s17 + $0x20] sm:$0xf]
  %v2675 = vld [vmem:[%s17 + $0x24] sm:$0xff]
  %v2676 = vld [vmem:[%s17 + $0x2c] sm:$0xf]
  %v2677 = vld [vmem:[%s17 + $0x30] sm:$0xff]
  %v2678 = vld [vmem:[%s17 + $0x38] sm:$0xf]
  %v2679 = vld [vmem:[%s17 + $0x3c] sm:$0xff]
  %v2680 = vld [vmem:[%s17 + $0x44] sm:$0xf]
  %v2681 = vld [vmem:[%s17 + $0x48] sm:$0xff]
  %v2682 = vld [vmem:[%s17 + $0x50] sm:$0xf]
  %v2683 = vld [vmem:[%s17 + $0x54] sm:$0xff]
  %v2684 = vld [vmem:[%s17 + $0x5c] sm:$0xf]
  %v2685 = vld [vmem:[%s17 + $0x60] sm:$0xff]
  %v2686 = vld [vmem:[%s17 + $0x68] sm:$0xf]
  %v2687 = vld [vmem:[%s17 + $0x6c] sm:$0xff]
  %v2688 = vld [vmem:[%s17 + $0x74] sm:$0xf]
  %v2689 = vld [vmem:[%s17 + $0x78] sm:$0xff]
  %v2690 = vld [vmem:[%s17 + $0x80] sm:$0xf]
  %v2691 = vld [vmem:[%s17 + $0x84] sm:$0xff]
  %v2692 = vld [vmem:[%s17 + $0x8c] sm:$0xf]
  %v2693 = vld [vmem:[%s17 + $0x90] sm:$0xff]
  %v2694 = vld [vmem:[%s17 + $0x98] sm:$0xf]
  %v2695 = vld [vmem:[%s17 + $0x9c] sm:$0xff]
  %v2696 = vld [vmem:[%s17 + $0xa4] sm:$0xf]
  %v2697 = vld [vmem:[%s17 + $0xa8] sm:$0xff]
  %v2698 = vld [vmem:[%s17 + $0xb0] sm:$0xf]
  %v2699 = vld [vmem:[%s17 + $0xb4] sm:$0xff]
  %v2700 = vld [vmem:[%s17 + $0xbc] sm:$0xf]
  %v2701 = vld [vmem:[%s17 + $0xc0] sm:$0xff]
  %v2702 = vld [vmem:[%s17 + $0xc8] sm:$0xf]
  %v2703 = vld [vmem:[%s17 + $0xcc] sm:$0xff]
  %v2704 = vld [vmem:[%s17 + $0xd4] sm:$0xf]
  %v2705 = vld [vmem:[%s17 + $0xd8] sm:$0xff]
  %v2706 = vld [vmem:[%s17 + $0xe0] sm:$0xf]
  %v2707 = vld [vmem:[%s17 + $0xe4] sm:$0xff]
  %v2708 = vld [vmem:[%s17 + $0xec] sm:$0xf]
  %v2709 = vpack.c.bf16 %v2626, %v2626
  %v2710 = vpack.c.bf16 %v2627, %v2627
  %v2711 = vld [vmem:[%s2 + $0x16] sm:$0x7]
  %v2713 = vlaneseq
  %v2714 = vshrl.u32 %v2713, 7
  %v2715 = vsub.s32 0, %v2714
  %v2716 = vrot.slane %v2711, %v2715
  %v2717 = vlaneseq
  %v2718 = vshrl.u32 %v2717, 7
  %v2719 = vsub.s32 1, %v2718
  %v2720 = vrot.slane %v2711, %v2719
  %v2721 = vlaneseq
  %v2722 = vshrl.u32 %v2721, 7
  %v2723 = vsub.s32 2, %v2722
  %v2724 = vrot.slane %v2711, %v2723
  %v2768 = vunpack.c.l.b16 %v2629
  %v2769 = vunpack.c.h.b16 %v2629
  %v2770 = vunpack.c.l.b16 %v2630
  %v2771 = vunpack.c.l.b16 %v2631
  %v2772 = vunpack.c.h.b16 %v2631
  %v2773 = vunpack.c.l.b16 %v2632
  %v2774 = vunpack.c.l.b16 %v2633
  %v2775 = vunpack.c.h.b16 %v2633
  %v2776 = vunpack.c.l.b16 %v2634
  %v2777 = vunpack.c.l.b16 %v2635
  %v2778 = vunpack.c.h.b16 %v2635
  %v2779 = vunpack.c.l.b16 %v2636
  %v2780 = vunpack.c.l.b16 %v2637
  %v2781 = vunpack.c.h.b16 %v2637
  %v2782 = vunpack.c.l.b16 %v2638
  %v2783 = vunpack.c.l.b16 %v2639
  %v2784 = vunpack.c.h.b16 %v2639
  %v2785 = vunpack.c.l.b16 %v2640
  %v2786 = vunpack.c.l.b16 %v2641
  %v2787 = vunpack.c.h.b16 %v2641
  %v2788 = vunpack.c.l.b16 %v2642
  %v2789 = vunpack.c.l.b16 %v2643
  %v2790 = vunpack.c.h.b16 %v2643
  %v2791 = vunpack.c.l.b16 %v2644
  %v2792 = vunpack.c.l.b16 %v2645
  %v2793 = vunpack.c.h.b16 %v2645
  %v2794 = vunpack.c.l.b16 %v2646
  %v2795 = vunpack.c.l.b16 %v2647
  %v2796 = vunpack.c.h.b16 %v2647
  %v2797 = vunpack.c.l.b16 %v2648
  %v2798 = vunpack.c.l.b16 %v2649
  %v2799 = vunpack.c.h.b16 %v2649
  %v2800 = vunpack.c.l.b16 %v2650
  %v2801 = vunpack.c.l.b16 %v2651
  %v2802 = vunpack.c.h.b16 %v2651
  %v2803 = vunpack.c.l.b16 %v2652
  %v2804 = vunpack.c.l.b16 %v2653
  %v2805 = vunpack.c.h.b16 %v2653
  %v2806 = vunpack.c.l.b16 %v2654
  %v2807 = vunpack.c.l.b16 %v2655
  %v2808 = vunpack.c.h.b16 %v2655
  %v2809 = vunpack.c.l.b16 %v2656
  %v2810 = vunpack.c.l.b16 %v2657
  %v2811 = vunpack.c.h.b16 %v2657
  %v2812 = vunpack.c.l.b16 %v2658
  %v2813 = vunpack.c.l.b16 %v2659
  %v2814 = vunpack.c.h.b16 %v2659
  %v2815 = vunpack.c.l.b16 %v2660
  %v2816 = vunpack.c.l.b16 %v2661
  %v2817 = vunpack.c.h.b16 %v2661
  %v2818 = vunpack.c.l.b16 %v2662
  %v2819 = vunpack.c.l.b16 %v2663
  %v2820 = vunpack.c.h.b16 %v2663
  %v2821 = vunpack.c.l.b16 %v2664
  %v2822 = vunpack.c.l.b16 %v2665
  %v2823 = vunpack.c.h.b16 %v2665
  %v2824 = vunpack.c.l.b16 %v2666
  %v2825 = vunpack.c.l.b16 %v2667
  %v2826 = vunpack.c.h.b16 %v2667
  %v2827 = vunpack.c.l.b16 %v2668
  %v2828 = vpack.c.b16 %v2771, %v2768
  %v2829 = vpack.c.b16 %v2772, %v2769
  %v2830 = vpack.c.b16 %v2773, %v2770
  %v2831 = vpack.c.b16 %v2777, %v2774
  %v2832 = vpack.c.b16 %v2778, %v2775
  %v2833 = vpack.c.b16 %v2779, %v2776
  %v2834 = vpack.c.b16 %v2783, %v2780
  %v2835 = vpack.c.b16 %v2784, %v2781
  %v2836 = vpack.c.b16 %v2785, %v2782
  %v2837 = vpack.c.b16 %v2789, %v2786
  %v2838 = vpack.c.b16 %v2790, %v2787
  %v2839 = vpack.c.b16 %v2791, %v2788
  %v2840 = vpack.c.b16 %v2795, %v2792
  %v2841 = vpack.c.b16 %v2796, %v2793
  %v2842 = vpack.c.b16 %v2797, %v2794
  %v2843 = vpack.c.b16 %v2801, %v2798
  %v2844 = vpack.c.b16 %v2802, %v2799
  %v2845 = vpack.c.b16 %v2803, %v2800
  %v2846 = vpack.c.b16 %v2807, %v2804
  %v2847 = vpack.c.b16 %v2808, %v2805
  %v2848 = vpack.c.b16 %v2809, %v2806
  %v2849 = vpack.c.b16 %v2813, %v2810
  %v2850 = vpack.c.b16 %v2814, %v2811
  %v2851 = vpack.c.b16 %v2815, %v2812
  %v2852 = vpack.c.b16 %v2819, %v2816
  %v2853 = vpack.c.b16 %v2820, %v2817
  %v2854 = vpack.c.b16 %v2821, %v2818
  %v2855 = vpack.c.b16 %v2825, %v2822
  %v2856 = vpack.c.b16 %v2826, %v2823
  %v2857 = vpack.c.b16 %v2827, %v2824
  %v2889 = vsel %vm2449, %v2710, 0
  %2891 = vmatprep.subr.bf16.mxu0 %v2850
  %2892 = vmatpush1.bf16.msra.mxu0 %v2849
  %2893 = vmatprep.subr.bf16.mxu0 %v2847
  %2894 = vmatpush1.bf16.msra.mxu0 %v2846
  %2895 = vmatprep.subr.bf16.mxu0 %v2844
  %2896 = vmatpush1.bf16.msra.mxu0 %v2843
  %2897 = vmatprep.subr.bf16.mxu0 %v2841
  %2898 = vmatpush1.bf16.msra.mxu0 %v2840
  %2899 = vmatprep.subr.bf16.mxu0 %v2838
  %2900 = vmatpush1.bf16.msra.mxu0 %v2837
  %2901 = vmatprep.subr.bf16.mxu0 %v2835
  %2902 = vmatpush1.bf16.msra.mxu0 %v2834
  %2903 = vmatprep.subr.bf16.mxu0 %v2832
  %2904 = vmatpush1.bf16.msra.mxu0 %v2831
  %2905 = vmatprep.subr.bf16.mxu0 %v2829
  %2906 = vmatpush1.bf16.msra.mxu0 %v2828
  %2907 = vmatprep.subr.bf16.mxu0 0
  %2908 = vmatpush2.bf16.msra.mxu0 0
  %2909 = vmatprep.subr.bf16.mxu0 0
  %2910 = vmatpush2.bf16.msra.mxu0 0
  %2911 = vmatprep.subr.bf16.mxu0 0
  %2912 = vmatpush2.bf16.msra.mxu0 0
  %2913 = vmatprep.subr.bf16.mxu0 0
  %2914 = vmatpush2.bf16.msra.mxu0 0
  %2915 = vmatprep.subr.bf16.mxu0 0
  %2916 = vmatpush2.bf16.msra.mxu0 0
  %2917 = vmatprep.subr.bf16.mxu0 0
  %2918 = vmatpush2.bf16.msra.mxu0 0
  %2919 = vmatprep.subr.bf16.mxu0 %v2856
  %2920 = vmatpush2.bf16.msra.mxu0 %v2855
  %2921 = vmatprep.subr.bf16.mxu0 %v2853
  %2922 = vmatpush2.bf16.msra.mxu0 %v2852
  %2923 = vmatprep.mubr.bf16.mxu0 %v2889
  %2924 = vmatmul.mubr.bf16.gmra.mxu0 %v2709
  %v2925 = vpop.f32.mrf.mxu0
  %v2926 = vadd.f32 %v2716, %v2925
  %v2927 = vpop.f32.mrf.mxu0
  %v2928 = vadd.f32 %v2720, %v2927
  %v2929 = vpop.f32.mrf.mxu0
  %v2930 = vpop.f32.mrf.mxu0
  %2931 = vdwg.mxu0
  %2932 = vmatprep.subr.bf16.mxu0 0
  %2933 = vmatpush1.bf16.msra.mxu0 %v2851
  %2934 = vmatprep.subr.bf16.mxu0 0
  %2935 = vmatpush1.bf16.msra.mxu0 %v2848
  %2936 = vmatprep.subr.bf16.mxu0 0
  %2937 = vmatpush1.bf16.msra.mxu0 %v2845
  %2938 = vmatprep.subr.bf16.mxu0 0
  %2939 = vmatpush1.bf16.msra.mxu0 %v2842
  %2940 = vmatprep.subr.bf16.mxu0 0
  %2941 = vmatpush1.bf16.msra.mxu0 %v2839
  %2942 = vmatprep.subr.bf16.mxu0 0
  %2943 = vmatpush1.bf16.msra.mxu0 %v2836
  %2944 = vmatprep.subr.bf16.mxu0 0
  %2945 = vmatpush1.bf16.msra.mxu0 %v2833
  %2946 = vmatprep.subr.bf16.mxu0 0
  %2947 = vmatpush1.bf16.msra.mxu0 %v2830
  %2948 = vmatprep.subr.bf16.mxu0 0
  %2949 = vmatpush2.bf16.msra.mxu0 0
  %2950 = vmatprep.subr.bf16.mxu0 0
  %2951 = vmatpush2.bf16.msra.mxu0 0
  %2952 = vmatprep.subr.bf16.mxu0 0
  %2953 = vmatpush2.bf16.msra.mxu0 0
  %2954 = vmatprep.subr.bf16.mxu0 0
  %2955 = vmatpush2.bf16.msra.mxu0 0
  %2956 = vmatprep.subr.bf16.mxu0 0
  %2957 = vmatpush2.bf16.msra.mxu0 0
  %2958 = vmatprep.subr.bf16.mxu0 0
  %2959 = vmatpush2.bf16.msra.mxu0 0
  %2960 = vmatprep.subr.bf16.mxu0 0
  %2961 = vmatpush2.bf16.msra.mxu0 %v2857
  %2962 = vmatprep.subr.bf16.mxu0 0
  %2963 = vmatpush2.bf16.msra.mxu0 %v2854
  %2964 = vmatprep.mubr.bf16.mxu0 %v2889
  %2965 = vmatmul.mubr.bf16.gmra.mxu0 %v2709
  %v2966 = vpop.f32.mrf.mxu0
  %v2967 = vadd.f32 %v2724, %v2966
  %v2968 = vpop.f32.mrf.mxu0
  %v2969 = vpop.f32.mrf.mxu0
  %v2970 = vpop.f32.mrf.mxu0
  %2971 = vdwg.mxu0
  %v2972 = vpack.c.bf16 %v2628, %v2628
  %v2973 = vld [vmem:[%s2 + $0x4c] sm:$0x7]
  %v2975 = vlaneseq
  %v2976 = vshrl.u32 %v2975, 7
  %v2977 = vsub.s32 0, %v2976
  %v2978 = vrot.slane %v2973, %v2977
  %v2979 = vlaneseq
  %v2980 = vshrl.u32 %v2979, 7
  %v2981 = vsub.s32 1, %v2980
  %v2982 = vrot.slane %v2973, %v2981
  %v2983 = vlaneseq
  %v2984 = vshrl.u32 %v2983, 7
  %v2985 = vsub.s32 2, %v2984
  %v2986 = vrot.slane %v2973, %v2985
  %2992 = vrot.lane.b32.xlu0 %v2710, 96
  %v2993 = vpop.permute.xlu0 %2992
  %2994 = vrot.lane.b32.xlu0 %v2972, 96
  %v2995 = vpop.permute.xlu0 %2994
  %vm2996 = vcmask 785408
  %v2997 = vsel %vm2996, %v2993, %v2995
  %v3039 = vunpack.c.l.b16 %v2669
  %v3040 = vunpack.c.h.b16 %v2669
  %v3041 = vunpack.c.l.b16 %v2670
  %v3042 = vunpack.c.l.b16 %v2671
  %v3043 = vunpack.c.h.b16 %v2671
  %v3044 = vunpack.c.l.b16 %v2672
  %v3045 = vunpack.c.l.b16 %v2673
  %v3046 = vunpack.c.h.b16 %v2673
  %v3047 = vunpack.c.l.b16 %v2674
  %v3048 = vunpack.c.l.b16 %v2675
  %v3049 = vunpack.c.h.b16 %v2675
  %v3050 = vunpack.c.l.b16 %v2676
  %v3051 = vunpack.c.l.b16 %v2677
  %v3052 = vunpack.c.h.b16 %v2677
  %v3053 = vunpack.c.l.b16 %v2678
  %v3054 = vunpack.c.l.b16 %v2679
  %v3055 = vunpack.c.h.b16 %v2679
  %v3056 = vunpack.c.l.b16 %v2680
  %v3057 = vunpack.c.l.b16 %v2681
  %v3058 = vunpack.c.h.b16 %v2681
  %v3059 = vunpack.c.l.b16 %v2682
  %v3060 = vunpack.c.l.b16 %v2683
  %v3061 = vunpack.c.h.b16 %v2683
  %v3062 = vunpack.c.l.b16 %v2684
  %v3063 = vunpack.c.l.b16 %v2685
  %v3064 = vunpack.c.h.b16 %v2685
  %v3065 = vunpack.c.l.b16 %v2686
  %v3066 = vunpack.c.l.b16 %v2687
  %v3067 = vunpack.c.h.b16 %v2687
  %v3068 = vunpack.c.l.b16 %v2688
  %v3069 = vunpack.c.l.b16 %v2689
  %v3070 = vunpack.c.h.b16 %v2689
  %v3071 = vunpack.c.l.b16 %v2690
  %v3072 = vunpack.c.l.b16 %v2691
  %v3073 = vunpack.c.h.b16 %v2691
  %v3074 = vunpack.c.l.b16 %v2692
  %v3075 = vunpack.c.l.b16 %v2693
  %v3076 = vunpack.c.h.b16 %v2693
  %v3077 = vunpack.c.l.b16 %v2694
  %v3078 = vunpack.c.l.b16 %v2695
  %v3079 = vunpack.c.h.b16 %v2695
  %v3080 = vunpack.c.l.b16 %v2696
  %v3081 = vunpack.c.l.b16 %v2697
  %v3082 = vunpack.c.h.b16 %v2697
  %v3083 = vunpack.c.l.b16 %v2698
  %v3084 = vunpack.c.l.b16 %v2699
  %v3085 = vunpack.c.h.b16 %v2699
  %v3086 = vunpack.c.l.b16 %v2700
  %v3087 = vunpack.c.l.b16 %v2701
  %v3088 = vunpack.c.h.b16 %v2701
  %v3089 = vunpack.c.l.b16 %v2702
  %v3090 = vunpack.c.l.b16 %v2703
  %v3091 = vunpack.c.h.b16 %v2703
  %v3092 = vunpack.c.l.b16 %v2704
  %v3093 = vunpack.c.l.b16 %v2705
  %v3094 = vunpack.c.h.b16 %v2705
  %v3095 = vunpack.c.l.b16 %v2706
  %v3096 = vunpack.c.l.b16 %v2707
  %v3097 = vunpack.c.h.b16 %v2707
  %v3098 = vunpack.c.l.b16 %v2708
  %v3099 = vpack.c.b16 %v3042, %v3039
  %v3100 = vpack.c.b16 %v3043, %v3040
  %v3101 = vpack.c.b16 %v3044, %v3041
  %v3102 = vpack.c.b16 %v3048, %v3045
  %v3103 = vpack.c.b16 %v3049, %v3046
  %v3104 = vpack.c.b16 %v3050, %v3047
  %v3105 = vpack.c.b16 %v3054, %v3051
  %v3106 = vpack.c.b16 %v3055, %v3052
  %v3107 = vpack.c.b16 %v3056, %v3053
  %v3108 = vpack.c.b16 %v3060, %v3057
  %v3109 = vpack.c.b16 %v3061, %v3058
  %v3110 = vpack.c.b16 %v3062, %v3059
  %v3111 = vpack.c.b16 %v3066, %v3063
  %v3112 = vpack.c.b16 %v3067, %v3064
  %v3113 = vpack.c.b16 %v3068, %v3065
  %v3114 = vpack.c.b16 %v3072, %v3069
  %v3115 = vpack.c.b16 %v3073, %v3070
  %v3116 = vpack.c.b16 %v3074, %v3071
  %v3117 = vpack.c.b16 %v3078, %v3075
  %v3118 = vpack.c.b16 %v3079, %v3076
  %v3119 = vpack.c.b16 %v3080, %v3077
  %v3120 = vpack.c.b16 %v3084, %v3081
  %v3121 = vpack.c.b16 %v3085, %v3082
  %v3122 = vpack.c.b16 %v3086, %v3083
  %v3123 = vpack.c.b16 %v3090, %v3087
  %v3124 = vpack.c.b16 %v3091, %v3088
  %v3125 = vpack.c.b16 %v3092, %v3089
  %v3126 = vpack.c.b16 %v3096, %v3093
  %v3127 = vpack.c.b16 %v3097, %v3094
  %v3128 = vpack.c.b16 %v3098, %v3095
  %v3160 = vsel %vm2449, %v2995, 0
  %3162 = vmatprep.subr.bf16.mxu0 %v3121
  %3163 = vmatpush1.bf16.msra.mxu0 %v3120
  %3164 = vmatprep.subr.bf16.mxu0 %v3118
  %3165 = vmatpush1.bf16.msra.mxu0 %v3117
  %3166 = vmatprep.subr.bf16.mxu0 %v3115
  %3167 = vmatpush1.bf16.msra.mxu0 %v3114
  %3168 = vmatprep.subr.bf16.mxu0 %v3112
  %3169 = vmatpush1.bf16.msra.mxu0 %v3111
  %3170 = vmatprep.subr.bf16.mxu0 %v3109
  %3171 = vmatpush1.bf16.msra.mxu0 %v3108
  %3172 = vmatprep.subr.bf16.mxu0 %v3106
  %3173 = vmatpush1.bf16.msra.mxu0 %v3105
  %3174 = vmatprep.subr.bf16.mxu0 %v3103
  %3175 = vmatpush1.bf16.msra.mxu0 %v3102
  %3176 = vmatprep.subr.bf16.mxu0 %v3100
  %3177 = vmatpush1.bf16.msra.mxu0 %v3099
  %3178 = vmatprep.subr.bf16.mxu0 0
  %3179 = vmatpush2.bf16.msra.mxu0 0
  %3180 = vmatprep.subr.bf16.mxu0 0
  %3181 = vmatpush2.bf16.msra.mxu0 0
  %3182 = vmatprep.subr.bf16.mxu0 0
  %3183 = vmatpush2.bf16.msra.mxu0 0
  %3184 = vmatprep.subr.bf16.mxu0 0
  %3185 = vmatpush2.bf16.msra.mxu0 0
  %3186 = vmatprep.subr.bf16.mxu0 0
  %3187 = vmatpush2.bf16.msra.mxu0 0
  %3188 = vmatprep.subr.bf16.mxu0 0
  %3189 = vmatpush2.bf16.msra.mxu0 0
  %3190 = vmatprep.subr.bf16.mxu0 %v3127
  %3191 = vmatpush2.bf16.msra.mxu0 %v3126
  %3192 = vmatprep.subr.bf16.mxu0 %v3124
  %3193 = vmatpush2.bf16.msra.mxu0 %v3123
  %3194 = vmatprep.mubr.bf16.mxu0 %v3160
  %3195 = vmatmul.mubr.bf16.gmra.mxu0 %v2997
  %v3196 = vpop.f32.mrf.mxu0
  %v3197 = vadd.f32 %v2978, %v3196
  %v3198 = vpop.f32.mrf.mxu0
  %v3199 = vadd.f32 %v2982, %v3198
  %v3200 = vpop.f32.mrf.mxu0
  %v3201 = vpop.f32.mrf.mxu0
  %3202 = vdwg.mxu0
  %3203 = vmatprep.subr.bf16.mxu0 0
  %3204 = vmatpush1.bf16.msra.mxu0 %v3122
  %3205 = vmatprep.subr.bf16.mxu0 0
  %3206 = vmatpush1.bf16.msra.mxu0 %v3119
  %3207 = vmatprep.subr.bf16.mxu0 0
  %3208 = vmatpush1.bf16.msra.mxu0 %v3116
  %3209 = vmatprep.subr.bf16.mxu0 0
  %3210 = vmatpush1.bf16.msra.mxu0 %v3113
  %3211 = vmatprep.subr.bf16.mxu0 0
  %3212 = vmatpush1.bf16.msra.mxu0 %v3110
  %3213 = vmatprep.subr.bf16.mxu0 0
  %3214 = vmatpush1.bf16.msra.mxu0 %v3107
  %3215 = vmatprep.subr.bf16.mxu0 0
  %3216 = vmatpush1.bf16.msra.mxu0 %v3104
  %3217 = vmatprep.subr.bf16.mxu0 0
  %3218 = vmatpush1.bf16.msra.mxu0 %v3101
  %3219 = vmatprep.subr.bf16.mxu0 0
  %3220 = vmatpush2.bf16.msra.mxu0 0
  %3221 = vmatprep.subr.bf16.mxu0 0
  %3222 = vmatpush2.bf16.msra.mxu0 0
  %3223 = vmatprep.subr.bf16.mxu0 0
  %3224 = vmatpush2.bf16.msra.mxu0 0
  %3225 = vmatprep.subr.bf16.mxu0 0
  %3226 = vmatpush2.bf16.msra.mxu0 0
  %3227 = vmatprep.subr.bf16.mxu0 0
  %3228 = vmatpush2.bf16.msra.mxu0 0
  %3229 = vmatprep.subr.bf16.mxu0 0
  %3230 = vmatpush2.bf16.msra.mxu0 0
  %3231 = vmatprep.subr.bf16.mxu0 0
  %3232 = vmatpush2.bf16.msra.mxu0 %v3128
  %3233 = vmatprep.subr.bf16.mxu0 0
  %3234 = vmatpush2.bf16.msra.mxu0 %v3125
  %3235 = vmatprep.mubr.bf16.mxu0 %v3160
  %3236 = vmatmul.mubr.bf16.gmra.mxu0 %v2997
  %v3237 = vpop.f32.mrf.mxu0
  %v3238 = vadd.f32 %v2986, %v3237
  %v3239 = vpop.f32.mrf.mxu0
  %v3240 = vpop.f32.mrf.mxu0
  %v3241 = vpop.f32.mrf.mxu0
  %3242 = vdwg.mxu0
  %3246 = vrot.lane.b32.xlu0 %v3197, 64
  %v3247 = vpop.permute.xlu0 %3246
  %3248 = vrot.lane.b32.xlu0 %v3199, 64
  %v3249 = vpop.permute.xlu0 %3248
  %3250 = vrot.lane.b32.xlu0 %v3238, 64
  %v3251 = vpop.permute.xlu0 %3250
  %v3252 = vsel %vm1199, %v3247, %v3249
  %v3253 = vsel %vm1199, %v3249, %v3251
  %v3257 = vsel %vm1199, %v2967, %v3247
  %vm3258 = vcmp.gt.f32.partialorder %v2926, 0.0
  %vm3259 = vcmp.gt.f32.partialorder %v2928, 0.0
  %vm3260 = vcmp.gt.f32.partialorder %v3257, 0.0
  %vm3261 = vcmp.gt.f32.partialorder %v3252, 0.0
  %vm3262 = vcmp.gt.f32.partialorder %v3253, 0.0
  %v3263 = vmul.f32 %v2926, 1.442695
  %v3264 = vpow.pop %v3263
  %v3265 = vmul.f32 %v2928, 1.442695
  %v3266 = vpow.pop %v3265
  %v3267 = vmul.f32 %v3257, 1.442695
  %v3268 = vpow.pop %v3267
  %v3269 = vmul.f32 %v3252, 1.442695
  %v3270 = vpow.pop %v3269
  %v3271 = vmul.f32 %v3253, 1.442695
  %v3272 = vpow.pop %v3271
  %v3273 = vsub.f32 %v3264, 1.0
  %v3274 = vsub.f32 %v3266, 1.0
  %v3275 = vsub.f32 %v3268, 1.0
  %v3276 = vsub.f32 %v3270, 1.0
  %v3277 = vsub.f32 %v3272, 1.0
  %v3278 = vmul.f32 %v3273, 1.6732632
  %v3279 = vmul.f32 %v3274, 1.6732632
  %v3280 = vmul.f32 %v3275, 1.6732632
  %v3281 = vmul.f32 %v3276, 1.6732632
  %v3282 = vmul.f32 %v3277, 1.6732632
  %v3283 = vsel %vm3258, %v2926, %v3278
  %v3284 = vsel %vm3259, %v2928, %v3279
  %v3285 = vsel %vm3260, %v3257, %v3280
  %v3286 = vsel %vm3261, %v3252, %v3281
  %v3287 = vsel %vm3262, %v3253, %v3282
  %v3288 = vmul.f32 %v3283, 1.050701
  %v3289 = vmul.f32 %v3284, 1.050701
  %v3290 = vmul.f32 %v3285, 1.050701
  %v3291 = vmul.f32 %v3286, 1.050701
  %v3292 = vmul.f32 %v3287, 1.050701
  %v3293 = vld [vmem:[%s2 + $0x19] sm:$0x7]
  %v3294 = vld [vmem:[%s2 + $0x4f] sm:$0x7]
  %v3296 = vlaneseq
  %v3297 = vshrl.u32 %v3296, 7
  %v3298 = vsub.s32 0, %v3297
  %v3299 = vrot.slane %v3293, %v3298
  %v3300 = vlaneseq
  %v3301 = vshrl.u32 %v3300, 7
  %v3302 = vsub.s32 1, %v3301
  %v3303 = vrot.slane %v3293, %v3302
  %v3304 = vlaneseq
  %v3305 = vshrl.u32 %v3304, 7
  %v3306 = vsub.s32 2, %v3305
  %v3307 = vrot.slane %v3293, %v3306
  %v3312 = vlaneseq
  %v3313 = vshrl.u32 %v3312, 7
  %v3314 = vsub.s32 0, %v3313
  %v3315 = vrot.slane %v3294, %v3314
  %v3316 = vlaneseq
  %v3317 = vshrl.u32 %v3316, 7
  %v3318 = vsub.s32 1, %v3317
  %v3319 = vrot.slane %v3294, %v3318
  %v3320 = vlaneseq
  %v3321 = vshrl.u32 %v3320, 7
  %v3322 = vsub.s32 2, %v3321
  %v3323 = vrot.slane %v3294, %v3322
  %3324 = vrot.lane.b32.xlu0 %v3315, 64
  %v3325 = vpop.permute.xlu0 %3324
  %3326 = vrot.lane.b32.xlu0 %v3319, 64
  %v3327 = vpop.permute.xlu0 %3326
  %3328 = vrot.lane.b32.xlu0 %v3323, 64
  %v3329 = vpop.permute.xlu0 %3328
  %v3330 = vsel %vm1199, %v3325, %v3327
  %v3331 = vsel %vm1199, %v3327, %v3329
  %v3335 = vsel %vm1199, %v3307, %v3325
  %v3336 = vld [vmem:[%s2 + $0x1c] sm:$0x7]
  %v3337 = vld [vmem:[%s2 + $0x52] sm:$0x7]
  %v3339 = vlaneseq
  %v3340 = vshrl.u32 %v3339, 7
  %v3341 = vsub.s32 0, %v3340
  %v3342 = vrot.slane %v3336, %v3341
  %v3343 = vlaneseq
  %v3344 = vshrl.u32 %v3343, 7
  %v3345 = vsub.s32 1, %v3344
  %v3346 = vrot.slane %v3336, %v3345
  %v3347 = vlaneseq
  %v3348 = vshrl.u32 %v3347, 7
  %v3349 = vsub.s32 2, %v3348
  %v3350 = vrot.slane %v3336, %v3349
  %v3355 = vlaneseq
  %v3356 = vshrl.u32 %v3355, 7
  %v3357 = vsub.s32 0, %v3356
  %v3358 = vrot.slane %v3337, %v3357
  %v3359 = vlaneseq
  %v3360 = vshrl.u32 %v3359, 7
  %v3361 = vsub.s32 1, %v3360
  %v3362 = vrot.slane %v3337, %v3361
  %v3363 = vlaneseq
  %v3364 = vshrl.u32 %v3363, 7
  %v3365 = vsub.s32 2, %v3364
  %v3366 = vrot.slane %v3337, %v3365
  %3367 = vrot.lane.b32.xlu0 %v3358, 64
  %v3368 = vpop.permute.xlu0 %3367
  %3369 = vrot.lane.b32.xlu0 %v3362, 64
  %v3370 = vpop.permute.xlu0 %3369
  %3371 = vrot.lane.b32.xlu0 %v3366, 64
  %v3372 = vpop.permute.xlu0 %3371
  %v3373 = vsel %vm1199, %v3368, %v3370
  %v3374 = vsel %vm1199, %v3370, %v3372
  %v3378 = vsel %vm1199, %v3350, %v3368
  %v3379 = vsel %vm1142, %v3288, 0.0
  %v3380 = vrot.slane %v3379, 4
  %v3381 = vadd.f32 %v3379, %v3380
  %v3382 = vrot.slane %v3381, 2
  %v3383 = vadd.f32 %v3381, %v3382
  %v3384 = vrot.slane %v3383, 1
  %v3385 = vadd.f32 %v3383, %v3384
  %v3386 = vsel %vm1142, %v3289, 0.0
  %v3387 = vrot.slane %v3386, 4
  %v3388 = vadd.f32 %v3386, %v3387
  %v3389 = vrot.slane %v3388, 2
  %v3390 = vadd.f32 %v3388, %v3389
  %v3391 = vrot.slane %v3390, 1
  %v3392 = vadd.f32 %v3390, %v3391
  %v3393 = vsel %vm1142, %v3290, 0.0
  %v3394 = vrot.slane %v3393, 4
  %v3395 = vadd.f32 %v3393, %v3394
  %v3396 = vrot.slane %v3395, 2
  %v3397 = vadd.f32 %v3395, %v3396
  %v3398 = vrot.slane %v3397, 1
  %v3399 = vadd.f32 %v3397, %v3398
  %v3400 = vsel %vm1142, %v3291, 0.0
  %v3401 = vrot.slane %v3400, 4
  %v3402 = vadd.f32 %v3400, %v3401
  %v3403 = vrot.slane %v3402, 2
  %v3404 = vadd.f32 %v3402, %v3403
  %v3405 = vrot.slane %v3404, 1
  %v3406 = vadd.f32 %v3404, %v3405
  %v3407 = vsel %vm1142, %v3292, 0.0
  %v3408 = vrot.slane %v3407, 4
  %v3409 = vadd.f32 %v3407, %v3408
  %v3410 = vrot.slane %v3409, 2
  %v3411 = vadd.f32 %v3409, %v3410
  %v3412 = vrot.slane %v3411, 1
  %v3413 = vadd.f32 %v3411, %v3412
  %v3414 = vmul.f32 %v3385, %v1892
  %v3415 = vmul.f32 %v3392, %v1892
  %v3416 = vmul.f32 %v3399, %v1892
  %v3417 = vmul.f32 %v3406, %v1892
  %v3418 = vmul.f32 %v3413, %v1892
  %v3419 = vsub.f32 %v3288, %v3414
  %v3420 = vsub.f32 %v3289, %v3415
  %v3421 = vsub.f32 %v3290, %v3416
  %v3422 = vsub.f32 %v3291, %v3417
  %v3423 = vsub.f32 %v3292, %v3418
  %v3424 = vmul.f32 %v3419, %v3419
  %v3425 = vmul.f32 %v3420, %v3420
  %v3426 = vmul.f32 %v3421, %v3421
  %v3427 = vmul.f32 %v3422, %v3422
  %v3428 = vmul.f32 %v3423, %v3423
  %v3429 = vsel %vm1142, %v3424, 0.0
  %v3430 = vrot.slane %v3429, 4
  %v3431 = vadd.f32 %v3429, %v3430
  %v3432 = vrot.slane %v3431, 2
  %v3433 = vadd.f32 %v3431, %v3432
  %v3434 = vrot.slane %v3433, 1
  %v3435 = vadd.f32 %v3433, %v3434
  %v3436 = vsel %vm1142, %v3425, 0.0
  %v3437 = vrot.slane %v3436, 4
  %v3438 = vadd.f32 %v3436, %v3437
  %v3439 = vrot.slane %v3438, 2
  %v3440 = vadd.f32 %v3438, %v3439
  %v3441 = vrot.slane %v3440, 1
  %v3442 = vadd.f32 %v3440, %v3441
  %v3443 = vsel %vm1142, %v3426, 0.0
  %v3444 = vrot.slane %v3443, 4
  %v3445 = vadd.f32 %v3443, %v3444
  %v3446 = vrot.slane %v3445, 2
  %v3447 = vadd.f32 %v3445, %v3446
  %v3448 = vrot.slane %v3447, 1
  %v3449 = vadd.f32 %v3447, %v3448
  %v3450 = vsel %vm1142, %v3427, 0.0
  %v3451 = vrot.slane %v3450, 4
  %v3452 = vadd.f32 %v3450, %v3451
  %v3453 = vrot.slane %v3452, 2
  %v3454 = vadd.f32 %v3452, %v3453
  %v3455 = vrot.slane %v3454, 1
  %v3456 = vadd.f32 %v3454, %v3455
  %v3457 = vsel %vm1142, %v3428, 0.0
  %v3458 = vrot.slane %v3457, 4
  %v3459 = vadd.f32 %v3457, %v3458
  %v3460 = vrot.slane %v3459, 2
  %v3461 = vadd.f32 %v3459, %v3460
  %v3462 = vrot.slane %v3461, 1
  %v3463 = vadd.f32 %v3461, %v3462
  %v3464 = vmul.f32 %v3435, %v1892
  %v3465 = vmul.f32 %v3442, %v1892
  %v3466 = vmul.f32 %v3449, %v1892
  %v3467 = vmul.f32 %v3456, %v1892
  %v3468 = vmul.f32 %v3463, %v1892
  %v3469 = vadd.f32 %v3464, 1e-05
  %v3470 = vadd.f32 %v3465, 1e-05
  %v3471 = vadd.f32 %v3466, 1e-05
  %v3472 = vadd.f32 %v3467, 1e-05
  %v3473 = vadd.f32 %v3468, 1e-05
  %v3474 = vrsqrt.pop %v3469
  %v3475 = vrsqrt.pop %v3470
  %v3476 = vrsqrt.pop %v3471
  %v3477 = vrsqrt.pop %v3472
  %v3478 = vrsqrt.pop %v3473
  %v3479 = vmul.f32 %v3419, %v3474
  %v3480 = vmul.f32 %v3420, %v3475
  %v3481 = vmul.f32 %v3421, %v3476
  %v3482 = vmul.f32 %v3422, %v3477
  %v3483 = vmul.f32 %v3423, %v3478
  %v3484 = vlaneseq
  %v3485 = vshrl.u32 %v3484, 7
  %v3486 = vsub.s32 0, %v3485
  %v3487 = vrot.slane %v3299, %v3486
  %v3488 = vlaneseq
  %v3489 = vshrl.u32 %v3488, 7
  %v3490 = vsub.s32 0, %v3489
  %v3491 = vrot.slane %v3303, %v3490
  %v3492 = vlaneseq
  %v3493 = vshrl.u32 %v3492, 7
  %v3494 = vsub.s32 0, %v3493
  %v3495 = vrot.slane %v3335, %v3494
  %v3496 = vlaneseq
  %v3497 = vshrl.u32 %v3496, 7
  %v3498 = vsub.s32 0, %v3497
  %v3499 = vrot.slane %v3330, %v3498
  %v3500 = vlaneseq
  %v3501 = vshrl.u32 %v3500, 7
  %v3502 = vsub.s32 0, %v3501
  %v3503 = vrot.slane %v3331, %v3502
  %v3504 = vmul.f32 %v3479, %v3487
  %v3505 = vmul.f32 %v3480, %v3491
  %v3506 = vmul.f32 %v3481, %v3495
  %v3507 = vmul.f32 %v3482, %v3499
  %v3508 = vmul.f32 %v3483, %v3503
  %v3509 = vlaneseq
  %v3510 = vshrl.u32 %v3509, 7
  %v3511 = vsub.s32 0, %v3510
  %v3512 = vrot.slane %v3342, %v3511
  %v3513 = vlaneseq
  %v3514 = vshrl.u32 %v3513, 7
  %v3515 = vsub.s32 0, %v3514
  %v3516 = vrot.slane %v3346, %v3515
  %v3517 = vlaneseq
  %v3518 = vshrl.u32 %v3517, 7
  %v3519 = vsub.s32 0, %v3518
  %v3520 = vrot.slane %v3378, %v3519
  %v3521 = vlaneseq
  %v3522 = vshrl.u32 %v3521, 7
  %v3523 = vsub.s32 0, %v3522
  %v3524 = vrot.slane %v3373, %v3523
  %v3525 = vlaneseq
  %v3526 = vshrl.u32 %v3525, 7
  %v3527 = vsub.s32 0, %v3526
  %v3528 = vrot.slane %v3374, %v3527
  %v3529 = vadd.f32 %v3504, %v3512
  %v3530 = vadd.f32 %v3505, %v3516
  %v3531 = vadd.f32 %v3506, %v3520
  %v3532 = vadd.f32 %v3507, %v3524
  %v3533 = vadd.f32 %v3508, %v3528
  %s3534 = smul.u32 4, 40
  %s3535 = smul.u32 %s3534, 5
  %s3536 = sshll.u32 %s3535, 4
  %3537 = dma.done [#allocation6], %s3536
  %s3538 = sshll.u32 %s3535, 4
  %3539 = dma.done %s314, %s3538
  %v3540 = vld [vmem:[#allocation2] sm:$0xff]
  %v3541 = vld [vmem:[#allocation2 + $0x8] sm:$0xff]
  %v3542 = vld [vmem:[#allocation2 + $0x10] sm:$0xf]
  %v3543 = vld [vmem:[#allocation2 + $0x14] sm:$0xff]
  %v3544 = vld [vmem:[#allocation2 + $0x1c] sm:$0xff]
  %v3545 = vld [vmem:[#allocation2 + $0x24] sm:$0xf]
  %v3546 = vld [vmem:[#allocation2 + $0x28] sm:$0xff]
  %v3547 = vld [vmem:[#allocation2 + $0x30] sm:$0xff]
  %v3548 = vld [vmem:[#allocation2 + $0x38] sm:$0xf]
  %v3549 = vld [vmem:[#allocation2 + $0x3c] sm:$0xff]
  %v3550 = vld [vmem:[#allocation2 + $0x44] sm:$0xff]
  %v3551 = vld [vmem:[#allocation2 + $0x4c] sm:$0xf]
  %v3552 = vld [vmem:[#allocation2 + $0x50] sm:$0xff]
  %v3553 = vld [vmem:[#allocation2 + $0x58] sm:$0xff]
  %v3554 = vld [vmem:[#allocation2 + $0x60] sm:$0xf]
  %v3555 = vld [vmem:[#allocation2 + $0x64] sm:$0xff]
  %v3556 = vld [vmem:[#allocation2 + $0x6c] sm:$0xff]
  %v3557 = vld [vmem:[#allocation2 + $0x74] sm:$0xf]
  %v3558 = vld [vmem:[#allocation2 + $0x78] sm:$0xff]
  %v3559 = vld [vmem:[#allocation2 + $0x80] sm:$0xff]
  %v3560 = vld [vmem:[#allocation2 + $0x88] sm:$0xf]
  %v3561 = vld [vmem:[#allocation2 + $0x8c] sm:$0xff]
  %v3562 = vld [vmem:[#allocation2 + $0x94] sm:$0xff]
  %v3563 = vld [vmem:[#allocation2 + $0x9c] sm:$0xf]
  %v3564 = vld [vmem:[#allocation2 + $0xa0] sm:$0xff]
  %v3565 = vld [vmem:[#allocation2 + $0xa8] sm:$0xff]
  %v3566 = vld [vmem:[#allocation2 + $0xb0] sm:$0xf]
  %v3567 = vld [vmem:[#allocation2 + $0xb4] sm:$0xff]
  %v3568 = vld [vmem:[#allocation2 + $0xbc] sm:$0xff]
  %v3569 = vld [vmem:[#allocation2 + $0xc4] sm:$0xf]
  %v3570 = vld [vmem:[#allocation2 + $0xc8] sm:$0xff]
  %v3571 = vld [vmem:[#allocation2 + $0xd0] sm:$0xff]
  %v3572 = vld [vmem:[#allocation2 + $0xd8] sm:$0xf]
  %v3573 = vld [vmem:[#allocation2 + $0xdc] sm:$0xff]
  %v3574 = vld [vmem:[#allocation2 + $0xe4] sm:$0xff]
  %v3575 = vld [vmem:[#allocation2 + $0xec] sm:$0xf]
  %v3576 = vld [vmem:[#allocation2 + $0xf0] sm:$0xff]
  %v3577 = vld [vmem:[#allocation2 + $0xf8] sm:$0xff]
  %v3578 = vld [vmem:[#allocation2 + $0x100] sm:$0xf]
  %v3579 = vld [vmem:[#allocation2 + $0x104] sm:$0xff]
  %v3580 = vld [vmem:[#allocation2 + $0x10c] sm:$0xff]
  %v3581 = vld [vmem:[#allocation2 + $0x114] sm:$0xf]
  %v3582 = vld [vmem:[#allocation2 + $0x118] sm:$0xff]
  %v3583 = vld [vmem:[#allocation2 + $0x120] sm:$0xff]
  %v3584 = vld [vmem:[#allocation2 + $0x128] sm:$0xf]
  %v3585 = vld [vmem:[#allocation2 + $0x12c] sm:$0xff]
  %v3586 = vld [vmem:[#allocation2 + $0x134] sm:$0xff]
  %v3587 = vld [vmem:[#allocation2 + $0x13c] sm:$0xf]
  %v3588 = vld [vmem:[#allocation2 + $0x140] sm:$0xff]
  %v3589 = vld [vmem:[#allocation2 + $0x148] sm:$0xff]
  %v3590 = vld [vmem:[#allocation2 + $0x150] sm:$0xf]
  %v3591 = vld [vmem:[#allocation2 + $0x154] sm:$0xff]
  %v3592 = vld [vmem:[#allocation2 + $0x15c] sm:$0xff]
  %v3593 = vld [vmem:[#allocation2 + $0x164] sm:$0xf]
  %v3594 = vld [vmem:[#allocation2 + $0x168] sm:$0xff]
  %v3595 = vld [vmem:[#allocation2 + $0x170] sm:$0xff]
  %v3596 = vld [vmem:[#allocation2 + $0x178] sm:$0xf]
  %v3597 = vld [vmem:[#allocation2 + $0x17c] sm:$0xff]
  %v3598 = vld [vmem:[#allocation2 + $0x184] sm:$0xff]
  %v3599 = vld [vmem:[#allocation2 + $0x18c] sm:$0xf]
  %v3600 = vld [vmem:[#allocation2 + $0x190] sm:$0xff]
  %v3601 = vld [vmem:[#allocation2 + $0x198] sm:$0xff]
  %v3602 = vld [vmem:[#allocation2 + $0x1a0] sm:$0xf]
  %v3603 = vld [vmem:[#allocation2 + $0x1a4] sm:$0xff]
  %v3604 = vld [vmem:[#allocation2 + $0x1ac] sm:$0xff]
  %v3605 = vld [vmem:[#allocation2 + $0x1b4] sm:$0xf]
  %v3606 = vld [vmem:[#allocation2 + $0x1b8] sm:$0xff]
  %v3607 = vld [vmem:[#allocation2 + $0x1c0] sm:$0xff]
  %v3608 = vld [vmem:[#allocation2 + $0x1c8] sm:$0xf]
  %v3609 = vld [vmem:[#allocation2 + $0x1cc] sm:$0xff]
  %v3610 = vld [vmem:[#allocation2 + $0x1d4] sm:$0xff]
  %v3611 = vld [vmem:[#allocation2 + $0x1dc] sm:$0xf]
  %v3612 = vld [vmem:[#allocation2 + $0x1e0] sm:$0xff]
  %v3613 = vld [vmem:[#allocation2 + $0x1e8] sm:$0xff]
  %v3614 = vld [vmem:[#allocation2 + $0x1f0] sm:$0xf]
  %v3615 = vld [vmem:[#allocation2 + $0x1f4] sm:$0xff]
  %v3616 = vld [vmem:[#allocation2 + $0x1fc] sm:$0xff]
  %v3617 = vld [vmem:[#allocation2 + $0x204] sm:$0xf]
  %v3618 = vld [vmem:[#allocation2 + $0x208] sm:$0xff]
  %v3619 = vld [vmem:[#allocation2 + $0x210] sm:$0xff]
  %v3620 = vld [vmem:[#allocation2 + $0x218] sm:$0xf]
  %v3621 = vld [vmem:[#allocation2 + $0x21c] sm:$0xff]
  %v3622 = vld [vmem:[#allocation2 + $0x224] sm:$0xff]
  %v3623 = vld [vmem:[#allocation2 + $0x22c] sm:$0xf]
  %v3624 = vld [vmem:[#allocation2 + $0x230] sm:$0xff]
  %v3625 = vld [vmem:[#allocation2 + $0x238] sm:$0xff]
  %v3626 = vld [vmem:[#allocation2 + $0x240] sm:$0xf]
  %v3627 = vld [vmem:[#allocation2 + $0x244] sm:$0xff]
  %v3628 = vld [vmem:[#allocation2 + $0x24c] sm:$0xff]
  %v3629 = vld [vmem:[#allocation2 + $0x254] sm:$0xf]
  %v3630 = vld [vmem:[#allocation2 + $0x258] sm:$0xff]
  %v3631 = vld [vmem:[#allocation2 + $0x260] sm:$0xff]
  %v3632 = vld [vmem:[#allocation2 + $0x268] sm:$0xf]
  %v3633 = vld [vmem:[#allocation2 + $0x26c] sm:$0xff]
  %v3634 = vld [vmem:[#allocation2 + $0x274] sm:$0xff]
  %v3635 = vld [vmem:[#allocation2 + $0x27c] sm:$0xf]
  %v3636 = vld [vmem:[#allocation2 + $0x280] sm:$0xff]
  %v3637 = vld [vmem:[#allocation2 + $0x288] sm:$0xff]
  %v3638 = vld [vmem:[#allocation2 + $0x290] sm:$0xf]
  %v3639 = vld [vmem:[#allocation2 + $0x294] sm:$0xff]
  %v3640 = vld [vmem:[#allocation2 + $0x29c] sm:$0xff]
  %v3641 = vld [vmem:[#allocation2 + $0x2a4] sm:$0xf]
  %v3642 = vld [vmem:[#allocation2 + $0x2a8] sm:$0xff]
  %v3643 = vld [vmem:[#allocation2 + $0x2b0] sm:$0xff]
  %v3644 = vld [vmem:[#allocation2 + $0x2b8] sm:$0xf]
  %v3645 = vld [vmem:[#allocation2 + $0x2bc] sm:$0xff]
  %v3646 = vld [vmem:[#allocation2 + $0x2c4] sm:$0xff]
  %v3647 = vld [vmem:[#allocation2 + $0x2cc] sm:$0xf]
  %v3648 = vld [vmem:[#allocation2 + $0x2d0] sm:$0xff]
  %v3649 = vld [vmem:[#allocation2 + $0x2d8] sm:$0xff]
  %v3650 = vld [vmem:[#allocation2 + $0x2e0] sm:$0xf]
  %v3651 = vld [vmem:[#allocation2 + $0x2e4] sm:$0xff]
  %v3652 = vld [vmem:[#allocation2 + $0x2ec] sm:$0xff]
  %v3653 = vld [vmem:[#allocation2 + $0x2f4] sm:$0xf]
  %v3654 = vld [vmem:[#allocation2 + $0x2f8] sm:$0xff]
  %v3655 = vld [vmem:[#allocation2 + $0x300] sm:$0xff]
  %v3656 = vld [vmem:[#allocation2 + $0x308] sm:$0xf]
  %v3657 = vld [vmem:[#allocation2 + $0x30c] sm:$0xff]
  %v3658 = vld [vmem:[#allocation2 + $0x314] sm:$0xff]
  %v3659 = vld [vmem:[#allocation2 + $0x31c] sm:$0xf]
  %v3660 = vld [vmem:[#allocation3] sm:$0xff]
  %v3661 = vld [vmem:[#allocation3 + $0x8] sm:$0xff]
  %v3662 = vld [vmem:[#allocation3 + $0x10] sm:$0xf]
  %v3663 = vld [vmem:[#allocation3 + $0x14] sm:$0xff]
  %v3664 = vld [vmem:[#allocation3 + $0x1c] sm:$0xff]
  %v3665 = vld [vmem:[#allocation3 + $0x24] sm:$0xf]
  %v3666 = vld [vmem:[#allocation3 + $0x28] sm:$0xff]
  %v3667 = vld [vmem:[#allocation3 + $0x30] sm:$0xff]
  %v3668 = vld [vmem:[#allocation3 + $0x38] sm:$0xf]
  %v3669 = vld [vmem:[#allocation3 + $0x3c] sm:$0xff]
  %v3670 = vld [vmem:[#allocation3 + $0x44] sm:$0xff]
  %v3671 = vld [vmem:[#allocation3 + $0x4c] sm:$0xf]
  %v3672 = vld [vmem:[#allocation3 + $0x50] sm:$0xff]
  %v3673 = vld [vmem:[#allocation3 + $0x58] sm:$0xff]
  %v3674 = vld [vmem:[#allocation3 + $0x60] sm:$0xf]
  %v3675 = vld [vmem:[#allocation3 + $0x64] sm:$0xff]
  %v3676 = vld [vmem:[#allocation3 + $0x6c] sm:$0xff]
  %v3677 = vld [vmem:[#allocation3 + $0x74] sm:$0xf]
  %v3678 = vld [vmem:[#allocation3 + $0x78] sm:$0xff]
  %v3679 = vld [vmem:[#allocation3 + $0x80] sm:$0xff]
  %v3680 = vld [vmem:[#allocation3 + $0x88] sm:$0xf]
  %v3681 = vld [vmem:[#allocation3 + $0x8c] sm:$0xff]
  %v3682 = vld [vmem:[#allocation3 + $0x94] sm:$0xff]
  %v3683 = vld [vmem:[#allocation3 + $0x9c] sm:$0xf]
  %v3684 = vld [vmem:[#allocation3 + $0xa0] sm:$0xff]
  %v3685 = vld [vmem:[#allocation3 + $0xa8] sm:$0xff]
  %v3686 = vld [vmem:[#allocation3 + $0xb0] sm:$0xf]
  %v3687 = vld [vmem:[#allocation3 + $0xb4] sm:$0xff]
  %v3688 = vld [vmem:[#allocation3 + $0xbc] sm:$0xff]
  %v3689 = vld [vmem:[#allocation3 + $0xc4] sm:$0xf]
  %v3690 = vld [vmem:[#allocation3 + $0xc8] sm:$0xff]
  %v3691 = vld [vmem:[#allocation3 + $0xd0] sm:$0xff]
  %v3692 = vld [vmem:[#allocation3 + $0xd8] sm:$0xf]
  %v3693 = vld [vmem:[#allocation3 + $0xdc] sm:$0xff]
  %v3694 = vld [vmem:[#allocation3 + $0xe4] sm:$0xff]
  %v3695 = vld [vmem:[#allocation3 + $0xec] sm:$0xf]
  %v3696 = vld [vmem:[#allocation3 + $0xf0] sm:$0xff]
  %v3697 = vld [vmem:[#allocation3 + $0xf8] sm:$0xff]
  %v3698 = vld [vmem:[#allocation3 + $0x100] sm:$0xf]
  %v3699 = vld [vmem:[#allocation3 + $0x104] sm:$0xff]
  %v3700 = vld [vmem:[#allocation3 + $0x10c] sm:$0xff]
  %v3701 = vld [vmem:[#allocation3 + $0x114] sm:$0xf]
  %v3702 = vld [vmem:[#allocation3 + $0x118] sm:$0xff]
  %v3703 = vld [vmem:[#allocation3 + $0x120] sm:$0xff]
  %v3704 = vld [vmem:[#allocation3 + $0x128] sm:$0xf]
  %v3705 = vld [vmem:[#allocation3 + $0x12c] sm:$0xff]
  %v3706 = vld [vmem:[#allocation3 + $0x134] sm:$0xff]
  %v3707 = vld [vmem:[#allocation3 + $0x13c] sm:$0xf]
  %v3708 = vld [vmem:[#allocation3 + $0x140] sm:$0xff]
  %v3709 = vld [vmem:[#allocation3 + $0x148] sm:$0xff]
  %v3710 = vld [vmem:[#allocation3 + $0x150] sm:$0xf]
  %v3711 = vld [vmem:[#allocation3 + $0x154] sm:$0xff]
  %v3712 = vld [vmem:[#allocation3 + $0x15c] sm:$0xff]
  %v3713 = vld [vmem:[#allocation3 + $0x164] sm:$0xf]
  %v3714 = vld [vmem:[#allocation3 + $0x168] sm:$0xff]
  %v3715 = vld [vmem:[#allocation3 + $0x170] sm:$0xff]
  %v3716 = vld [vmem:[#allocation3 + $0x178] sm:$0xf]
  %v3717 = vld [vmem:[#allocation3 + $0x17c] sm:$0xff]
  %v3718 = vld [vmem:[#allocation3 + $0x184] sm:$0xff]
  %v3719 = vld [vmem:[#allocation3 + $0x18c] sm:$0xf]
  %v3720 = vld [vmem:[#allocation3 + $0x190] sm:$0xff]
  %v3721 = vld [vmem:[#allocation3 + $0x198] sm:$0xff]
  %v3722 = vld [vmem:[#allocation3 + $0x1a0] sm:$0xf]
  %v3723 = vld [vmem:[#allocation3 + $0x1a4] sm:$0xff]
  %v3724 = vld [vmem:[#allocation3 + $0x1ac] sm:$0xff]
  %v3725 = vld [vmem:[#allocation3 + $0x1b4] sm:$0xf]
  %v3726 = vld [vmem:[#allocation3 + $0x1b8] sm:$0xff]
  %v3727 = vld [vmem:[#allocation3 + $0x1c0] sm:$0xff]
  %v3728 = vld [vmem:[#allocation3 + $0x1c8] sm:$0xf]
  %v3729 = vld [vmem:[#allocation3 + $0x1cc] sm:$0xff]
  %v3730 = vld [vmem:[#allocation3 + $0x1d4] sm:$0xff]
  %v3731 = vld [vmem:[#allocation3 + $0x1dc] sm:$0xf]
  %v3732 = vld [vmem:[#allocation3 + $0x1e0] sm:$0xff]
  %v3733 = vld [vmem:[#allocation3 + $0x1e8] sm:$0xff]
  %v3734 = vld [vmem:[#allocation3 + $0x1f0] sm:$0xf]
  %v3735 = vld [vmem:[#allocation3 + $0x1f4] sm:$0xff]
  %v3736 = vld [vmem:[#allocation3 + $0x1fc] sm:$0xff]
  %v3737 = vld [vmem:[#allocation3 + $0x204] sm:$0xf]
  %v3738 = vld [vmem:[#allocation3 + $0x208] sm:$0xff]
  %v3739 = vld [vmem:[#allocation3 + $0x210] sm:$0xff]
  %v3740 = vld [vmem:[#allocation3 + $0x218] sm:$0xf]
  %v3741 = vld [vmem:[#allocation3 + $0x21c] sm:$0xff]
  %v3742 = vld [vmem:[#allocation3 + $0x224] sm:$0xff]
  %v3743 = vld [vmem:[#allocation3 + $0x22c] sm:$0xf]
  %v3744 = vld [vmem:[#allocation3 + $0x230] sm:$0xff]
  %v3745 = vld [vmem:[#allocation3 + $0x238] sm:$0xff]
  %v3746 = vld [vmem:[#allocation3 + $0x240] sm:$0xf]
  %v3747 = vld [vmem:[#allocation3 + $0x244] sm:$0xff]
  %v3748 = vld [vmem:[#allocation3 + $0x24c] sm:$0xff]
  %v3749 = vld [vmem:[#allocation3 + $0x254] sm:$0xf]
  %v3750 = vld [vmem:[#allocation3 + $0x258] sm:$0xff]
  %v3751 = vld [vmem:[#allocation3 + $0x260] sm:$0xff]
  %v3752 = vld [vmem:[#allocation3 + $0x268] sm:$0xf]
  %v3753 = vld [vmem:[#allocation3 + $0x26c] sm:$0xff]
  %v3754 = vld [vmem:[#allocation3 + $0x274] sm:$0xff]
  %v3755 = vld [vmem:[#allocation3 + $0x27c] sm:$0xf]
  %v3756 = vld [vmem:[#allocation3 + $0x280] sm:$0xff]
  %v3757 = vld [vmem:[#allocation3 + $0x288] sm:$0xff]
  %v3758 = vld [vmem:[#allocation3 + $0x290] sm:$0xf]
  %v3759 = vld [vmem:[#allocation3 + $0x294] sm:$0xff]
  %v3760 = vld [vmem:[#allocation3 + $0x29c] sm:$0xff]
  %v3761 = vld [vmem:[#allocation3 + $0x2a4] sm:$0xf]
  %v3762 = vld [vmem:[#allocation3 + $0x2a8] sm:$0xff]
  %v3763 = vld [vmem:[#allocation3 + $0x2b0] sm:$0xff]
  %v3764 = vld [vmem:[#allocation3 + $0x2b8] sm:$0xf]
  %v3765 = vld [vmem:[#allocation3 + $0x2bc] sm:$0xff]
  %v3766 = vld [vmem:[#allocation3 + $0x2c4] sm:$0xff]
  %v3767 = vld [vmem:[#allocation3 + $0x2cc] sm:$0xf]
  %v3768 = vld [vmem:[#allocation3 + $0x2d0] sm:$0xff]
  %v3769 = vld [vmem:[#allocation3 + $0x2d8] sm:$0xff]
  %v3770 = vld [vmem:[#allocation3 + $0x2e0] sm:$0xf]
  %v3771 = vld [vmem:[#allocation3 + $0x2e4] sm:$0xff]
  %v3772 = vld [vmem:[#allocation3 + $0x2ec] sm:$0xff]
  %v3773 = vld [vmem:[#allocation3 + $0x2f4] sm:$0xf]
  %v3774 = vld [vmem:[#allocation3 + $0x2f8] sm:$0xff]
  %v3775 = vld [vmem:[#allocation3 + $0x300] sm:$0xff]
  %v3776 = vld [vmem:[#allocation3 + $0x308] sm:$0xf]
  %v3777 = vld [vmem:[#allocation3 + $0x30c] sm:$0xff]
  %v3778 = vld [vmem:[#allocation3 + $0x314] sm:$0xff]
  %v3779 = vld [vmem:[#allocation3 + $0x31c] sm:$0xf]
  %v3780 = vpack.c.bf16 %v3529, %v3529
  %v3781 = vpack.c.bf16 %v3530, %v3530
  %v3782 = vpack.c.bf16 %v3531, %v3531
  %v3783 = vld [vmem:[%s2 + $0x1f] sm:$0x1f]
  %v3785 = vlaneseq
  %v3786 = vshrl.u32 %v3785, 7
  %v3787 = vsub.s32 0, %v3786
  %v3788 = vrot.slane %v3783, %v3787
  %v3789 = vlaneseq
  %v3790 = vshrl.u32 %v3789, 7
  %v3791 = vsub.s32 1, %v3790
  %v3792 = vrot.slane %v3783, %v3791
  %v3793 = vlaneseq
  %v3794 = vshrl.u32 %v3793, 7
  %v3795 = vsub.s32 2, %v3794
  %v3796 = vrot.slane %v3783, %v3795
  %v3797 = vlaneseq
  %v3798 = vshrl.u32 %v3797, 7
  %v3799 = vsub.s32 3, %v3798
  %v3800 = vrot.slane %v3783, %v3799
  %v3801 = vlaneseq
  %v3802 = vshrl.u32 %v3801, 7
  %v3803 = vsub.s32 4, %v3802
  %v3804 = vrot.slane %v3783, %v3803
  %v3930 = vunpack.c.l.b16 %v3540
  %v3931 = vunpack.c.h.b16 %v3540
  %v3932 = vunpack.c.l.b16 %v3541
  %v3933 = vunpack.c.h.b16 %v3541
  %v3934 = vunpack.c.l.b16 %v3542
  %v3935 = vunpack.c.l.b16 %v3543
  %v3936 = vunpack.c.h.b16 %v3543
  %v3937 = vunpack.c.l.b16 %v3544
  %v3938 = vunpack.c.h.b16 %v3544
  %v3939 = vunpack.c.l.b16 %v3545
  %v3940 = vunpack.c.l.b16 %v3546
  %v3941 = vunpack.c.h.b16 %v3546
  %v3942 = vunpack.c.l.b16 %v3547
  %v3943 = vunpack.c.h.b16 %v3547
  %v3944 = vunpack.c.l.b16 %v3548
  %v3945 = vunpack.c.l.b16 %v3549
  %v3946 = vunpack.c.h.b16 %v3549
  %v3947 = vunpack.c.l.b16 %v3550
  %v3948 = vunpack.c.h.b16 %v3550
  %v3949 = vunpack.c.l.b16 %v3551
  %v3950 = vunpack.c.l.b16 %v3552
  %v3951 = vunpack.c.h.b16 %v3552
  %v3952 = vunpack.c.l.b16 %v3553
  %v3953 = vunpack.c.h.b16 %v3553
  %v3954 = vunpack.c.l.b16 %v3554
  %v3955 = vunpack.c.l.b16 %v3555
  %v3956 = vunpack.c.h.b16 %v3555
  %v3957 = vunpack.c.l.b16 %v3556
  %v3958 = vunpack.c.h.b16 %v3556
  %v3959 = vunpack.c.l.b16 %v3557
  %v3960 = vunpack.c.l.b16 %v3558
  %v3961 = vunpack.c.h.b16 %v3558
  %v3962 = vunpack.c.l.b16 %v3559
  %v3963 = vunpack.c.h.b16 %v3559
  %v3964 = vunpack.c.l.b16 %v3560
  %v3965 = vunpack.c.l.b16 %v3561
  %v3966 = vunpack.c.h.b16 %v3561
  %v3967 = vunpack.c.l.b16 %v3562
  %v3968 = vunpack.c.h.b16 %v3562
  %v3969 = vunpack.c.l.b16 %v3563
  %v3970 = vunpack.c.l.b16 %v3564
  %v3971 = vunpack.c.h.b16 %v3564
  %v3972 = vunpack.c.l.b16 %v3565
  %v3973 = vunpack.c.h.b16 %v3565
  %v3974 = vunpack.c.l.b16 %v3566
  %v3975 = vunpack.c.l.b16 %v3567
  %v3976 = vunpack.c.h.b16 %v3567
  %v3977 = vunpack.c.l.b16 %v3568
  %v3978 = vunpack.c.h.b16 %v3568
  %v3979 = vunpack.c.l.b16 %v3569
  %v3980 = vunpack.c.l.b16 %v3570
  %v3981 = vunpack.c.h.b16 %v3570
  %v3982 = vunpack.c.l.b16 %v3571
  %v3983 = vunpack.c.h.b16 %v3571
  %v3984 = vunpack.c.l.b16 %v3572
  %v3985 = vunpack.c.l.b16 %v3573
  %v3986 = vunpack.c.h.b16 %v3573
  %v3987 = vunpack.c.l.b16 %v3574
  %v3988 = vunpack.c.h.b16 %v3574
  %v3989 = vunpack.c.l.b16 %v3575
  %v3990 = vunpack.c.l.b16 %v3576
  %v3991 = vunpack.c.h.b16 %v3576
  %v3992 = vunpack.c.l.b16 %v3577
  %v3993 = vunpack.c.h.b16 %v3577
  %v3994 = vunpack.c.l.b16 %v3578
  %v3995 = vunpack.c.l.b16 %v3579
  %v3996 = vunpack.c.h.b16 %v3579
  %v3997 = vunpack.c.l.b16 %v3580
  %v3998 = vunpack.c.h.b16 %v3580
  %v3999 = vunpack.c.l.b16 %v3581
  %v4000 = vunpack.c.l.b16 %v3582
  %v4001 = vunpack.c.h.b16 %v3582
  %v4002 = vunpack.c.l.b16 %v3583
  %v4003 = vunpack.c.h.b16 %v3583
  %v4004 = vunpack.c.l.b16 %v3584
  %v4005 = vunpack.c.l.b16 %v3585
  %v4006 = vunpack.c.h.b16 %v3585
  %v4007 = vunpack.c.l.b16 %v3586
  %v4008 = vunpack.c.h.b16 %v3586
  %v4009 = vunpack.c.l.b16 %v3587
  %v4010 = vunpack.c.l.b16 %v3588
  %v4011 = vunpack.c.h.b16 %v3588
  %v4012 = vunpack.c.l.b16 %v3589
  %v4013 = vunpack.c.h.b16 %v3589
  %v4014 = vunpack.c.l.b16 %v3590
  %v4015 = vunpack.c.l.b16 %v3591
  %v4016 = vunpack.c.h.b16 %v3591
  %v4017 = vunpack.c.l.b16 %v3592
  %v4018 = vunpack.c.h.b16 %v3592
  %v4019 = vunpack.c.l.b16 %v3593
  %v4020 = vunpack.c.l.b16 %v3594
  %v4021 = vunpack.c.h.b16 %v3594
  %v4022 = vunpack.c.l.b16 %v3595
  %v4023 = vunpack.c.h.b16 %v3595
  %v4024 = vunpack.c.l.b16 %v3596
  %v4025 = vunpack.c.l.b16 %v3597
  %v4026 = vunpack.c.h.b16 %v3597
  %v4027 = vunpack.c.l.b16 %v3598
  %v4028 = vunpack.c.h.b16 %v3598
  %v4029 = vunpack.c.l.b16 %v3599
  %v4030 = vunpack.c.l.b16 %v3600
  %v4031 = vunpack.c.h.b16 %v3600
  %v4032 = vunpack.c.l.b16 %v3601
  %v4033 = vunpack.c.h.b16 %v3601
  %v4034 = vunpack.c.l.b16 %v3602
  %v4035 = vunpack.c.l.b16 %v3603
  %v4036 = vunpack.c.h.b16 %v3603
  %v4037 = vunpack.c.l.b16 %v3604
  %v4038 = vunpack.c.h.b16 %v3604
  %v4039 = vunpack.c.l.b16 %v3605
  %v4040 = vunpack.c.l.b16 %v3606
  %v4041 = vunpack.c.h.b16 %v3606
  %v4042 = vunpack.c.l.b16 %v3607
  %v4043 = vunpack.c.h.b16 %v3607
  %v4044 = vunpack.c.l.b16 %v3608
  %v4045 = vunpack.c.l.b16 %v3609
  %v4046 = vunpack.c.h.b16 %v3609
  %v4047 = vunpack.c.l.b16 %v3610
  %v4048 = vunpack.c.h.b16 %v3610
  %v4049 = vunpack.c.l.b16 %v3611
  %v4050 = vunpack.c.l.b16 %v3612
  %v4051 = vunpack.c.h.b16 %v3612
  %v4052 = vunpack.c.l.b16 %v3613
  %v4053 = vunpack.c.h.b16 %v3613
  %v4054 = vunpack.c.l.b16 %v3614
  %v4055 = vunpack.c.l.b16 %v3615
  %v4056 = vunpack.c.h.b16 %v3615
  %v4057 = vunpack.c.l.b16 %v3616
  %v4058 = vunpack.c.h.b16 %v3616
  %v4059 = vunpack.c.l.b16 %v3617
  %v4060 = vunpack.c.l.b16 %v3618
  %v4061 = vunpack.c.h.b16 %v3618
  %v4062 = vunpack.c.l.b16 %v3619
  %v4063 = vunpack.c.h.b16 %v3619
  %v4064 = vunpack.c.l.b16 %v3620
  %v4065 = vunpack.c.l.b16 %v3621
  %v4066 = vunpack.c.h.b16 %v3621
  %v4067 = vunpack.c.l.b16 %v3622
  %v4068 = vunpack.c.h.b16 %v3622
  %v4069 = vunpack.c.l.b16 %v3623
  %v4070 = vunpack.c.l.b16 %v3624
  %v4071 = vunpack.c.h.b16 %v3624
  %v4072 = vunpack.c.l.b16 %v3625
  %v4073 = vunpack.c.h.b16 %v3625
  %v4074 = vunpack.c.l.b16 %v3626
  %v4075 = vunpack.c.l.b16 %v3627
  %v4076 = vunpack.c.h.b16 %v3627
  %v4077 = vunpack.c.l.b16 %v3628
  %v4078 = vunpack.c.h.b16 %v3628
  %v4079 = vunpack.c.l.b16 %v3629
  %v4080 = vunpack.c.l.b16 %v3630
  %v4081 = vunpack.c.h.b16 %v3630
  %v4082 = vunpack.c.l.b16 %v3631
  %v4083 = vunpack.c.h.b16 %v3631
  %v4084 = vunpack.c.l.b16 %v3632
  %v4085 = vunpack.c.l.b16 %v3633
  %v4086 = vunpack.c.h.b16 %v3633
  %v4087 = vunpack.c.l.b16 %v3634
  %v4088 = vunpack.c.h.b16 %v3634
  %v4089 = vunpack.c.l.b16 %v3635
  %v4090 = vunpack.c.l.b16 %v3636
  %v4091 = vunpack.c.h.b16 %v3636
  %v4092 = vunpack.c.l.b16 %v3637
  %v4093 = vunpack.c.h.b16 %v3637
  %v4094 = vunpack.c.l.b16 %v3638
  %v4095 = vunpack.c.l.b16 %v3639
  %v4096 = vunpack.c.h.b16 %v3639
  %v4097 = vunpack.c.l.b16 %v3640
  %v4098 = vunpack.c.h.b16 %v3640
  %v4099 = vunpack.c.l.b16 %v3641
  %v4100 = vunpack.c.l.b16 %v3642
  %v4101 = vunpack.c.h.b16 %v3642
  %v4102 = vunpack.c.l.b16 %v3643
  %v4103 = vunpack.c.h.b16 %v3643
  %v4104 = vunpack.c.l.b16 %v3644
  %v4105 = vunpack.c.l.b16 %v3645
  %v4106 = vunpack.c.h.b16 %v3645
  %v4107 = vunpack.c.l.b16 %v3646
  %v4108 = vunpack.c.h.b16 %v3646
  %v4109 = vunpack.c.l.b16 %v3647
  %v4110 = vunpack.c.l.b16 %v3648
  %v4111 = vunpack.c.h.b16 %v3648
  %v4112 = vunpack.c.l.b16 %v3649
  %v4113 = vunpack.c.h.b16 %v3649
  %v4114 = vunpack.c.l.b16 %v3650
  %v4115 = vunpack.c.l.b16 %v3651
  %v4116 = vunpack.c.h.b16 %v3651
  %v4117 = vunpack.c.l.b16 %v3652
  %v4118 = vunpack.c.h.b16 %v3652
  %v4119 = vunpack.c.l.b16 %v3653
  %v4120 = vunpack.c.l.b16 %v3654
  %v4121 = vunpack.c.h.b16 %v3654
  %v4122 = vunpack.c.l.b16 %v3655
  %v4123 = vunpack.c.h.b16 %v3655
  %v4124 = vunpack.c.l.b16 %v3656
  %v4125 = vunpack.c.l.b16 %v3657
  %v4126 = vunpack.c.h.b16 %v3657
  %v4127 = vunpack.c.l.b16 %v3658
  %v4128 = vunpack.c.h.b16 %v3658
  %v4129 = vunpack.c.l.b16 %v3659
  %v4130 = vpack.c.b16 %v3935, %v3930
  %v4131 = vpack.c.b16 %v3936, %v3931
  %v4132 = vpack.c.b16 %v3937, %v3932
  %v4133 = vpack.c.b16 %v3938, %v3933
  %v4134 = vpack.c.b16 %v3939, %v3934
  %v4135 = vpack.c.b16 %v3945, %v3940
  %v4136 = vpack.c.b16 %v3946, %v3941
  %v4137 = vpack.c.b16 %v3947, %v3942
  %v4138 = vpack.c.b16 %v3948, %v3943
  %v4139 = vpack.c.b16 %v3949, %v3944
  %v4140 = vpack.c.b16 %v3955, %v3950
  %v4141 = vpack.c.b16 %v3956, %v3951
  %v4142 = vpack.c.b16 %v3957, %v3952
  %v4143 = vpack.c.b16 %v3958, %v3953
  %v4144 = vpack.c.b16 %v3959, %v3954
  %v4145 = vpack.c.b16 %v3965, %v3960
  %v4146 = vpack.c.b16 %v3966, %v3961
  %v4147 = vpack.c.b16 %v3967, %v3962
  %v4148 = vpack.c.b16 %v3968, %v3963
  %v4149 = vpack.c.b16 %v3969, %v3964
  %v4150 = vpack.c.b16 %v3975, %v3970
  %v4151 = vpack.c.b16 %v3976, %v3971
  %v4152 = vpack.c.b16 %v3977, %v3972
  %v4153 = vpack.c.b16 %v3978, %v3973
  %v4154 = vpack.c.b16 %v3979, %v3974
  %v4155 = vpack.c.b16 %v3985, %v3980
  %v4156 = vpack.c.b16 %v3986, %v3981
  %v4157 = vpack.c.b16 %v3987, %v3982
  %v4158 = vpack.c.b16 %v3988, %v3983
  %v4159 = vpack.c.b16 %v3989, %v3984
  %v4160 = vpack.c.b16 %v3995, %v3990
  %v4161 = vpack.c.b16 %v3996, %v3991
  %v4162 = vpack.c.b16 %v3997, %v3992
  %v4163 = vpack.c.b16 %v3998, %v3993
  %v4164 = vpack.c.b16 %v3999, %v3994
  %v4165 = vpack.c.b16 %v4005, %v4000
  %v4166 = vpack.c.b16 %v4006, %v4001
  %v4167 = vpack.c.b16 %v4007, %v4002
  %v4168 = vpack.c.b16 %v4008, %v4003
  %v4169 = vpack.c.b16 %v4009, %v4004
  %v4170 = vpack.c.b16 %v4015, %v4010
  %v4171 = vpack.c.b16 %v4016, %v4011
  %v4172 = vpack.c.b16 %v4017, %v4012
  %v4173 = vpack.c.b16 %v4018, %v4013
  %v4174 = vpack.c.b16 %v4019, %v4014
  %v4175 = vpack.c.b16 %v4025, %v4020
  %v4176 = vpack.c.b16 %v4026, %v4021
  %v4177 = vpack.c.b16 %v4027, %v4022
  %v4178 = vpack.c.b16 %v4028, %v4023
  %v4179 = vpack.c.b16 %v4029, %v4024
  %v4180 = vpack.c.b16 %v4035, %v4030
  %v4181 = vpack.c.b16 %v4036, %v4031
  %v4182 = vpack.c.b16 %v4037, %v4032
  %v4183 = vpack.c.b16 %v4038, %v4033
  %v4184 = vpack.c.b16 %v4039, %v4034
  %v4185 = vpack.c.b16 %v4045, %v4040
  %v4186 = vpack.c.b16 %v4046, %v4041
  %v4187 = vpack.c.b16 %v4047, %v4042
  %v4188 = vpack.c.b16 %v4048, %v4043
  %v4189 = vpack.c.b16 %v4049, %v4044
  %v4190 = vpack.c.b16 %v4055, %v4050
  %v4191 = vpack.c.b16 %v4056, %v4051
  %v4192 = vpack.c.b16 %v4057, %v4052
  %v4193 = vpack.c.b16 %v4058, %v4053
  %v4194 = vpack.c.b16 %v4059, %v4054
  %v4195 = vpack.c.b16 %v4065, %v4060
  %v4196 = vpack.c.b16 %v4066, %v4061
  %v4197 = vpack.c.b16 %v4067, %v4062
  %v4198 = vpack.c.b16 %v4068, %v4063
  %v4199 = vpack.c.b16 %v4069, %v4064
  %v4200 = vpack.c.b16 %v4075, %v4070
  %v4201 = vpack.c.b16 %v4076, %v4071
  %v4202 = vpack.c.b16 %v4077, %v4072
  %v4203 = vpack.c.b16 %v4078, %v4073
  %v4204 = vpack.c.b16 %v4079, %v4074
  %v4205 = vpack.c.b16 %v4085, %v4080
  %v4206 = vpack.c.b16 %v4086, %v4081
  %v4207 = vpack.c.b16 %v4087, %v4082
  %v4208 = vpack.c.b16 %v4088, %v4083
  %v4209 = vpack.c.b16 %v4089, %v4084
  %v4210 = vpack.c.b16 %v4095, %v4090
  %v4211 = vpack.c.b16 %v4096, %v4091
  %v4212 = vpack.c.b16 %v4097, %v4092
  %v4213 = vpack.c.b16 %v4098, %v4093
  %v4214 = vpack.c.b16 %v4099, %v4094
  %v4215 = vpack.c.b16 %v4105, %v4100
  %v4216 = vpack.c.b16 %v4106, %v4101
  %v4217 = vpack.c.b16 %v4107, %v4102
  %v4218 = vpack.c.b16 %v4108, %v4103
  %v4219 = vpack.c.b16 %v4109, %v4104
  %v4220 = vpack.c.b16 %v4115, %v4110
  %v4221 = vpack.c.b16 %v4116, %v4111
  %v4222 = vpack.c.b16 %v4117, %v4112
  %v4223 = vpack.c.b16 %v4118, %v4113
  %v4224 = vpack.c.b16 %v4119, %v4114
  %v4225 = vpack.c.b16 %v4125, %v4120
  %v4226 = vpack.c.b16 %v4126, %v4121
  %v4227 = vpack.c.b16 %v4127, %v4122
  %v4228 = vpack.c.b16 %v4128, %v4123
  %v4229 = vpack.c.b16 %v4129, %v4124
  %v4331 = vsel %vm1199, %v3782, 0
  %4333 = vmatprep.subr.bf16.mxu0 %v4166
  %4334 = vmatpush1.bf16.msra.mxu0 %v4165
  %4335 = vmatprep.subr.bf16.mxu0 %v4161
  %4336 = vmatpush1.bf16.msra.mxu0 %v4160
  %4337 = vmatprep.subr.bf16.mxu0 %v4156
  %4338 = vmatpush1.bf16.msra.mxu0 %v4155
  %4339 = vmatprep.subr.bf16.mxu0 %v4151
  %4340 = vmatpush1.bf16.msra.mxu0 %v4150
  %4341 = vmatprep.subr.bf16.mxu0 %v4146
  %4342 = vmatpush1.bf16.msra.mxu0 %v4145
  %4343 = vmatprep.subr.bf16.mxu0 %v4141
  %4344 = vmatpush1.bf16.msra.mxu0 %v4140
  %4345 = vmatprep.subr.bf16.mxu0 %v4136
  %4346 = vmatpush1.bf16.msra.mxu0 %v4135
  %4347 = vmatprep.subr.bf16.mxu0 %v4131
  %4348 = vmatpush1.bf16.msra.mxu0 %v4130
  %4349 = vmatprep.subr.bf16.mxu0 %v4206
  %4350 = vmatpush2.bf16.msra.mxu0 %v4205
  %4351 = vmatprep.subr.bf16.mxu0 %v4201
  %4352 = vmatpush2.bf16.msra.mxu0 %v4200
  %4353 = vmatprep.subr.bf16.mxu0 %v4196
  %4354 = vmatpush2.bf16.msra.mxu0 %v4195
  %4355 = vmatprep.subr.bf16.mxu0 %v4191
  %4356 = vmatpush2.bf16.msra.mxu0 %v4190
  %4357 = vmatprep.subr.bf16.mxu0 %v4186
  %4358 = vmatpush2.bf16.msra.mxu0 %v4185
  %4359 = vmatprep.subr.bf16.mxu0 %v4181
  %4360 = vmatpush2.bf16.msra.mxu0 %v4180
  %4361 = vmatprep.subr.bf16.mxu0 %v4176
  %4362 = vmatpush2.bf16.msra.mxu0 %v4175
  %4363 = vmatprep.subr.bf16.mxu0 %v4171
  %4364 = vmatpush2.bf16.msra.mxu0 %v4170
  %4365 = vmatprep.mubr.bf16.mxu0 %v3781
  %4366 = vmatmul.mubr.bf16.gmra.mxu0 %v3780
  %v4367 = vpop.f32.mrf.mxu0
  %v4368 = vadd.f32 %v3788, %v4367
  %v4369 = vpop.f32.mrf.mxu0
  %v4370 = vadd.f32 %v3792, %v4369
  %v4371 = vpop.f32.mrf.mxu0
  %v4372 = vpop.f32.mrf.mxu0
  %4373 = vdwg.mxu0
  %4374 = vmatprep.subr.bf16.mxu0 0
  %4375 = vmatpush1.bf16.msra.mxu0 0
  %4376 = vmatprep.subr.bf16.mxu0 0
  %4377 = vmatpush1.bf16.msra.mxu0 0
  %4378 = vmatprep.subr.bf16.mxu0 0
  %4379 = vmatpush1.bf16.msra.mxu0 0
  %4380 = vmatprep.subr.bf16.mxu0 0
  %4381 = vmatpush1.bf16.msra.mxu0 0
  %4382 = vmatprep.subr.bf16.mxu0 %v4226
  %4383 = vmatpush1.bf16.msra.mxu0 %v4225
  %4384 = vmatprep.subr.bf16.mxu0 %v4221
  %4385 = vmatpush1.bf16.msra.mxu0 %v4220
  %4386 = vmatprep.subr.bf16.mxu0 %v4216
  %4387 = vmatpush1.bf16.msra.mxu0 %v4215
  %4388 = vmatprep.subr.bf16.mxu0 %v4211
  %4389 = vmatpush1.bf16.msra.mxu0 %v4210
  %4390 = vmatprep.subr.bf16.mxu0 0
  %4391 = vmatpush2.bf16.msra.mxu0 0
  %4392 = vmatprep.subr.bf16.mxu0 0
  %4393 = vmatpush2.bf16.msra.mxu0 0
  %4394 = vmatprep.subr.bf16.mxu0 0
  %4395 = vmatpush2.bf16.msra.mxu0 0
  %4396 = vmatprep.subr.bf16.mxu0 0
  %4397 = vmatpush2.bf16.msra.mxu0 0
  %4398 = vmatprep.subr.bf16.mxu0 0
  %4399 = vmatpush2.bf16.msra.mxu0 0
  %4400 = vmatprep.subr.bf16.mxu0 0
  %4401 = vmatpush2.bf16.msra.mxu0 0
  %4402 = vmatprep.subr.bf16.mxu0 0
  %4403 = vmatpush2.bf16.msra.mxu0 0
  %4404 = vmatprep.subr.bf16.mxu0 0
  %4405 = vmatpush2.bf16.msra.mxu0 0
  %4406 = vmatprep.mubr.bf16.mxu0 0
  %4407 = vmatmul.mubr.bf16.gmra.mxu0 %v4331
  %v4408 = vpop.f32.mrf.mxu0
  %v4409 = vadd.f32 %v4368, %v4408
  %v4410 = vpop.f32.mrf.mxu0
  %v4411 = vadd.f32 %v4370, %v4410
  %v4412 = vpop.f32.mrf.mxu0
  %v4413 = vpop.f32.mrf.mxu0
  %4414 = vdwg.mxu0
  %4415 = vmatprep.subr.bf16.mxu0 %v4168
  %4416 = vmatpush1.bf16.msra.mxu0 %v4167
  %4417 = vmatprep.subr.bf16.mxu0 %v4163
  %4418 = vmatpush1.bf16.msra.mxu0 %v4162
  %4419 = vmatprep.subr.bf16.mxu0 %v4158
  %4420 = vmatpush1.bf16.msra.mxu0 %v4157
  %4421 = vmatprep.subr.bf16.mxu0 %v4153
  %4422 = vmatpush1.bf16.msra.mxu0 %v4152
  %4423 = vmatprep.subr.bf16.mxu0 %v4148
  %4424 = vmatpush1.bf16.msra.mxu0 %v4147
  %4425 = vmatprep.subr.bf16.mxu0 %v4143
  %4426 = vmatpush1.bf16.msra.mxu0 %v4142
  %4427 = vmatprep.subr.bf16.mxu0 %v4138
  %4428 = vmatpush1.bf16.msra.mxu0 %v4137
  %4429 = vmatprep.subr.bf16.mxu0 %v4133
  %4430 = vmatpush1.bf16.msra.mxu0 %v4132
  %4431 = vmatprep.subr.bf16.mxu0 %v4208
  %4432 = vmatpush2.bf16.msra.mxu0 %v4207
  %4433 = vmatprep.subr.bf16.mxu0 %v4203
  %4434 = vmatpush2.bf16.msra.mxu0 %v4202
  %4435 = vmatprep.subr.bf16.mxu0 %v4198
  %4436 = vmatpush2.bf16.msra.mxu0 %v4197
  %4437 = vmatprep.subr.bf16.mxu0 %v4193
  %4438 = vmatpush2.bf16.msra.mxu0 %v4192
  %4439 = vmatprep.subr.bf16.mxu0 %v4188
  %4440 = vmatpush2.bf16.msra.mxu0 %v4187
  %4441 = vmatprep.subr.bf16.mxu0 %v4183
  %4442 = vmatpush2.bf16.msra.mxu0 %v4182
  %4443 = vmatprep.subr.bf16.mxu0 %v4178
  %4444 = vmatpush2.bf16.msra.mxu0 %v4177
  %4445 = vmatprep.subr.bf16.mxu0 %v4173
  %4446 = vmatpush2.bf16.msra.mxu0 %v4172
  %4447 = vmatprep.mubr.bf16.mxu0 %v3781
  %4448 = vmatmul.mubr.bf16.gmra.mxu0 %v3780
  %v4449 = vpop.f32.mrf.mxu0
  %v4450 = vadd.f32 %v3796, %v4449
  %v4451 = vpop.f32.mrf.mxu0
  %v4452 = vadd.f32 %v3800, %v4451
  %v4453 = vpop.f32.mrf.mxu0
  %v4454 = vpop.f32.mrf.mxu0
  %4455 = vdwg.mxu0
  %4456 = vmatprep.subr.bf16.mxu0 0
  %4457 = vmatpush1.bf16.msra.mxu0 0
  %4458 = vmatprep.subr.bf16.mxu0 0
  %4459 = vmatpush1.bf16.msra.mxu0 0
  %4460 = vmatprep.subr.bf16.mxu0 0
  %4461 = vmatpush1.bf16.msra.mxu0 0
  %4462 = vmatprep.subr.bf16.mxu0 0
  %4463 = vmatpush1.bf16.msra.mxu0 0
  %4464 = vmatprep.subr.bf16.mxu0 %v4228
  %4465 = vmatpush1.bf16.msra.mxu0 %v4227
  %4466 = vmatprep.subr.bf16.mxu0 %v4223
  %4467 = vmatpush1.bf16.msra.mxu0 %v4222
  %4468 = vmatprep.subr.bf16.mxu0 %v4218
  %4469 = vmatpush1.bf16.msra.mxu0 %v4217
  %4470 = vmatprep.subr.bf16.mxu0 %v4213
  %4471 = vmatpush1.bf16.msra.mxu0 %v4212
  %4472 = vmatprep.subr.bf16.mxu0 0
  %4473 = vmatpush2.bf16.msra.mxu0 0
  %4474 = vmatprep.subr.bf16.mxu0 0
  %4475 = vmatpush2.bf16.msra.mxu0 0
  %4476 = vmatprep.subr.bf16.mxu0 0
  %4477 = vmatpush2.bf16.msra.mxu0 0
  %4478 = vmatprep.subr.bf16.mxu0 0
  %4479 = vmatpush2.bf16.msra.mxu0 0
  %4480 = vmatprep.subr.bf16.mxu0 0
  %4481 = vmatpush2.bf16.msra.mxu0 0
  %4482 = vmatprep.subr.bf16.mxu0 0
  %4483 = vmatpush2.bf16.msra.mxu0 0
  %4484 = vmatprep.subr.bf16.mxu0 0
  %4485 = vmatpush2.bf16.msra.mxu0 0
  %4486 = vmatprep.subr.bf16.mxu0 0
  %4487 = vmatpush2.bf16.msra.mxu0 0
  %4488 = vmatprep.mubr.bf16.mxu0 0
  %4489 = vmatmul.mubr.bf16.gmra.mxu0 %v4331
  %v4490 = vpop.f32.mrf.mxu0
  %v4491 = vadd.f32 %v4450, %v4490
  %v4492 = vpop.f32.mrf.mxu0
  %v4493 = vadd.f32 %v4452, %v4492
  %v4494 = vpop.f32.mrf.mxu0
  %v4495 = vpop.f32.mrf.mxu0
  %4496 = vdwg.mxu0
  %4497 = vmatprep.subr.bf16.mxu0 0
  %4498 = vmatpush1.bf16.msra.mxu0 %v4169
  %4499 = vmatprep.subr.bf16.mxu0 0
  %4500 = vmatpush1.bf16.msra.mxu0 %v4164
  %4501 = vmatprep.subr.bf16.mxu0 0
  %4502 = vmatpush1.bf16.msra.mxu0 %v4159
  %4503 = vmatprep.subr.bf16.mxu0 0
  %4504 = vmatpush1.bf16.msra.mxu0 %v4154
  %4505 = vmatprep.subr.bf16.mxu0 0
  %4506 = vmatpush1.bf16.msra.mxu0 %v4149
  %4507 = vmatprep.subr.bf16.mxu0 0
  %4508 = vmatpush1.bf16.msra.mxu0 %v4144
  %4509 = vmatprep.subr.bf16.mxu0 0
  %4510 = vmatpush1.bf16.msra.mxu0 %v4139
  %4511 = vmatprep.subr.bf16.mxu0 0
  %4512 = vmatpush1.bf16.msra.mxu0 %v4134
  %4513 = vmatprep.subr.bf16.mxu0 0
  %4514 = vmatpush2.bf16.msra.mxu0 %v4209
  %4515 = vmatprep.subr.bf16.mxu0 0
  %4516 = vmatpush2.bf16.msra.mxu0 %v4204
  %4517 = vmatprep.subr.bf16.mxu0 0
  %4518 = vmatpush2.bf16.msra.mxu0 %v4199
  %4519 = vmatprep.subr.bf16.mxu0 0
  %4520 = vmatpush2.bf16.msra.mxu0 %v4194
  %4521 = vmatprep.subr.bf16.mxu0 0
  %4522 = vmatpush2.bf16.msra.mxu0 %v4189
  %4523 = vmatprep.subr.bf16.mxu0 0
  %4524 = vmatpush2.bf16.msra.mxu0 %v4184
  %4525 = vmatprep.subr.bf16.mxu0 0
  %4526 = vmatpush2.bf16.msra.mxu0 %v4179
  %4527 = vmatprep.subr.bf16.mxu0 0
  %4528 = vmatpush2.bf16.msra.mxu0 %v4174
  %4529 = vmatprep.mubr.bf16.mxu0 %v3781
  %4530 = vmatmul.mubr.bf16.gmra.mxu0 %v3780
  %v4531 = vpop.f32.mrf.mxu0
  %v4532 = vadd.f32 %v3804, %v4531
  %v4533 = vpop.f32.mrf.mxu0
  %v4534 = vpop.f32.mrf.mxu0
  %v4535 = vpop.f32.mrf.mxu0
  %4536 = vdwg.mxu0
  %4537 = vmatprep.subr.bf16.mxu0 0
  %4538 = vmatpush1.bf16.msra.mxu0 0
  %4539 = vmatprep.subr.bf16.mxu0 0
  %4540 = vmatpush1.bf16.msra.mxu0 0
  %4541 = vmatprep.subr.bf16.mxu0 0
  %4542 = vmatpush1.bf16.msra.mxu0 0
  %4543 = vmatprep.subr.bf16.mxu0 0
  %4544 = vmatpush1.bf16.msra.mxu0 0
  %4545 = vmatprep.subr.bf16.mxu0 0
  %4546 = vmatpush1.bf16.msra.mxu0 %v4229
  %4547 = vmatprep.subr.bf16.mxu0 0
  %4548 = vmatpush1.bf16.msra.mxu0 %v4224
  %4549 = vmatprep.subr.bf16.mxu0 0
  %4550 = vmatpush1.bf16.msra.mxu0 %v4219
  %4551 = vmatprep.subr.bf16.mxu0 0
  %4552 = vmatpush1.bf16.msra.mxu0 %v4214
  %4553 = vmatprep.subr.bf16.mxu0 0
  %4554 = vmatpush2.bf16.msra.mxu0 0
  %4555 = vmatprep.subr.bf16.mxu0 0
  %4556 = vmatpush2.bf16.msra.mxu0 0
  %4557 = vmatprep.subr.bf16.mxu0 0
  %4558 = vmatpush2.bf16.msra.mxu0 0
  %4559 = vmatprep.subr.bf16.mxu0 0
  %4560 = vmatpush2.bf16.msra.mxu0 0
  %4561 = vmatprep.subr.bf16.mxu0 0
  %4562 = vmatpush2.bf16.msra.mxu0 0
  %4563 = vmatprep.subr.bf16.mxu0 0
  %4564 = vmatpush2.bf16.msra.mxu0 0
  %4565 = vmatprep.subr.bf16.mxu0 0
  %4566 = vmatpush2.bf16.msra.mxu0 0
  %4567 = vmatprep.subr.bf16.mxu0 0
  %4568 = vmatpush2.bf16.msra.mxu0 0
  %4569 = vmatprep.mubr.bf16.mxu0 0
  %4570 = vmatmul.mubr.bf16.gmra.mxu0 %v4331
  %v4571 = vpop.f32.mrf.mxu0
  %v4572 = vadd.f32 %v4532, %v4571
  %v4573 = vpop.f32.mrf.mxu0
  %v4574 = vpop.f32.mrf.mxu0
  %v4575 = vpop.f32.mrf.mxu0
  %4576 = vdwg.mxu0
  %v4577 = vpack.c.bf16 %v3532, %v3532
  %v4578 = vpack.c.bf16 %v3533, %v3533
  %v4579 = vld [vmem:[%s2 + $0x55] sm:$0x1f]
  %v4581 = vlaneseq
  %v4582 = vshrl.u32 %v4581, 7
  %v4583 = vsub.s32 0, %v4582
  %v4584 = vrot.slane %v4579, %v4583
  %v4585 = vlaneseq
  %v4586 = vshrl.u32 %v4585, 7
  %v4587 = vsub.s32 1, %v4586
  %v4588 = vrot.slane %v4579, %v4587
  %v4589 = vlaneseq
  %v4590 = vshrl.u32 %v4589, 7
  %v4591 = vsub.s32 2, %v4590
  %v4592 = vrot.slane %v4579, %v4591
  %v4593 = vlaneseq
  %v4594 = vshrl.u32 %v4593, 7
  %v4595 = vsub.s32 3, %v4594
  %v4596 = vrot.slane %v4579, %v4595
  %v4597 = vlaneseq
  %v4598 = vshrl.u32 %v4597, 7
  %v4599 = vsub.s32 4, %v4598
  %v4600 = vrot.slane %v4579, %v4599
  %4609 = vrot.lane.b32.xlu0 %v3782, 64
  %v4610 = vpop.permute.xlu0 %4609
  %4611 = vrot.lane.b32.xlu0 %v4577, 64
  %v4612 = vpop.permute.xlu0 %4611
  %4613 = vrot.lane.b32.xlu0 %v4578, 64
  %v4614 = vpop.permute.xlu0 %4613
  %vm4615 = vcmask 523264
  %v4616 = vsel %vm4615, %v4610, %v4612
  %v4617 = vsel %vm4615, %v4612, %v4614
  %v4740 = vunpack.c.l.b16 %v3660
  %v4741 = vunpack.c.h.b16 %v3660
  %v4742 = vunpack.c.l.b16 %v3661
  %v4743 = vunpack.c.h.b16 %v3661
  %v4744 = vunpack.c.l.b16 %v3662
  %v4745 = vunpack.c.l.b16 %v3663
  %v4746 = vunpack.c.h.b16 %v3663
  %v4747 = vunpack.c.l.b16 %v3664
  %v4748 = vunpack.c.h.b16 %v3664
  %v4749 = vunpack.c.l.b16 %v3665
  %v4750 = vunpack.c.l.b16 %v3666
  %v4751 = vunpack.c.h.b16 %v3666
  %v4752 = vunpack.c.l.b16 %v3667
  %v4753 = vunpack.c.h.b16 %v3667
  %v4754 = vunpack.c.l.b16 %v3668
  %v4755 = vunpack.c.l.b16 %v3669
  %v4756 = vunpack.c.h.b16 %v3669
  %v4757 = vunpack.c.l.b16 %v3670
  %v4758 = vunpack.c.h.b16 %v3670
  %v4759 = vunpack.c.l.b16 %v3671
  %v4760 = vunpack.c.l.b16 %v3672
  %v4761 = vunpack.c.h.b16 %v3672
  %v4762 = vunpack.c.l.b16 %v3673
  %v4763 = vunpack.c.h.b16 %v3673
  %v4764 = vunpack.c.l.b16 %v3674
  %v4765 = vunpack.c.l.b16 %v3675
  %v4766 = vunpack.c.h.b16 %v3675
  %v4767 = vunpack.c.l.b16 %v3676
  %v4768 = vunpack.c.h.b16 %v3676
  %v4769 = vunpack.c.l.b16 %v3677
  %v4770 = vunpack.c.l.b16 %v3678
  %v4771 = vunpack.c.h.b16 %v3678
  %v4772 = vunpack.c.l.b16 %v3679
  %v4773 = vunpack.c.h.b16 %v3679
  %v4774 = vunpack.c.l.b16 %v3680
  %v4775 = vunpack.c.l.b16 %v3681
  %v4776 = vunpack.c.h.b16 %v3681
  %v4777 = vunpack.c.l.b16 %v3682
  %v4778 = vunpack.c.h.b16 %v3682
  %v4779 = vunpack.c.l.b16 %v3683
  %v4780 = vunpack.c.l.b16 %v3684
  %v4781 = vunpack.c.h.b16 %v3684
  %v4782 = vunpack.c.l.b16 %v3685
  %v4783 = vunpack.c.h.b16 %v3685
  %v4784 = vunpack.c.l.b16 %v3686
  %v4785 = vunpack.c.l.b16 %v3687
  %v4786 = vunpack.c.h.b16 %v3687
  %v4787 = vunpack.c.l.b16 %v3688
  %v4788 = vunpack.c.h.b16 %v3688
  %v4789 = vunpack.c.l.b16 %v3689
  %v4790 = vunpack.c.l.b16 %v3690
  %v4791 = vunpack.c.h.b16 %v3690
  %v4792 = vunpack.c.l.b16 %v3691
  %v4793 = vunpack.c.h.b16 %v3691
  %v4794 = vunpack.c.l.b16 %v3692
  %v4795 = vunpack.c.l.b16 %v3693
  %v4796 = vunpack.c.h.b16 %v3693
  %v4797 = vunpack.c.l.b16 %v3694
  %v4798 = vunpack.c.h.b16 %v3694
  %v4799 = vunpack.c.l.b16 %v3695
  %v4800 = vunpack.c.l.b16 %v3696
  %v4801 = vunpack.c.h.b16 %v3696
  %v4802 = vunpack.c.l.b16 %v3697
  %v4803 = vunpack.c.h.b16 %v3697
  %v4804 = vunpack.c.l.b16 %v3698
  %v4805 = vunpack.c.l.b16 %v3699
  %v4806 = vunpack.c.h.b16 %v3699
  %v4807 = vunpack.c.l.b16 %v3700
  %v4808 = vunpack.c.h.b16 %v3700
  %v4809 = vunpack.c.l.b16 %v3701
  %v4810 = vunpack.c.l.b16 %v3702
  %v4811 = vunpack.c.h.b16 %v3702
  %v4812 = vunpack.c.l.b16 %v3703
  %v4813 = vunpack.c.h.b16 %v3703
  %v4814 = vunpack.c.l.b16 %v3704
  %v4815 = vunpack.c.l.b16 %v3705
  %v4816 = vunpack.c.h.b16 %v3705
  %v4817 = vunpack.c.l.b16 %v3706
  %v4818 = vunpack.c.h.b16 %v3706
  %v4819 = vunpack.c.l.b16 %v3707
  %v4820 = vunpack.c.l.b16 %v3708
  %v4821 = vunpack.c.h.b16 %v3708
  %v4822 = vunpack.c.l.b16 %v3709
  %v4823 = vunpack.c.h.b16 %v3709
  %v4824 = vunpack.c.l.b16 %v3710
  %v4825 = vunpack.c.l.b16 %v3711
  %v4826 = vunpack.c.h.b16 %v3711
  %v4827 = vunpack.c.l.b16 %v3712
  %v4828 = vunpack.c.h.b16 %v3712
  %v4829 = vunpack.c.l.b16 %v3713
  %v4830 = vunpack.c.l.b16 %v3714
  %v4831 = vunpack.c.h.b16 %v3714
  %v4832 = vunpack.c.l.b16 %v3715
  %v4833 = vunpack.c.h.b16 %v3715
  %v4834 = vunpack.c.l.b16 %v3716
  %v4835 = vunpack.c.l.b16 %v3717
  %v4836 = vunpack.c.h.b16 %v3717
  %v4837 = vunpack.c.l.b16 %v3718
  %v4838 = vunpack.c.h.b16 %v3718
  %v4839 = vunpack.c.l.b16 %v3719
  %v4840 = vunpack.c.l.b16 %v3720
  %v4841 = vunpack.c.h.b16 %v3720
  %v4842 = vunpack.c.l.b16 %v3721
  %v4843 = vunpack.c.h.b16 %v3721
  %v4844 = vunpack.c.l.b16 %v3722
  %v4845 = vunpack.c.l.b16 %v3723
  %v4846 = vunpack.c.h.b16 %v3723
  %v4847 = vunpack.c.l.b16 %v3724
  %v4848 = vunpack.c.h.b16 %v3724
  %v4849 = vunpack.c.l.b16 %v3725
  %v4850 = vunpack.c.l.b16 %v3726
  %v4851 = vunpack.c.h.b16 %v3726
  %v4852 = vunpack.c.l.b16 %v3727
  %v4853 = vunpack.c.h.b16 %v3727
  %v4854 = vunpack.c.l.b16 %v3728
  %v4855 = vunpack.c.l.b16 %v3729
  %v4856 = vunpack.c.h.b16 %v3729
  %v4857 = vunpack.c.l.b16 %v3730
  %v4858 = vunpack.c.h.b16 %v3730
  %v4859 = vunpack.c.l.b16 %v3731
  %v4860 = vunpack.c.l.b16 %v3732
  %v4861 = vunpack.c.h.b16 %v3732
  %v4862 = vunpack.c.l.b16 %v3733
  %v4863 = vunpack.c.h.b16 %v3733
  %v4864 = vunpack.c.l.b16 %v3734
  %v4865 = vunpack.c.l.b16 %v3735
  %v4866 = vunpack.c.h.b16 %v3735
  %v4867 = vunpack.c.l.b16 %v3736
  %v4868 = vunpack.c.h.b16 %v3736
  %v4869 = vunpack.c.l.b16 %v3737
  %v4870 = vunpack.c.l.b16 %v3738
  %v4871 = vunpack.c.h.b16 %v3738
  %v4872 = vunpack.c.l.b16 %v3739
  %v4873 = vunpack.c.h.b16 %v3739
  %v4874 = vunpack.c.l.b16 %v3740
  %v4875 = vunpack.c.l.b16 %v3741
  %v4876 = vunpack.c.h.b16 %v3741
  %v4877 = vunpack.c.l.b16 %v3742
  %v4878 = vunpack.c.h.b16 %v3742
  %v4879 = vunpack.c.l.b16 %v3743
  %v4880 = vunpack.c.l.b16 %v3744
  %v4881 = vunpack.c.h.b16 %v3744
  %v4882 = vunpack.c.l.b16 %v3745
  %v4883 = vunpack.c.h.b16 %v3745
  %v4884 = vunpack.c.l.b16 %v3746
  %v4885 = vunpack.c.l.b16 %v3747
  %v4886 = vunpack.c.h.b16 %v3747
  %v4887 = vunpack.c.l.b16 %v3748
  %v4888 = vunpack.c.h.b16 %v3748
  %v4889 = vunpack.c.l.b16 %v3749
  %v4890 = vunpack.c.l.b16 %v3750
  %v4891 = vunpack.c.h.b16 %v3750
  %v4892 = vunpack.c.l.b16 %v3751
  %v4893 = vunpack.c.h.b16 %v3751
  %v4894 = vunpack.c.l.b16 %v3752
  %v4895 = vunpack.c.l.b16 %v3753
  %v4896 = vunpack.c.h.b16 %v3753
  %v4897 = vunpack.c.l.b16 %v3754
  %v4898 = vunpack.c.h.b16 %v3754
  %v4899 = vunpack.c.l.b16 %v3755
  %v4900 = vunpack.c.l.b16 %v3756
  %v4901 = vunpack.c.h.b16 %v3756
  %v4902 = vunpack.c.l.b16 %v3757
  %v4903 = vunpack.c.h.b16 %v3757
  %v4904 = vunpack.c.l.b16 %v3758
  %v4905 = vunpack.c.l.b16 %v3759
  %v4906 = vunpack.c.h.b16 %v3759
  %v4907 = vunpack.c.l.b16 %v3760
  %v4908 = vunpack.c.h.b16 %v3760
  %v4909 = vunpack.c.l.b16 %v3761
  %v4910 = vunpack.c.l.b16 %v3762
  %v4911 = vunpack.c.h.b16 %v3762
  %v4912 = vunpack.c.l.b16 %v3763
  %v4913 = vunpack.c.h.b16 %v3763
  %v4914 = vunpack.c.l.b16 %v3764
  %v4915 = vunpack.c.l.b16 %v3765
  %v4916 = vunpack.c.h.b16 %v3765
  %v4917 = vunpack.c.l.b16 %v3766
  %v4918 = vunpack.c.h.b16 %v3766
  %v4919 = vunpack.c.l.b16 %v3767
  %v4920 = vunpack.c.l.b16 %v3768
  %v4921 = vunpack.c.h.b16 %v3768
  %v4922 = vunpack.c.l.b16 %v3769
  %v4923 = vunpack.c.h.b16 %v3769
  %v4924 = vunpack.c.l.b16 %v3770
  %v4925 = vunpack.c.l.b16 %v3771
  %v4926 = vunpack.c.h.b16 %v3771
  %v4927 = vunpack.c.l.b16 %v3772
  %v4928 = vunpack.c.h.b16 %v3772
  %v4929 = vunpack.c.l.b16 %v3773
  %v4930 = vunpack.c.l.b16 %v3774
  %v4931 = vunpack.c.h.b16 %v3774
  %v4932 = vunpack.c.l.b16 %v3775
  %v4933 = vunpack.c.h.b16 %v3775
  %v4934 = vunpack.c.l.b16 %v3776
  %v4935 = vunpack.c.l.b16 %v3777
  %v4936 = vunpack.c.h.b16 %v3777
  %v4937 = vunpack.c.l.b16 %v3778
  %v4938 = vunpack.c.h.b16 %v3778
  %v4939 = vunpack.c.l.b16 %v3779
  %v4940 = vpack.c.b16 %v4745, %v4740
  %v4941 = vpack.c.b16 %v4746, %v4741
  %v4942 = vpack.c.b16 %v4747, %v4742
  %v4943 = vpack.c.b16 %v4748, %v4743
  %v4944 = vpack.c.b16 %v4749, %v4744
  %v4945 = vpack.c.b16 %v4755, %v4750
  %v4946 = vpack.c.b16 %v4756, %v4751
  %v4947 = vpack.c.b16 %v4757, %v4752
  %v4948 = vpack.c.b16 %v4758, %v4753
  %v4949 = vpack.c.b16 %v4759, %v4754
  %v4950 = vpack.c.b16 %v4765, %v4760
  %v4951 = vpack.c.b16 %v4766, %v4761
  %v4952 = vpack.c.b16 %v4767, %v4762
  %v4953 = vpack.c.b16 %v4768, %v4763
  %v4954 = vpack.c.b16 %v4769, %v4764
  %v4955 = vpack.c.b16 %v4775, %v4770
  %v4956 = vpack.c.b16 %v4776, %v4771
  %v4957 = vpack.c.b16 %v4777, %v4772
  %v4958 = vpack.c.b16 %v4778, %v4773
  %v4959 = vpack.c.b16 %v4779, %v4774
  %v4960 = vpack.c.b16 %v4785, %v4780
  %v4961 = vpack.c.b16 %v4786, %v4781
  %v4962 = vpack.c.b16 %v4787, %v4782
  %v4963 = vpack.c.b16 %v4788, %v4783
  %v4964 = vpack.c.b16 %v4789, %v4784
  %v4965 = vpack.c.b16 %v4795, %v4790
  %v4966 = vpack.c.b16 %v4796, %v4791
  %v4967 = vpack.c.b16 %v4797, %v4792
  %v4968 = vpack.c.b16 %v4798, %v4793
  %v4969 = vpack.c.b16 %v4799, %v4794
  %v4970 = vpack.c.b16 %v4805, %v4800
  %v4971 = vpack.c.b16 %v4806, %v4801
  %v4972 = vpack.c.b16 %v4807, %v4802
  %v4973 = vpack.c.b16 %v4808, %v4803
  %v4974 = vpack.c.b16 %v4809, %v4804
  %v4975 = vpack.c.b16 %v4815, %v4810
  %v4976 = vpack.c.b16 %v4816, %v4811
  %v4977 = vpack.c.b16 %v4817, %v4812
  %v4978 = vpack.c.b16 %v4818, %v4813
  %v4979 = vpack.c.b16 %v4819, %v4814
  %v4980 = vpack.c.b16 %v4825, %v4820
  %v4981 = vpack.c.b16 %v4826, %v4821
  %v4982 = vpack.c.b16 %v4827, %v4822
  %v4983 = vpack.c.b16 %v4828, %v4823
  %v4984 = vpack.c.b16 %v4829, %v4824
  %v4985 = vpack.c.b16 %v4835, %v4830
  %v4986 = vpack.c.b16 %v4836, %v4831
  %v4987 = vpack.c.b16 %v4837, %v4832
  %v4988 = vpack.c.b16 %v4838, %v4833
  %v4989 = vpack.c.b16 %v4839, %v4834
  %v4990 = vpack.c.b16 %v4845, %v4840
  %v4991 = vpack.c.b16 %v4846, %v4841
  %v4992 = vpack.c.b16 %v4847, %v4842
  %v4993 = vpack.c.b16 %v4848, %v4843
  %v4994 = vpack.c.b16 %v4849, %v4844
  %v4995 = vpack.c.b16 %v4855, %v4850
  %v4996 = vpack.c.b16 %v4856, %v4851
  %v4997 = vpack.c.b16 %v4857, %v4852
  %v4998 = vpack.c.b16 %v4858, %v4853
  %v4999 = vpack.c.b16 %v4859, %v4854
  %v5000 = vpack.c.b16 %v4865, %v4860
  %v5001 = vpack.c.b16 %v4866, %v4861
  %v5002 = vpack.c.b16 %v4867, %v4862
  %v5003 = vpack.c.b16 %v4868, %v4863
  %v5004 = vpack.c.b16 %v4869, %v4864
  %v5005 = vpack.c.b16 %v4875, %v4870
  %v5006 = vpack.c.b16 %v4876, %v4871
  %v5007 = vpack.c.b16 %v4877, %v4872
  %v5008 = vpack.c.b16 %v4878, %v4873
  %v5009 = vpack.c.b16 %v4879, %v4874
  %v5010 = vpack.c.b16 %v4885, %v4880
  %v5011 = vpack.c.b16 %v4886, %v4881
  %v5012 = vpack.c.b16 %v4887, %v4882
  %v5013 = vpack.c.b16 %v4888, %v4883
  %v5014 = vpack.c.b16 %v4889, %v4884
  %v5015 = vpack.c.b16 %v4895, %v4890
  %v5016 = vpack.c.b16 %v4896, %v4891
  %v5017 = vpack.c.b16 %v4897, %v4892
  %v5018 = vpack.c.b16 %v4898, %v4893
  %v5019 = vpack.c.b16 %v4899, %v4894
  %v5020 = vpack.c.b16 %v4905, %v4900
  %v5021 = vpack.c.b16 %v4906, %v4901
  %v5022 = vpack.c.b16 %v4907, %v4902
  %v5023 = vpack.c.b16 %v4908, %v4903
  %v5024 = vpack.c.b16 %v4909, %v4904
  %v5025 = vpack.c.b16 %v4915, %v4910
  %v5026 = vpack.c.b16 %v4916, %v4911
  %v5027 = vpack.c.b16 %v4917, %v4912
  %v5028 = vpack.c.b16 %v4918, %v4913
  %v5029 = vpack.c.b16 %v4919, %v4914
  %v5030 = vpack.c.b16 %v4925, %v4920
  %v5031 = vpack.c.b16 %v4926, %v4921
  %v5032 = vpack.c.b16 %v4927, %v4922
  %v5033 = vpack.c.b16 %v4928, %v4923
  %v5034 = vpack.c.b16 %v4929, %v4924
  %v5035 = vpack.c.b16 %v4935, %v4930
  %v5036 = vpack.c.b16 %v4936, %v4931
  %v5037 = vpack.c.b16 %v4937, %v4932
  %v5038 = vpack.c.b16 %v4938, %v4933
  %v5039 = vpack.c.b16 %v4939, %v4934
  %v5141 = vsel %vm1199, %v4614, 0
  %5143 = vmatprep.subr.bf16.mxu0 %v4976
  %5144 = vmatpush1.bf16.msra.mxu0 %v4975
  %5145 = vmatprep.subr.bf16.mxu0 %v4971
  %5146 = vmatpush1.bf16.msra.mxu0 %v4970
  %5147 = vmatprep.subr.bf16.mxu0 %v4966
  %5148 = vmatpush1.bf16.msra.mxu0 %v4965
  %5149 = vmatprep.subr.bf16.mxu0 %v4961
  %5150 = vmatpush1.bf16.msra.mxu0 %v4960
  %5151 = vmatprep.subr.bf16.mxu0 %v4956
  %5152 = vmatpush1.bf16.msra.mxu0 %v4955
  %5153 = vmatprep.subr.bf16.mxu0 %v4951
  %5154 = vmatpush1.bf16.msra.mxu0 %v4950
  %5155 = vmatprep.subr.bf16.mxu0 %v4946
  %5156 = vmatpush1.bf16.msra.mxu0 %v4945
  %5157 = vmatprep.subr.bf16.mxu0 %v4941
  %5158 = vmatpush1.bf16.msra.mxu0 %v4940
  %5159 = vmatprep.subr.bf16.mxu0 %v5016
  %5160 = vmatpush2.bf16.msra.mxu0 %v5015
  %5161 = vmatprep.subr.bf16.mxu0 %v5011
  %5162 = vmatpush2.bf16.msra.mxu0 %v5010
  %5163 = vmatprep.subr.bf16.mxu0 %v5006
  %5164 = vmatpush2.bf16.msra.mxu0 %v5005
  %5165 = vmatprep.subr.bf16.mxu0 %v5001
  %5166 = vmatpush2.bf16.msra.mxu0 %v5000
  %5167 = vmatprep.subr.bf16.mxu0 %v4996
  %5168 = vmatpush2.bf16.msra.mxu0 %v4995
  %5169 = vmatprep.subr.bf16.mxu0 %v4991
  %5170 = vmatpush2.bf16.msra.mxu0 %v4990
  %5171 = vmatprep.subr.bf16.mxu0 %v4986
  %5172 = vmatpush2.bf16.msra.mxu0 %v4985
  %5173 = vmatprep.subr.bf16.mxu0 %v4981
  %5174 = vmatpush2.bf16.msra.mxu0 %v4980
  %5175 = vmatprep.mubr.bf16.mxu0 %v4617
  %5176 = vmatmul.mubr.bf16.gmra.mxu0 %v4616
  %v5177 = vpop.f32.mrf.mxu0
  %v5178 = vadd.f32 %v4584, %v5177
  %v5179 = vpop.f32.mrf.mxu0
  %v5180 = vadd.f32 %v4588, %v5179
  %v5181 = vpop.f32.mrf.mxu0
  %v5182 = vpop.f32.mrf.mxu0
  %5183 = vdwg.mxu0
  %5184 = vmatprep.subr.bf16.mxu0 0
  %5185 = vmatpush1.bf16.msra.mxu0 0
  %5186 = vmatprep.subr.bf16.mxu0 0
  %5187 = vmatpush1.bf16.msra.mxu0 0
  %5188 = vmatprep.subr.bf16.mxu0 0
  %5189 = vmatpush1.bf16.msra.mxu0 0
  %5190 = vmatprep.subr.bf16.mxu0 0
  %5191 = vmatpush1.bf16.msra.mxu0 0
  %5192 = vmatprep.subr.bf16.mxu0 %v5036
  %5193 = vmatpush1.bf16.msra.mxu0 %v5035
  %5194 = vmatprep.subr.bf16.mxu0 %v5031
  %5195 = vmatpush1.bf16.msra.mxu0 %v5030
  %5196 = vmatprep.subr.bf16.mxu0 %v5026
  %5197 = vmatpush1.bf16.msra.mxu0 %v5025
  %5198 = vmatprep.subr.bf16.mxu0 %v5021
  %5199 = vmatpush1.bf16.msra.mxu0 %v5020
  %5200 = vmatprep.subr.bf16.mxu0 0
  %5201 = vmatpush2.bf16.msra.mxu0 0
  %5202 = vmatprep.subr.bf16.mxu0 0
  %5203 = vmatpush2.bf16.msra.mxu0 0
  %5204 = vmatprep.subr.bf16.mxu0 0
  %5205 = vmatpush2.bf16.msra.mxu0 0
  %5206 = vmatprep.subr.bf16.mxu0 0
  %5207 = vmatpush2.bf16.msra.mxu0 0
  %5208 = vmatprep.subr.bf16.mxu0 0
  %5209 = vmatpush2.bf16.msra.mxu0 0
  %5210 = vmatprep.subr.bf16.mxu0 0
  %5211 = vmatpush2.bf16.msra.mxu0 0
  %5212 = vmatprep.subr.bf16.mxu0 0
  %5213 = vmatpush2.bf16.msra.mxu0 0
  %5214 = vmatprep.subr.bf16.mxu0 0
  %5215 = vmatpush2.bf16.msra.mxu0 0
  %5216 = vmatprep.mubr.bf16.mxu0 0
  %5217 = vmatmul.mubr.bf16.gmra.mxu0 %v5141
  %v5218 = vpop.f32.mrf.mxu0
  %v5219 = vadd.f32 %v5178, %v5218
  %v5220 = vpop.f32.mrf.mxu0
  %v5221 = vadd.f32 %v5180, %v5220
  %v5222 = vpop.f32.mrf.mxu0
  %v5223 = vpop.f32.mrf.mxu0
  %5224 = vdwg.mxu0
  %5225 = vmatprep.subr.bf16.mxu0 %v4978
  %5226 = vmatpush1.bf16.msra.mxu0 %v4977
  %5227 = vmatprep.subr.bf16.mxu0 %v4973
  %5228 = vmatpush1.bf16.msra.mxu0 %v4972
  %5229 = vmatprep.subr.bf16.mxu0 %v4968
  %5230 = vmatpush1.bf16.msra.mxu0 %v4967
  %5231 = vmatprep.subr.bf16.mxu0 %v4963
  %5232 = vmatpush1.bf16.msra.mxu0 %v4962
  %5233 = vmatprep.subr.bf16.mxu0 %v4958
  %5234 = vmatpush1.bf16.msra.mxu0 %v4957
  %5235 = vmatprep.subr.bf16.mxu0 %v4953
  %5236 = vmatpush1.bf16.msra.mxu0 %v4952
  %5237 = vmatprep.subr.bf16.mxu0 %v4948
  %5238 = vmatpush1.bf16.msra.mxu0 %v4947
  %5239 = vmatprep.subr.bf16.mxu0 %v4943
  %5240 = vmatpush1.bf16.msra.mxu0 %v4942
  %5241 = vmatprep.subr.bf16.mxu0 %v5018
  %5242 = vmatpush2.bf16.msra.mxu0 %v5017
  %5243 = vmatprep.subr.bf16.mxu0 %v5013
  %5244 = vmatpush2.bf16.msra.mxu0 %v5012
  %5245 = vmatprep.subr.bf16.mxu0 %v5008
  %5246 = vmatpush2.bf16.msra.mxu0 %v5007
  %5247 = vmatprep.subr.bf16.mxu0 %v5003
  %5248 = vmatpush2.bf16.msra.mxu0 %v5002
  %5249 = vmatprep.subr.bf16.mxu0 %v4998
  %5250 = vmatpush2.bf16.msra.mxu0 %v4997
  %5251 = vmatprep.subr.bf16.mxu0 %v4993
  %5252 = vmatpush2.bf16.msra.mxu0 %v4992
  %5253 = vmatprep.subr.bf16.mxu0 %v4988
  %5254 = vmatpush2.bf16.msra.mxu0 %v4987
  %5255 = vmatprep.subr.bf16.mxu0 %v4983
  %5256 = vmatpush2.bf16.msra.mxu0 %v4982
  %5257 = vmatprep.mubr.bf16.mxu0 %v4617
  %5258 = vmatmul.mubr.bf16.gmra.mxu0 %v4616
  %v5259 = vpop.f32.mrf.mxu0
  %v5260 = vadd.f32 %v4592, %v5259
  %v5261 = vpop.f32.mrf.mxu0
  %v5262 = vadd.f32 %v4596, %v5261
  %v5263 = vpop.f32.mrf.mxu0
  %v5264 = vpop.f32.mrf.mxu0
  %5265 = vdwg.mxu0
  %5266 = vmatprep.subr.bf16.mxu0 0
  %5267 = vmatpush1.bf16.msra.mxu0 0
  %5268 = vmatprep.subr.bf16.mxu0 0
  %5269 = vmatpush1.bf16.msra.mxu0 0
  %5270 = vmatprep.subr.bf16.mxu0 0
  %5271 = vmatpush1.bf16.msra.mxu0 0
  %5272 = vmatprep.subr.bf16.mxu0 0
  %5273 = vmatpush1.bf16.msra.mxu0 0
  %5274 = vmatprep.subr.bf16.mxu0 %v5038
  %5275 = vmatpush1.bf16.msra.mxu0 %v5037
  %5276 = vmatprep.subr.bf16.mxu0 %v5033
  %5277 = vmatpush1.bf16.msra.mxu0 %v5032
  %5278 = vmatprep.subr.bf16.mxu0 %v5028
  %5279 = vmatpush1.bf16.msra.mxu0 %v5027
  %5280 = vmatprep.subr.bf16.mxu0 %v5023
  %5281 = vmatpush1.bf16.msra.mxu0 %v5022
  %5282 = vmatprep.subr.bf16.mxu0 0
  %5283 = vmatpush2.bf16.msra.mxu0 0
  %5284 = vmatprep.subr.bf16.mxu0 0
  %5285 = vmatpush2.bf16.msra.mxu0 0
  %5286 = vmatprep.subr.bf16.mxu0 0
  %5287 = vmatpush2.bf16.msra.mxu0 0
  %5288 = vmatprep.subr.bf16.mxu0 0
  %5289 = vmatpush2.bf16.msra.mxu0 0
  %5290 = vmatprep.subr.bf16.mxu0 0
  %5291 = vmatpush2.bf16.msra.mxu0 0
  %5292 = vmatprep.subr.bf16.mxu0 0
  %5293 = vmatpush2.bf16.msra.mxu0 0
  %5294 = vmatprep.subr.bf16.mxu0 0
  %5295 = vmatpush2.bf16.msra.mxu0 0
  %5296 = vmatprep.subr.bf16.mxu0 0
  %5297 = vmatpush2.bf16.msra.mxu0 0
  %5298 = vmatprep.mubr.bf16.mxu0 0
  %5299 = vmatmul.mubr.bf16.gmra.mxu0 %v5141
  %v5300 = vpop.f32.mrf.mxu0
  %v5301 = vadd.f32 %v5260, %v5300
  %v5302 = vpop.f32.mrf.mxu0
  %v5303 = vadd.f32 %v5262, %v5302
  %v5304 = vpop.f32.mrf.mxu0
  %v5305 = vpop.f32.mrf.mxu0
  %5306 = vdwg.mxu0
  %5307 = vmatprep.subr.bf16.mxu0 0
  %5308 = vmatpush1.bf16.msra.mxu0 %v4979
  %5309 = vmatprep.subr.bf16.mxu0 0
  %5310 = vmatpush1.bf16.msra.mxu0 %v4974
  %5311 = vmatprep.subr.bf16.mxu0 0
  %5312 = vmatpush1.bf16.msra.mxu0 %v4969
  %5313 = vmatprep.subr.bf16.mxu0 0
  %5314 = vmatpush1.bf16.msra.mxu0 %v4964
  %5315 = vmatprep.subr.bf16.mxu0 0
  %5316 = vmatpush1.bf16.msra.mxu0 %v4959
  %5317 = vmatprep.subr.bf16.mxu0 0
  %5318 = vmatpush1.bf16.msra.mxu0 %v4954
  %5319 = vmatprep.subr.bf16.mxu0 0
  %5320 = vmatpush1.bf16.msra.mxu0 %v4949
  %5321 = vmatprep.subr.bf16.mxu0 0
  %5322 = vmatpush1.bf16.msra.mxu0 %v4944
  %5323 = vmatprep.subr.bf16.mxu0 0
  %5324 = vmatpush2.bf16.msra.mxu0 %v5019
  %5325 = vmatprep.subr.bf16.mxu0 0
  %5326 = vmatpush2.bf16.msra.mxu0 %v5014
  %5327 = vmatprep.subr.bf16.mxu0 0
  %5328 = vmatpush2.bf16.msra.mxu0 %v5009
  %5329 = vmatprep.subr.bf16.mxu0 0
  %5330 = vmatpush2.bf16.msra.mxu0 %v5004
  %5331 = vmatprep.subr.bf16.mxu0 0
  %5332 = vmatpush2.bf16.msra.mxu0 %v4999
  %5333 = vmatprep.subr.bf16.mxu0 0
  %5334 = vmatpush2.bf16.msra.mxu0 %v4994
  %5335 = vmatprep.subr.bf16.mxu0 0
  %5336 = vmatpush2.bf16.msra.mxu0 %v4989
  %5337 = vmatprep.subr.bf16.mxu0 0
  %5338 = vmatpush2.bf16.msra.mxu0 %v4984
  %5339 = vmatprep.mubr.bf16.mxu0 %v4617
  %5340 = vmatmul.mubr.bf16.gmra.mxu0 %v4616
  %v5341 = vpop.f32.mrf.mxu0
  %v5342 = vadd.f32 %v4600, %v5341
  %v5343 = vpop.f32.mrf.mxu0
  %v5344 = vpop.f32.mrf.mxu0
  %v5345 = vpop.f32.mrf.mxu0
  %5346 = vdwg.mxu0
  %5347 = vmatprep.subr.bf16.mxu0 0
  %5348 = vmatpush1.bf16.msra.mxu0 0
  %5349 = vmatprep.subr.bf16.mxu0 0
  %5350 = vmatpush1.bf16.msra.mxu0 0
  %5351 = vmatprep.subr.bf16.mxu0 0
  %5352 = vmatpush1.bf16.msra.mxu0 0
  %5353 = vmatprep.subr.bf16.mxu0 0
  %5354 = vmatpush1.bf16.msra.mxu0 0
  %5355 = vmatprep.subr.bf16.mxu0 0
  %5356 = vmatpush1.bf16.msra.mxu0 %v5039
  %5357 = vmatprep.subr.bf16.mxu0 0
  %5358 = vmatpush1.bf16.msra.mxu0 %v5034
  %5359 = vmatprep.subr.bf16.mxu0 0
  %5360 = vmatpush1.bf16.msra.mxu0 %v5029
  %5361 = vmatprep.subr.bf16.mxu0 0
  %5362 = vmatpush1.bf16.msra.mxu0 %v5024
  %5363 = vmatprep.subr.bf16.mxu0 0
  %5364 = vmatpush2.bf16.msra.mxu0 0
  %5365 = vmatprep.subr.bf16.mxu0 0
  %5366 = vmatpush2.bf16.msra.mxu0 0
  %5367 = vmatprep.subr.bf16.mxu0 0
  %5368 = vmatpush2.bf16.msra.mxu0 0
  %5369 = vmatprep.subr.bf16.mxu0 0
  %5370 = vmatpush2.bf16.msra.mxu0 0
  %5371 = vmatprep.subr.bf16.mxu0 0
  %5372 = vmatpush2.bf16.msra.mxu0 0
  %5373 = vmatprep.subr.bf16.mxu0 0
  %5374 = vmatpush2.bf16.msra.mxu0 0
  %5375 = vmatprep.subr.bf16.mxu0 0
  %5376 = vmatpush2.bf16.msra.mxu0 0
  %5377 = vmatprep.subr.bf16.mxu0 0
  %5378 = vmatpush2.bf16.msra.mxu0 0
  %5379 = vmatprep.mubr.bf16.mxu0 0
  %5380 = vmatmul.mubr.bf16.gmra.mxu0 %v5141
  %v5381 = vpop.f32.mrf.mxu0
  %v5382 = vadd.f32 %v5342, %v5381
  %v5383 = vpop.f32.mrf.mxu0
  %v5384 = vpop.f32.mrf.mxu0
  %v5385 = vpop.f32.mrf.mxu0
  %5386 = vdwg.mxu0
  %vm5387 = vcmp.gt.f32.partialorder %v4409, 0.0
  %vm5388 = vcmp.gt.f32.partialorder %v4411, 0.0
  %vm5389 = vcmp.gt.f32.partialorder %v4491, 0.0
  %vm5390 = vcmp.gt.f32.partialorder %v4493, 0.0
  %vm5391 = vcmp.gt.f32.partialorder %v4572, 0.0
  %vm5392 = vcmp.gt.f32.partialorder %v5219, 0.0
  %vm5393 = vcmp.gt.f32.partialorder %v5221, 0.0
  %vm5394 = vcmp.gt.f32.partialorder %v5301, 0.0
  %vm5395 = vcmp.gt.f32.partialorder %v5303, 0.0
  %vm5396 = vcmp.gt.f32.partialorder %v5382, 0.0
  %v5397 = vmul.f32 %v4409, 1.442695
  %v5398 = vpow.pop %v5397
  %v5399 = vmul.f32 %v4411, 1.442695
  %v5400 = vpow.pop %v5399
  %v5401 = vmul.f32 %v4491, 1.442695
  %v5402 = vpow.pop %v5401
  %v5403 = vmul.f32 %v4493, 1.442695
  %v5404 = vpow.pop %v5403
  %v5405 = vmul.f32 %v4572, 1.442695
  %v5406 = vpow.pop %v5405
  %v5407 = vmul.f32 %v5219, 1.442695
  %v5408 = vpow.pop %v5407
  %v5409 = vmul.f32 %v5221, 1.442695
  %v5410 = vpow.pop %v5409
  %v5411 = vmul.f32 %v5301, 1.442695
  %v5412 = vpow.pop %v5411
  %v5413 = vmul.f32 %v5303, 1.442695
  %v5414 = vpow.pop %v5413
  %v5415 = vmul.f32 %v5382, 1.442695
  %v5416 = vpow.pop %v5415
  %v5417 = vsub.f32 %v5398, 1.0
  %v5418 = vsub.f32 %v5400, 1.0
  %v5419 = vsub.f32 %v5402, 1.0
  %v5420 = vsub.f32 %v5404, 1.0
  %v5421 = vsub.f32 %v5406, 1.0
  %v5422 = vsub.f32 %v5408, 1.0
  %v5423 = vsub.f32 %v5410, 1.0
  %v5424 = vsub.f32 %v5412, 1.0
  %v5425 = vsub.f32 %v5414, 1.0
  %v5426 = vsub.f32 %v5416, 1.0
  %v5427 = vmul.f32 %v5417, 1.6732632
  %v5428 = vmul.f32 %v5418, 1.6732632
  %v5429 = vmul.f32 %v5419, 1.6732632
  %v5430 = vmul.f32 %v5420, 1.6732632
  %v5431 = vmul.f32 %v5421, 1.6732632
  %v5432 = vmul.f32 %v5422, 1.6732632
  %v5433 = vmul.f32 %v5423, 1.6732632
  %v5434 = vmul.f32 %v5424, 1.6732632
  %v5435 = vmul.f32 %v5425, 1.6732632
  %v5436 = vmul.f32 %v5426, 1.6732632
  %v5437 = vsel %vm5387, %v4409, %v5427
  %v5438 = vsel %vm5388, %v4411, %v5428
  %v5439 = vsel %vm5389, %v4491, %v5429
  %v5440 = vsel %vm5390, %v4493, %v5430
  %v5441 = vsel %vm5391, %v4572, %v5431
  %v5442 = vsel %vm5392, %v5219, %v5432
  %v5443 = vsel %vm5393, %v5221, %v5433
  %v5444 = vsel %vm5394, %v5301, %v5434
  %v5445 = vsel %vm5395, %v5303, %v5435
  %v5446 = vsel %vm5396, %v5382, %v5436
  %v5447 = vmul.f32 %v5437, 1.050701
  %v5448 = vmul.f32 %v5438, 1.050701
  %v5449 = vmul.f32 %v5439, 1.050701
  %v5450 = vmul.f32 %v5440, 1.050701
  %v5451 = vmul.f32 %v5441, 1.050701
  %v5452 = vmul.f32 %v5442, 1.050701
  %v5453 = vmul.f32 %v5443, 1.050701
  %v5454 = vmul.f32 %v5444, 1.050701
  %v5455 = vmul.f32 %v5445, 1.050701
  %v5456 = vmul.f32 %v5446, 1.050701
  %v5457 = vld [vmem:[%s2 + $0x24] sm:$0x1f]
  %v5458 = vld [vmem:[%s2 + $0x5a] sm:$0x1f]
  %v5460 = vlaneseq
  %v5461 = vshrl.u32 %v5460, 7
  %v5462 = vsub.s32 0, %v5461
  %v5463 = vrot.slane %v5457, %v5462
  %v5464 = vlaneseq
  %v5465 = vshrl.u32 %v5464, 7
  %v5466 = vsub.s32 1, %v5465
  %v5467 = vrot.slane %v5457, %v5466
  %v5468 = vlaneseq
  %v5469 = vshrl.u32 %v5468, 7
  %v5470 = vsub.s32 2, %v5469
  %v5471 = vrot.slane %v5457, %v5470
  %v5472 = vlaneseq
  %v5473 = vshrl.u32 %v5472, 7
  %v5474 = vsub.s32 3, %v5473
  %v5475 = vrot.slane %v5457, %v5474
  %v5476 = vlaneseq
  %v5477 = vshrl.u32 %v5476, 7
  %v5478 = vsub.s32 4, %v5477
  %v5479 = vrot.slane %v5457, %v5478
  %v5486 = vlaneseq
  %v5487 = vshrl.u32 %v5486, 7
  %v5488 = vsub.s32 0, %v5487
  %v5489 = vrot.slane %v5458, %v5488
  %v5490 = vlaneseq
  %v5491 = vshrl.u32 %v5490, 7
  %v5492 = vsub.s32 1, %v5491
  %v5493 = vrot.slane %v5458, %v5492
  %v5494 = vlaneseq
  %v5495 = vshrl.u32 %v5494, 7
  %v5496 = vsub.s32 2, %v5495
  %v5497 = vrot.slane %v5458, %v5496
  %v5498 = vlaneseq
  %v5499 = vshrl.u32 %v5498, 7
  %v5500 = vsub.s32 3, %v5499
  %v5501 = vrot.slane %v5458, %v5500
  %v5502 = vlaneseq
  %v5503 = vshrl.u32 %v5502, 7
  %v5504 = vsub.s32 4, %v5503
  %v5505 = vrot.slane %v5458, %v5504
  %v5511 = vld [vmem:[%s2 + $0x29] sm:$0x1f]
  %v5512 = vld [vmem:[%s2 + $0x5f] sm:$0x1f]
  %v5514 = vlaneseq
  %v5515 = vshrl.u32 %v5514, 7
  %v5516 = vsub.s32 0, %v5515
  %v5517 = vrot.slane %v5511, %v5516
  %v5518 = vlaneseq
  %v5519 = vshrl.u32 %v5518, 7
  %v5520 = vsub.s32 1, %v5519
  %v5521 = vrot.slane %v5511, %v5520
  %v5522 = vlaneseq
  %v5523 = vshrl.u32 %v5522, 7
  %v5524 = vsub.s32 2, %v5523
  %v5525 = vrot.slane %v5511, %v5524
  %v5526 = vlaneseq
  %v5527 = vshrl.u32 %v5526, 7
  %v5528 = vsub.s32 3, %v5527
  %v5529 = vrot.slane %v5511, %v5528
  %v5530 = vlaneseq
  %v5531 = vshrl.u32 %v5530, 7
  %v5532 = vsub.s32 4, %v5531
  %v5533 = vrot.slane %v5511, %v5532
  %v5540 = vlaneseq
  %v5541 = vshrl.u32 %v5540, 7
  %v5542 = vsub.s32 0, %v5541
  %v5543 = vrot.slane %v5512, %v5542
  %v5544 = vlaneseq
  %v5545 = vshrl.u32 %v5544, 7
  %v5546 = vsub.s32 1, %v5545
  %v5547 = vrot.slane %v5512, %v5546
  %v5548 = vlaneseq
  %v5549 = vshrl.u32 %v5548, 7
  %v5550 = vsub.s32 2, %v5549
  %v5551 = vrot.slane %v5512, %v5550
  %v5552 = vlaneseq
  %v5553 = vshrl.u32 %v5552, 7
  %v5554 = vsub.s32 3, %v5553
  %v5555 = vrot.slane %v5512, %v5554
  %v5556 = vlaneseq
  %v5557 = vshrl.u32 %v5556, 7
  %v5558 = vsub.s32 4, %v5557
  %v5559 = vrot.slane %v5512, %v5558
  %v5565 = vsel %vm1142, %v5447, 0.0
  %v5566 = vrot.slane %v5565, 4
  %v5567 = vadd.f32 %v5565, %v5566
  %v5568 = vrot.slane %v5567, 2
  %v5569 = vadd.f32 %v5567, %v5568
  %v5570 = vrot.slane %v5569, 1
  %v5571 = vadd.f32 %v5569, %v5570
  %v5572 = vsel %vm1142, %v5448, 0.0
  %v5573 = vrot.slane %v5572, 4
  %v5574 = vadd.f32 %v5572, %v5573
  %v5575 = vrot.slane %v5574, 2
  %v5576 = vadd.f32 %v5574, %v5575
  %v5577 = vrot.slane %v5576, 1
  %v5578 = vadd.f32 %v5576, %v5577
  %v5579 = vsel %vm1142, %v5449, 0.0
  %v5580 = vrot.slane %v5579, 4
  %v5581 = vadd.f32 %v5579, %v5580
  %v5582 = vrot.slane %v5581, 2
  %v5583 = vadd.f32 %v5581, %v5582
  %v5584 = vrot.slane %v5583, 1
  %v5585 = vadd.f32 %v5583, %v5584
  %v5586 = vsel %vm1142, %v5450, 0.0
  %v5587 = vrot.slane %v5586, 4
  %v5588 = vadd.f32 %v5586, %v5587
  %v5589 = vrot.slane %v5588, 2
  %v5590 = vadd.f32 %v5588, %v5589
  %v5591 = vrot.slane %v5590, 1
  %v5592 = vadd.f32 %v5590, %v5591
  %v5593 = vsel %vm1142, %v5451, 0.0
  %v5594 = vrot.slane %v5593, 4
  %v5595 = vadd.f32 %v5593, %v5594
  %v5596 = vrot.slane %v5595, 2
  %v5597 = vadd.f32 %v5595, %v5596
  %v5598 = vrot.slane %v5597, 1
  %v5599 = vadd.f32 %v5597, %v5598
  %v5600 = vsel %vm1142, %v5452, 0.0
  %v5601 = vrot.slane %v5600, 4
  %v5602 = vadd.f32 %v5600, %v5601
  %v5603 = vrot.slane %v5602, 2
  %v5604 = vadd.f32 %v5602, %v5603
  %v5605 = vrot.slane %v5604, 1
  %v5606 = vadd.f32 %v5604, %v5605
  %v5607 = vsel %vm1142, %v5453, 0.0
  %v5608 = vrot.slane %v5607, 4
  %v5609 = vadd.f32 %v5607, %v5608
  %v5610 = vrot.slane %v5609, 2
  %v5611 = vadd.f32 %v5609, %v5610
  %v5612 = vrot.slane %v5611, 1
  %v5613 = vadd.f32 %v5611, %v5612
  %v5614 = vsel %vm1142, %v5454, 0.0
  %v5615 = vrot.slane %v5614, 4
  %v5616 = vadd.f32 %v5614, %v5615
  %v5617 = vrot.slane %v5616, 2
  %v5618 = vadd.f32 %v5616, %v5617
  %v5619 = vrot.slane %v5618, 1
  %v5620 = vadd.f32 %v5618, %v5619
  %v5621 = vsel %vm1142, %v5455, 0.0
  %v5622 = vrot.slane %v5621, 4
  %v5623 = vadd.f32 %v5621, %v5622
  %v5624 = vrot.slane %v5623, 2
  %v5625 = vadd.f32 %v5623, %v5624
  %v5626 = vrot.slane %v5625, 1
  %v5627 = vadd.f32 %v5625, %v5626
  %v5628 = vsel %vm1142, %v5456, 0.0
  %v5629 = vrot.slane %v5628, 4
  %v5630 = vadd.f32 %v5628, %v5629
  %v5631 = vrot.slane %v5630, 2
  %v5632 = vadd.f32 %v5630, %v5631
  %v5633 = vrot.slane %v5632, 1
  %v5634 = vadd.f32 %v5632, %v5633
  %v5635 = vmul.f32 %v5571, %v1892
  %v5636 = vmul.f32 %v5578, %v1892
  %v5637 = vmul.f32 %v5585, %v1892
  %v5638 = vmul.f32 %v5592, %v1892
  %v5639 = vmul.f32 %v5599, %v1892
  %v5640 = vmul.f32 %v5606, %v1892
  %v5641 = vmul.f32 %v5613, %v1892
  %v5642 = vmul.f32 %v5620, %v1892
  %v5643 = vmul.f32 %v5627, %v1892
  %v5644 = vmul.f32 %v5634, %v1892
  %v5645 = vsub.f32 %v5447, %v5635
  %v5646 = vsub.f32 %v5448, %v5636
  %v5647 = vsub.f32 %v5449, %v5637
  %v5648 = vsub.f32 %v5450, %v5638
  %v5649 = vsub.f32 %v5451, %v5639
  %v5650 = vsub.f32 %v5452, %v5640
  %v5651 = vsub.f32 %v5453, %v5641
  %v5652 = vsub.f32 %v5454, %v5642
  %v5653 = vsub.f32 %v5455, %v5643
  %v5654 = vsub.f32 %v5456, %v5644
  %v5655 = vmul.f32 %v5645, %v5645
  %v5656 = vmul.f32 %v5646, %v5646
  %v5657 = vmul.f32 %v5647, %v5647
  %v5658 = vmul.f32 %v5648, %v5648
  %v5659 = vmul.f32 %v5649, %v5649
  %v5660 = vmul.f32 %v5650, %v5650
  %v5661 = vmul.f32 %v5651, %v5651
  %v5662 = vmul.f32 %v5652, %v5652
  %v5663 = vmul.f32 %v5653, %v5653
  %v5664 = vmul.f32 %v5654, %v5654
  %v5665 = vsel %vm1142, %v5655, 0.0
  %v5666 = vrot.slane %v5665, 4
  %v5667 = vadd.f32 %v5665, %v5666
  %v5668 = vrot.slane %v5667, 2
  %v5669 = vadd.f32 %v5667, %v5668
  %v5670 = vrot.slane %v5669, 1
  %v5671 = vadd.f32 %v5669, %v5670
  %v5672 = vsel %vm1142, %v5656, 0.0
  %v5673 = vrot.slane %v5672, 4
  %v5674 = vadd.f32 %v5672, %v5673
  %v5675 = vrot.slane %v5674, 2
  %v5676 = vadd.f32 %v5674, %v5675
  %v5677 = vrot.slane %v5676, 1
  %v5678 = vadd.f32 %v5676, %v5677
  %v5679 = vsel %vm1142, %v5657, 0.0
  %v5680 = vrot.slane %v5679, 4
  %v5681 = vadd.f32 %v5679, %v5680
  %v5682 = vrot.slane %v5681, 2
  %v5683 = vadd.f32 %v5681, %v5682
  %v5684 = vrot.slane %v5683, 1
  %v5685 = vadd.f32 %v5683, %v5684
  %v5686 = vsel %vm1142, %v5658, 0.0
  %v5687 = vrot.slane %v5686, 4
  %v5688 = vadd.f32 %v5686, %v5687
  %v5689 = vrot.slane %v5688, 2
  %v5690 = vadd.f32 %v5688, %v5689
  %v5691 = vrot.slane %v5690, 1
  %v5692 = vadd.f32 %v5690, %v5691
  %v5693 = vsel %vm1142, %v5659, 0.0
  %v5694 = vrot.slane %v5693, 4
  %v5695 = vadd.f32 %v5693, %v5694
  %v5696 = vrot.slane %v5695, 2
  %v5697 = vadd.f32 %v5695, %v5696
  %v5698 = vrot.slane %v5697, 1
  %v5699 = vadd.f32 %v5697, %v5698
  %v5700 = vsel %vm1142, %v5660, 0.0
  %v5701 = vrot.slane %v5700, 4
  %v5702 = vadd.f32 %v5700, %v5701
  %v5703 = vrot.slane %v5702, 2
  %v5704 = vadd.f32 %v5702, %v5703
  %v5705 = vrot.slane %v5704, 1
  %v5706 = vadd.f32 %v5704, %v5705
  %v5707 = vsel %vm1142, %v5661, 0.0
  %v5708 = vrot.slane %v5707, 4
  %v5709 = vadd.f32 %v5707, %v5708
  %v5710 = vrot.slane %v5709, 2
  %v5711 = vadd.f32 %v5709, %v5710
  %v5712 = vrot.slane %v5711, 1
  %v5713 = vadd.f32 %v5711, %v5712
  %v5714 = vsel %vm1142, %v5662, 0.0
  %v5715 = vrot.slane %v5714, 4
  %v5716 = vadd.f32 %v5714, %v5715
  %v5717 = vrot.slane %v5716, 2
  %v5718 = vadd.f32 %v5716, %v5717
  %v5719 = vrot.slane %v5718, 1
  %v5720 = vadd.f32 %v5718, %v5719
  %v5721 = vsel %vm1142, %v5663, 0.0
  %v5722 = vrot.slane %v5721, 4
  %v5723 = vadd.f32 %v5721, %v5722
  %v5724 = vrot.slane %v5723, 2
  %v5725 = vadd.f32 %v5723, %v5724
  %v5726 = vrot.slane %v5725, 1
  %v5727 = vadd.f32 %v5725, %v5726
  %v5728 = vsel %vm1142, %v5664, 0.0
  %v5729 = vrot.slane %v5728, 4
  %v5730 = vadd.f32 %v5728, %v5729
  %v5731 = vrot.slane %v5730, 2
  %v5732 = vadd.f32 %v5730, %v5731
  %v5733 = vrot.slane %v5732, 1
  %v5734 = vadd.f32 %v5732, %v5733
  %v5735 = vmul.f32 %v5671, %v1892
  %v5736 = vmul.f32 %v5678, %v1892
  %v5737 = vmul.f32 %v5685, %v1892
  %v5738 = vmul.f32 %v5692, %v1892
  %v5739 = vmul.f32 %v5699, %v1892
  %v5740 = vmul.f32 %v5706, %v1892
  %v5741 = vmul.f32 %v5713, %v1892
  %v5742 = vmul.f32 %v5720, %v1892
  %v5743 = vmul.f32 %v5727, %v1892
  %v5744 = vmul.f32 %v5734, %v1892
  %v5745 = vadd.f32 %v5735, 1e-05
  %v5746 = vadd.f32 %v5736, 1e-05
  %v5747 = vadd.f32 %v5737, 1e-05
  %v5748 = vadd.f32 %v5738, 1e-05
  %v5749 = vadd.f32 %v5739, 1e-05
  %v5750 = vadd.f32 %v5740, 1e-05
  %v5751 = vadd.f32 %v5741, 1e-05
  %v5752 = vadd.f32 %v5742, 1e-05
  %v5753 = vadd.f32 %v5743, 1e-05
  %v5754 = vadd.f32 %v5744, 1e-05
  %v5755 = vrsqrt.pop %v5745
  %v5756 = vrsqrt.pop %v5746
  %v5757 = vrsqrt.pop %v5747
  %v5758 = vrsqrt.pop %v5748
  %v5759 = vrsqrt.pop %v5749
  %v5760 = vrsqrt.pop %v5750
  %v5761 = vrsqrt.pop %v5751
  %v5762 = vrsqrt.pop %v5752
  %v5763 = vrsqrt.pop %v5753
  %v5764 = vrsqrt.pop %v5754
  %v5765 = vmul.f32 %v5645, %v5755
  %v5766 = vmul.f32 %v5646, %v5756
  %v5767 = vmul.f32 %v5647, %v5757
  %v5768 = vmul.f32 %v5648, %v5758
  %v5769 = vmul.f32 %v5649, %v5759
  %v5770 = vmul.f32 %v5650, %v5760
  %v5771 = vmul.f32 %v5651, %v5761
  %v5772 = vmul.f32 %v5652, %v5762
  %v5773 = vmul.f32 %v5653, %v5763
  %v5774 = vmul.f32 %v5654, %v5764
  %v5775 = vlaneseq
  %v5776 = vshrl.u32 %v5775, 7
  %v5777 = vsub.s32 0, %v5776
  %v5778 = vrot.slane %v5463, %v5777
  %v5779 = vlaneseq
  %v5780 = vshrl.u32 %v5779, 7
  %v5781 = vsub.s32 0, %v5780
  %v5782 = vrot.slane %v5467, %v5781
  %v5783 = vlaneseq
  %v5784 = vshrl.u32 %v5783, 7
  %v5785 = vsub.s32 0, %v5784
  %v5786 = vrot.slane %v5471, %v5785
  %v5787 = vlaneseq
  %v5788 = vshrl.u32 %v5787, 7
  %v5789 = vsub.s32 0, %v5788
  %v5790 = vrot.slane %v5475, %v5789
  %v5791 = vlaneseq
  %v5792 = vshrl.u32 %v5791, 7
  %v5793 = vsub.s32 0, %v5792
  %v5794 = vrot.slane %v5479, %v5793
  %v5795 = vlaneseq
  %v5796 = vshrl.u32 %v5795, 7
  %v5797 = vsub.s32 0, %v5796
  %v5798 = vrot.slane %v5489, %v5797
  %v5799 = vlaneseq
  %v5800 = vshrl.u32 %v5799, 7
  %v5801 = vsub.s32 0, %v5800
  %v5802 = vrot.slane %v5493, %v5801
  %v5803 = vlaneseq
  %v5804 = vshrl.u32 %v5803, 7
  %v5805 = vsub.s32 0, %v5804
  %v5806 = vrot.slane %v5497, %v5805
  %v5807 = vlaneseq
  %v5808 = vshrl.u32 %v5807, 7
  %v5809 = vsub.s32 0, %v5808
  %v5810 = vrot.slane %v5501, %v5809
  %v5811 = vlaneseq
  %v5812 = vshrl.u32 %v5811, 7
  %v5813 = vsub.s32 0, %v5812
  %v5814 = vrot.slane %v5505, %v5813
  %v5815 = vmul.f32 %v5765, %v5778
  %v5816 = vmul.f32 %v5766, %v5782
  %v5817 = vmul.f32 %v5767, %v5786
  %v5818 = vmul.f32 %v5768, %v5790
  %v5819 = vmul.f32 %v5769, %v5794
  %v5820 = vmul.f32 %v5770, %v5798
  %v5821 = vmul.f32 %v5771, %v5802
  %v5822 = vmul.f32 %v5772, %v5806
  %v5823 = vmul.f32 %v5773, %v5810
  %v5824 = vmul.f32 %v5774, %v5814
  %v5825 = vlaneseq
  %v5826 = vshrl.u32 %v5825, 7
  %v5827 = vsub.s32 0, %v5826
  %v5828 = vrot.slane %v5517, %v5827
  %v5829 = vlaneseq
  %v5830 = vshrl.u32 %v5829, 7
  %v5831 = vsub.s32 0, %v5830
  %v5832 = vrot.slane %v5521, %v5831
  %v5833 = vlaneseq
  %v5834 = vshrl.u32 %v5833, 7
  %v5835 = vsub.s32 0, %v5834
  %v5836 = vrot.slane %v5525, %v5835
  %v5837 = vlaneseq
  %v5838 = vshrl.u32 %v5837, 7
  %v5839 = vsub.s32 0, %v5838
  %v5840 = vrot.slane %v5529, %v5839
  %v5841 = vlaneseq
  %v5842 = vshrl.u32 %v5841, 7
  %v5843 = vsub.s32 0, %v5842
  %v5844 = vrot.slane %v5533, %v5843
  %v5845 = vlaneseq
  %v5846 = vshrl.u32 %v5845, 7
  %v5847 = vsub.s32 0, %v5846
  %v5848 = vrot.slane %v5543, %v5847
  %v5849 = vlaneseq
  %v5850 = vshrl.u32 %v5849, 7
  %v5851 = vsub.s32 0, %v5850
  %v5852 = vrot.slane %v5547, %v5851
  %v5853 = vlaneseq
  %v5854 = vshrl.u32 %v5853, 7
  %v5855 = vsub.s32 0, %v5854
  %v5856 = vrot.slane %v5551, %v5855
  %v5857 = vlaneseq
  %v5858 = vshrl.u32 %v5857, 7
  %v5859 = vsub.s32 0, %v5858
  %v5860 = vrot.slane %v5555, %v5859
  %v5861 = vlaneseq
  %v5862 = vshrl.u32 %v5861, 7
  %v5863 = vsub.s32 0, %v5862
  %v5864 = vrot.slane %v5559, %v5863
  %v5865 = vadd.f32 %v5815, %v5828
  %v5866 = vadd.f32 %v5816, %v5832
  %v5867 = vadd.f32 %v5817, %v5836
  %v5868 = vadd.f32 %v5818, %v5840
  %v5869 = vadd.f32 %v5819, %v5844
  %v5870 = vadd.f32 %v5820, %v5848
  %v5871 = vadd.f32 %v5821, %v5852
  %v5872 = vadd.f32 %v5822, %v5856
  %v5873 = vadd.f32 %v5823, %v5860
  %v5874 = vadd.f32 %v5824, %v5864
  %s5875 = smul.u32 4, 80
  %s5876 = smul.u32 %s5875, 3
  %s5877 = sshll.u32 %s5876, 4
  %5878 = dma.done %s556, %s5877
  %s5879 = sshll.u32 %s5876, 4
  %5880 = dma.done %s838, %s5879
  %v5881 = vld [vmem:[#allocation4] sm:$0xff]
  %v5882 = vld [vmem:[#allocation4 + $0x8] sm:$0xf]
  %v5883 = vld [vmem:[#allocation4 + $0xc] sm:$0xff]
  %v5884 = vld [vmem:[#allocation4 + $0x14] sm:$0xf]
  %v5885 = vld [vmem:[#allocation4 + $0x18] sm:$0xff]
  %v5886 = vld [vmem:[#allocation4 + $0x20] sm:$0xf]
  %v5887 = vld [vmem:[#allocation4 + $0x24] sm:$0xff]
  %v5888 = vld [vmem:[#allocation4 + $0x2c] sm:$0xf]
  %v5889 = vld [vmem:[#allocation4 + $0x30] sm:$0xff]
  %v5890 = vld [vmem:[#allocation4 + $0x38] sm:$0xf]
  %v5891 = vld [vmem:[#allocation4 + $0x3c] sm:$0xff]
  %v5892 = vld [vmem:[#allocation4 + $0x44] sm:$0xf]
  %v5893 = vld [vmem:[#allocation4 + $0x48] sm:$0xff]
  %v5894 = vld [vmem:[#allocation4 + $0x50] sm:$0xf]
  %v5895 = vld [vmem:[#allocation4 + $0x54] sm:$0xff]
  %v5896 = vld [vmem:[#allocation4 + $0x5c] sm:$0xf]
  %v5897 = vld [vmem:[#allocation4 + $0x60] sm:$0xff]
  %v5898 = vld [vmem:[#allocation4 + $0x68] sm:$0xf]
  %v5899 = vld [vmem:[#allocation4 + $0x6c] sm:$0xff]
  %v5900 = vld [vmem:[#allocation4 + $0x74] sm:$0xf]
  %v5901 = vld [vmem:[#allocation4 + $0x78] sm:$0xff]
  %v5902 = vld [vmem:[#allocation4 + $0x80] sm:$0xf]
  %v5903 = vld [vmem:[#allocation4 + $0x84] sm:$0xff]
  %v5904 = vld [vmem:[#allocation4 + $0x8c] sm:$0xf]
  %v5905 = vld [vmem:[#allocation4 + $0x90] sm:$0xff]
  %v5906 = vld [vmem:[#allocation4 + $0x98] sm:$0xf]
  %v5907 = vld [vmem:[#allocation4 + $0x9c] sm:$0xff]
  %v5908 = vld [vmem:[#allocation4 + $0xa4] sm:$0xf]
  %v5909 = vld [vmem:[#allocation4 + $0xa8] sm:$0xff]
  %v5910 = vld [vmem:[#allocation4 + $0xb0] sm:$0xf]
  %v5911 = vld [vmem:[#allocation4 + $0xb4] sm:$0xff]
  %v5912 = vld [vmem:[#allocation4 + $0xbc] sm:$0xf]
  %v5913 = vld [vmem:[#allocation4 + $0xc0] sm:$0xff]
  %v5914 = vld [vmem:[#allocation4 + $0xc8] sm:$0xf]
  %v5915 = vld [vmem:[#allocation4 + $0xcc] sm:$0xff]
  %v5916 = vld [vmem:[#allocation4 + $0xd4] sm:$0xf]
  %v5917 = vld [vmem:[#allocation4 + $0xd8] sm:$0xff]
  %v5918 = vld [vmem:[#allocation4 + $0xe0] sm:$0xf]
  %v5919 = vld [vmem:[#allocation4 + $0xe4] sm:$0xff]
  %v5920 = vld [vmem:[#allocation4 + $0xec] sm:$0xf]
  %v5921 = vld [vmem:[#allocation4 + $0xf0] sm:$0xff]
  %v5922 = vld [vmem:[#allocation4 + $0xf8] sm:$0xf]
  %v5923 = vld [vmem:[#allocation4 + $0xfc] sm:$0xff]
  %v5924 = vld [vmem:[#allocation4 + $0x104] sm:$0xf]
  %v5925 = vld [vmem:[#allocation4 + $0x108] sm:$0xff]
  %v5926 = vld [vmem:[#allocation4 + $0x110] sm:$0xf]
  %v5927 = vld [vmem:[#allocation4 + $0x114] sm:$0xff]
  %v5928 = vld [vmem:[#allocation4 + $0x11c] sm:$0xf]
  %v5929 = vld [vmem:[#allocation4 + $0x120] sm:$0xff]
  %v5930 = vld [vmem:[#allocation4 + $0x128] sm:$0xf]
  %v5931 = vld [vmem:[#allocation4 + $0x12c] sm:$0xff]
  %v5932 = vld [vmem:[#allocation4 + $0x134] sm:$0xf]
  %v5933 = vld [vmem:[#allocation4 + $0x138] sm:$0xff]
  %v5934 = vld [vmem:[#allocation4 + $0x140] sm:$0xf]
  %v5935 = vld [vmem:[#allocation4 + $0x144] sm:$0xff]
  %v5936 = vld [vmem:[#allocation4 + $0x14c] sm:$0xf]
  %v5937 = vld [vmem:[#allocation4 + $0x150] sm:$0xff]
  %v5938 = vld [vmem:[#allocation4 + $0x158] sm:$0xf]
  %v5939 = vld [vmem:[#allocation4 + $0x15c] sm:$0xff]
  %v5940 = vld [vmem:[#allocation4 + $0x164] sm:$0xf]
  %v5941 = vld [vmem:[#allocation4 + $0x168] sm:$0xff]
  %v5942 = vld [vmem:[#allocation4 + $0x170] sm:$0xf]
  %v5943 = vld [vmem:[#allocation4 + $0x174] sm:$0xff]
  %v5944 = vld [vmem:[#allocation4 + $0x17c] sm:$0xf]
  %v5945 = vld [vmem:[#allocation4 + $0x180] sm:$0xff]
  %v5946 = vld [vmem:[#allocation4 + $0x188] sm:$0xf]
  %v5947 = vld [vmem:[#allocation4 + $0x18c] sm:$0xff]
  %v5948 = vld [vmem:[#allocation4 + $0x194] sm:$0xf]
  %v5949 = vld [vmem:[#allocation4 + $0x198] sm:$0xff]
  %v5950 = vld [vmem:[#allocation4 + $0x1a0] sm:$0xf]
  %v5951 = vld [vmem:[#allocation4 + $0x1a4] sm:$0xff]
  %v5952 = vld [vmem:[#allocation4 + $0x1ac] sm:$0xf]
  %v5953 = vld [vmem:[#allocation4 + $0x1b0] sm:$0xff]
  %v5954 = vld [vmem:[#allocation4 + $0x1b8] sm:$0xf]
  %v5955 = vld [vmem:[#allocation4 + $0x1bc] sm:$0xff]
  %v5956 = vld [vmem:[#allocation4 + $0x1c4] sm:$0xf]
  %v5957 = vld [vmem:[#allocation4 + $0x1c8] sm:$0xff]
  %v5958 = vld [vmem:[#allocation4 + $0x1d0] sm:$0xf]
  %v5959 = vld [vmem:[#allocation4 + $0x1d4] sm:$0xff]
  %v5960 = vld [vmem:[#allocation4 + $0x1dc] sm:$0xf]
  %v5961 = vld [vmem:[#allocation4 + $0x1e0] sm:$0xff]
  %v5962 = vld [vmem:[#allocation4 + $0x1e8] sm:$0xf]
  %v5963 = vld [vmem:[#allocation4 + $0x1ec] sm:$0xff]
  %v5964 = vld [vmem:[#allocation4 + $0x1f4] sm:$0xf]
  %v5965 = vld [vmem:[#allocation4 + $0x1f8] sm:$0xff]
  %v5966 = vld [vmem:[#allocation4 + $0x200] sm:$0xf]
  %v5967 = vld [vmem:[#allocation4 + $0x204] sm:$0xff]
  %v5968 = vld [vmem:[#allocation4 + $0x20c] sm:$0xf]
  %v5969 = vld [vmem:[#allocation4 + $0x210] sm:$0xff]
  %v5970 = vld [vmem:[#allocation4 + $0x218] sm:$0xf]
  %v5971 = vld [vmem:[#allocation4 + $0x21c] sm:$0xff]
  %v5972 = vld [vmem:[#allocation4 + $0x224] sm:$0xf]
  %v5973 = vld [vmem:[#allocation4 + $0x228] sm:$0xff]
  %v5974 = vld [vmem:[#allocation4 + $0x230] sm:$0xf]
  %v5975 = vld [vmem:[#allocation4 + $0x234] sm:$0xff]
  %v5976 = vld [vmem:[#allocation4 + $0x23c] sm:$0xf]
  %v5977 = vld [vmem:[#allocation4 + $0x240] sm:$0xff]
  %v5978 = vld [vmem:[#allocation4 + $0x248] sm:$0xf]
  %v5979 = vld [vmem:[#allocation4 + $0x24c] sm:$0xff]
  %v5980 = vld [vmem:[#allocation4 + $0x254] sm:$0xf]
  %v5981 = vld [vmem:[#allocation4 + $0x258] sm:$0xff]
  %v5982 = vld [vmem:[#allocation4 + $0x260] sm:$0xf]
  %v5983 = vld [vmem:[#allocation4 + $0x264] sm:$0xff]
  %v5984 = vld [vmem:[#allocation4 + $0x26c] sm:$0xf]
  %v5985 = vld [vmem:[#allocation4 + $0x270] sm:$0xff]
  %v5986 = vld [vmem:[#allocation4 + $0x278] sm:$0xf]
  %v5987 = vld [vmem:[#allocation4 + $0x27c] sm:$0xff]
  %v5988 = vld [vmem:[#allocation4 + $0x284] sm:$0xf]
  %v5989 = vld [vmem:[#allocation4 + $0x288] sm:$0xff]
  %v5990 = vld [vmem:[#allocation4 + $0x290] sm:$0xf]
  %v5991 = vld [vmem:[#allocation4 + $0x294] sm:$0xff]
  %v5992 = vld [vmem:[#allocation4 + $0x29c] sm:$0xf]
  %v5993 = vld [vmem:[#allocation4 + $0x2a0] sm:$0xff]
  %v5994 = vld [vmem:[#allocation4 + $0x2a8] sm:$0xf]
  %v5995 = vld [vmem:[#allocation4 + $0x2ac] sm:$0xff]
  %v5996 = vld [vmem:[#allocation4 + $0x2b4] sm:$0xf]
  %v5997 = vld [vmem:[#allocation4 + $0x2b8] sm:$0xff]
  %v5998 = vld [vmem:[#allocation4 + $0x2c0] sm:$0xf]
  %v5999 = vld [vmem:[#allocation4 + $0x2c4] sm:$0xff]
  %v6000 = vld [vmem:[#allocation4 + $0x2cc] sm:$0xf]
  %v6001 = vld [vmem:[#allocation4 + $0x2d0] sm:$0xff]
  %v6002 = vld [vmem:[#allocation4 + $0x2d8] sm:$0xf]
  %v6003 = vld [vmem:[#allocation4 + $0x2dc] sm:$0xff]
  %v6004 = vld [vmem:[#allocation4 + $0x2e4] sm:$0xf]
  %v6005 = vld [vmem:[#allocation4 + $0x2e8] sm:$0xff]
  %v6006 = vld [vmem:[#allocation4 + $0x2f0] sm:$0xf]
  %v6007 = vld [vmem:[#allocation4 + $0x2f4] sm:$0xff]
  %v6008 = vld [vmem:[#allocation4 + $0x2fc] sm:$0xf]
  %v6009 = vld [vmem:[#allocation4 + $0x300] sm:$0xff]
  %v6010 = vld [vmem:[#allocation4 + $0x308] sm:$0xf]
  %v6011 = vld [vmem:[#allocation4 + $0x30c] sm:$0xff]
  %v6012 = vld [vmem:[#allocation4 + $0x314] sm:$0xf]
  %v6013 = vld [vmem:[#allocation4 + $0x318] sm:$0xff]
  %v6014 = vld [vmem:[#allocation4 + $0x320] sm:$0xf]
  %v6015 = vld [vmem:[#allocation4 + $0x324] sm:$0xff]
  %v6016 = vld [vmem:[#allocation4 + $0x32c] sm:$0xf]
  %v6017 = vld [vmem:[#allocation4 + $0x330] sm:$0xff]
  %v6018 = vld [vmem:[#allocation4 + $0x338] sm:$0xf]
  %v6019 = vld [vmem:[#allocation4 + $0x33c] sm:$0xff]
  %v6020 = vld [vmem:[#allocation4 + $0x344] sm:$0xf]
  %v6021 = vld [vmem:[#allocation4 + $0x348] sm:$0xff]
  %v6022 = vld [vmem:[#allocation4 + $0x350] sm:$0xf]
  %v6023 = vld [vmem:[#allocation4 + $0x354] sm:$0xff]
  %v6024 = vld [vmem:[#allocation4 + $0x35c] sm:$0xf]
  %v6025 = vld [vmem:[#allocation4 + $0x360] sm:$0xff]
  %v6026 = vld [vmem:[#allocation4 + $0x368] sm:$0xf]
  %v6027 = vld [vmem:[#allocation4 + $0x36c] sm:$0xff]
  %v6028 = vld [vmem:[#allocation4 + $0x374] sm:$0xf]
  %v6029 = vld [vmem:[#allocation4 + $0x378] sm:$0xff]
  %v6030 = vld [vmem:[#allocation4 + $0x380] sm:$0xf]
  %v6031 = vld [vmem:[#allocation4 + $0x384] sm:$0xff]
  %v6032 = vld [vmem:[#allocation4 + $0x38c] sm:$0xf]
  %v6033 = vld [vmem:[#allocation4 + $0x390] sm:$0xff]
  %v6034 = vld [vmem:[#allocation4 + $0x398] sm:$0xf]
  %v6035 = vld [vmem:[#allocation4 + $0x39c] sm:$0xff]
  %v6036 = vld [vmem:[#allocation4 + $0x3a4] sm:$0xf]
  %v6037 = vld [vmem:[#allocation4 + $0x3a8] sm:$0xff]
  %v6038 = vld [vmem:[#allocation4 + $0x3b0] sm:$0xf]
  %v6039 = vld [vmem:[#allocation4 + $0x3b4] sm:$0xff]
  %v6040 = vld [vmem:[#allocation4 + $0x3bc] sm:$0xf]
  %v6041 = vld [vmem:[#allocation5] sm:$0xff]
  %v6042 = vld [vmem:[#allocation5 + $0x8] sm:$0xf]
  %v6043 = vld [vmem:[#allocation5 + $0xc] sm:$0xff]
  %v6044 = vld [vmem:[#allocation5 + $0x14] sm:$0xf]
  %v6045 = vld [vmem:[#allocation5 + $0x18] sm:$0xff]
  %v6046 = vld [vmem:[#allocation5 + $0x20] sm:$0xf]
  %v6047 = vld [vmem:[#allocation5 + $0x24] sm:$0xff]
  %v6048 = vld [vmem:[#allocation5 + $0x2c] sm:$0xf]
  %v6049 = vld [vmem:[#allocation5 + $0x30] sm:$0xff]
  %v6050 = vld [vmem:[#allocation5 + $0x38] sm:$0xf]
  %v6051 = vld [vmem:[#allocation5 + $0x3c] sm:$0xff]
  %v6052 = vld [vmem:[#allocation5 + $0x44] sm:$0xf]
  %v6053 = vld [vmem:[#allocation5 + $0x48] sm:$0xff]
  %v6054 = vld [vmem:[#allocation5 + $0x50] sm:$0xf]
  %v6055 = vld [vmem:[#allocation5 + $0x54] sm:$0xff]
  %v6056 = vld [vmem:[#allocation5 + $0x5c] sm:$0xf]
  %v6057 = vld [vmem:[#allocation5 + $0x60] sm:$0xff]
  %v6058 = vld [vmem:[#allocation5 + $0x68] sm:$0xf]
  %v6059 = vld [vmem:[#allocation5 + $0x6c] sm:$0xff]
  %v6060 = vld [vmem:[#allocation5 + $0x74] sm:$0xf]
  %v6061 = vld [vmem:[#allocation5 + $0x78] sm:$0xff]
  %v6062 = vld [vmem:[#allocation5 + $0x80] sm:$0xf]
  %v6063 = vld [vmem:[#allocation5 + $0x84] sm:$0xff]
  %v6064 = vld [vmem:[#allocation5 + $0x8c] sm:$0xf]
  %v6065 = vld [vmem:[#allocation5 + $0x90] sm:$0xff]
  %v6066 = vld [vmem:[#allocation5 + $0x98] sm:$0xf]
  %v6067 = vld [vmem:[#allocation5 + $0x9c] sm:$0xff]
  %v6068 = vld [vmem:[#allocation5 + $0xa4] sm:$0xf]
  %v6069 = vld [vmem:[#allocation5 + $0xa8] sm:$0xff]
  %v6070 = vld [vmem:[#allocation5 + $0xb0] sm:$0xf]
  %v6071 = vld [vmem:[#allocation5 + $0xb4] sm:$0xff]
  %v6072 = vld [vmem:[#allocation5 + $0xbc] sm:$0xf]
  %v6073 = vld [vmem:[#allocation5 + $0xc0] sm:$0xff]
  %v6074 = vld [vmem:[#allocation5 + $0xc8] sm:$0xf]
  %v6075 = vld [vmem:[#allocation5 + $0xcc] sm:$0xff]
  %v6076 = vld [vmem:[#allocation5 + $0xd4] sm:$0xf]
  %v6077 = vld [vmem:[#allocation5 + $0xd8] sm:$0xff]
  %v6078 = vld [vmem:[#allocation5 + $0xe0] sm:$0xf]
  %v6079 = vld [vmem:[#allocation5 + $0xe4] sm:$0xff]
  %v6080 = vld [vmem:[#allocation5 + $0xec] sm:$0xf]
  %v6081 = vld [vmem:[#allocation5 + $0xf0] sm:$0xff]
  %v6082 = vld [vmem:[#allocation5 + $0xf8] sm:$0xf]
  %v6083 = vld [vmem:[#allocation5 + $0xfc] sm:$0xff]
  %v6084 = vld [vmem:[#allocation5 + $0x104] sm:$0xf]
  %v6085 = vld [vmem:[#allocation5 + $0x108] sm:$0xff]
  %v6086 = vld [vmem:[#allocation5 + $0x110] sm:$0xf]
  %v6087 = vld [vmem:[#allocation5 + $0x114] sm:$0xff]
  %v6088 = vld [vmem:[#allocation5 + $0x11c] sm:$0xf]
  %v6089 = vld [vmem:[#allocation5 + $0x120] sm:$0xff]
  %v6090 = vld [vmem:[#allocation5 + $0x128] sm:$0xf]
  %v6091 = vld [vmem:[#allocation5 + $0x12c] sm:$0xff]
  %v6092 = vld [vmem:[#allocation5 + $0x134] sm:$0xf]
  %v6093 = vld [vmem:[#allocation5 + $0x138] sm:$0xff]
  %v6094 = vld [vmem:[#allocation5 + $0x140] sm:$0xf]
  %v6095 = vld [vmem:[#allocation5 + $0x144] sm:$0xff]
  %v6096 = vld [vmem:[#allocation5 + $0x14c] sm:$0xf]
  %v6097 = vld [vmem:[#allocation5 + $0x150] sm:$0xff]
  %v6098 = vld [vmem:[#allocation5 + $0x158] sm:$0xf]
  %v6099 = vld [vmem:[#allocation5 + $0x15c] sm:$0xff]
  %v6100 = vld [vmem:[#allocation5 + $0x164] sm:$0xf]
  %v6101 = vld [vmem:[#allocation5 + $0x168] sm:$0xff]
  %v6102 = vld [vmem:[#allocation5 + $0x170] sm:$0xf]
  %v6103 = vld [vmem:[#allocation5 + $0x174] sm:$0xff]
  %v6104 = vld [vmem:[#allocation5 + $0x17c] sm:$0xf]
  %v6105 = vld [vmem:[#allocation5 + $0x180] sm:$0xff]
  %v6106 = vld [vmem:[#allocation5 + $0x188] sm:$0xf]
  %v6107 = vld [vmem:[#allocation5 + $0x18c] sm:$0xff]
  %v6108 = vld [vmem:[#allocation5 + $0x194] sm:$0xf]
  %v6109 = vld [vmem:[#allocation5 + $0x198] sm:$0xff]
  %v6110 = vld [vmem:[#allocation5 + $0x1a0] sm:$0xf]
  %v6111 = vld [vmem:[#allocation5 + $0x1a4] sm:$0xff]
  %v6112 = vld [vmem:[#allocation5 + $0x1ac] sm:$0xf]
  %v6113 = vld [vmem:[#allocation5 + $0x1b0] sm:$0xff]
  %v6114 = vld [vmem:[#allocation5 + $0x1b8] sm:$0xf]
  %v6115 = vld [vmem:[#allocation5 + $0x1bc] sm:$0xff]
  %v6116 = vld [vmem:[#allocation5 + $0x1c4] sm:$0xf]
  %v6117 = vld [vmem:[#allocation5 + $0x1c8] sm:$0xff]
  %v6118 = vld [vmem:[#allocation5 + $0x1d0] sm:$0xf]
  %v6119 = vld [vmem:[#allocation5 + $0x1d4] sm:$0xff]
  %v6120 = vld [vmem:[#allocation5 + $0x1dc] sm:$0xf]
  %v6121 = vld [vmem:[#allocation5 + $0x1e0] sm:$0xff]
  %v6122 = vld [vmem:[#allocation5 + $0x1e8] sm:$0xf]
  %v6123 = vld [vmem:[#allocation5 + $0x1ec] sm:$0xff]
  %v6124 = vld [vmem:[#allocation5 + $0x1f4] sm:$0xf]
  %v6125 = vld [vmem:[#allocation5 + $0x1f8] sm:$0xff]
  %v6126 = vld [vmem:[#allocation5 + $0x200] sm:$0xf]
  %v6127 = vld [vmem:[#allocation5 + $0x204] sm:$0xff]
  %v6128 = vld [vmem:[#allocation5 + $0x20c] sm:$0xf]
  %v6129 = vld [vmem:[#allocation5 + $0x210] sm:$0xff]
  %v6130 = vld [vmem:[#allocation5 + $0x218] sm:$0xf]
  %v6131 = vld [vmem:[#allocation5 + $0x21c] sm:$0xff]
  %v6132 = vld [vmem:[#allocation5 + $0x224] sm:$0xf]
  %v6133 = vld [vmem:[#allocation5 + $0x228] sm:$0xff]
  %v6134 = vld [vmem:[#allocation5 + $0x230] sm:$0xf]
  %v6135 = vld [vmem:[#allocation5 + $0x234] sm:$0xff]
  %v6136 = vld [vmem:[#allocation5 + $0x23c] sm:$0xf]
  %v6137 = vld [vmem:[#allocation5 + $0x240] sm:$0xff]
  %v6138 = vld [vmem:[#allocation5 + $0x248] sm:$0xf]
  %v6139 = vld [vmem:[#allocation5 + $0x24c] sm:$0xff]
  %v6140 = vld [vmem:[#allocation5 + $0x254] sm:$0xf]
  %v6141 = vld [vmem:[#allocation5 + $0x258] sm:$0xff]
  %v6142 = vld [vmem:[#allocation5 + $0x260] sm:$0xf]
  %v6143 = vld [vmem:[#allocation5 + $0x264] sm:$0xff]
  %v6144 = vld [vmem:[#allocation5 + $0x26c] sm:$0xf]
  %v6145 = vld [vmem:[#allocation5 + $0x270] sm:$0xff]
  %v6146 = vld [vmem:[#allocation5 + $0x278] sm:$0xf]
  %v6147 = vld [vmem:[#allocation5 + $0x27c] sm:$0xff]
  %v6148 = vld [vmem:[#allocation5 + $0x284] sm:$0xf]
  %v6149 = vld [vmem:[#allocation5 + $0x288] sm:$0xff]
  %v6150 = vld [vmem:[#allocation5 + $0x290] sm:$0xf]
  %v6151 = vld [vmem:[#allocation5 + $0x294] sm:$0xff]
  %v6152 = vld [vmem:[#allocation5 + $0x29c] sm:$0xf]
  %v6153 = vld [vmem:[#allocation5 + $0x2a0] sm:$0xff]
  %v6154 = vld [vmem:[#allocation5 + $0x2a8] sm:$0xf]
  %v6155 = vld [vmem:[#allocation5 + $0x2ac] sm:$0xff]
  %v6156 = vld [vmem:[#allocation5 + $0x2b4] sm:$0xf]
  %v6157 = vld [vmem:[#allocation5 + $0x2b8] sm:$0xff]
  %v6158 = vld [vmem:[#allocation5 + $0x2c0] sm:$0xf]
  %v6159 = vld [vmem:[#allocation5 + $0x2c4] sm:$0xff]
  %v6160 = vld [vmem:[#allocation5 + $0x2cc] sm:$0xf]
  %v6161 = vld [vmem:[#allocation5 + $0x2d0] sm:$0xff]
  %v6162 = vld [vmem:[#allocation5 + $0x2d8] sm:$0xf]
  %v6163 = vld [vmem:[#allocation5 + $0x2dc] sm:$0xff]
  %v6164 = vld [vmem:[#allocation5 + $0x2e4] sm:$0xf]
  %v6165 = vld [vmem:[#allocation5 + $0x2e8] sm:$0xff]
  %v6166 = vld [vmem:[#allocation5 + $0x2f0] sm:$0xf]
  %v6167 = vld [vmem:[#allocation5 + $0x2f4] sm:$0xff]
  %v6168 = vld [vmem:[#allocation5 + $0x2fc] sm:$0xf]
  %v6169 = vld [vmem:[#allocation5 + $0x300] sm:$0xff]
  %v6170 = vld [vmem:[#allocation5 + $0x308] sm:$0xf]
  %v6171 = vld [vmem:[#allocation5 + $0x30c] sm:$0xff]
  %v6172 = vld [vmem:[#allocation5 + $0x314] sm:$0xf]
  %v6173 = vld [vmem:[#allocation5 + $0x318] sm:$0xff]
  %v6174 = vld [vmem:[#allocation5 + $0x320] sm:$0xf]
  %v6175 = vld [vmem:[#allocation5 + $0x324] sm:$0xff]
  %v6176 = vld [vmem:[#allocation5 + $0x32c] sm:$0xf]
  %v6177 = vld [vmem:[#allocation5 + $0x330] sm:$0xff]
  %v6178 = vld [vmem:[#allocation5 + $0x338] sm:$0xf]
  %v6179 = vld [vmem:[#allocation5 + $0x33c] sm:$0xff]
  %v6180 = vld [vmem:[#allocation5 + $0x344] sm:$0xf]
  %v6181 = vld [vmem:[#allocation5 + $0x348] sm:$0xff]
  %v6182 = vld [vmem:[#allocation5 + $0x350] sm:$0xf]
  %v6183 = vld [vmem:[#allocation5 + $0x354] sm:$0xff]
  %v6184 = vld [vmem:[#allocation5 + $0x35c] sm:$0xf]
  %v6185 = vld [vmem:[#allocation5 + $0x360] sm:$0xff]
  %v6186 = vld [vmem:[#allocation5 + $0x368] sm:$0xf]
  %v6187 = vld [vmem:[#allocation5 + $0x36c] sm:$0xff]
  %v6188 = vld [vmem:[#allocation5 + $0x374] sm:$0xf]
  %v6189 = vld [vmem:[#allocation5 + $0x378] sm:$0xff]
  %v6190 = vld [vmem:[#allocation5 + $0x380] sm:$0xf]
  %v6191 = vld [vmem:[#allocation5 + $0x384] sm:$0xff]
  %v6192 = vld [vmem:[#allocation5 + $0x38c] sm:$0xf]
  %v6193 = vld [vmem:[#allocation5 + $0x390] sm:$0xff]
  %v6194 = vld [vmem:[#allocation5 + $0x398] sm:$0xf]
  %v6195 = vld [vmem:[#allocation5 + $0x39c] sm:$0xff]
  %v6196 = vld [vmem:[#allocation5 + $0x3a4] sm:$0xf]
  %v6197 = vld [vmem:[#allocation5 + $0x3a8] sm:$0xff]
  %v6198 = vld [vmem:[#allocation5 + $0x3b0] sm:$0xf]
  %v6199 = vld [vmem:[#allocation5 + $0x3b4] sm:$0xff]
  %v6200 = vld [vmem:[#allocation5 + $0x3bc] sm:$0xf]
  %v6201 = vpack.c.bf16 %v5865, %v5865
  %v6202 = vpack.c.bf16 %v5866, %v5866
  %v6203 = vpack.c.bf16 %v5867, %v5867
  %v6204 = vpack.c.bf16 %v5868, %v5868
  %v6205 = vpack.c.bf16 %v5869, %v5869
  %v6206 = vld [vmem:[%s2 + $0x2e] sm:$0x7]
  %v6208 = vlaneseq
  %v6209 = vshrl.u32 %v6208, 7
  %v6210 = vsub.s32 0, %v6209
  %v6211 = vrot.slane %v6206, %v6210
  %v6212 = vlaneseq
  %v6213 = vshrl.u32 %v6212, 7
  %v6214 = vsub.s32 1, %v6213
  %v6215 = vrot.slane %v6206, %v6214
  %v6216 = vlaneseq
  %v6217 = vshrl.u32 %v6216, 7
  %v6218 = vsub.s32 2, %v6217
  %v6219 = vrot.slane %v6206, %v6218
  %v6383 = vunpack.c.l.b16 %v5881
  %v6384 = vunpack.c.h.b16 %v5881
  %v6385 = vunpack.c.l.b16 %v5882
  %v6386 = vunpack.c.l.b16 %v5883
  %v6387 = vunpack.c.h.b16 %v5883
  %v6388 = vunpack.c.l.b16 %v5884
  %v6389 = vunpack.c.l.b16 %v5885
  %v6390 = vunpack.c.h.b16 %v5885
  %v6391 = vunpack.c.l.b16 %v5886
  %v6392 = vunpack.c.l.b16 %v5887
  %v6393 = vunpack.c.h.b16 %v5887
  %v6394 = vunpack.c.l.b16 %v5888
  %v6395 = vunpack.c.l.b16 %v5889
  %v6396 = vunpack.c.h.b16 %v5889
  %v6397 = vunpack.c.l.b16 %v5890
  %v6398 = vunpack.c.l.b16 %v5891
  %v6399 = vunpack.c.h.b16 %v5891
  %v6400 = vunpack.c.l.b16 %v5892
  %v6401 = vunpack.c.l.b16 %v5893
  %v6402 = vunpack.c.h.b16 %v5893
  %v6403 = vunpack.c.l.b16 %v5894
  %v6404 = vunpack.c.l.b16 %v5895
  %v6405 = vunpack.c.h.b16 %v5895
  %v6406 = vunpack.c.l.b16 %v5896
  %v6407 = vunpack.c.l.b16 %v5897
  %v6408 = vunpack.c.h.b16 %v5897
  %v6409 = vunpack.c.l.b16 %v5898
  %v6410 = vunpack.c.l.b16 %v5899
  %v6411 = vunpack.c.h.b16 %v5899
  %v6412 = vunpack.c.l.b16 %v5900
  %v6413 = vunpack.c.l.b16 %v5901
  %v6414 = vunpack.c.h.b16 %v5901
  %v6415 = vunpack.c.l.b16 %v5902
  %v6416 = vunpack.c.l.b16 %v5903
  %v6417 = vunpack.c.h.b16 %v5903
  %v6418 = vunpack.c.l.b16 %v5904
  %v6419 = vunpack.c.l.b16 %v5905
  %v6420 = vunpack.c.h.b16 %v5905
  %v6421 = vunpack.c.l.b16 %v5906
  %v6422 = vunpack.c.l.b16 %v5907
  %v6423 = vunpack.c.h.b16 %v5907
  %v6424 = vunpack.c.l.b16 %v5908
  %v6425 = vunpack.c.l.b16 %v5909
  %v6426 = vunpack.c.h.b16 %v5909
  %v6427 = vunpack.c.l.b16 %v5910
  %v6428 = vunpack.c.l.b16 %v5911
  %v6429 = vunpack.c.h.b16 %v5911
  %v6430 = vunpack.c.l.b16 %v5912
  %v6431 = vunpack.c.l.b16 %v5913
  %v6432 = vunpack.c.h.b16 %v5913
  %v6433 = vunpack.c.l.b16 %v5914
  %v6434 = vunpack.c.l.b16 %v5915
  %v6435 = vunpack.c.h.b16 %v5915
  %v6436 = vunpack.c.l.b16 %v5916
  %v6437 = vunpack.c.l.b16 %v5917
  %v6438 = vunpack.c.h.b16 %v5917
  %v6439 = vunpack.c.l.b16 %v5918
  %v6440 = vunpack.c.l.b16 %v5919
  %v6441 = vunpack.c.h.b16 %v5919
  %v6442 = vunpack.c.l.b16 %v5920
  %v6443 = vunpack.c.l.b16 %v5921
  %v6444 = vunpack.c.h.b16 %v5921
  %v6445 = vunpack.c.l.b16 %v5922
  %v6446 = vunpack.c.l.b16 %v5923
  %v6447 = vunpack.c.h.b16 %v5923
  %v6448 = vunpack.c.l.b16 %v5924
  %v6449 = vunpack.c.l.b16 %v5925
  %v6450 = vunpack.c.h.b16 %v5925
  %v6451 = vunpack.c.l.b16 %v5926
  %v6452 = vunpack.c.l.b16 %v5927
  %v6453 = vunpack.c.h.b16 %v5927
  %v6454 = vunpack.c.l.b16 %v5928
  %v6455 = vunpack.c.l.b16 %v5929
  %v6456 = vunpack.c.h.b16 %v5929
  %v6457 = vunpack.c.l.b16 %v5930
  %v6458 = vunpack.c.l.b16 %v5931
  %v6459 = vunpack.c.h.b16 %v5931
  %v6460 = vunpack.c.l.b16 %v5932
  %v6461 = vunpack.c.l.b16 %v5933
  %v6462 = vunpack.c.h.b16 %v5933
  %v6463 = vunpack.c.l.b16 %v5934
  %v6464 = vunpack.c.l.b16 %v5935
  %v6465 = vunpack.c.h.b16 %v5935
  %v6466 = vunpack.c.l.b16 %v5936
  %v6467 = vunpack.c.l.b16 %v5937
  %v6468 = vunpack.c.h.b16 %v5937
  %v6469 = vunpack.c.l.b16 %v5938
  %v6470 = vunpack.c.l.b16 %v5939
  %v6471 = vunpack.c.h.b16 %v5939
  %v6472 = vunpack.c.l.b16 %v5940
  %v6473 = vunpack.c.l.b16 %v5941
  %v6474 = vunpack.c.h.b16 %v5941
  %v6475 = vunpack.c.l.b16 %v5942
  %v6476 = vunpack.c.l.b16 %v5943
  %v6477 = vunpack.c.h.b16 %v5943
  %v6478 = vunpack.c.l.b16 %v5944
  %v6479 = vunpack.c.l.b16 %v5945
  %v6480 = vunpack.c.h.b16 %v5945
  %v6481 = vunpack.c.l.b16 %v5946
  %v6482 = vunpack.c.l.b16 %v5947
  %v6483 = vunpack.c.h.b16 %v5947
  %v6484 = vunpack.c.l.b16 %v5948
  %v6485 = vunpack.c.l.b16 %v5949
  %v6486 = vunpack.c.h.b16 %v5949
  %v6487 = vunpack.c.l.b16 %v5950
  %v6488 = vunpack.c.l.b16 %v5951
  %v6489 = vunpack.c.h.b16 %v5951
  %v6490 = vunpack.c.l.b16 %v5952
  %v6491 = vunpack.c.l.b16 %v5953
  %v6492 = vunpack.c.h.b16 %v5953
  %v6493 = vunpack.c.l.b16 %v5954
  %v6494 = vunpack.c.l.b16 %v5955
  %v6495 = vunpack.c.h.b16 %v5955
  %v6496 = vunpack.c.l.b16 %v5956
  %v6497 = vunpack.c.l.b16 %v5957
  %v6498 = vunpack.c.h.b16 %v5957
  %v6499 = vunpack.c.l.b16 %v5958
  %v6500 = vunpack.c.l.b16 %v5959
  %v6501 = vunpack.c.h.b16 %v5959
  %v6502 = vunpack.c.l.b16 %v5960
  %v6503 = vunpack.c.l.b16 %v5961
  %v6504 = vunpack.c.h.b16 %v5961
  %v6505 = vunpack.c.l.b16 %v5962
  %v6506 = vunpack.c.l.b16 %v5963
  %v6507 = vunpack.c.h.b16 %v5963
  %v6508 = vunpack.c.l.b16 %v5964
  %v6509 = vunpack.c.l.b16 %v5965
  %v6510 = vunpack.c.h.b16 %v5965
  %v6511 = vunpack.c.l.b16 %v5966
  %v6512 = vunpack.c.l.b16 %v5967
  %v6513 = vunpack.c.h.b16 %v5967
  %v6514 = vunpack.c.l.b16 %v5968
  %v6515 = vunpack.c.l.b16 %v5969
  %v6516 = vunpack.c.h.b16 %v5969
  %v6517 = vunpack.c.l.b16 %v5970
  %v6518 = vunpack.c.l.b16 %v5971
  %v6519 = vunpack.c.h.b16 %v5971
  %v6520 = vunpack.c.l.b16 %v5972
  %v6521 = vunpack.c.l.b16 %v5973
  %v6522 = vunpack.c.h.b16 %v5973
  %v6523 = vunpack.c.l.b16 %v5974
  %v6524 = vunpack.c.l.b16 %v5975
  %v6525 = vunpack.c.h.b16 %v5975
  %v6526 = vunpack.c.l.b16 %v5976
  %v6527 = vunpack.c.l.b16 %v5977
  %v6528 = vunpack.c.h.b16 %v5977
  %v6529 = vunpack.c.l.b16 %v5978
  %v6530 = vunpack.c.l.b16 %v5979
  %v6531 = vunpack.c.h.b16 %v5979
  %v6532 = vunpack.c.l.b16 %v5980
  %v6533 = vunpack.c.l.b16 %v5981
  %v6534 = vunpack.c.h.b16 %v5981
  %v6535 = vunpack.c.l.b16 %v5982
  %v6536 = vunpack.c.l.b16 %v5983
  %v6537 = vunpack.c.h.b16 %v5983
  %v6538 = vunpack.c.l.b16 %v5984
  %v6539 = vunpack.c.l.b16 %v5985
  %v6540 = vunpack.c.h.b16 %v5985
  %v6541 = vunpack.c.l.b16 %v5986
  %v6542 = vunpack.c.l.b16 %v5987
  %v6543 = vunpack.c.h.b16 %v5987
  %v6544 = vunpack.c.l.b16 %v5988
  %v6545 = vunpack.c.l.b16 %v5989
  %v6546 = vunpack.c.h.b16 %v5989
  %v6547 = vunpack.c.l.b16 %v5990
  %v6548 = vunpack.c.l.b16 %v5991
  %v6549 = vunpack.c.h.b16 %v5991
  %v6550 = vunpack.c.l.b16 %v5992
  %v6551 = vunpack.c.l.b16 %v5993
  %v6552 = vunpack.c.h.b16 %v5993
  %v6553 = vunpack.c.l.b16 %v5994
  %v6554 = vunpack.c.l.b16 %v5995
  %v6555 = vunpack.c.h.b16 %v5995
  %v6556 = vunpack.c.l.b16 %v5996
  %v6557 = vunpack.c.l.b16 %v5997
  %v6558 = vunpack.c.h.b16 %v5997
  %v6559 = vunpack.c.l.b16 %v5998
  %v6560 = vunpack.c.l.b16 %v5999
  %v6561 = vunpack.c.h.b16 %v5999
  %v6562 = vunpack.c.l.b16 %v6000
  %v6563 = vunpack.c.l.b16 %v6001
  %v6564 = vunpack.c.h.b16 %v6001
  %v6565 = vunpack.c.l.b16 %v6002
  %v6566 = vunpack.c.l.b16 %v6003
  %v6567 = vunpack.c.h.b16 %v6003
  %v6568 = vunpack.c.l.b16 %v6004
  %v6569 = vunpack.c.l.b16 %v6005
  %v6570 = vunpack.c.h.b16 %v6005
  %v6571 = vunpack.c.l.b16 %v6006
  %v6572 = vunpack.c.l.b16 %v6007
  %v6573 = vunpack.c.h.b16 %v6007
  %v6574 = vunpack.c.l.b16 %v6008
  %v6575 = vunpack.c.l.b16 %v6009
  %v6576 = vunpack.c.h.b16 %v6009
  %v6577 = vunpack.c.l.b16 %v6010
  %v6578 = vunpack.c.l.b16 %v6011
  %v6579 = vunpack.c.h.b16 %v6011
  %v6580 = vunpack.c.l.b16 %v6012
  %v6581 = vunpack.c.l.b16 %v6013
  %v6582 = vunpack.c.h.b16 %v6013
  %v6583 = vunpack.c.l.b16 %v6014
  %v6584 = vunpack.c.l.b16 %v6015
  %v6585 = vunpack.c.h.b16 %v6015
  %v6586 = vunpack.c.l.b16 %v6016
  %v6587 = vunpack.c.l.b16 %v6017
  %v6588 = vunpack.c.h.b16 %v6017
  %v6589 = vunpack.c.l.b16 %v6018
  %v6590 = vunpack.c.l.b16 %v6019
  %v6591 = vunpack.c.h.b16 %v6019
  %v6592 = vunpack.c.l.b16 %v6020
  %v6593 = vunpack.c.l.b16 %v6021
  %v6594 = vunpack.c.h.b16 %v6021
  %v6595 = vunpack.c.l.b16 %v6022
  %v6596 = vunpack.c.l.b16 %v6023
  %v6597 = vunpack.c.h.b16 %v6023
  %v6598 = vunpack.c.l.b16 %v6024
  %v6599 = vunpack.c.l.b16 %v6025
  %v6600 = vunpack.c.h.b16 %v6025
  %v6601 = vunpack.c.l.b16 %v6026
  %v6602 = vunpack.c.l.b16 %v6027
  %v6603 = vunpack.c.h.b16 %v6027
  %v6604 = vunpack.c.l.b16 %v6028
  %v6605 = vunpack.c.l.b16 %v6029
  %v6606 = vunpack.c.h.b16 %v6029
  %v6607 = vunpack.c.l.b16 %v6030
  %v6608 = vunpack.c.l.b16 %v6031
  %v6609 = vunpack.c.h.b16 %v6031
  %v6610 = vunpack.c.l.b16 %v6032
  %v6611 = vunpack.c.l.b16 %v6033
  %v6612 = vunpack.c.h.b16 %v6033
  %v6613 = vunpack.c.l.b16 %v6034
  %v6614 = vunpack.c.l.b16 %v6035
  %v6615 = vunpack.c.h.b16 %v6035
  %v6616 = vunpack.c.l.b16 %v6036
  %v6617 = vunpack.c.l.b16 %v6037
  %v6618 = vunpack.c.h.b16 %v6037
  %v6619 = vunpack.c.l.b16 %v6038
  %v6620 = vunpack.c.l.b16 %v6039
  %v6621 = vunpack.c.h.b16 %v6039
  %v6622 = vunpack.c.l.b16 %v6040
  %v6623 = vpack.c.b16 %v6386, %v6383
  %v6624 = vpack.c.b16 %v6387, %v6384
  %v6625 = vpack.c.b16 %v6388, %v6385
  %v6626 = vpack.c.b16 %v6392, %v6389
  %v6627 = vpack.c.b16 %v6393, %v6390
  %v6628 = vpack.c.b16 %v6394, %v6391
  %v6629 = vpack.c.b16 %v6398, %v6395
  %v6630 = vpack.c.b16 %v6399, %v6396
  %v6631 = vpack.c.b16 %v6400, %v6397
  %v6632 = vpack.c.b16 %v6404, %v6401
  %v6633 = vpack.c.b16 %v6405, %v6402
  %v6634 = vpack.c.b16 %v6406, %v6403
  %v6635 = vpack.c.b16 %v6410, %v6407
  %v6636 = vpack.c.b16 %v6411, %v6408
  %v6637 = vpack.c.b16 %v6412, %v6409
  %v6638 = vpack.c.b16 %v6416, %v6413
  %v6639 = vpack.c.b16 %v6417, %v6414
  %v6640 = vpack.c.b16 %v6418, %v6415
  %v6641 = vpack.c.b16 %v6422, %v6419
  %v6642 = vpack.c.b16 %v6423, %v6420
  %v6643 = vpack.c.b16 %v6424, %v6421
  %v6644 = vpack.c.b16 %v6428, %v6425
  %v6645 = vpack.c.b16 %v6429, %v6426
  %v6646 = vpack.c.b16 %v6430, %v6427
  %v6647 = vpack.c.b16 %v6434, %v6431
  %v6648 = vpack.c.b16 %v6435, %v6432
  %v6649 = vpack.c.b16 %v6436, %v6433
  %v6650 = vpack.c.b16 %v6440, %v6437
  %v6651 = vpack.c.b16 %v6441, %v6438
  %v6652 = vpack.c.b16 %v6442, %v6439
  %v6653 = vpack.c.b16 %v6446, %v6443
  %v6654 = vpack.c.b16 %v6447, %v6444
  %v6655 = vpack.c.b16 %v6448, %v6445
  %v6656 = vpack.c.b16 %v6452, %v6449
  %v6657 = vpack.c.b16 %v6453, %v6450
  %v6658 = vpack.c.b16 %v6454, %v6451
  %v6659 = vpack.c.b16 %v6458, %v6455
  %v6660 = vpack.c.b16 %v6459, %v6456
  %v6661 = vpack.c.b16 %v6460, %v6457
  %v6662 = vpack.c.b16 %v6464, %v6461
  %v6663 = vpack.c.b16 %v6465, %v6462
  %v6664 = vpack.c.b16 %v6466, %v6463
  %v6665 = vpack.c.b16 %v6470, %v6467
  %v6666 = vpack.c.b16 %v6471, %v6468
  %v6667 = vpack.c.b16 %v6472, %v6469
  %v6668 = vpack.c.b16 %v6476, %v6473
  %v6669 = vpack.c.b16 %v6477, %v6474
  %v6670 = vpack.c.b16 %v6478, %v6475
  %v6671 = vpack.c.b16 %v6482, %v6479
  %v6672 = vpack.c.b16 %v6483, %v6480
  %v6673 = vpack.c.b16 %v6484, %v6481
  %v6674 = vpack.c.b16 %v6488, %v6485
  %v6675 = vpack.c.b16 %v6489, %v6486
  %v6676 = vpack.c.b16 %v6490, %v6487
  %v6677 = vpack.c.b16 %v6494, %v6491
  %v6678 = vpack.c.b16 %v6495, %v6492
  %v6679 = vpack.c.b16 %v6496, %v6493
  %v6680 = vpack.c.b16 %v6500, %v6497
  %v6681 = vpack.c.b16 %v6501, %v6498
  %v6682 = vpack.c.b16 %v6502, %v6499
  %v6683 = vpack.c.b16 %v6506, %v6503
  %v6684 = vpack.c.b16 %v6507, %v6504
  %v6685 = vpack.c.b16 %v6508, %v6505
  %v6686 = vpack.c.b16 %v6512, %v6509
  %v6687 = vpack.c.b16 %v6513, %v6510
  %v6688 = vpack.c.b16 %v6514, %v6511
  %v6689 = vpack.c.b16 %v6518, %v6515
  %v6690 = vpack.c.b16 %v6519, %v6516
  %v6691 = vpack.c.b16 %v6520, %v6517
  %v6692 = vpack.c.b16 %v6524, %v6521
  %v6693 = vpack.c.b16 %v6525, %v6522
  %v6694 = vpack.c.b16 %v6526, %v6523
  %v6695 = vpack.c.b16 %v6530, %v6527
  %v6696 = vpack.c.b16 %v6531, %v6528
  %v6697 = vpack.c.b16 %v6532, %v6529
  %v6698 = vpack.c.b16 %v6536, %v6533
  %v6699 = vpack.c.b16 %v6537, %v6534
  %v6700 = vpack.c.b16 %v6538, %v6535
  %v6701 = vpack.c.b16 %v6542, %v6539
  %v6702 = vpack.c.b16 %v6543, %v6540
  %v6703 = vpack.c.b16 %v6544, %v6541
  %v6704 = vpack.c.b16 %v6548, %v6545
  %v6705 = vpack.c.b16 %v6549, %v6546
  %v6706 = vpack.c.b16 %v6550, %v6547
  %v6707 = vpack.c.b16 %v6554, %v6551
  %v6708 = vpack.c.b16 %v6555, %v6552
  %v6709 = vpack.c.b16 %v6556, %v6553
  %v6710 = vpack.c.b16 %v6560, %v6557
  %v6711 = vpack.c.b16 %v6561, %v6558
  %v6712 = vpack.c.b16 %v6562, %v6559
  %v6713 = vpack.c.b16 %v6566, %v6563
  %v6714 = vpack.c.b16 %v6567, %v6564
  %v6715 = vpack.c.b16 %v6568, %v6565
  %v6716 = vpack.c.b16 %v6572, %v6569
  %v6717 = vpack.c.b16 %v6573, %v6570
  %v6718 = vpack.c.b16 %v6574, %v6571
  %v6719 = vpack.c.b16 %v6578, %v6575
  %v6720 = vpack.c.b16 %v6579, %v6576
  %v6721 = vpack.c.b16 %v6580, %v6577
  %v6722 = vpack.c.b16 %v6584, %v6581
  %v6723 = vpack.c.b16 %v6585, %v6582
  %v6724 = vpack.c.b16 %v6586, %v6583
  %v6725 = vpack.c.b16 %v6590, %v6587
  %v6726 = vpack.c.b16 %v6591, %v6588
  %v6727 = vpack.c.b16 %v6592, %v6589
  %v6728 = vpack.c.b16 %v6596, %v6593
  %v6729 = vpack.c.b16 %v6597, %v6594
  %v6730 = vpack.c.b16 %v6598, %v6595
  %v6731 = vpack.c.b16 %v6602, %v6599
  %v6732 = vpack.c.b16 %v6603, %v6600
  %v6733 = vpack.c.b16 %v6604, %v6601
  %v6734 = vpack.c.b16 %v6608, %v6605
  %v6735 = vpack.c.b16 %v6609, %v6606
  %v6736 = vpack.c.b16 %v6610, %v6607
  %v6737 = vpack.c.b16 %v6614, %v6611
  %v6738 = vpack.c.b16 %v6615, %v6612
  %v6739 = vpack.c.b16 %v6616, %v6613
  %v6740 = vpack.c.b16 %v6620, %v6617
  %v6741 = vpack.c.b16 %v6621, %v6618
  %v6742 = vpack.c.b16 %v6622, %v6619
  %6863 = vmatprep.subr.bf16.mxu0 %v6645
  %6864 = vmatpush1.bf16.msra.mxu0 %v6644
  %6865 = vmatprep.subr.bf16.mxu0 %v6642
  %6866 = vmatpush1.bf16.msra.mxu0 %v6641
  %6867 = vmatprep.subr.bf16.mxu0 %v6639
  %6868 = vmatpush1.bf16.msra.mxu0 %v6638
  %6869 = vmatprep.subr.bf16.mxu0 %v6636
  %6870 = vmatpush1.bf16.msra.mxu0 %v6635
  %6871 = vmatprep.subr.bf16.mxu0 %v6633
  %6872 = vmatpush1.bf16.msra.mxu0 %v6632
  %6873 = vmatprep.subr.bf16.mxu0 %v6630
  %6874 = vmatpush1.bf16.msra.mxu0 %v6629
  %6875 = vmatprep.subr.bf16.mxu0 %v6627
  %6876 = vmatpush1.bf16.msra.mxu0 %v6626
  %6877 = vmatprep.subr.bf16.mxu0 %v6624
  %6878 = vmatpush1.bf16.msra.mxu0 %v6623
  %6879 = vmatprep.subr.bf16.mxu0 %v6669
  %6880 = vmatpush2.bf16.msra.mxu0 %v6668
  %6881 = vmatprep.subr.bf16.mxu0 %v6666
  %6882 = vmatpush2.bf16.msra.mxu0 %v6665
  %6883 = vmatprep.subr.bf16.mxu0 %v6663
  %6884 = vmatpush2.bf16.msra.mxu0 %v6662
  %6885 = vmatprep.subr.bf16.mxu0 %v6660
  %6886 = vmatpush2.bf16.msra.mxu0 %v6659
  %6887 = vmatprep.subr.bf16.mxu0 %v6657
  %6888 = vmatpush2.bf16.msra.mxu0 %v6656
  %6889 = vmatprep.subr.bf16.mxu0 %v6654
  %6890 = vmatpush2.bf16.msra.mxu0 %v6653
  %6891 = vmatprep.subr.bf16.mxu0 %v6651
  %6892 = vmatpush2.bf16.msra.mxu0 %v6650
  %6893 = vmatprep.subr.bf16.mxu0 %v6648
  %6894 = vmatpush2.bf16.msra.mxu0 %v6647
  %6895 = vmatprep.mubr.bf16.mxu0 %v6202
  %6896 = vmatmul.mubr.bf16.gmra.mxu0 %v6201
  %v6897 = vpop.f32.mrf.mxu0
  %v6898 = vadd.f32 %v6211, %v6897
  %v6899 = vpop.f32.mrf.mxu0
  %v6900 = vadd.f32 %v6215, %v6899
  %v6901 = vpop.f32.mrf.mxu0
  %v6902 = vpop.f32.mrf.mxu0
  %6903 = vdwg.mxu0
  %6904 = vmatprep.subr.bf16.mxu0 %v6693
  %6905 = vmatpush1.bf16.msra.mxu0 %v6692
  %6906 = vmatprep.subr.bf16.mxu0 %v6690
  %6907 = vmatpush1.bf16.msra.mxu0 %v6689
  %6908 = vmatprep.subr.bf16.mxu0 %v6687
  %6909 = vmatpush1.bf16.msra.mxu0 %v6686
  %6910 = vmatprep.subr.bf16.mxu0 %v6684
  %6911 = vmatpush1.bf16.msra.mxu0 %v6683
  %6912 = vmatprep.subr.bf16.mxu0 %v6681
  %6913 = vmatpush1.bf16.msra.mxu0 %v6680
  %6914 = vmatprep.subr.bf16.mxu0 %v6678
  %6915 = vmatpush1.bf16.msra.mxu0 %v6677
  %6916 = vmatprep.subr.bf16.mxu0 %v6675
  %6917 = vmatpush1.bf16.msra.mxu0 %v6674
  %6918 = vmatprep.subr.bf16.mxu0 %v6672
  %6919 = vmatpush1.bf16.msra.mxu0 %v6671
  %6920 = vmatprep.subr.bf16.mxu0 %v6717
  %6921 = vmatpush2.bf16.msra.mxu0 %v6716
  %6922 = vmatprep.subr.bf16.mxu0 %v6714
  %6923 = vmatpush2.bf16.msra.mxu0 %v6713
  %6924 = vmatprep.subr.bf16.mxu0 %v6711
  %6925 = vmatpush2.bf16.msra.mxu0 %v6710
  %6926 = vmatprep.subr.bf16.mxu0 %v6708
  %6927 = vmatpush2.bf16.msra.mxu0 %v6707
  %6928 = vmatprep.subr.bf16.mxu0 %v6705
  %6929 = vmatpush2.bf16.msra.mxu0 %v6704
  %6930 = vmatprep.subr.bf16.mxu0 %v6702
  %6931 = vmatpush2.bf16.msra.mxu0 %v6701
  %6932 = vmatprep.subr.bf16.mxu0 %v6699
  %6933 = vmatpush2.bf16.msra.mxu0 %v6698
  %6934 = vmatprep.subr.bf16.mxu0 %v6696
  %6935 = vmatpush2.bf16.msra.mxu0 %v6695
  %6936 = vmatprep.mubr.bf16.mxu0 %v6204
  %6937 = vmatmul.mubr.bf16.gmra.mxu0 %v6203
  %v6938 = vpop.f32.mrf.mxu0
  %v6939 = vadd.f32 %v6898, %v6938
  %v6940 = vpop.f32.mrf.mxu0
  %v6941 = vadd.f32 %v6900, %v6940
  %v6942 = vpop.f32.mrf.mxu0
  %v6943 = vpop.f32.mrf.mxu0
  %6944 = vdwg.mxu0
  %6945 = vmatprep.subr.bf16.mxu0 %v6741
  %6946 = vmatpush1.bf16.msra.mxu0 %v6740
  %6947 = vmatprep.subr.bf16.mxu0 %v6738
  %6948 = vmatpush1.bf16.msra.mxu0 %v6737
  %6949 = vmatprep.subr.bf16.mxu0 %v6735
  %6950 = vmatpush1.bf16.msra.mxu0 %v6734
  %6951 = vmatprep.subr.bf16.mxu0 %v6732
  %6952 = vmatpush1.bf16.msra.mxu0 %v6731
  %6953 = vmatprep.subr.bf16.mxu0 %v6729
  %6954 = vmatpush1.bf16.msra.mxu0 %v6728
  %6955 = vmatprep.subr.bf16.mxu0 %v6726
  %6956 = vmatpush1.bf16.msra.mxu0 %v6725
  %6957 = vmatprep.subr.bf16.mxu0 %v6723
  %6958 = vmatpush1.bf16.msra.mxu0 %v6722
  %6959 = vmatprep.subr.bf16.mxu0 %v6720
  %6960 = vmatpush1.bf16.msra.mxu0 %v6719
  %6961 = vmatprep.subr.bf16.mxu0 0
  %6962 = vmatpush2.bf16.msra.mxu0 0
  %6963 = vmatprep.subr.bf16.mxu0 0
  %6964 = vmatpush2.bf16.msra.mxu0 0
  %6965 = vmatprep.subr.bf16.mxu0 0
  %6966 = vmatpush2.bf16.msra.mxu0 0
  %6967 = vmatprep.subr.bf16.mxu0 0
  %6968 = vmatpush2.bf16.msra.mxu0 0
  %6969 = vmatprep.subr.bf16.mxu0 0
  %6970 = vmatpush2.bf16.msra.mxu0 0
  %6971 = vmatprep.subr.bf16.mxu0 0
  %6972 = vmatpush2.bf16.msra.mxu0 0
  %6973 = vmatprep.subr.bf16.mxu0 0
  %6974 = vmatpush2.bf16.msra.mxu0 0
  %6975 = vmatprep.subr.bf16.mxu0 0
  %6976 = vmatpush2.bf16.msra.mxu0 0
  %6977 = vmatprep.mubr.bf16.mxu0 0
  %6978 = vmatmul.mubr.bf16.gmra.mxu0 %v6205
  %v6979 = vpop.f32.mrf.mxu0
  %v6980 = vadd.f32 %v6939, %v6979
  %v6981 = vpop.f32.mrf.mxu0
  %v6982 = vadd.f32 %v6941, %v6981
  %v6983 = vpop.f32.mrf.mxu0
  %v6984 = vpop.f32.mrf.mxu0
  %6985 = vdwg.mxu0
  %6986 = vmatprep.subr.bf16.mxu0 0
  %6987 = vmatpush1.bf16.msra.mxu0 %v6646
  %6988 = vmatprep.subr.bf16.mxu0 0
  %6989 = vmatpush1.bf16.msra.mxu0 %v6643
  %6990 = vmatprep.subr.bf16.mxu0 0
  %6991 = vmatpush1.bf16.msra.mxu0 %v6640
  %6992 = vmatprep.subr.bf16.mxu0 0
  %6993 = vmatpush1.bf16.msra.mxu0 %v6637
  %6994 = vmatprep.subr.bf16.mxu0 0
  %6995 = vmatpush1.bf16.msra.mxu0 %v6634
  %6996 = vmatprep.subr.bf16.mxu0 0
  %6997 = vmatpush1.bf16.msra.mxu0 %v6631
  %6998 = vmatprep.subr.bf16.mxu0 0
  %6999 = vmatpush1.bf16.msra.mxu0 %v6628
  %7000 = vmatprep.subr.bf16.mxu0 0
  %7001 = vmatpush1.bf16.msra.mxu0 %v6625
  %7002 = vmatprep.subr.bf16.mxu0 0
  %7003 = vmatpush2.bf16.msra.mxu0 %v6670
  %7004 = vmatprep.subr.bf16.mxu0 0
  %7005 = vmatpush2.bf16.msra.mxu0 %v6667
  %7006 = vmatprep.subr.bf16.mxu0 0
  %7007 = vmatpush2.bf16.msra.mxu0 %v6664
  %7008 = vmatprep.subr.bf16.mxu0 0
  %7009 = vmatpush2.bf16.msra.mxu0 %v6661
  %7010 = vmatprep.subr.bf16.mxu0 0
  %7011 = vmatpush2.bf16.msra.mxu0 %v6658
  %7012 = vmatprep.subr.bf16.mxu0 0
  %7013 = vmatpush2.bf16.msra.mxu0 %v6655
  %7014 = vmatprep.subr.bf16.mxu0 0
  %7015 = vmatpush2.bf16.msra.mxu0 %v6652
  %7016 = vmatprep.subr.bf16.mxu0 0
  %7017 = vmatpush2.bf16.msra.mxu0 %v6649
  %7018 = vmatprep.mubr.bf16.mxu0 %v6202
  %7019 = vmatmul.mubr.bf16.gmra.mxu0 %v6201
  %v7020 = vpop.f32.mrf.mxu0
  %v7021 = vadd.f32 %v6219, %v7020
  %v7022 = vpop.f32.mrf.mxu0
  %v7023 = vpop.f32.mrf.mxu0
  %v7024 = vpop.f32.mrf.mxu0
  %7025 = vdwg.mxu0
  %7026 = vmatprep.subr.bf16.mxu0 0
  %7027 = vmatpush1.bf16.msra.mxu0 %v6694
  %7028 = vmatprep.subr.bf16.mxu0 0
  %7029 = vmatpush1.bf16.msra.mxu0 %v6691
  %7030 = vmatprep.subr.bf16.mxu0 0
  %7031 = vmatpush1.bf16.msra.mxu0 %v6688
  %7032 = vmatprep.subr.bf16.mxu0 0
  %7033 = vmatpush1.bf16.msra.mxu0 %v6685
  %7034 = vmatprep.subr.bf16.mxu0 0
  %7035 = vmatpush1.bf16.msra.mxu0 %v6682
  %7036 = vmatprep.subr.bf16.mxu0 0
  %7037 = vmatpush1.bf16.msra.mxu0 %v6679
  %7038 = vmatprep.subr.bf16.mxu0 0
  %7039 = vmatpush1.bf16.msra.mxu0 %v6676
  %7040 = vmatprep.subr.bf16.mxu0 0
  %7041 = vmatpush1.bf16.msra.mxu0 %v6673
  %7042 = vmatprep.subr.bf16.mxu0 0
  %7043 = vmatpush2.bf16.msra.mxu0 %v6718
  %7044 = vmatprep.subr.bf16.mxu0 0
  %7045 = vmatpush2.bf16.msra.mxu0 %v6715
  %7046 = vmatprep.subr.bf16.mxu0 0
  %7047 = vmatpush2.bf16.msra.mxu0 %v6712
  %7048 = vmatprep.subr.bf16.mxu0 0
  %7049 = vmatpush2.bf16.msra.mxu0 %v6709
  %7050 = vmatprep.subr.bf16.mxu0 0
  %7051 = vmatpush2.bf16.msra.mxu0 %v6706
  %7052 = vmatprep.subr.bf16.mxu0 0
  %7053 = vmatpush2.bf16.msra.mxu0 %v6703
  %7054 = vmatprep.subr.bf16.mxu0 0
  %7055 = vmatpush2.bf16.msra.mxu0 %v6700
  %7056 = vmatprep.subr.bf16.mxu0 0
  %7057 = vmatpush2.bf16.msra.mxu0 %v6697
  %7058 = vmatprep.mubr.bf16.mxu0 %v6204
  %7059 = vmatmul.mubr.bf16.gmra.mxu0 %v6203
  %v7060 = vpop.f32.mrf.mxu0
  %v7061 = vadd.f32 %v7021, %v7060
  %v7062 = vpop.f32.mrf.mxu0
  %v7063 = vpop.f32.mrf.mxu0
  %v7064 = vpop.f32.mrf.mxu0
  %7065 = vdwg.mxu0
  %7066 = vmatprep.subr.bf16.mxu0 0
  %7067 = vmatpush1.bf16.msra.mxu0 %v6742
  %7068 = vmatprep.subr.bf16.mxu0 0
  %7069 = vmatpush1.bf16.msra.mxu0 %v6739
  %7070 = vmatprep.subr.bf16.mxu0 0
  %7071 = vmatpush1.bf16.msra.mxu0 %v6736
  %7072 = vmatprep.subr.bf16.mxu0 0
  %7073 = vmatpush1.bf16.msra.mxu0 %v6733
  %7074 = vmatprep.subr.bf16.mxu0 0
  %7075 = vmatpush1.bf16.msra.mxu0 %v6730
  %7076 = vmatprep.subr.bf16.mxu0 0
  %7077 = vmatpush1.bf16.msra.mxu0 %v6727
  %7078 = vmatprep.subr.bf16.mxu0 0
  %7079 = vmatpush1.bf16.msra.mxu0 %v6724
  %7080 = vmatprep.subr.bf16.mxu0 0
  %7081 = vmatpush1.bf16.msra.mxu0 %v6721
  %7082 = vmatprep.subr.bf16.mxu0 0
  %7083 = vmatpush2.bf16.msra.mxu0 0
  %7084 = vmatprep.subr.bf16.mxu0 0
  %7085 = vmatpush2.bf16.msra.mxu0 0
  %7086 = vmatprep.subr.bf16.mxu0 0
  %7087 = vmatpush2.bf16.msra.mxu0 0
  %7088 = vmatprep.subr.bf16.mxu0 0
  %7089 = vmatpush2.bf16.msra.mxu0 0
  %7090 = vmatprep.subr.bf16.mxu0 0
  %7091 = vmatpush2.bf16.msra.mxu0 0
  %7092 = vmatprep.subr.bf16.mxu0 0
  %7093 = vmatpush2.bf16.msra.mxu0 0
  %7094 = vmatprep.subr.bf16.mxu0 0
  %7095 = vmatpush2.bf16.msra.mxu0 0
  %7096 = vmatprep.subr.bf16.mxu0 0
  %7097 = vmatpush2.bf16.msra.mxu0 0
  %7098 = vmatprep.mubr.bf16.mxu0 0
  %7099 = vmatmul.mubr.bf16.gmra.mxu0 %v6205
  %v7100 = vpop.f32.mrf.mxu0
  %v7101 = vadd.f32 %v7061, %v7100
  %v7102 = vpop.f32.mrf.mxu0
  %v7103 = vpop.f32.mrf.mxu0
  %v7104 = vpop.f32.mrf.mxu0
  %7105 = vdwg.mxu0
  %v7106 = vpack.c.bf16 %v5870, %v5870
  %v7107 = vpack.c.bf16 %v5871, %v5871
  %v7108 = vpack.c.bf16 %v5872, %v5872
  %v7109 = vpack.c.bf16 %v5873, %v5873
  %v7110 = vpack.c.bf16 %v5874, %v5874
  %v7111 = vld [vmem:[%s2 + $0x64] sm:$0x7]
  %v7113 = vlaneseq
  %v7114 = vshrl.u32 %v7113, 7
  %v7115 = vsub.s32 0, %v7114
  %v7116 = vrot.slane %v7111, %v7115
  %v7117 = vlaneseq
  %v7118 = vshrl.u32 %v7117, 7
  %v7119 = vsub.s32 1, %v7118
  %v7120 = vrot.slane %v7111, %v7119
  %v7121 = vlaneseq
  %v7122 = vshrl.u32 %v7121, 7
  %v7123 = vsub.s32 2, %v7122
  %v7124 = vrot.slane %v7111, %v7123
  %v7288 = vunpack.c.l.b16 %v6041
  %v7289 = vunpack.c.h.b16 %v6041
  %v7290 = vunpack.c.l.b16 %v6042
  %v7291 = vunpack.c.l.b16 %v6043
  %v7292 = vunpack.c.h.b16 %v6043
  %v7293 = vunpack.c.l.b16 %v6044
  %v7294 = vunpack.c.l.b16 %v6045
  %v7295 = vunpack.c.h.b16 %v6045
  %v7296 = vunpack.c.l.b16 %v6046
  %v7297 = vunpack.c.l.b16 %v6047
  %v7298 = vunpack.c.h.b16 %v6047
  %v7299 = vunpack.c.l.b16 %v6048
  %v7300 = vunpack.c.l.b16 %v6049
  %v7301 = vunpack.c.h.b16 %v6049
  %v7302 = vunpack.c.l.b16 %v6050
  %v7303 = vunpack.c.l.b16 %v6051
  %v7304 = vunpack.c.h.b16 %v6051
  %v7305 = vunpack.c.l.b16 %v6052
  %v7306 = vunpack.c.l.b16 %v6053
  %v7307 = vunpack.c.h.b16 %v6053
  %v7308 = vunpack.c.l.b16 %v6054
  %v7309 = vunpack.c.l.b16 %v6055
  %v7310 = vunpack.c.h.b16 %v6055
  %v7311 = vunpack.c.l.b16 %v6056
  %v7312 = vunpack.c.l.b16 %v6057
  %v7313 = vunpack.c.h.b16 %v6057
  %v7314 = vunpack.c.l.b16 %v6058
  %v7315 = vunpack.c.l.b16 %v6059
  %v7316 = vunpack.c.h.b16 %v6059
  %v7317 = vunpack.c.l.b16 %v6060
  %v7318 = vunpack.c.l.b16 %v6061
  %v7319 = vunpack.c.h.b16 %v6061
  %v7320 = vunpack.c.l.b16 %v6062
  %v7321 = vunpack.c.l.b16 %v6063
  %v7322 = vunpack.c.h.b16 %v6063
  %v7323 = vunpack.c.l.b16 %v6064
  %v7324 = vunpack.c.l.b16 %v6065
  %v7325 = vunpack.c.h.b16 %v6065
  %v7326 = vunpack.c.l.b16 %v6066
  %v7327 = vunpack.c.l.b16 %v6067
  %v7328 = vunpack.c.h.b16 %v6067
  %v7329 = vunpack.c.l.b16 %v6068
  %v7330 = vunpack.c.l.b16 %v6069
  %v7331 = vunpack.c.h.b16 %v6069
  %v7332 = vunpack.c.l.b16 %v6070
  %v7333 = vunpack.c.l.b16 %v6071
  %v7334 = vunpack.c.h.b16 %v6071
  %v7335 = vunpack.c.l.b16 %v6072
  %v7336 = vunpack.c.l.b16 %v6073
  %v7337 = vunpack.c.h.b16 %v6073
  %v7338 = vunpack.c.l.b16 %v6074
  %v7339 = vunpack.c.l.b16 %v6075
  %v7340 = vunpack.c.h.b16 %v6075
  %v7341 = vunpack.c.l.b16 %v6076
  %v7342 = vunpack.c.l.b16 %v6077
  %v7343 = vunpack.c.h.b16 %v6077
  %v7344 = vunpack.c.l.b16 %v6078
  %v7345 = vunpack.c.l.b16 %v6079
  %v7346 = vunpack.c.h.b16 %v6079
  %v7347 = vunpack.c.l.b16 %v6080
  %v7348 = vunpack.c.l.b16 %v6081
  %v7349 = vunpack.c.h.b16 %v6081
  %v7350 = vunpack.c.l.b16 %v6082
  %v7351 = vunpack.c.l.b16 %v6083
  %v7352 = vunpack.c.h.b16 %v6083
  %v7353 = vunpack.c.l.b16 %v6084
  %v7354 = vunpack.c.l.b16 %v6085
  %v7355 = vunpack.c.h.b16 %v6085
  %v7356 = vunpack.c.l.b16 %v6086
  %v7357 = vunpack.c.l.b16 %v6087
  %v7358 = vunpack.c.h.b16 %v6087
  %v7359 = vunpack.c.l.b16 %v6088
  %v7360 = vunpack.c.l.b16 %v6089
  %v7361 = vunpack.c.h.b16 %v6089
  %v7362 = vunpack.c.l.b16 %v6090
  %v7363 = vunpack.c.l.b16 %v6091
  %v7364 = vunpack.c.h.b16 %v6091
  %v7365 = vunpack.c.l.b16 %v6092
  %v7366 = vunpack.c.l.b16 %v6093
  %v7367 = vunpack.c.h.b16 %v6093
  %v7368 = vunpack.c.l.b16 %v6094
  %v7369 = vunpack.c.l.b16 %v6095
  %v7370 = vunpack.c.h.b16 %v6095
  %v7371 = vunpack.c.l.b16 %v6096
  %v7372 = vunpack.c.l.b16 %v6097
  %v7373 = vunpack.c.h.b16 %v6097
  %v7374 = vunpack.c.l.b16 %v6098
  %v7375 = vunpack.c.l.b16 %v6099
  %v7376 = vunpack.c.h.b16 %v6099
  %v7377 = vunpack.c.l.b16 %v6100
  %v7378 = vunpack.c.l.b16 %v6101
  %v7379 = vunpack.c.h.b16 %v6101
  %v7380 = vunpack.c.l.b16 %v6102
  %v7381 = vunpack.c.l.b16 %v6103
  %v7382 = vunpack.c.h.b16 %v6103
  %v7383 = vunpack.c.l.b16 %v6104
  %v7384 = vunpack.c.l.b16 %v6105
  %v7385 = vunpack.c.h.b16 %v6105
  %v7386 = vunpack.c.l.b16 %v6106
  %v7387 = vunpack.c.l.b16 %v6107
  %v7388 = vunpack.c.h.b16 %v6107
  %v7389 = vunpack.c.l.b16 %v6108
  %v7390 = vunpack.c.l.b16 %v6109
  %v7391 = vunpack.c.h.b16 %v6109
  %v7392 = vunpack.c.l.b16 %v6110
  %v7393 = vunpack.c.l.b16 %v6111
  %v7394 = vunpack.c.h.b16 %v6111
  %v7395 = vunpack.c.l.b16 %v6112
  %v7396 = vunpack.c.l.b16 %v6113
  %v7397 = vunpack.c.h.b16 %v6113
  %v7398 = vunpack.c.l.b16 %v6114
  %v7399 = vunpack.c.l.b16 %v6115
  %v7400 = vunpack.c.h.b16 %v6115
  %v7401 = vunpack.c.l.b16 %v6116
  %v7402 = vunpack.c.l.b16 %v6117
  %v7403 = vunpack.c.h.b16 %v6117
  %v7404 = vunpack.c.l.b16 %v6118
  %v7405 = vunpack.c.l.b16 %v6119
  %v7406 = vunpack.c.h.b16 %v6119
  %v7407 = vunpack.c.l.b16 %v6120
  %v7408 = vunpack.c.l.b16 %v6121
  %v7409 = vunpack.c.h.b16 %v6121
  %v7410 = vunpack.c.l.b16 %v6122
  %v7411 = vunpack.c.l.b16 %v6123
  %v7412 = vunpack.c.h.b16 %v6123
  %v7413 = vunpack.c.l.b16 %v6124
  %v7414 = vunpack.c.l.b16 %v6125
  %v7415 = vunpack.c.h.b16 %v6125
  %v7416 = vunpack.c.l.b16 %v6126
  %v7417 = vunpack.c.l.b16 %v6127
  %v7418 = vunpack.c.h.b16 %v6127
  %v7419 = vunpack.c.l.b16 %v6128
  %v7420 = vunpack.c.l.b16 %v6129
  %v7421 = vunpack.c.h.b16 %v6129
  %v7422 = vunpack.c.l.b16 %v6130
  %v7423 = vunpack.c.l.b16 %v6131
  %v7424 = vunpack.c.h.b16 %v6131
  %v7425 = vunpack.c.l.b16 %v6132
  %v7426 = vunpack.c.l.b16 %v6133
  %v7427 = vunpack.c.h.b16 %v6133
  %v7428 = vunpack.c.l.b16 %v6134
  %v7429 = vunpack.c.l.b16 %v6135
  %v7430 = vunpack.c.h.b16 %v6135
  %v7431 = vunpack.c.l.b16 %v6136
  %v7432 = vunpack.c.l.b16 %v6137
  %v7433 = vunpack.c.h.b16 %v6137
  %v7434 = vunpack.c.l.b16 %v6138
  %v7435 = vunpack.c.l.b16 %v6139
  %v7436 = vunpack.c.h.b16 %v6139
  %v7437 = vunpack.c.l.b16 %v6140
  %v7438 = vunpack.c.l.b16 %v6141
  %v7439 = vunpack.c.h.b16 %v6141
  %v7440 = vunpack.c.l.b16 %v6142
  %v7441 = vunpack.c.l.b16 %v6143
  %v7442 = vunpack.c.h.b16 %v6143
  %v7443 = vunpack.c.l.b16 %v6144
  %v7444 = vunpack.c.l.b16 %v6145
  %v7445 = vunpack.c.h.b16 %v6145
  %v7446 = vunpack.c.l.b16 %v6146
  %v7447 = vunpack.c.l.b16 %v6147
  %v7448 = vunpack.c.h.b16 %v6147
  %v7449 = vunpack.c.l.b16 %v6148
  %v7450 = vunpack.c.l.b16 %v6149
  %v7451 = vunpack.c.h.b16 %v6149
  %v7452 = vunpack.c.l.b16 %v6150
  %v7453 = vunpack.c.l.b16 %v6151
  %v7454 = vunpack.c.h.b16 %v6151
  %v7455 = vunpack.c.l.b16 %v6152
  %v7456 = vunpack.c.l.b16 %v6153
  %v7457 = vunpack.c.h.b16 %v6153
  %v7458 = vunpack.c.l.b16 %v6154
  %v7459 = vunpack.c.l.b16 %v6155
  %v7460 = vunpack.c.h.b16 %v6155
  %v7461 = vunpack.c.l.b16 %v6156
  %v7462 = vunpack.c.l.b16 %v6157
  %v7463 = vunpack.c.h.b16 %v6157
  %v7464 = vunpack.c.l.b16 %v6158
  %v7465 = vunpack.c.l.b16 %v6159
  %v7466 = vunpack.c.h.b16 %v6159
  %v7467 = vunpack.c.l.b16 %v6160
  %v7468 = vunpack.c.l.b16 %v6161
  %v7469 = vunpack.c.h.b16 %v6161
  %v7470 = vunpack.c.l.b16 %v6162
  %v7471 = vunpack.c.l.b16 %v6163
  %v7472 = vunpack.c.h.b16 %v6163
  %v7473 = vunpack.c.l.b16 %v6164
  %v7474 = vunpack.c.l.b16 %v6165
  %v7475 = vunpack.c.h.b16 %v6165
  %v7476 = vunpack.c.l.b16 %v6166
  %v7477 = vunpack.c.l.b16 %v6167
  %v7478 = vunpack.c.h.b16 %v6167
  %v7479 = vunpack.c.l.b16 %v6168
  %v7480 = vunpack.c.l.b16 %v6169
  %v7481 = vunpack.c.h.b16 %v6169
  %v7482 = vunpack.c.l.b16 %v6170
  %v7483 = vunpack.c.l.b16 %v6171
  %v7484 = vunpack.c.h.b16 %v6171
  %v7485 = vunpack.c.l.b16 %v6172
  %v7486 = vunpack.c.l.b16 %v6173
  %v7487 = vunpack.c.h.b16 %v6173
  %v7488 = vunpack.c.l.b16 %v6174
  %v7489 = vunpack.c.l.b16 %v6175
  %v7490 = vunpack.c.h.b16 %v6175
  %v7491 = vunpack.c.l.b16 %v6176
  %v7492 = vunpack.c.l.b16 %v6177
  %v7493 = vunpack.c.h.b16 %v6177
  %v7494 = vunpack.c.l.b16 %v6178
  %v7495 = vunpack.c.l.b16 %v6179
  %v7496 = vunpack.c.h.b16 %v6179
  %v7497 = vunpack.c.l.b16 %v6180
  %v7498 = vunpack.c.l.b16 %v6181
  %v7499 = vunpack.c.h.b16 %v6181
  %v7500 = vunpack.c.l.b16 %v6182
  %v7501 = vunpack.c.l.b16 %v6183
  %v7502 = vunpack.c.h.b16 %v6183
  %v7503 = vunpack.c.l.b16 %v6184
  %v7504 = vunpack.c.l.b16 %v6185
  %v7505 = vunpack.c.h.b16 %v6185
  %v7506 = vunpack.c.l.b16 %v6186
  %v7507 = vunpack.c.l.b16 %v6187
  %v7508 = vunpack.c.h.b16 %v6187
  %v7509 = vunpack.c.l.b16 %v6188
  %v7510 = vunpack.c.l.b16 %v6189
  %v7511 = vunpack.c.h.b16 %v6189
  %v7512 = vunpack.c.l.b16 %v6190
  %v7513 = vunpack.c.l.b16 %v6191
  %v7514 = vunpack.c.h.b16 %v6191
  %v7515 = vunpack.c.l.b16 %v6192
  %v7516 = vunpack.c.l.b16 %v6193
  %v7517 = vunpack.c.h.b16 %v6193
  %v7518 = vunpack.c.l.b16 %v6194
  %v7519 = vunpack.c.l.b16 %v6195
  %v7520 = vunpack.c.h.b16 %v6195
  %v7521 = vunpack.c.l.b16 %v6196
  %v7522 = vunpack.c.l.b16 %v6197
  %v7523 = vunpack.c.h.b16 %v6197
  %v7524 = vunpack.c.l.b16 %v6198
  %v7525 = vunpack.c.l.b16 %v6199
  %v7526 = vunpack.c.h.b16 %v6199
  %v7527 = vunpack.c.l.b16 %v6200
  %v7528 = vpack.c.b16 %v7291, %v7288
  %v7529 = vpack.c.b16 %v7292, %v7289
  %v7530 = vpack.c.b16 %v7293, %v7290
  %v7531 = vpack.c.b16 %v7297, %v7294
  %v7532 = vpack.c.b16 %v7298, %v7295
  %v7533 = vpack.c.b16 %v7299, %v7296
  %v7534 = vpack.c.b16 %v7303, %v7300
  %v7535 = vpack.c.b16 %v7304, %v7301
  %v7536 = vpack.c.b16 %v7305, %v7302
  %v7537 = vpack.c.b16 %v7309, %v7306
  %v7538 = vpack.c.b16 %v7310, %v7307
  %v7539 = vpack.c.b16 %v7311, %v7308
  %v7540 = vpack.c.b16 %v7315, %v7312
  %v7541 = vpack.c.b16 %v7316, %v7313
  %v7542 = vpack.c.b16 %v7317, %v7314
  %v7543 = vpack.c.b16 %v7321, %v7318
  %v7544 = vpack.c.b16 %v7322, %v7319
  %v7545 = vpack.c.b16 %v7323, %v7320
  %v7546 = vpack.c.b16 %v7327, %v7324
  %v7547 = vpack.c.b16 %v7328, %v7325
  %v7548 = vpack.c.b16 %v7329, %v7326
  %v7549 = vpack.c.b16 %v7333, %v7330
  %v7550 = vpack.c.b16 %v7334, %v7331
  %v7551 = vpack.c.b16 %v7335, %v7332
  %v7552 = vpack.c.b16 %v7339, %v7336
  %v7553 = vpack.c.b16 %v7340, %v7337
  %v7554 = vpack.c.b16 %v7341, %v7338
  %v7555 = vpack.c.b16 %v7345, %v7342
  %v7556 = vpack.c.b16 %v7346, %v7343
  %v7557 = vpack.c.b16 %v7347, %v7344
  %v7558 = vpack.c.b16 %v7351, %v7348
  %v7559 = vpack.c.b16 %v7352, %v7349
  %v7560 = vpack.c.b16 %v7353, %v7350
  %v7561 = vpack.c.b16 %v7357, %v7354
  %v7562 = vpack.c.b16 %v7358, %v7355
  %v7563 = vpack.c.b16 %v7359, %v7356
  %v7564 = vpack.c.b16 %v7363, %v7360
  %v7565 = vpack.c.b16 %v7364, %v7361
  %v7566 = vpack.c.b16 %v7365, %v7362
  %v7567 = vpack.c.b16 %v7369, %v7366
  %v7568 = vpack.c.b16 %v7370, %v7367
  %v7569 = vpack.c.b16 %v7371, %v7368
  %v7570 = vpack.c.b16 %v7375, %v7372
  %v7571 = vpack.c.b16 %v7376, %v7373
  %v7572 = vpack.c.b16 %v7377, %v7374
  %v7573 = vpack.c.b16 %v7381, %v7378
  %v7574 = vpack.c.b16 %v7382, %v7379
  %v7575 = vpack.c.b16 %v7383, %v7380
  %v7576 = vpack.c.b16 %v7387, %v7384
  %v7577 = vpack.c.b16 %v7388, %v7385
  %v7578 = vpack.c.b16 %v7389, %v7386
  %v7579 = vpack.c.b16 %v7393, %v7390
  %v7580 = vpack.c.b16 %v7394, %v7391
  %v7581 = vpack.c.b16 %v7395, %v7392
  %v7582 = vpack.c.b16 %v7399, %v7396
  %v7583 = vpack.c.b16 %v7400, %v7397
  %v7584 = vpack.c.b16 %v7401, %v7398
  %v7585 = vpack.c.b16 %v7405, %v7402
  %v7586 = vpack.c.b16 %v7406, %v7403
  %v7587 = vpack.c.b16 %v7407, %v7404
  %v7588 = vpack.c.b16 %v7411, %v7408
  %v7589 = vpack.c.b16 %v7412, %v7409
  %v7590 = vpack.c.b16 %v7413, %v7410
  %v7591 = vpack.c.b16 %v7417, %v7414
  %v7592 = vpack.c.b16 %v7418, %v7415
  %v7593 = vpack.c.b16 %v7419, %v7416
  %v7594 = vpack.c.b16 %v7423, %v7420
  %v7595 = vpack.c.b16 %v7424, %v7421
  %v7596 = vpack.c.b16 %v7425, %v7422
  %v7597 = vpack.c.b16 %v7429, %v7426
  %v7598 = vpack.c.b16 %v7430, %v7427
  %v7599 = vpack.c.b16 %v7431, %v7428
  %v7600 = vpack.c.b16 %v7435, %v7432
  %v7601 = vpack.c.b16 %v7436, %v7433
  %v7602 = vpack.c.b16 %v7437, %v7434
  %v7603 = vpack.c.b16 %v7441, %v7438
  %v7604 = vpack.c.b16 %v7442, %v7439
  %v7605 = vpack.c.b16 %v7443, %v7440
  %v7606 = vpack.c.b16 %v7447, %v7444
  %v7607 = vpack.c.b16 %v7448, %v7445
  %v7608 = vpack.c.b16 %v7449, %v7446
  %v7609 = vpack.c.b16 %v7453, %v7450
  %v7610 = vpack.c.b16 %v7454, %v7451
  %v7611 = vpack.c.b16 %v7455, %v7452
  %v7612 = vpack.c.b16 %v7459, %v7456
  %v7613 = vpack.c.b16 %v7460, %v7457
  %v7614 = vpack.c.b16 %v7461, %v7458
  %v7615 = vpack.c.b16 %v7465, %v7462
  %v7616 = vpack.c.b16 %v7466, %v7463
  %v7617 = vpack.c.b16 %v7467, %v7464
  %v7618 = vpack.c.b16 %v7471, %v7468
  %v7619 = vpack.c.b16 %v7472, %v7469
  %v7620 = vpack.c.b16 %v7473, %v7470
  %v7621 = vpack.c.b16 %v7477, %v7474
  %v7622 = vpack.c.b16 %v7478, %v7475
  %v7623 = vpack.c.b16 %v7479, %v7476
  %v7624 = vpack.c.b16 %v7483, %v7480
  %v7625 = vpack.c.b16 %v7484, %v7481
  %v7626 = vpack.c.b16 %v7485, %v7482
  %v7627 = vpack.c.b16 %v7489, %v7486
  %v7628 = vpack.c.b16 %v7490, %v7487
  %v7629 = vpack.c.b16 %v7491, %v7488
  %v7630 = vpack.c.b16 %v7495, %v7492
  %v7631 = vpack.c.b16 %v7496, %v7493
  %v7632 = vpack.c.b16 %v7497, %v7494
  %v7633 = vpack.c.b16 %v7501, %v7498
  %v7634 = vpack.c.b16 %v7502, %v7499
  %v7635 = vpack.c.b16 %v7503, %v7500
  %v7636 = vpack.c.b16 %v7507, %v7504
  %v7637 = vpack.c.b16 %v7508, %v7505
  %v7638 = vpack.c.b16 %v7509, %v7506
  %v7639 = vpack.c.b16 %v7513, %v7510
  %v7640 = vpack.c.b16 %v7514, %v7511
  %v7641 = vpack.c.b16 %v7515, %v7512
  %v7642 = vpack.c.b16 %v7519, %v7516
  %v7643 = vpack.c.b16 %v7520, %v7517
  %v7644 = vpack.c.b16 %v7521, %v7518
  %v7645 = vpack.c.b16 %v7525, %v7522
  %v7646 = vpack.c.b16 %v7526, %v7523
  %v7647 = vpack.c.b16 %v7527, %v7524
  %7768 = vmatprep.subr.bf16.mxu0 %v7550
  %7769 = vmatpush1.bf16.msra.mxu0 %v7549
  %7770 = vmatprep.subr.bf16.mxu0 %v7547
  %7771 = vmatpush1.bf16.msra.mxu0 %v7546
  %7772 = vmatprep.subr.bf16.mxu0 %v7544
  %7773 = vmatpush1.bf16.msra.mxu0 %v7543
  %7774 = vmatprep.subr.bf16.mxu0 %v7541
  %7775 = vmatpush1.bf16.msra.mxu0 %v7540
  %7776 = vmatprep.subr.bf16.mxu0 %v7538
  %7777 = vmatpush1.bf16.msra.mxu0 %v7537
  %7778 = vmatprep.subr.bf16.mxu0 %v7535
  %7779 = vmatpush1.bf16.msra.mxu0 %v7534
  %7780 = vmatprep.subr.bf16.mxu0 %v7532
  %7781 = vmatpush1.bf16.msra.mxu0 %v7531
  %7782 = vmatprep.subr.bf16.mxu0 %v7529
  %7783 = vmatpush1.bf16.msra.mxu0 %v7528
  %7784 = vmatprep.subr.bf16.mxu0 %v7574
  %7785 = vmatpush2.bf16.msra.mxu0 %v7573
  %7786 = vmatprep.subr.bf16.mxu0 %v7571
  %7787 = vmatpush2.bf16.msra.mxu0 %v7570
  %7788 = vmatprep.subr.bf16.mxu0 %v7568
  %7789 = vmatpush2.bf16.msra.mxu0 %v7567
  %7790 = vmatprep.subr.bf16.mxu0 %v7565
  %7791 = vmatpush2.bf16.msra.mxu0 %v7564
  %7792 = vmatprep.subr.bf16.mxu0 %v7562
  %7793 = vmatpush2.bf16.msra.mxu0 %v7561
  %7794 = vmatprep.subr.bf16.mxu0 %v7559
  %7795 = vmatpush2.bf16.msra.mxu0 %v7558
  %7796 = vmatprep.subr.bf16.mxu0 %v7556
  %7797 = vmatpush2.bf16.msra.mxu0 %v7555
  %7798 = vmatprep.subr.bf16.mxu0 %v7553
  %7799 = vmatpush2.bf16.msra.mxu0 %v7552
  %7800 = vmatprep.mubr.bf16.mxu0 %v7107
  %7801 = vmatmul.mubr.bf16.gmra.mxu0 %v7106
  %v7802 = vpop.f32.mrf.mxu0
  %v7803 = vadd.f32 %v7116, %v7802
  %v7804 = vpop.f32.mrf.mxu0
  %v7805 = vadd.f32 %v7120, %v7804
  %v7806 = vpop.f32.mrf.mxu0
  %v7807 = vpop.f32.mrf.mxu0
  %7808 = vdwg.mxu0
  %7809 = vmatprep.subr.bf16.mxu0 %v7598
  %7810 = vmatpush1.bf16.msra.mxu0 %v7597
  %7811 = vmatprep.subr.bf16.mxu0 %v7595
  %7812 = vmatpush1.bf16.msra.mxu0 %v7594
  %7813 = vmatprep.subr.bf16.mxu0 %v7592
  %7814 = vmatpush1.bf16.msra.mxu0 %v7591
  %7815 = vmatprep.subr.bf16.mxu0 %v7589
  %7816 = vmatpush1.bf16.msra.mxu0 %v7588
  %7817 = vmatprep.subr.bf16.mxu0 %v7586
  %7818 = vmatpush1.bf16.msra.mxu0 %v7585
  %7819 = vmatprep.subr.bf16.mxu0 %v7583
  %7820 = vmatpush1.bf16.msra.mxu0 %v7582
  %7821 = vmatprep.subr.bf16.mxu0 %v7580
  %7822 = vmatpush1.bf16.msra.mxu0 %v7579
  %7823 = vmatprep.subr.bf16.mxu0 %v7577
  %7824 = vmatpush1.bf16.msra.mxu0 %v7576
  %7825 = vmatprep.subr.bf16.mxu0 %v7622
  %7826 = vmatpush2.bf16.msra.mxu0 %v7621
  %7827 = vmatprep.subr.bf16.mxu0 %v7619
  %7828 = vmatpush2.bf16.msra.mxu0 %v7618
  %7829 = vmatprep.subr.bf16.mxu0 %v7616
  %7830 = vmatpush2.bf16.msra.mxu0 %v7615
  %7831 = vmatprep.subr.bf16.mxu0 %v7613
  %7832 = vmatpush2.bf16.msra.mxu0 %v7612
  %7833 = vmatprep.subr.bf16.mxu0 %v7610
  %7834 = vmatpush2.bf16.msra.mxu0 %v7609
  %7835 = vmatprep.subr.bf16.mxu0 %v7607
  %7836 = vmatpush2.bf16.msra.mxu0 %v7606
  %7837 = vmatprep.subr.bf16.mxu0 %v7604
  %7838 = vmatpush2.bf16.msra.mxu0 %v7603
  %7839 = vmatprep.subr.bf16.mxu0 %v7601
  %7840 = vmatpush2.bf16.msra.mxu0 %v7600
  %7841 = vmatprep.mubr.bf16.mxu0 %v7109
  %7842 = vmatmul.mubr.bf16.gmra.mxu0 %v7108
  %v7843 = vpop.f32.mrf.mxu0
  %v7844 = vadd.f32 %v7803, %v7843
  %v7845 = vpop.f32.mrf.mxu0
  %v7846 = vadd.f32 %v7805, %v7845
  %v7847 = vpop.f32.mrf.mxu0
  %v7848 = vpop.f32.mrf.mxu0
  %7849 = vdwg.mxu0
  %7850 = vmatprep.subr.bf16.mxu0 %v7646
  %7851 = vmatpush1.bf16.msra.mxu0 %v7645
  %7852 = vmatprep.subr.bf16.mxu0 %v7643
  %7853 = vmatpush1.bf16.msra.mxu0 %v7642
  %7854 = vmatprep.subr.bf16.mxu0 %v7640
  %7855 = vmatpush1.bf16.msra.mxu0 %v7639
  %7856 = vmatprep.subr.bf16.mxu0 %v7637
  %7857 = vmatpush1.bf16.msra.mxu0 %v7636
  %7858 = vmatprep.subr.bf16.mxu0 %v7634
  %7859 = vmatpush1.bf16.msra.mxu0 %v7633
  %7860 = vmatprep.subr.bf16.mxu0 %v7631
  %7861 = vmatpush1.bf16.msra.mxu0 %v7630
  %7862 = vmatprep.subr.bf16.mxu0 %v7628
  %7863 = vmatpush1.bf16.msra.mxu0 %v7627
  %7864 = vmatprep.subr.bf16.mxu0 %v7625
  %7865 = vmatpush1.bf16.msra.mxu0 %v7624
  %7866 = vmatprep.subr.bf16.mxu0 0
  %7867 = vmatpush2.bf16.msra.mxu0 0
  %7868 = vmatprep.subr.bf16.mxu0 0
  %7869 = vmatpush2.bf16.msra.mxu0 0
  %7870 = vmatprep.subr.bf16.mxu0 0
  %7871 = vmatpush2.bf16.msra.mxu0 0
  %7872 = vmatprep.subr.bf16.mxu0 0
  %7873 = vmatpush2.bf16.msra.mxu0 0
  %7874 = vmatprep.subr.bf16.mxu0 0
  %7875 = vmatpush2.bf16.msra.mxu0 0
  %7876 = vmatprep.subr.bf16.mxu0 0
  %7877 = vmatpush2.bf16.msra.mxu0 0
  %7878 = vmatprep.subr.bf16.mxu0 0
  %7879 = vmatpush2.bf16.msra.mxu0 0
  %7880 = vmatprep.subr.bf16.mxu0 0
  %7881 = vmatpush2.bf16.msra.mxu0 0
  %7882 = vmatprep.mubr.bf16.mxu0 0
  %7883 = vmatmul.mubr.bf16.gmra.mxu0 %v7110
  %v7884 = vpop.f32.mrf.mxu0
  %v7885 = vadd.f32 %v7844, %v7884
  %v7886 = vpop.f32.mrf.mxu0
  %v7887 = vadd.f32 %v7846, %v7886
  %v7888 = vpop.f32.mrf.mxu0
  %v7889 = vpop.f32.mrf.mxu0
  %7890 = vdwg.mxu0
  %7891 = vmatprep.subr.bf16.mxu0 0
  %7892 = vmatpush1.bf16.msra.mxu0 %v7551
  %7893 = vmatprep.subr.bf16.mxu0 0
  %7894 = vmatpush1.bf16.msra.mxu0 %v7548
  %7895 = vmatprep.subr.bf16.mxu0 0
  %7896 = vmatpush1.bf16.msra.mxu0 %v7545
  %7897 = vmatprep.subr.bf16.mxu0 0
  %7898 = vmatpush1.bf16.msra.mxu0 %v7542
  %7899 = vmatprep.subr.bf16.mxu0 0
  %7900 = vmatpush1.bf16.msra.mxu0 %v7539
  %7901 = vmatprep.subr.bf16.mxu0 0
  %7902 = vmatpush1.bf16.msra.mxu0 %v7536
  %7903 = vmatprep.subr.bf16.mxu0 0
  %7904 = vmatpush1.bf16.msra.mxu0 %v7533
  %7905 = vmatprep.subr.bf16.mxu0 0
  %7906 = vmatpush1.bf16.msra.mxu0 %v7530
  %7907 = vmatprep.subr.bf16.mxu0 0
  %7908 = vmatpush2.bf16.msra.mxu0 %v7575
  %7909 = vmatprep.subr.bf16.mxu0 0
  %7910 = vmatpush2.bf16.msra.mxu0 %v7572
  %7911 = vmatprep.subr.bf16.mxu0 0
  %7912 = vmatpush2.bf16.msra.mxu0 %v7569
  %7913 = vmatprep.subr.bf16.mxu0 0
  %7914 = vmatpush2.bf16.msra.mxu0 %v7566
  %7915 = vmatprep.subr.bf16.mxu0 0
  %7916 = vmatpush2.bf16.msra.mxu0 %v7563
  %7917 = vmatprep.subr.bf16.mxu0 0
  %7918 = vmatpush2.bf16.msra.mxu0 %v7560
  %7919 = vmatprep.subr.bf16.mxu0 0
  %7920 = vmatpush2.bf16.msra.mxu0 %v7557
  %7921 = vmatprep.subr.bf16.mxu0 0
  %7922 = vmatpush2.bf16.msra.mxu0 %v7554
  %7923 = vmatprep.mubr.bf16.mxu0 %v7107
  %7924 = vmatmul.mubr.bf16.gmra.mxu0 %v7106
  %v7925 = vpop.f32.mrf.mxu0
  %v7926 = vadd.f32 %v7124, %v7925
  %v7927 = vpop.f32.mrf.mxu0
  %v7928 = vpop.f32.mrf.mxu0
  %v7929 = vpop.f32.mrf.mxu0
  %7930 = vdwg.mxu0
  %7931 = vmatprep.subr.bf16.mxu0 0
  %7932 = vmatpush1.bf16.msra.mxu0 %v7599
  %7933 = vmatprep.subr.bf16.mxu0 0
  %7934 = vmatpush1.bf16.msra.mxu0 %v7596
  %7935 = vmatprep.subr.bf16.mxu0 0
  %7936 = vmatpush1.bf16.msra.mxu0 %v7593
  %7937 = vmatprep.subr.bf16.mxu0 0
  %7938 = vmatpush1.bf16.msra.mxu0 %v7590
  %7939 = vmatprep.subr.bf16.mxu0 0
  %7940 = vmatpush1.bf16.msra.mxu0 %v7587
  %7941 = vmatprep.subr.bf16.mxu0 0
  %7942 = vmatpush1.bf16.msra.mxu0 %v7584
  %7943 = vmatprep.subr.bf16.mxu0 0
  %7944 = vmatpush1.bf16.msra.mxu0 %v7581
  %7945 = vmatprep.subr.bf16.mxu0 0
  %7946 = vmatpush1.bf16.msra.mxu0 %v7578
  %7947 = vmatprep.subr.bf16.mxu0 0
  %7948 = vmatpush2.bf16.msra.mxu0 %v7623
  %7949 = vmatprep.subr.bf16.mxu0 0
  %7950 = vmatpush2.bf16.msra.mxu0 %v7620
  %7951 = vmatprep.subr.bf16.mxu0 0
  %7952 = vmatpush2.bf16.msra.mxu0 %v7617
  %7953 = vmatprep.subr.bf16.mxu0 0
  %7954 = vmatpush2.bf16.msra.mxu0 %v7614
  %7955 = vmatprep.subr.bf16.mxu0 0
  %7956 = vmatpush2.bf16.msra.mxu0 %v7611
  %7957 = vmatprep.subr.bf16.mxu0 0
  %7958 = vmatpush2.bf16.msra.mxu0 %v7608
  %7959 = vmatprep.subr.bf16.mxu0 0
  %7960 = vmatpush2.bf16.msra.mxu0 %v7605
  %7961 = vmatprep.subr.bf16.mxu0 0
  %7962 = vmatpush2.bf16.msra.mxu0 %v7602
  %7963 = vmatprep.mubr.bf16.mxu0 %v7109
  %7964 = vmatmul.mubr.bf16.gmra.mxu0 %v7108
  %v7965 = vpop.f32.mrf.mxu0
  %v7966 = vadd.f32 %v7926, %v7965
  %v7967 = vpop.f32.mrf.mxu0
  %v7968 = vpop.f32.mrf.mxu0
  %v7969 = vpop.f32.mrf.mxu0
  %7970 = vdwg.mxu0
  %7971 = vmatprep.subr.bf16.mxu0 0
  %7972 = vmatpush1.bf16.msra.mxu0 %v7647
  %7973 = vmatprep.subr.bf16.mxu0 0
  %7974 = vmatpush1.bf16.msra.mxu0 %v7644
  %7975 = vmatprep.subr.bf16.mxu0 0
  %7976 = vmatpush1.bf16.msra.mxu0 %v7641
  %7977 = vmatprep.subr.bf16.mxu0 0
  %7978 = vmatpush1.bf16.msra.mxu0 %v7638
  %7979 = vmatprep.subr.bf16.mxu0 0
  %7980 = vmatpush1.bf16.msra.mxu0 %v7635
  %7981 = vmatprep.subr.bf16.mxu0 0
  %7982 = vmatpush1.bf16.msra.mxu0 %v7632
  %7983 = vmatprep.subr.bf16.mxu0 0
  %7984 = vmatpush1.bf16.msra.mxu0 %v7629
  %7985 = vmatprep.subr.bf16.mxu0 0
  %7986 = vmatpush1.bf16.msra.mxu0 %v7626
  %7987 = vmatprep.subr.bf16.mxu0 0
  %7988 = vmatpush2.bf16.msra.mxu0 0
  %7989 = vmatprep.subr.bf16.mxu0 0
  %7990 = vmatpush2.bf16.msra.mxu0 0
  %7991 = vmatprep.subr.bf16.mxu0 0
  %7992 = vmatpush2.bf16.msra.mxu0 0
  %7993 = vmatprep.subr.bf16.mxu0 0
  %7994 = vmatpush2.bf16.msra.mxu0 0
  %7995 = vmatprep.subr.bf16.mxu0 0
  %7996 = vmatpush2.bf16.msra.mxu0 0
  %7997 = vmatprep.subr.bf16.mxu0 0
  %7998 = vmatpush2.bf16.msra.mxu0 0
  %7999 = vmatprep.subr.bf16.mxu0 0
  %8000 = vmatpush2.bf16.msra.mxu0 0
  %8001 = vmatprep.subr.bf16.mxu0 0
  %8002 = vmatpush2.bf16.msra.mxu0 0
  %8003 = vmatprep.mubr.bf16.mxu0 0
  %8004 = vmatmul.mubr.bf16.gmra.mxu0 %v7110
  %v8005 = vpop.f32.mrf.mxu0
  %v8006 = vadd.f32 %v7966, %v8005
  %v8007 = vpop.f32.mrf.mxu0
  %v8008 = vpop.f32.mrf.mxu0
  %v8009 = vpop.f32.mrf.mxu0
  %8010 = vdwg.mxu0
  %8014 = vrot.lane.b32.xlu0 %v7885, 64
  %v8015 = vpop.permute.xlu0 %8014
  %8016 = vrot.lane.b32.xlu0 %v7887, 64
  %v8017 = vpop.permute.xlu0 %8016
  %8018 = vrot.lane.b32.xlu0 %v8006, 64
  %v8019 = vpop.permute.xlu0 %8018
  %v8020 = vsel %vm1199, %v8015, %v8017
  %v8021 = vsel %vm1199, %v8017, %v8019
  %v8025 = vsel %vm1199, %v7101, %v8015
  %vm8026 = vcmp.gt.f32.partialorder %v6980, 0.0
  %vm8027 = vcmp.gt.f32.partialorder %v6982, 0.0
  %vm8028 = vcmp.gt.f32.partialorder %v8025, 0.0
  %vm8029 = vcmp.gt.f32.partialorder %v8020, 0.0
  %vm8030 = vcmp.gt.f32.partialorder %v8021, 0.0
  %v8031 = vmul.f32 %v6980, 1.442695
  %v8032 = vpow.pop %v8031
  %v8033 = vmul.f32 %v6982, 1.442695
  %v8034 = vpow.pop %v8033
  %v8035 = vmul.f32 %v8025, 1.442695
  %v8036 = vpow.pop %v8035
  %v8037 = vmul.f32 %v8020, 1.442695
  %v8038 = vpow.pop %v8037
  %v8039 = vmul.f32 %v8021, 1.442695
  %v8040 = vpow.pop %v8039
  %v8041 = vsub.f32 %v8032, 1.0
  %v8042 = vsub.f32 %v8034, 1.0
  %v8043 = vsub.f32 %v8036, 1.0
  %v8044 = vsub.f32 %v8038, 1.0
  %v8045 = vsub.f32 %v8040, 1.0
  %v8046 = vmul.f32 %v8041, 1.6732632
  %v8047 = vmul.f32 %v8042, 1.6732632
  %v8048 = vmul.f32 %v8043, 1.6732632
  %v8049 = vmul.f32 %v8044, 1.6732632
  %v8050 = vmul.f32 %v8045, 1.6732632
  %v8051 = vsel %vm8026, %v6980, %v8046
  %v8052 = vsel %vm8027, %v6982, %v8047
  %v8053 = vsel %vm8028, %v8025, %v8048
  %v8054 = vsel %vm8029, %v8020, %v8049
  %v8055 = vsel %vm8030, %v8021, %v8050
  %v8056 = vmul.f32 %v8051, 1.050701
  %v8057 = vmul.f32 %v8052, 1.050701
  %v8058 = vmul.f32 %v8053, 1.050701
  %v8059 = vmul.f32 %v8054, 1.050701
  %v8060 = vmul.f32 %v8055, 1.050701
  %v8061 = vld [vmem:[%s2 + $0x31] sm:$0x7]
  %v8062 = vld [vmem:[%s2 + $0x67] sm:$0x7]
  %v8064 = vlaneseq
  %v8065 = vshrl.u32 %v8064, 7
  %v8066 = vsub.s32 0, %v8065
  %v8067 = vrot.slane %v8061, %v8066
  %v8068 = vlaneseq
  %v8069 = vshrl.u32 %v8068, 7
  %v8070 = vsub.s32 1, %v8069
  %v8071 = vrot.slane %v8061, %v8070
  %v8072 = vlaneseq
  %v8073 = vshrl.u32 %v8072, 7
  %v8074 = vsub.s32 2, %v8073
  %v8075 = vrot.slane %v8061, %v8074
  %v8080 = vlaneseq
  %v8081 = vshrl.u32 %v8080, 7
  %v8082 = vsub.s32 0, %v8081
  %v8083 = vrot.slane %v8062, %v8082
  %v8084 = vlaneseq
  %v8085 = vshrl.u32 %v8084, 7
  %v8086 = vsub.s32 1, %v8085
  %v8087 = vrot.slane %v8062, %v8086
  %v8088 = vlaneseq
  %v8089 = vshrl.u32 %v8088, 7
  %v8090 = vsub.s32 2, %v8089
  %v8091 = vrot.slane %v8062, %v8090
  %8092 = vrot.lane.b32.xlu0 %v8083, 64
  %v8093 = vpop.permute.xlu0 %8092
  %8094 = vrot.lane.b32.xlu0 %v8087, 64
  %v8095 = vpop.permute.xlu0 %8094
  %8096 = vrot.lane.b32.xlu0 %v8091, 64
  %v8097 = vpop.permute.xlu0 %8096
  %v8098 = vsel %vm1199, %v8093, %v8095
  %v8099 = vsel %vm1199, %v8095, %v8097
  %v8103 = vsel %vm1199, %v8075, %v8093
  %v8104 = vld [vmem:[%s2 + $0x34] sm:$0x7]
  %v8105 = vld [vmem:[%s2 + $0x6a] sm:$0x7]
  %v8107 = vlaneseq
  %v8108 = vshrl.u32 %v8107, 7
  %v8109 = vsub.s32 0, %v8108
  %v8110 = vrot.slane %v8104, %v8109
  %v8111 = vlaneseq
  %v8112 = vshrl.u32 %v8111, 7
  %v8113 = vsub.s32 1, %v8112
  %v8114 = vrot.slane %v8104, %v8113
  %v8115 = vlaneseq
  %v8116 = vshrl.u32 %v8115, 7
  %v8117 = vsub.s32 2, %v8116
  %v8118 = vrot.slane %v8104, %v8117
  %v8123 = vlaneseq
  %v8124 = vshrl.u32 %v8123, 7
  %v8125 = vsub.s32 0, %v8124
  %v8126 = vrot.slane %v8105, %v8125
  %v8127 = vlaneseq
  %v8128 = vshrl.u32 %v8127, 7
  %v8129 = vsub.s32 1, %v8128
  %v8130 = vrot.slane %v8105, %v8129
  %v8131 = vlaneseq
  %v8132 = vshrl.u32 %v8131, 7
  %v8133 = vsub.s32 2, %v8132
  %v8134 = vrot.slane %v8105, %v8133
  %8135 = vrot.lane.b32.xlu0 %v8126, 64
  %v8136 = vpop.permute.xlu0 %8135
  %8137 = vrot.lane.b32.xlu0 %v8130, 64
  %v8138 = vpop.permute.xlu0 %8137
  %8139 = vrot.lane.b32.xlu0 %v8134, 64
  %v8140 = vpop.permute.xlu0 %8139
  %v8141 = vsel %vm1199, %v8136, %v8138
  %v8142 = vsel %vm1199, %v8138, %v8140
  %v8146 = vsel %vm1199, %v8118, %v8136
  %v8147 = vsel %vm1142, %v8056, 0.0
  %v8148 = vrot.slane %v8147, 4
  %v8149 = vadd.f32 %v8147, %v8148
  %v8150 = vrot.slane %v8149, 2
  %v8151 = vadd.f32 %v8149, %v8150
  %v8152 = vrot.slane %v8151, 1
  %v8153 = vadd.f32 %v8151, %v8152
  %v8154 = vsel %vm1142, %v8057, 0.0
  %v8155 = vrot.slane %v8154, 4
  %v8156 = vadd.f32 %v8154, %v8155
  %v8157 = vrot.slane %v8156, 2
  %v8158 = vadd.f32 %v8156, %v8157
  %v8159 = vrot.slane %v8158, 1
  %v8160 = vadd.f32 %v8158, %v8159
  %v8161 = vsel %vm1142, %v8058, 0.0
  %v8162 = vrot.slane %v8161, 4
  %v8163 = vadd.f32 %v8161, %v8162
  %v8164 = vrot.slane %v8163, 2
  %v8165 = vadd.f32 %v8163, %v8164
  %v8166 = vrot.slane %v8165, 1
  %v8167 = vadd.f32 %v8165, %v8166
  %v8168 = vsel %vm1142, %v8059, 0.0
  %v8169 = vrot.slane %v8168, 4
  %v8170 = vadd.f32 %v8168, %v8169
  %v8171 = vrot.slane %v8170, 2
  %v8172 = vadd.f32 %v8170, %v8171
  %v8173 = vrot.slane %v8172, 1
  %v8174 = vadd.f32 %v8172, %v8173
  %v8175 = vsel %vm1142, %v8060, 0.0
  %v8176 = vrot.slane %v8175, 4
  %v8177 = vadd.f32 %v8175, %v8176
  %v8178 = vrot.slane %v8177, 2
  %v8179 = vadd.f32 %v8177, %v8178
  %v8180 = vrot.slane %v8179, 1
  %v8181 = vadd.f32 %v8179, %v8180
  %v8182 = vmul.f32 %v8153, %v1892
  %v8183 = vmul.f32 %v8160, %v1892
  %v8184 = vmul.f32 %v8167, %v1892
  %v8185 = vmul.f32 %v8174, %v1892
  %v8186 = vmul.f32 %v8181, %v1892
  %v8187 = vsub.f32 %v8056, %v8182
  %v8188 = vsub.f32 %v8057, %v8183
  %v8189 = vsub.f32 %v8058, %v8184
  %v8190 = vsub.f32 %v8059, %v8185
  %v8191 = vsub.f32 %v8060, %v8186
  %v8192 = vmul.f32 %v8187, %v8187
  %v8193 = vmul.f32 %v8188, %v8188
  %v8194 = vmul.f32 %v8189, %v8189
  %v8195 = vmul.f32 %v8190, %v8190
  %v8196 = vmul.f32 %v8191, %v8191
  %v8197 = vsel %vm1142, %v8192, 0.0
  %v8198 = vrot.slane %v8197, 4
  %v8199 = vadd.f32 %v8197, %v8198
  %v8200 = vrot.slane %v8199, 2
  %v8201 = vadd.f32 %v8199, %v8200
  %v8202 = vrot.slane %v8201, 1
  %v8203 = vadd.f32 %v8201, %v8202
  %v8204 = vsel %vm1142, %v8193, 0.0
  %v8205 = vrot.slane %v8204, 4
  %v8206 = vadd.f32 %v8204, %v8205
  %v8207 = vrot.slane %v8206, 2
  %v8208 = vadd.f32 %v8206, %v8207
  %v8209 = vrot.slane %v8208, 1
  %v8210 = vadd.f32 %v8208, %v8209
  %v8211 = vsel %vm1142, %v8194, 0.0
  %v8212 = vrot.slane %v8211, 4
  %v8213 = vadd.f32 %v8211, %v8212
  %v8214 = vrot.slane %v8213, 2
  %v8215 = vadd.f32 %v8213, %v8214
  %v8216 = vrot.slane %v8215, 1
  %v8217 = vadd.f32 %v8215, %v8216
  %v8218 = vsel %vm1142, %v8195, 0.0
  %v8219 = vrot.slane %v8218, 4
  %v8220 = vadd.f32 %v8218, %v8219
  %v8221 = vrot.slane %v8220, 2
  %v8222 = vadd.f32 %v8220, %v8221
  %v8223 = vrot.slane %v8222, 1
  %v8224 = vadd.f32 %v8222, %v8223
  %v8225 = vsel %vm1142, %v8196, 0.0
  %v8226 = vrot.slane %v8225, 4
  %v8227 = vadd.f32 %v8225, %v8226
  %v8228 = vrot.slane %v8227, 2
  %v8229 = vadd.f32 %v8227, %v8228
  %v8230 = vrot.slane %v8229, 1
  %v8231 = vadd.f32 %v8229, %v8230
  %v8232 = vmul.f32 %v8203, %v1892
  %v8233 = vmul.f32 %v8210, %v1892
  %v8234 = vmul.f32 %v8217, %v1892
  %v8235 = vmul.f32 %v8224, %v1892
  %v8236 = vmul.f32 %v8231, %v1892
  %v8237 = vadd.f32 %v8232, 1e-05
  %v8238 = vadd.f32 %v8233, 1e-05
  %v8239 = vadd.f32 %v8234, 1e-05
  %v8240 = vadd.f32 %v8235, 1e-05
  %v8241 = vadd.f32 %v8236, 1e-05
  %v8242 = vrsqrt.pop %v8237
  %v8243 = vrsqrt.pop %v8238
  %v8244 = vrsqrt.pop %v8239
  %v8245 = vrsqrt.pop %v8240
  %v8246 = vrsqrt.pop %v8241
  %v8247 = vmul.f32 %v8187, %v8242
  %v8248 = vmul.f32 %v8188, %v8243
  %v8249 = vmul.f32 %v8189, %v8244
  %v8250 = vmul.f32 %v8190, %v8245
  %v8251 = vmul.f32 %v8191, %v8246
  %v8252 = vlaneseq
  %v8253 = vshrl.u32 %v8252, 7
  %v8254 = vsub.s32 0, %v8253
  %v8255 = vrot.slane %v8067, %v8254
  %v8256 = vlaneseq
  %v8257 = vshrl.u32 %v8256, 7
  %v8258 = vsub.s32 0, %v8257
  %v8259 = vrot.slane %v8071, %v8258
  %v8260 = vlaneseq
  %v8261 = vshrl.u32 %v8260, 7
  %v8262 = vsub.s32 0, %v8261
  %v8263 = vrot.slane %v8103, %v8262
  %v8264 = vlaneseq
  %v8265 = vshrl.u32 %v8264, 7
  %v8266 = vsub.s32 0, %v8265
  %v8267 = vrot.slane %v8098, %v8266
  %v8268 = vlaneseq
  %v8269 = vshrl.u32 %v8268, 7
  %v8270 = vsub.s32 0, %v8269
  %v8271 = vrot.slane %v8099, %v8270
  %v8272 = vmul.f32 %v8247, %v8255
  %v8273 = vmul.f32 %v8248, %v8259
  %v8274 = vmul.f32 %v8249, %v8263
  %v8275 = vmul.f32 %v8250, %v8267
  %v8276 = vmul.f32 %v8251, %v8271
  %v8277 = vlaneseq
  %v8278 = vshrl.u32 %v8277, 7
  %v8279 = vsub.s32 0, %v8278
  %v8280 = vrot.slane %v8110, %v8279
  %v8281 = vlaneseq
  %v8282 = vshrl.u32 %v8281, 7
  %v8283 = vsub.s32 0, %v8282
  %v8284 = vrot.slane %v8114, %v8283
  %v8285 = vlaneseq
  %v8286 = vshrl.u32 %v8285, 7
  %v8287 = vsub.s32 0, %v8286
  %v8288 = vrot.slane %v8146, %v8287
  %v8289 = vlaneseq
  %v8290 = vshrl.u32 %v8289, 7
  %v8291 = vsub.s32 0, %v8290
  %v8292 = vrot.slane %v8141, %v8291
  %v8293 = vlaneseq
  %v8294 = vshrl.u32 %v8293, 7
  %v8295 = vsub.s32 0, %v8294
  %v8296 = vrot.slane %v8142, %v8295
  %v8297 = vadd.f32 %v8272, %v8280
  %v8298 = vadd.f32 %v8273, %v8284
  %v8299 = vadd.f32 %v8274, %v8288
  %v8300 = vadd.f32 %v8275, %v8292
  %v8301 = vadd.f32 %v8276, %v8296
  %v8302 = vld [vmem:[%s12] sm:$0xff]
  %v8303 = vld [vmem:[%s12 + $0x8] sm:$0xff]
  %v8304 = vld [vmem:[%s12 + $0x10] sm:$0xff]
  %v8305 = vld [vmem:[%s12 + $0x18] sm:$0xff]
  %v8306 = vld [vmem:[%s12 + $0x20] sm:$0xff]
  %v8307 = vld [vmem:[%s12 + $0x28] sm:$0xff]
  %v8308 = vld [vmem:[%s12 + $0x30] sm:$0xff]
  %v8309 = vld [vmem:[%s12 + $0x38] sm:$0xff]
  %v8310 = vld [vmem:[%s12 + $0x40] sm:$0xff]
  %v8311 = vld [vmem:[%s12 + $0x48] sm:$0xff]
  %v8312 = vld [vmem:[%s12 + $0x50] sm:$0xff]
  %v8313 = vld [vmem:[%s12 + $0x58] sm:$0xff]
  %v8314 = vld [vmem:[%s12 + $0x60] sm:$0xff]
  %v8315 = vld [vmem:[%s12 + $0x68] sm:$0xff]
  %v8316 = vld [vmem:[%s12 + $0x70] sm:$0xff]
  %v8317 = vld [vmem:[%s12 + $0x78] sm:$0xff]
  %v8318 = vld [vmem:[%s12 + $0x80] sm:$0xff]
  %v8319 = vld [vmem:[%s12 + $0x88] sm:$0xff]
  %v8320 = vld [vmem:[%s12 + $0x90] sm:$0xff]
  %v8321 = vld [vmem:[%s12 + $0x98] sm:$0xff]
  %v8322 = vld [vmem:[%s12 + $0xa0] sm:$0xff]
  %v8323 = vld [vmem:[%s12 + $0xa8] sm:$0xff]
  %v8324 = vld [vmem:[%s12 + $0xb0] sm:$0xff]
  %v8325 = vld [vmem:[%s12 + $0xb8] sm:$0xff]
  %v8326 = vld [vmem:[%s12 + $0xc0] sm:$0xff]
  %v8327 = vld [vmem:[%s12 + $0xc8] sm:$0xff]
  %v8328 = vld [vmem:[%s12 + $0xd0] sm:$0xff]
  %v8329 = vld [vmem:[%s12 + $0xd8] sm:$0xff]
  %v8330 = vld [vmem:[%s12 + $0xe0] sm:$0xff]
  %v8331 = vld [vmem:[%s12 + $0xe8] sm:$0xff]
  %v8332 = vld [vmem:[%s12 + $0xf0] sm:$0xff]
  %v8333 = vld [vmem:[%s12 + $0xf8] sm:$0xff]
  %v8334 = vld [vmem:[%s12 + $0x100] sm:$0xff]
  %v8335 = vld [vmem:[%s12 + $0x108] sm:$0xff]
  %v8336 = vld [vmem:[%s12 + $0x110] sm:$0xff]
  %v8337 = vld [vmem:[%s12 + $0x118] sm:$0xff]
  %v8338 = vld [vmem:[%s12 + $0x120] sm:$0xff]
  %v8339 = vld [vmem:[%s12 + $0x128] sm:$0xff]
  %v8340 = vld [vmem:[%s12 + $0x130] sm:$0xff]
  %v8341 = vld [vmem:[%s12 + $0x138] sm:$0xff]
  %v8342 = vld [vmem:[%s18] sm:$0xff]
  %v8343 = vld [vmem:[%s18 + $0x8] sm:$0xff]
  %v8344 = vld [vmem:[%s18 + $0x10] sm:$0xff]
  %v8345 = vld [vmem:[%s18 + $0x18] sm:$0xff]
  %v8346 = vld [vmem:[%s18 + $0x20] sm:$0xff]
  %v8347 = vld [vmem:[%s18 + $0x28] sm:$0xff]
  %v8348 = vld [vmem:[%s18 + $0x30] sm:$0xff]
  %v8349 = vld [vmem:[%s18 + $0x38] sm:$0xff]
  %v8350 = vld [vmem:[%s18 + $0x40] sm:$0xff]
  %v8351 = vld [vmem:[%s18 + $0x48] sm:$0xff]
  %v8352 = vld [vmem:[%s18 + $0x50] sm:$0xff]
  %v8353 = vld [vmem:[%s18 + $0x58] sm:$0xff]
  %v8354 = vld [vmem:[%s18 + $0x60] sm:$0xff]
  %v8355 = vld [vmem:[%s18 + $0x68] sm:$0xff]
  %v8356 = vld [vmem:[%s18 + $0x70] sm:$0xff]
  %v8357 = vld [vmem:[%s18 + $0x78] sm:$0xff]
  %v8358 = vld [vmem:[%s18 + $0x80] sm:$0xff]
  %v8359 = vld [vmem:[%s18 + $0x88] sm:$0xff]
  %v8360 = vld [vmem:[%s18 + $0x90] sm:$0xff]
  %v8361 = vld [vmem:[%s18 + $0x98] sm:$0xff]
  %v8362 = vld [vmem:[%s18 + $0xa0] sm:$0xff]
  %v8363 = vld [vmem:[%s18 + $0xa8] sm:$0xff]
  %v8364 = vld [vmem:[%s18 + $0xb0] sm:$0xff]
  %v8365 = vld [vmem:[%s18 + $0xb8] sm:$0xff]
  %v8366 = vld [vmem:[%s18 + $0xc0] sm:$0xff]
  %v8367 = vld [vmem:[%s18 + $0xc8] sm:$0xff]
  %v8368 = vld [vmem:[%s18 + $0xd0] sm:$0xff]
  %v8369 = vld [vmem:[%s18 + $0xd8] sm:$0xff]
  %v8370 = vld [vmem:[%s18 + $0xe0] sm:$0xff]
  %v8371 = vld [vmem:[%s18 + $0xe8] sm:$0xff]
  %v8372 = vld [vmem:[%s18 + $0xf0] sm:$0xff]
  %v8373 = vld [vmem:[%s18 + $0xf8] sm:$0xff]
  %v8374 = vld [vmem:[%s18 + $0x100] sm:$0xff]
  %v8375 = vld [vmem:[%s18 + $0x108] sm:$0xff]
  %v8376 = vld [vmem:[%s18 + $0x110] sm:$0xff]
  %v8377 = vld [vmem:[%s18 + $0x118] sm:$0xff]
  %v8378 = vld [vmem:[%s18 + $0x120] sm:$0xff]
  %v8379 = vld [vmem:[%s18 + $0x128] sm:$0xff]
  %v8380 = vld [vmem:[%s18 + $0x130] sm:$0xff]
  %v8381 = vld [vmem:[%s18 + $0x138] sm:$0xff]
  %v8382 = vpack.c.bf16 %v8297, %v8297
  %v8383 = vpack.c.bf16 %v8298, %v8298
  %v8384 = vpack.c.bf16 %v8299, %v8299
  %v8385 = vld [vmem:[%s2 + $0x37] sm:$0x3]
  %v8387 = vlaneseq
  %v8388 = vshrl.u32 %v8387, 7
  %v8389 = vsub.s32 0, %v8388
  %v8390 = vrot.slane %v8385, %v8389
  %v8391 = vlaneseq
  %v8392 = vshrl.u32 %v8391, 7
  %v8393 = vsub.s32 1, %v8392
  %v8394 = vrot.slane %v8385, %v8393
  %v8437 = vunpack.c.l.b16 %v8302
  %v8438 = vunpack.c.h.b16 %v8302
  %v8439 = vunpack.c.l.b16 %v8303
  %v8440 = vunpack.c.h.b16 %v8303
  %v8441 = vunpack.c.l.b16 %v8304
  %v8442 = vunpack.c.h.b16 %v8304
  %v8443 = vunpack.c.l.b16 %v8305
  %v8444 = vunpack.c.h.b16 %v8305
  %v8445 = vunpack.c.l.b16 %v8306
  %v8446 = vunpack.c.h.b16 %v8306
  %v8447 = vunpack.c.l.b16 %v8307
  %v8448 = vunpack.c.h.b16 %v8307
  %v8449 = vunpack.c.l.b16 %v8308
  %v8450 = vunpack.c.h.b16 %v8308
  %v8451 = vunpack.c.l.b16 %v8309
  %v8452 = vunpack.c.h.b16 %v8309
  %v8453 = vunpack.c.l.b16 %v8310
  %v8454 = vunpack.c.h.b16 %v8310
  %v8455 = vunpack.c.l.b16 %v8311
  %v8456 = vunpack.c.h.b16 %v8311
  %v8457 = vunpack.c.l.b16 %v8312
  %v8458 = vunpack.c.h.b16 %v8312
  %v8459 = vunpack.c.l.b16 %v8313
  %v8460 = vunpack.c.h.b16 %v8313
  %v8461 = vunpack.c.l.b16 %v8314
  %v8462 = vunpack.c.h.b16 %v8314
  %v8463 = vunpack.c.l.b16 %v8315
  %v8464 = vunpack.c.h.b16 %v8315
  %v8465 = vunpack.c.l.b16 %v8316
  %v8466 = vunpack.c.h.b16 %v8316
  %v8467 = vunpack.c.l.b16 %v8317
  %v8468 = vunpack.c.h.b16 %v8317
  %v8469 = vunpack.c.l.b16 %v8318
  %v8470 = vunpack.c.h.b16 %v8318
  %v8471 = vunpack.c.l.b16 %v8319
  %v8472 = vunpack.c.h.b16 %v8319
  %v8473 = vunpack.c.l.b16 %v8320
  %v8474 = vunpack.c.h.b16 %v8320
  %v8475 = vunpack.c.l.b16 %v8321
  %v8476 = vunpack.c.h.b16 %v8321
  %v8477 = vunpack.c.l.b16 %v8322
  %v8478 = vunpack.c.h.b16 %v8322
  %v8479 = vunpack.c.l.b16 %v8323
  %v8480 = vunpack.c.h.b16 %v8323
  %v8481 = vunpack.c.l.b16 %v8324
  %v8482 = vunpack.c.h.b16 %v8324
  %v8483 = vunpack.c.l.b16 %v8325
  %v8484 = vunpack.c.h.b16 %v8325
  %v8485 = vunpack.c.l.b16 %v8326
  %v8486 = vunpack.c.h.b16 %v8326
  %v8487 = vunpack.c.l.b16 %v8327
  %v8488 = vunpack.c.h.b16 %v8327
  %v8489 = vunpack.c.l.b16 %v8328
  %v8490 = vunpack.c.h.b16 %v8328
  %v8491 = vunpack.c.l.b16 %v8329
  %v8492 = vunpack.c.h.b16 %v8329
  %v8493 = vunpack.c.l.b16 %v8330
  %v8494 = vunpack.c.h.b16 %v8330
  %v8495 = vunpack.c.l.b16 %v8331
  %v8496 = vunpack.c.h.b16 %v8331
  %v8497 = vunpack.c.l.b16 %v8332
  %v8498 = vunpack.c.h.b16 %v8332
  %v8499 = vunpack.c.l.b16 %v8333
  %v8500 = vunpack.c.h.b16 %v8333
  %v8501 = vunpack.c.l.b16 %v8334
  %v8502 = vunpack.c.h.b16 %v8334
  %v8503 = vunpack.c.l.b16 %v8335
  %v8504 = vunpack.c.h.b16 %v8335
  %v8505 = vunpack.c.l.b16 %v8336
  %v8506 = vunpack.c.h.b16 %v8336
  %v8507 = vunpack.c.l.b16 %v8337
  %v8508 = vunpack.c.h.b16 %v8337
  %v8509 = vunpack.c.l.b16 %v8338
  %v8510 = vunpack.c.h.b16 %v8338
  %v8511 = vunpack.c.l.b16 %v8339
  %v8512 = vunpack.c.h.b16 %v8339
  %v8513 = vunpack.c.l.b16 %v8340
  %v8514 = vunpack.c.h.b16 %v8340
  %v8515 = vunpack.c.l.b16 %v8341
  %v8516 = vunpack.c.h.b16 %v8341
  %v8517 = vpack.c.b16 %v8439, %v8437
  %v8518 = vpack.c.b16 %v8440, %v8438
  %v8519 = vpack.c.b16 %v8443, %v8441
  %v8520 = vpack.c.b16 %v8444, %v8442
  %v8521 = vpack.c.b16 %v8447, %v8445
  %v8522 = vpack.c.b16 %v8448, %v8446
  %v8523 = vpack.c.b16 %v8451, %v8449
  %v8524 = vpack.c.b16 %v8452, %v8450
  %v8525 = vpack.c.b16 %v8455, %v8453
  %v8526 = vpack.c.b16 %v8456, %v8454
  %v8527 = vpack.c.b16 %v8459, %v8457
  %v8528 = vpack.c.b16 %v8460, %v8458
  %v8529 = vpack.c.b16 %v8463, %v8461
  %v8530 = vpack.c.b16 %v8464, %v8462
  %v8531 = vpack.c.b16 %v8467, %v8465
  %v8532 = vpack.c.b16 %v8468, %v8466
  %v8533 = vpack.c.b16 %v8471, %v8469
  %v8534 = vpack.c.b16 %v8472, %v8470
  %v8535 = vpack.c.b16 %v8475, %v8473
  %v8536 = vpack.c.b16 %v8476, %v8474
  %v8537 = vpack.c.b16 %v8479, %v8477
  %v8538 = vpack.c.b16 %v8480, %v8478
  %v8539 = vpack.c.b16 %v8483, %v8481
  %v8540 = vpack.c.b16 %v8484, %v8482
  %v8541 = vpack.c.b16 %v8487, %v8485
  %v8542 = vpack.c.b16 %v8488, %v8486
  %v8543 = vpack.c.b16 %v8491, %v8489
  %v8544 = vpack.c.b16 %v8492, %v8490
  %v8545 = vpack.c.b16 %v8495, %v8493
  %v8546 = vpack.c.b16 %v8496, %v8494
  %v8547 = vpack.c.b16 %v8499, %v8497
  %v8548 = vpack.c.b16 %v8500, %v8498
  %v8549 = vpack.c.b16 %v8503, %v8501
  %v8550 = vpack.c.b16 %v8504, %v8502
  %v8551 = vpack.c.b16 %v8507, %v8505
  %v8552 = vpack.c.b16 %v8508, %v8506
  %v8553 = vpack.c.b16 %v8511, %v8509
  %v8554 = vpack.c.b16 %v8512, %v8510
  %v8555 = vpack.c.b16 %v8515, %v8513
  %v8556 = vpack.c.b16 %v8516, %v8514
  %v8598 = vsel %vm1199, %v8384, 0
  %8600 = vmatprep.subr.bf16.mxu0 %v8532
  %8601 = vmatpush1.bf16.msra.mxu0 %v8531
  %8602 = vmatprep.subr.bf16.mxu0 %v8530
  %8603 = vmatpush1.bf16.msra.mxu0 %v8529
  %8604 = vmatprep.subr.bf16.mxu0 %v8528
  %8605 = vmatpush1.bf16.msra.mxu0 %v8527
  %8606 = vmatprep.subr.bf16.mxu0 %v8526
  %8607 = vmatpush1.bf16.msra.mxu0 %v8525
  %8608 = vmatprep.subr.bf16.mxu0 %v8524
  %8609 = vmatpush1.bf16.msra.mxu0 %v8523
  %8610 = vmatprep.subr.bf16.mxu0 %v8522
  %8611 = vmatpush1.bf16.msra.mxu0 %v8521
  %8612 = vmatprep.subr.bf16.mxu0 %v8520
  %8613 = vmatpush1.bf16.msra.mxu0 %v8519
  %8614 = vmatprep.subr.bf16.mxu0 %v8518
  %8615 = vmatpush1.bf16.msra.mxu0 %v8517
  %8616 = vmatprep.subr.bf16.mxu0 %v8548
  %8617 = vmatpush2.bf16.msra.mxu0 %v8547
  %8618 = vmatprep.subr.bf16.mxu0 %v8546
  %8619 = vmatpush2.bf16.msra.mxu0 %v8545
  %8620 = vmatprep.subr.bf16.mxu0 %v8544
  %8621 = vmatpush2.bf16.msra.mxu0 %v8543
  %8622 = vmatprep.subr.bf16.mxu0 %v8542
  %8623 = vmatpush2.bf16.msra.mxu0 %v8541
  %8624 = vmatprep.subr.bf16.mxu0 %v8540
  %8625 = vmatpush2.bf16.msra.mxu0 %v8539
  %8626 = vmatprep.subr.bf16.mxu0 %v8538
  %8627 = vmatpush2.bf16.msra.mxu0 %v8537
  %8628 = vmatprep.subr.bf16.mxu0 %v8536
  %8629 = vmatpush2.bf16.msra.mxu0 %v8535
  %8630 = vmatprep.subr.bf16.mxu0 %v8534
  %8631 = vmatpush2.bf16.msra.mxu0 %v8533
  %8632 = vmatprep.mubr.bf16.mxu0 %v8383
  %8633 = vmatmul.mubr.bf16.gmra.mxu0 %v8382
  %v8634 = vpop.f32.mrf.mxu0
  %v8635 = vadd.f32 %v8390, %v8634
  %v8636 = vpop.f32.mrf.mxu0
  %v8637 = vadd.f32 %v8394, %v8636
  %v8638 = vpop.f32.mrf.mxu0
  %v8639 = vpop.f32.mrf.mxu0
  %8640 = vdwg.mxu0
  %8641 = vmatprep.subr.bf16.mxu0 0
  %8642 = vmatpush1.bf16.msra.mxu0 0
  %8643 = vmatprep.subr.bf16.mxu0 0
  %8644 = vmatpush1.bf16.msra.mxu0 0
  %8645 = vmatprep.subr.bf16.mxu0 0
  %8646 = vmatpush1.bf16.msra.mxu0 0
  %8647 = vmatprep.subr.bf16.mxu0 0
  %8648 = vmatpush1.bf16.msra.mxu0 0
  %8649 = vmatprep.subr.bf16.mxu0 %v8556
  %8650 = vmatpush1.bf16.msra.mxu0 %v8555
  %8651 = vmatprep.subr.bf16.mxu0 %v8554
  %8652 = vmatpush1.bf16.msra.mxu0 %v8553
  %8653 = vmatprep.subr.bf16.mxu0 %v8552
  %8654 = vmatpush1.bf16.msra.mxu0 %v8551
  %8655 = vmatprep.subr.bf16.mxu0 %v8550
  %8656 = vmatpush1.bf16.msra.mxu0 %v8549
  %8657 = vmatprep.subr.bf16.mxu0 0
  %8658 = vmatpush2.bf16.msra.mxu0 0
  %8659 = vmatprep.subr.bf16.mxu0 0
  %8660 = vmatpush2.bf16.msra.mxu0 0
  %8661 = vmatprep.subr.bf16.mxu0 0
  %8662 = vmatpush2.bf16.msra.mxu0 0
  %8663 = vmatprep.subr.bf16.mxu0 0
  %8664 = vmatpush2.bf16.msra.mxu0 0
  %8665 = vmatprep.subr.bf16.mxu0 0
  %8666 = vmatpush2.bf16.msra.mxu0 0
  %8667 = vmatprep.subr.bf16.mxu0 0
  %8668 = vmatpush2.bf16.msra.mxu0 0
  %8669 = vmatprep.subr.bf16.mxu0 0
  %8670 = vmatpush2.bf16.msra.mxu0 0
  %8671 = vmatprep.subr.bf16.mxu0 0
  %8672 = vmatpush2.bf16.msra.mxu0 0
  %8673 = vmatprep.mubr.bf16.mxu0 0
  %8674 = vmatmul.mubr.bf16.gmra.mxu0 %v8598
  %v8675 = vpop.f32.mrf.mxu0
  %v8676 = vadd.f32 %v8635, %v8675
  %v8677 = vpop.f32.mrf.mxu0
  %v8678 = vadd.f32 %v8637, %v8677
  %v8679 = vpop.f32.mrf.mxu0
  %v8680 = vpop.f32.mrf.mxu0
  %8681 = vdwg.mxu0
  %v8682 = vpack.c.bf16 %v8300, %v8300
  %v8683 = vpack.c.bf16 %v8301, %v8301
  %v8684 = vld [vmem:[%s2 + $0x6d] sm:$0x3]
  %v8686 = vlaneseq
  %v8687 = vshrl.u32 %v8686, 7
  %v8688 = vsub.s32 0, %v8687
  %v8689 = vrot.slane %v8684, %v8688
  %v8690 = vlaneseq
  %v8691 = vshrl.u32 %v8690, 7
  %v8692 = vsub.s32 1, %v8691
  %v8693 = vrot.slane %v8684, %v8692
  %8699 = vrot.lane.b32.xlu0 %v8384, 64
  %v8700 = vpop.permute.xlu0 %8699
  %8701 = vrot.lane.b32.xlu0 %v8682, 64
  %v8702 = vpop.permute.xlu0 %8701
  %8703 = vrot.lane.b32.xlu0 %v8683, 64
  %v8704 = vpop.permute.xlu0 %8703
  %v8705 = vsel %vm4615, %v8700, %v8702
  %v8706 = vsel %vm4615, %v8702, %v8704
  %v8749 = vunpack.c.l.b16 %v8342
  %v8750 = vunpack.c.h.b16 %v8342
  %v8751 = vunpack.c.l.b16 %v8343
  %v8752 = vunpack.c.h.b16 %v8343
  %v8753 = vunpack.c.l.b16 %v8344
  %v8754 = vunpack.c.h.b16 %v8344
  %v8755 = vunpack.c.l.b16 %v8345
  %v8756 = vunpack.c.h.b16 %v8345
  %v8757 = vunpack.c.l.b16 %v8346
  %v8758 = vunpack.c.h.b16 %v8346
  %v8759 = vunpack.c.l.b16 %v8347
  %v8760 = vunpack.c.h.b16 %v8347
  %v8761 = vunpack.c.l.b16 %v8348
  %v8762 = vunpack.c.h.b16 %v8348
  %v8763 = vunpack.c.l.b16 %v8349
  %v8764 = vunpack.c.h.b16 %v8349
  %v8765 = vunpack.c.l.b16 %v8350
  %v8766 = vunpack.c.h.b16 %v8350
  %v8767 = vunpack.c.l.b16 %v8351
  %v8768 = vunpack.c.h.b16 %v8351
  %v8769 = vunpack.c.l.b16 %v8352
  %v8770 = vunpack.c.h.b16 %v8352
  %v8771 = vunpack.c.l.b16 %v8353
  %v8772 = vunpack.c.h.b16 %v8353
  %v8773 = vunpack.c.l.b16 %v8354
  %v8774 = vunpack.c.h.b16 %v8354
  %v8775 = vunpack.c.l.b16 %v8355
  %v8776 = vunpack.c.h.b16 %v8355
  %v8777 = vunpack.c.l.b16 %v8356
  %v8778 = vunpack.c.h.b16 %v8356
  %v8779 = vunpack.c.l.b16 %v8357
  %v8780 = vunpack.c.h.b16 %v8357
  %v8781 = vunpack.c.l.b16 %v8358
  %v8782 = vunpack.c.h.b16 %v8358
  %v8783 = vunpack.c.l.b16 %v8359
  %v8784 = vunpack.c.h.b16 %v8359
  %v8785 = vunpack.c.l.b16 %v8360
  %v8786 = vunpack.c.h.b16 %v8360
  %v8787 = vunpack.c.l.b16 %v8361
  %v8788 = vunpack.c.h.b16 %v8361
  %v8789 = vunpack.c.l.b16 %v8362
  %v8790 = vunpack.c.h.b16 %v8362
  %v8791 = vunpack.c.l.b16 %v8363
  %v8792 = vunpack.c.h.b16 %v8363
  %v8793 = vunpack.c.l.b16 %v8364
  %v8794 = vunpack.c.h.b16 %v8364
  %v8795 = vunpack.c.l.b16 %v8365
  %v8796 = vunpack.c.h.b16 %v8365
  %v8797 = vunpack.c.l.b16 %v8366
  %v8798 = vunpack.c.h.b16 %v8366
  %v8799 = vunpack.c.l.b16 %v8367
  %v8800 = vunpack.c.h.b16 %v8367
  %v8801 = vunpack.c.l.b16 %v8368
  %v8802 = vunpack.c.h.b16 %v8368
  %v8803 = vunpack.c.l.b16 %v8369
  %v8804 = vunpack.c.h.b16 %v8369
  %v8805 = vunpack.c.l.b16 %v8370
  %v8806 = vunpack.c.h.b16 %v8370
  %v8807 = vunpack.c.l.b16 %v8371
  %v8808 = vunpack.c.h.b16 %v8371
  %v8809 = vunpack.c.l.b16 %v8372
  %v8810 = vunpack.c.h.b16 %v8372
  %v8811 = vunpack.c.l.b16 %v8373
  %v8812 = vunpack.c.h.b16 %v8373
  %v8813 = vunpack.c.l.b16 %v8374
  %v8814 = vunpack.c.h.b16 %v8374
  %v8815 = vunpack.c.l.b16 %v8375
  %v8816 = vunpack.c.h.b16 %v8375
  %v8817 = vunpack.c.l.b16 %v8376
  %v8818 = vunpack.c.h.b16 %v8376
  %v8819 = vunpack.c.l.b16 %v8377
  %v8820 = vunpack.c.h.b16 %v8377
  %v8821 = vunpack.c.l.b16 %v8378
  %v8822 = vunpack.c.h.b16 %v8378
  %v8823 = vunpack.c.l.b16 %v8379
  %v8824 = vunpack.c.h.b16 %v8379
  %v8825 = vunpack.c.l.b16 %v8380
  %v8826 = vunpack.c.h.b16 %v8380
  %v8827 = vunpack.c.l.b16 %v8381
  %v8828 = vunpack.c.h.b16 %v8381
  %v8829 = vpack.c.b16 %v8751, %v8749
  %v8830 = vpack.c.b16 %v8752, %v8750
  %v8831 = vpack.c.b16 %v8755, %v8753
  %v8832 = vpack.c.b16 %v8756, %v8754
  %v8833 = vpack.c.b16 %v8759, %v8757
  %v8834 = vpack.c.b16 %v8760, %v8758
  %v8835 = vpack.c.b16 %v8763, %v8761
  %v8836 = vpack.c.b16 %v8764, %v8762
  %v8837 = vpack.c.b16 %v8767, %v8765
  %v8838 = vpack.c.b16 %v8768, %v8766
  %v8839 = vpack.c.b16 %v8771, %v8769
  %v8840 = vpack.c.b16 %v8772, %v8770
  %v8841 = vpack.c.b16 %v8775, %v8773
  %v8842 = vpack.c.b16 %v8776, %v8774
  %v8843 = vpack.c.b16 %v8779, %v8777
  %v8844 = vpack.c.b16 %v8780, %v8778
  %v8845 = vpack.c.b16 %v8783, %v8781
  %v8846 = vpack.c.b16 %v8784, %v8782
  %v8847 = vpack.c.b16 %v8787, %v8785
  %v8848 = vpack.c.b16 %v8788, %v8786
  %v8849 = vpack.c.b16 %v8791, %v8789
  %v8850 = vpack.c.b16 %v8792, %v8790
  %v8851 = vpack.c.b16 %v8795, %v8793
  %v8852 = vpack.c.b16 %v8796, %v8794
  %v8853 = vpack.c.b16 %v8799, %v8797
  %v8854 = vpack.c.b16 %v8800, %v8798
  %v8855 = vpack.c.b16 %v8803, %v8801
  %v8856 = vpack.c.b16 %v8804, %v8802
  %v8857 = vpack.c.b16 %v8807, %v8805
  %v8858 = vpack.c.b16 %v8808, %v8806
  %v8859 = vpack.c.b16 %v8811, %v8809
  %v8860 = vpack.c.b16 %v8812, %v8810
  %v8861 = vpack.c.b16 %v8815, %v8813
  %v8862 = vpack.c.b16 %v8816, %v8814
  %v8863 = vpack.c.b16 %v8819, %v8817
  %v8864 = vpack.c.b16 %v8820, %v8818
  %v8865 = vpack.c.b16 %v8823, %v8821
  %v8866 = vpack.c.b16 %v8824, %v8822
  %v8867 = vpack.c.b16 %v8827, %v8825
  %v8868 = vpack.c.b16 %v8828, %v8826
  %v8910 = vsel %vm1199, %v8704, 0
  %8912 = vmatprep.subr.bf16.mxu0 %v8844
  %8913 = vmatpush1.bf16.msra.mxu0 %v8843
  %8914 = vmatprep.subr.bf16.mxu0 %v8842
  %8915 = vmatpush1.bf16.msra.mxu0 %v8841
  %8916 = vmatprep.subr.bf16.mxu0 %v8840
  %8917 = vmatpush1.bf16.msra.mxu0 %v8839
  %8918 = vmatprep.subr.bf16.mxu0 %v8838
  %8919 = vmatpush1.bf16.msra.mxu0 %v8837
  %8920 = vmatprep.subr.bf16.mxu0 %v8836
  %8921 = vmatpush1.bf16.msra.mxu0 %v8835
  %8922 = vmatprep.subr.bf16.mxu0 %v8834
  %8923 = vmatpush1.bf16.msra.mxu0 %v8833
  %8924 = vmatprep.subr.bf16.mxu0 %v8832
  %8925 = vmatpush1.bf16.msra.mxu0 %v8831
  %8926 = vmatprep.subr.bf16.mxu0 %v8830
  %8927 = vmatpush1.bf16.msra.mxu0 %v8829
  %8928 = vmatprep.subr.bf16.mxu0 %v8860
  %8929 = vmatpush2.bf16.msra.mxu0 %v8859
  %8930 = vmatprep.subr.bf16.mxu0 %v8858
  %8931 = vmatpush2.bf16.msra.mxu0 %v8857
  %8932 = vmatprep.subr.bf16.mxu0 %v8856
  %8933 = vmatpush2.bf16.msra.mxu0 %v8855
  %8934 = vmatprep.subr.bf16.mxu0 %v8854
  %8935 = vmatpush2.bf16.msra.mxu0 %v8853
  %8936 = vmatprep.subr.bf16.mxu0 %v8852
  %8937 = vmatpush2.bf16.msra.mxu0 %v8851
  %8938 = vmatprep.subr.bf16.mxu0 %v8850
  %8939 = vmatpush2.bf16.msra.mxu0 %v8849
  %8940 = vmatprep.subr.bf16.mxu0 %v8848
  %8941 = vmatpush2.bf16.msra.mxu0 %v8847
  %8942 = vmatprep.subr.bf16.mxu0 %v8846
  %8943 = vmatpush2.bf16.msra.mxu0 %v8845
  %8944 = vmatprep.mubr.bf16.mxu0 %v8706
  %8945 = vmatmul.mubr.bf16.gmra.mxu0 %v8705
  %v8946 = vpop.f32.mrf.mxu0
  %v8947 = vadd.f32 %v8689, %v8946
  %v8948 = vpop.f32.mrf.mxu0
  %v8949 = vadd.f32 %v8693, %v8948
  %v8950 = vpop.f32.mrf.mxu0
  %v8951 = vpop.f32.mrf.mxu0
  %8952 = vdwg.mxu0
  %8953 = vmatprep.subr.bf16.mxu0 0
  %8954 = vmatpush1.bf16.msra.mxu0 0
  %8955 = vmatprep.subr.bf16.mxu0 0
  %8956 = vmatpush1.bf16.msra.mxu0 0
  %8957 = vmatprep.subr.bf16.mxu0 0
  %8958 = vmatpush1.bf16.msra.mxu0 0
  %8959 = vmatprep.subr.bf16.mxu0 0
  %8960 = vmatpush1.bf16.msra.mxu0 0
  %8961 = vmatprep.subr.bf16.mxu0 %v8868
  %8962 = vmatpush1.bf16.msra.mxu0 %v8867
  %8963 = vmatprep.subr.bf16.mxu0 %v8866
  %8964 = vmatpush1.bf16.msra.mxu0 %v8865
  %8965 = vmatprep.subr.bf16.mxu0 %v8864
  %8966 = vmatpush1.bf16.msra.mxu0 %v8863
  %8967 = vmatprep.subr.bf16.mxu0 %v8862
  %8968 = vmatpush1.bf16.msra.mxu0 %v8861
  %8969 = vmatprep.subr.bf16.mxu0 0
  %8970 = vmatpush2.bf16.msra.mxu0 0
  %8971 = vmatprep.subr.bf16.mxu0 0
  %8972 = vmatpush2.bf16.msra.mxu0 0
  %8973 = vmatprep.subr.bf16.mxu0 0
  %8974 = vmatpush2.bf16.msra.mxu0 0
  %8975 = vmatprep.subr.bf16.mxu0 0
  %8976 = vmatpush2.bf16.msra.mxu0 0
  %8977 = vmatprep.subr.bf16.mxu0 0
  %8978 = vmatpush2.bf16.msra.mxu0 0
  %8979 = vmatprep.subr.bf16.mxu0 0
  %8980 = vmatpush2.bf16.msra.mxu0 0
  %8981 = vmatprep.subr.bf16.mxu0 0
  %8982 = vmatpush2.bf16.msra.mxu0 0
  %8983 = vmatprep.subr.bf16.mxu0 0
  %8984 = vmatpush2.bf16.msra.mxu0 0
  %8985 = vmatprep.mubr.bf16.mxu0 0
  %8986 = vmatmul.mubr.bf16.gmra.mxu0 %v8910
  %v8987 = vpop.f32.mrf.mxu0
  %v8988 = vadd.f32 %v8947, %v8987
  %v8989 = vpop.f32.mrf.mxu0
  %v8990 = vadd.f32 %v8949, %v8989
  %v8991 = vpop.f32.mrf.mxu0
  %v8992 = vpop.f32.mrf.mxu0
  %8993 = vdwg.mxu0
  %8996 = vrot.lane.b32.xlu0 %v8988, 32
  %v8997 = vpop.permute.xlu0 %8996
  %8998 = vrot.lane.b32.xlu0 %v8990, 32
  %v8999 = vpop.permute.xlu0 %8998
  %v9000 = vsel %vm2449, %v8997, %v8999
  %v9003 = vsel %vm2449, %v8678, %v8997
  %vm9004 = vcmp.gt.f32.partialorder %v8676, 0.0
  %vm9005 = vcmp.gt.f32.partialorder %v9003, 0.0
  %vm9006 = vcmp.gt.f32.partialorder %v9000, 0.0
  %v9007 = vmul.f32 %v8676, 1.442695
  %v9008 = vpow.pop %v9007
  %v9009 = vmul.f32 %v9003, 1.442695
  %v9010 = vpow.pop %v9009
  %v9011 = vmul.f32 %v9000, 1.442695
  %v9012 = vpow.pop %v9011
  %v9013 = vsub.f32 %v9008, 1.0
  %v9014 = vsub.f32 %v9010, 1.0
  %v9015 = vsub.f32 %v9012, 1.0
  %v9016 = vmul.f32 %v9013, 1.6732632
  %v9017 = vmul.f32 %v9014, 1.6732632
  %v9018 = vmul.f32 %v9015, 1.6732632
  %v9019 = vsel %vm9004, %v8676, %v9016
  %v9020 = vsel %vm9005, %v9003, %v9017
  %v9021 = vsel %vm9006, %v9000, %v9018
  %v9022 = vmul.f32 %v9019, 1.050701
  %v9023 = vmul.f32 %v9020, 1.050701
  %v9024 = vmul.f32 %v9021, 1.050701
  %v9025 = vld [vmem:[%s2 + $0x39] sm:$0x3]
  %v9026 = vld [vmem:[%s2 + $0x6f] sm:$0x3]
  %v9028 = vlaneseq
  %v9029 = vshrl.u32 %v9028, 7
  %v9030 = vsub.s32 0, %v9029
  %v9031 = vrot.slane %v9025, %v9030
  %v9032 = vlaneseq
  %v9033 = vshrl.u32 %v9032, 7
  %v9034 = vsub.s32 1, %v9033
  %v9035 = vrot.slane %v9025, %v9034
  %v9039 = vlaneseq
  %v9040 = vshrl.u32 %v9039, 7
  %v9041 = vsub.s32 0, %v9040
  %v9042 = vrot.slane %v9026, %v9041
  %v9043 = vlaneseq
  %v9044 = vshrl.u32 %v9043, 7
  %v9045 = vsub.s32 1, %v9044
  %v9046 = vrot.slane %v9026, %v9045
  %9047 = vrot.lane.b32.xlu0 %v9042, 32
  %v9048 = vpop.permute.xlu0 %9047
  %9049 = vrot.lane.b32.xlu0 %v9046, 32
  %v9050 = vpop.permute.xlu0 %9049
  %v9051 = vsel %vm2449, %v9048, %v9050
  %v9054 = vsel %vm2449, %v9035, %v9048
  %v9055 = vld [vmem:[%s2 + $0x3b] sm:$0x3]
  %v9056 = vld [vmem:[%s2 + $0x71] sm:$0x3]
  %v9058 = vlaneseq
  %v9059 = vshrl.u32 %v9058, 7
  %v9060 = vsub.s32 0, %v9059
  %v9061 = vrot.slane %v9055, %v9060
  %v9062 = vlaneseq
  %v9063 = vshrl.u32 %v9062, 7
  %v9064 = vsub.s32 1, %v9063
  %v9065 = vrot.slane %v9055, %v9064
  %v9069 = vlaneseq
  %v9070 = vshrl.u32 %v9069, 7
  %v9071 = vsub.s32 0, %v9070
  %v9072 = vrot.slane %v9056, %v9071
  %v9073 = vlaneseq
  %v9074 = vshrl.u32 %v9073, 7
  %v9075 = vsub.s32 1, %v9074
  %v9076 = vrot.slane %v9056, %v9075
  %9077 = vrot.lane.b32.xlu0 %v9072, 32
  %v9078 = vpop.permute.xlu0 %9077
  %9079 = vrot.lane.b32.xlu0 %v9076, 32
  %v9080 = vpop.permute.xlu0 %9079
  %v9081 = vsel %vm2449, %v9078, %v9080
  %v9084 = vsel %vm2449, %v9065, %v9078
  %v9085 = vsel %vm1142, %v9022, 0.0
  %v9086 = vrot.slane %v9085, 4
  %v9087 = vadd.f32 %v9085, %v9086
  %v9088 = vrot.slane %v9087, 2
  %v9089 = vadd.f32 %v9087, %v9088
  %v9090 = vrot.slane %v9089, 1
  %v9091 = vadd.f32 %v9089, %v9090
  %v9092 = vsel %vm1142, %v9023, 0.0
  %v9093 = vrot.slane %v9092, 4
  %v9094 = vadd.f32 %v9092, %v9093
  %v9095 = vrot.slane %v9094, 2
  %v9096 = vadd.f32 %v9094, %v9095
  %v9097 = vrot.slane %v9096, 1
  %v9098 = vadd.f32 %v9096, %v9097
  %v9099 = vsel %vm2549, %v9024, 0.0
  %v9100 = vrot.slane %v9099, 4
  %v9101 = vadd.f32 %v9099, %v9100
  %v9102 = vrot.slane %v9101, 2
  %v9103 = vadd.f32 %v9101, %v9102
  %v9104 = vrot.slane %v9103, 1
  %v9105 = vadd.f32 %v9103, %v9104
  %v9106 = vmul.f32 %v9091, %v1892
  %v9107 = vmul.f32 %v9098, %v1892
  %v9108 = vmul.f32 %v9105, %v1892
  %v9109 = vsub.f32 %v9022, %v9106
  %v9110 = vsub.f32 %v9023, %v9107
  %v9111 = vsub.f32 %v9024, %v9108
  %v9112 = vmul.f32 %v9109, %v9109
  %v9113 = vmul.f32 %v9110, %v9110
  %v9114 = vmul.f32 %v9111, %v9111
  %v9115 = vsel %vm1142, %v9112, 0.0
  %v9116 = vrot.slane %v9115, 4
  %v9117 = vadd.f32 %v9115, %v9116
  %v9118 = vrot.slane %v9117, 2
  %v9119 = vadd.f32 %v9117, %v9118
  %v9120 = vrot.slane %v9119, 1
  %v9121 = vadd.f32 %v9119, %v9120
  %v9122 = vsel %vm1142, %v9113, 0.0
  %v9123 = vrot.slane %v9122, 4
  %v9124 = vadd.f32 %v9122, %v9123
  %v9125 = vrot.slane %v9124, 2
  %v9126 = vadd.f32 %v9124, %v9125
  %v9127 = vrot.slane %v9126, 1
  %v9128 = vadd.f32 %v9126, %v9127
  %v9129 = vsel %vm2549, %v9114, 0.0
  %v9130 = vrot.slane %v9129, 4
  %v9131 = vadd.f32 %v9129, %v9130
  %v9132 = vrot.slane %v9131, 2
  %v9133 = vadd.f32 %v9131, %v9132
  %v9134 = vrot.slane %v9133, 1
  %v9135 = vadd.f32 %v9133, %v9134
  %v9136 = vmul.f32 %v9121, %v1892
  %v9137 = vmul.f32 %v9128, %v1892
  %v9138 = vmul.f32 %v9135, %v1892
  %v9139 = vadd.f32 %v9136, 1e-05
  %v9140 = vadd.f32 %v9137, 1e-05
  %v9141 = vadd.f32 %v9138, 1e-05
  %v9142 = vrsqrt.pop %v9139
  %v9143 = vrsqrt.pop %v9140
  %v9144 = vrsqrt.pop %v9141
  %v9145 = vmul.f32 %v9109, %v9142
  %v9146 = vmul.f32 %v9110, %v9143
  %v9147 = vmul.f32 %v9111, %v9144
  %v9148 = vlaneseq
  %v9149 = vshrl.u32 %v9148, 7
  %v9150 = vsub.s32 0, %v9149
  %v9151 = vrot.slane %v9031, %v9150
  %v9152 = vlaneseq
  %v9153 = vshrl.u32 %v9152, 7
  %v9154 = vsub.s32 0, %v9153
  %v9155 = vrot.slane %v9054, %v9154
  %v9156 = vlaneseq
  %v9157 = vshrl.u32 %v9156, 7
  %v9158 = vsub.s32 0, %v9157
  %v9159 = vrot.slane %v9051, %v9158
  %v9160 = vmul.f32 %v9145, %v9151
  %v9161 = vmul.f32 %v9146, %v9155
  %v9162 = vmul.f32 %v9147, %v9159
  %v9163 = vlaneseq
  %v9164 = vshrl.u32 %v9163, 7
  %v9165 = vsub.s32 0, %v9164
  %v9166 = vrot.slane %v9061, %v9165
  %v9167 = vlaneseq
  %v9168 = vshrl.u32 %v9167, 7
  %v9169 = vsub.s32 0, %v9168
  %v9170 = vrot.slane %v9084, %v9169
  %v9171 = vlaneseq
  %v9172 = vshrl.u32 %v9171, 7
  %v9173 = vsub.s32 0, %v9172
  %v9174 = vrot.slane %v9081, %v9173
  %v9175 = vadd.f32 %v9160, %v9166
  %v9176 = vadd.f32 %v9161, %v9170
  %v9177 = vadd.f32 %v9162, %v9174
  %v9178 = vld [vmem:[%s13] sm:$0xf]
  %v9179 = vld [vmem:[%s13 + $0x4] sm:$0xf]
  %v9180 = vld [vmem:[%s13 + $0x8] sm:$0xf]
  %v9181 = vld [vmem:[%s13 + $0xc] sm:$0xf]
  %v9182 = vld [vmem:[%s13 + $0x10] sm:$0xf]
  %v9183 = vld [vmem:[%s13 + $0x14] sm:$0xf]
  %v9184 = vld [vmem:[%s13 + $0x18] sm:$0xf]
  %v9185 = vld [vmem:[%s13 + $0x1c] sm:$0xf]
  %v9186 = vld [vmem:[%s13 + $0x20] sm:$0xf]
  %v9187 = vld [vmem:[%s13 + $0x24] sm:$0xf]
  %v9188 = vld [vmem:[%s13 + $0x28] sm:$0xf]
  %v9189 = vld [vmem:[%s13 + $0x2c] sm:$0xf]
  %v9190 = vld [vmem:[%s13 + $0x30] sm:$0xf]
  %v9191 = vld [vmem:[%s13 + $0x34] sm:$0xf]
  %v9192 = vld [vmem:[%s13 + $0x38] sm:$0xf]
  %v9193 = vld [vmem:[%s13 + $0x3c] sm:$0xf]
  %v9194 = vld [vmem:[%s13 + $0x40] sm:$0xf]
  %v9195 = vld [vmem:[%s13 + $0x44] sm:$0xf]
  %v9196 = vld [vmem:[%s13 + $0x48] sm:$0xf]
  %v9197 = vld [vmem:[%s13 + $0x4c] sm:$0xf]
  %v9198 = vld [vmem:[%s19] sm:$0xf]
  %v9199 = vld [vmem:[%s19 + $0x4] sm:$0xf]
  %v9200 = vld [vmem:[%s19 + $0x8] sm:$0xf]
  %v9201 = vld [vmem:[%s19 + $0xc] sm:$0xf]
  %v9202 = vld [vmem:[%s19 + $0x10] sm:$0xf]
  %v9203 = vld [vmem:[%s19 + $0x14] sm:$0xf]
  %v9204 = vld [vmem:[%s19 + $0x18] sm:$0xf]
  %v9205 = vld [vmem:[%s19 + $0x1c] sm:$0xf]
  %v9206 = vld [vmem:[%s19 + $0x20] sm:$0xf]
  %v9207 = vld [vmem:[%s19 + $0x24] sm:$0xf]
  %v9208 = vld [vmem:[%s19 + $0x28] sm:$0xf]
  %v9209 = vld [vmem:[%s19 + $0x2c] sm:$0xf]
  %v9210 = vld [vmem:[%s19 + $0x30] sm:$0xf]
  %v9211 = vld [vmem:[%s19 + $0x34] sm:$0xf]
  %v9212 = vld [vmem:[%s19 + $0x38] sm:$0xf]
  %v9213 = vld [vmem:[%s19 + $0x3c] sm:$0xf]
  %v9214 = vld [vmem:[%s19 + $0x40] sm:$0xf]
  %v9215 = vld [vmem:[%s19 + $0x44] sm:$0xf]
  %v9216 = vld [vmem:[%s19 + $0x48] sm:$0xf]
  %v9217 = vld [vmem:[%s19 + $0x4c] sm:$0xf]
  %v9218 = vpack.c.bf16 %v9175, %v9175
  %v9219 = vpack.c.bf16 %v9176, %v9176
  %v9220 = vld [vmem:[%s2 + $0x3d] sm:$0x1]
  %v9222 = vlaneseq
  %v9223 = vshrl.u32 %v9222, 7
  %v9224 = vsub.s32 0, %v9223
  %v9225 = vrot.slane %v9220, %v9224
  %v9247 = vunpack.c.l.b16 %v9178
  %v9248 = vunpack.c.l.b16 %v9179
  %v9249 = vunpack.c.l.b16 %v9180
  %v9250 = vunpack.c.l.b16 %v9181
  %v9251 = vunpack.c.l.b16 %v9182
  %v9252 = vunpack.c.l.b16 %v9183
  %v9253 = vunpack.c.l.b16 %v9184
  %v9254 = vunpack.c.l.b16 %v9185
  %v9255 = vunpack.c.l.b16 %v9186
  %v9256 = vunpack.c.l.b16 %v9187
  %v9257 = vunpack.c.l.b16 %v9188
  %v9258 = vunpack.c.l.b16 %v9189
  %v9259 = vunpack.c.l.b16 %v9190
  %v9260 = vunpack.c.l.b16 %v9191
  %v9261 = vunpack.c.l.b16 %v9192
  %v9262 = vunpack.c.l.b16 %v9193
  %v9263 = vunpack.c.l.b16 %v9194
  %v9264 = vunpack.c.l.b16 %v9195
  %v9265 = vunpack.c.l.b16 %v9196
  %v9266 = vunpack.c.l.b16 %v9197
  %v9267 = vpack.c.b16 %v9248, %v9247
  %v9268 = vpack.c.b16 %v9250, %v9249
  %v9269 = vpack.c.b16 %v9252, %v9251
  %v9270 = vpack.c.b16 %v9254, %v9253
  %v9271 = vpack.c.b16 %v9256, %v9255
  %v9272 = vpack.c.b16 %v9258, %v9257
  %v9273 = vpack.c.b16 %v9260, %v9259
  %v9274 = vpack.c.b16 %v9262, %v9261
  %v9275 = vpack.c.b16 %v9264, %v9263
  %v9276 = vpack.c.b16 %v9266, %v9265
  %v9288 = vsel %vm2449, %v9219, 0
  %9290 = vmatprep.subr.bf16.mxu0 0
  %9291 = vmatpush1.bf16.msra.mxu0 %v9274
  %9292 = vmatprep.subr.bf16.mxu0 0
  %9293 = vmatpush1.bf16.msra.mxu0 %v9273
  %9294 = vmatprep.subr.bf16.mxu0 0
  %9295 = vmatpush1.bf16.msra.mxu0 %v9272
  %9296 = vmatprep.subr.bf16.mxu0 0
  %9297 = vmatpush1.bf16.msra.mxu0 %v9271
  %9298 = vmatprep.subr.bf16.mxu0 0
  %9299 = vmatpush1.bf16.msra.mxu0 %v9270
  %9300 = vmatprep.subr.bf16.mxu0 0
  %9301 = vmatpush1.bf16.msra.mxu0 %v9269
  %9302 = vmatprep.subr.bf16.mxu0 0
  %9303 = vmatpush1.bf16.msra.mxu0 %v9268
  %9304 = vmatprep.subr.bf16.mxu0 0
  %9305 = vmatpush1.bf16.msra.mxu0 %v9267
  %9306 = vmatprep.subr.bf16.mxu0 0
  %9307 = vmatpush2.bf16.msra.mxu0 0
  %9308 = vmatprep.subr.bf16.mxu0 0
  %9309 = vmatpush2.bf16.msra.mxu0 0
  %9310 = vmatprep.subr.bf16.mxu0 0
  %9311 = vmatpush2.bf16.msra.mxu0 0
  %9312 = vmatprep.subr.bf16.mxu0 0
  %9313 = vmatpush2.bf16.msra.mxu0 0
  %9314 = vmatprep.subr.bf16.mxu0 0
  %9315 = vmatpush2.bf16.msra.mxu0 0
  %9316 = vmatprep.subr.bf16.mxu0 0
  %9317 = vmatpush2.bf16.msra.mxu0 0
  %9318 = vmatprep.subr.bf16.mxu0 0
  %9319 = vmatpush2.bf16.msra.mxu0 %v9276
  %9320 = vmatprep.subr.bf16.mxu0 0
  %9321 = vmatpush2.bf16.msra.mxu0 %v9275
  %9322 = vmatprep.mubr.bf16.mxu0 %v9288
  %9323 = vmatmul.mubr.bf16.gmra.mxu0 %v9218
  %v9324 = vpop.f32.mrf.mxu0
  %v9325 = vadd.f32 %v9225, %v9324
  %v9326 = vpop.f32.mrf.mxu0
  %v9327 = vpop.f32.mrf.mxu0
  %v9328 = vpop.f32.mrf.mxu0
  %9329 = vdwg.mxu0
  %v9330 = vpack.c.bf16 %v9177, %v9177
  %v9331 = vld [vmem:[%s2 + $0x73] sm:$0x1]
  %v9333 = vlaneseq
  %v9334 = vshrl.u32 %v9333, 7
  %v9335 = vsub.s32 0, %v9334
  %v9336 = vrot.slane %v9331, %v9335
  %9340 = vrot.lane.b32.xlu0 %v9219, 96
  %v9341 = vpop.permute.xlu0 %9340
  %9342 = vrot.lane.b32.xlu0 %v9330, 96
  %v9343 = vpop.permute.xlu0 %9342
  %v9344 = vsel %vm2996, %v9341, %v9343
  %v9366 = vunpack.c.l.b16 %v9198
  %v9367 = vunpack.c.l.b16 %v9199
  %v9368 = vunpack.c.l.b16 %v9200
  %v9369 = vunpack.c.l.b16 %v9201
  %v9370 = vunpack.c.l.b16 %v9202
  %v9371 = vunpack.c.l.b16 %v9203
  %v9372 = vunpack.c.l.b16 %v9204
  %v9373 = vunpack.c.l.b16 %v9205
  %v9374 = vunpack.c.l.b16 %v9206
  %v9375 = vunpack.c.l.b16 %v9207
  %v9376 = vunpack.c.l.b16 %v9208
  %v9377 = vunpack.c.l.b16 %v9209
  %v9378 = vunpack.c.l.b16 %v9210
  %v9379 = vunpack.c.l.b16 %v9211
  %v9380 = vunpack.c.l.b16 %v9212
  %v9381 = vunpack.c.l.b16 %v9213
  %v9382 = vunpack.c.l.b16 %v9214
  %v9383 = vunpack.c.l.b16 %v9215
  %v9384 = vunpack.c.l.b16 %v9216
  %v9385 = vunpack.c.l.b16 %v9217
  %v9386 = vpack.c.b16 %v9367, %v9366
  %v9387 = vpack.c.b16 %v9369, %v9368
  %v9388 = vpack.c.b16 %v9371, %v9370
  %v9389 = vpack.c.b16 %v9373, %v9372
  %v9390 = vpack.c.b16 %v9375, %v9374
  %v9391 = vpack.c.b16 %v9377, %v9376
  %v9392 = vpack.c.b16 %v9379, %v9378
  %v9393 = vpack.c.b16 %v9381, %v9380
  %v9394 = vpack.c.b16 %v9383, %v9382
  %v9395 = vpack.c.b16 %v9385, %v9384
  %v9407 = vsel %vm2449, %v9343, 0
  %9409 = vmatprep.subr.bf16.mxu0 0
  %9410 = vmatpush1.bf16.msra.mxu0 %v9393
  %9411 = vmatprep.subr.bf16.mxu0 0
  %9412 = vmatpush1.bf16.msra.mxu0 %v9392
  %9413 = vmatprep.subr.bf16.mxu0 0
  %9414 = vmatpush1.bf16.msra.mxu0 %v9391
  %9415 = vmatprep.subr.bf16.mxu0 0
  %9416 = vmatpush1.bf16.msra.mxu0 %v9390
  %9417 = vmatprep.subr.bf16.mxu0 0
  %9418 = vmatpush1.bf16.msra.mxu0 %v9389
  %9419 = vmatprep.subr.bf16.mxu0 0
  %9420 = vmatpush1.bf16.msra.mxu0 %v9388
  %9421 = vmatprep.subr.bf16.mxu0 0
  %9422 = vmatpush1.bf16.msra.mxu0 %v9387
  %9423 = vmatprep.subr.bf16.mxu0 0
  %9424 = vmatpush1.bf16.msra.mxu0 %v9386
  %9425 = vmatprep.subr.bf16.mxu0 0
  %9426 = vmatpush2.bf16.msra.mxu0 0
  %9427 = vmatprep.subr.bf16.mxu0 0
  %9428 = vmatpush2.bf16.msra.mxu0 0
  %9429 = vmatprep.subr.bf16.mxu0 0
  %9430 = vmatpush2.bf16.msra.mxu0 0
  %9431 = vmatprep.subr.bf16.mxu0 0
  %9432 = vmatpush2.bf16.msra.mxu0 0
  %9433 = vmatprep.subr.bf16.mxu0 0
  %9434 = vmatpush2.bf16.msra.mxu0 0
  %9435 = vmatprep.subr.bf16.mxu0 0
  %9436 = vmatpush2.bf16.msra.mxu0 0
  %9437 = vmatprep.subr.bf16.mxu0 0
  %9438 = vmatpush2.bf16.msra.mxu0 %v9395
  %9439 = vmatprep.subr.bf16.mxu0 0
  %9440 = vmatpush2.bf16.msra.mxu0 %v9394
  %9441 = vmatprep.mubr.bf16.mxu0 %v9407
  %9442 = vmatmul.mubr.bf16.gmra.mxu0 %v9344
  %v9443 = vpop.f32.mrf.mxu0
  %v9444 = vadd.f32 %v9336, %v9443
  %v9445 = vpop.f32.mrf.mxu0
  %v9446 = vpop.f32.mrf.mxu0
  %v9447 = vpop.f32.mrf.mxu0
  %9448 = vdwg.mxu0
  %9450 = vrot.lane.b32.xlu0 %v9444, 80
  %v9451 = vpop.permute.xlu0 %9450
  %v9453 = vsel %vm2100, %v9325, %v9451
  %vm9454 = vcmp.gt.f32.partialorder %v9453, 0.0
  %vm9455 = vcmp.gt.f32.partialorder %v9451, 0.0
  %v9456 = vmul.f32 %v9453, 1.442695
  %v9457 = vpow.pop %v9456
  %v9458 = vmul.f32 %v9451, 1.442695
  %v9459 = vpow.pop %v9458
  %v9460 = vsub.f32 %v9457, 1.0
  %v9461 = vsub.f32 %v9459, 1.0
  %v9462 = vmul.f32 %v9460, 1.6732632
  %v9463 = vmul.f32 %v9461, 1.6732632
  %v9464 = vsel %vm9454, %v9453, %v9462
  %v9465 = vsel %vm9455, %v9451, %v9463
  %v9466 = vmul.f32 %v9464, 1.050701
  %v9467 = vmul.f32 %v9465, 1.050701
  %v9468 = vld [vmem:[%s2 + $0x3e] sm:$0x1]
  %v9469 = vld [vmem:[%s2 + $0x74] sm:$0x1]
  %v9471 = vlaneseq
  %v9472 = vshrl.u32 %v9471, 7
  %v9473 = vsub.s32 0, %v9472
  %v9474 = vrot.slane %v9469, %v9473
  %9475 = vrot.lane.b32.xlu0 %v9474, 80
  %v9476 = vpop.permute.xlu0 %9475
  %v9478 = vsel %vm2100, %v9468, %v9476
  %v9479 = vld [vmem:[%s2 + $0x3f] sm:$0x1]
  %v9480 = vld [vmem:[%s2 + $0x75] sm:$0x1]
  %v9482 = vlaneseq
  %v9483 = vshrl.u32 %v9482, 7
  %v9484 = vsub.s32 0, %v9483
  %v9485 = vrot.slane %v9480, %v9484
  %9486 = vrot.lane.b32.xlu0 %v9485, 80
  %v9487 = vpop.permute.xlu0 %9486
  %v9489 = vsel %vm2100, %v9479, %v9487
  %v9490 = vsel %vm1142, %v9466, 0.0
  %v9491 = vrot.slane %v9490, 4
  %v9492 = vadd.f32 %v9490, %v9491
  %v9493 = vrot.slane %v9492, 2
  %v9494 = vadd.f32 %v9492, %v9493
  %v9495 = vrot.slane %v9494, 1
  %v9496 = vadd.f32 %v9494, %v9495
  %v9497 = vsel %vm2145, %v9467, 0.0
  %v9498 = vrot.slane %v9497, 4
  %v9499 = vadd.f32 %v9497, %v9498
  %v9500 = vrot.slane %v9499, 2
  %v9501 = vadd.f32 %v9499, %v9500
  %v9502 = vrot.slane %v9501, 1
  %v9503 = vadd.f32 %v9501, %v9502
  %v9504 = vmul.f32 %v9496, %v1892
  %v9505 = vmul.f32 %v9503, %v1892
  %v9506 = vsub.f32 %v9466, %v9504
  %v9507 = vsub.f32 %v9467, %v9505
  %v9508 = vmul.f32 %v9506, %v9506
  %v9509 = vmul.f32 %v9507, %v9507
  %v9510 = vsel %vm1142, %v9508, 0.0
  %v9511 = vrot.slane %v9510, 4
  %v9512 = vadd.f32 %v9510, %v9511
  %v9513 = vrot.slane %v9512, 2
  %v9514 = vadd.f32 %v9512, %v9513
  %v9515 = vrot.slane %v9514, 1
  %v9516 = vadd.f32 %v9514, %v9515
  %v9517 = vsel %vm2145, %v9509, 0.0
  %v9518 = vrot.slane %v9517, 4
  %v9519 = vadd.f32 %v9517, %v9518
  %v9520 = vrot.slane %v9519, 2
  %v9521 = vadd.f32 %v9519, %v9520
  %v9522 = vrot.slane %v9521, 1
  %v9523 = vadd.f32 %v9521, %v9522
  %v9524 = vmul.f32 %v9516, %v1892
  %v9525 = vmul.f32 %v9523, %v1892
  %v9526 = vadd.f32 %v9524, 1e-05
  %v9527 = vadd.f32 %v9525, 1e-05
  %v9528 = vrsqrt.pop %v9526
  %v9529 = vrsqrt.pop %v9527
  %v9530 = vmul.f32 %v9506, %v9528
  %v9531 = vmul.f32 %v9507, %v9529
  %v9532 = vlaneseq
  %v9533 = vshrl.u32 %v9532, 7
  %v9534 = vsub.s32 0, %v9533
  %v9535 = vrot.slane %v9478, %v9534
  %v9536 = vlaneseq
  %v9537 = vshrl.u32 %v9536, 7
  %v9538 = vsub.s32 0, %v9537
  %v9539 = vrot.slane %v9476, %v9538
  %v9540 = vmul.f32 %v9530, %v9535
  %v9541 = vmul.f32 %v9531, %v9539
  %v9542 = vlaneseq
  %v9543 = vshrl.u32 %v9542, 7
  %v9544 = vsub.s32 0, %v9543
  %v9545 = vrot.slane %v9489, %v9544
  %v9546 = vlaneseq
  %v9547 = vshrl.u32 %v9546, 7
  %v9548 = vsub.s32 0, %v9547
  %v9549 = vrot.slane %v9487, %v9548
  %v9550 = vadd.f32 %v9540, %v9545
  %v9551 = vadd.f32 %v9541, %v9549
  %v9552 = vld [vmem:[%s14] sm:$0xf]
  %v9553 = vld [vmem:[%s14 + $0x4] sm:$0xf]
  %v9554 = vld [vmem:[%s14 + $0x8] sm:$0xf]
  %v9555 = vld [vmem:[%s14 + $0xc] sm:$0xf]
  %v9556 = vld [vmem:[%s14 + $0x10] sm:$0xf]
  %v9557 = vld [vmem:[%s14 + $0x14] sm:$0xf]
  %v9558 = vld [vmem:[%s14 + $0x18] sm:$0xf]
  %v9559 = vld [vmem:[%s14 + $0x1c] sm:$0xf]
  %v9560 = vld [vmem:[%s14 + $0x20] sm:$0xf]
  %v9561 = vld [vmem:[%s14 + $0x24] sm:$0xf]
  %v9562 = vpack.c.bf16 %v9550, %v9550
  %v9563 = vld [vmem:[%s2 + $0x40] sm:$0x1]
  %v9565 = vlaneseq
  %v9566 = vshrl.u32 %v9565, 7
  %v9567 = vsub.s32 0, %v9566
  %v9568 = vrot.slane %v9563, %v9567
  %v9580 = vunpack.c.l.b16 %v9552
  %v9581 = vunpack.c.l.b16 %v9553
  %v9582 = vunpack.c.l.b16 %v9554
  %v9583 = vunpack.c.l.b16 %v9555
  %v9584 = vunpack.c.l.b16 %v9556
  %v9585 = vunpack.c.l.b16 %v9557
  %v9586 = vunpack.c.l.b16 %v9558
  %v9587 = vunpack.c.l.b16 %v9559
  %v9588 = vunpack.c.l.b16 %v9560
  %v9589 = vunpack.c.l.b16 %v9561
  %v9590 = vpack.c.b16 %v9581, %v9580
  %v9591 = vpack.c.b16 %v9583, %v9582
  %v9592 = vpack.c.b16 %v9585, %v9584
  %v9593 = vpack.c.b16 %v9587, %v9586
  %v9594 = vpack.c.b16 %v9589, %v9588
  %v9601 = vsel %vm2100, %v9562, 0
  %9603 = vmatprep.subr.bf16.mxu0 0
  %9604 = vmatpush1.bf16.msra.mxu0 0
  %9605 = vmatprep.subr.bf16.mxu0 0
  %9606 = vmatpush1.bf16.msra.mxu0 0
  %9607 = vmatprep.subr.bf16.mxu0 0
  %9608 = vmatpush1.bf16.msra.mxu0 0
  %9609 = vmatprep.subr.bf16.mxu0 0
  %9610 = vmatpush1.bf16.msra.mxu0 %v9594
  %9611 = vmatprep.subr.bf16.mxu0 0
  %9612 = vmatpush1.bf16.msra.mxu0 %v9593
  %9613 = vmatprep.subr.bf16.mxu0 0
  %9614 = vmatpush1.bf16.msra.mxu0 %v9592
  %9615 = vmatprep.subr.bf16.mxu0 0
  %9616 = vmatpush1.bf16.msra.mxu0 %v9591
  %9617 = vmatprep.subr.bf16.mxu0 0
  %9618 = vmatpush1.bf16.msra.mxu0 %v9590
  %9619 = vmatprep.subr.bf16.mxu0 0
  %9620 = vmatpush2.bf16.msra.mxu0 0
  %9621 = vmatprep.subr.bf16.mxu0 0
  %9622 = vmatpush2.bf16.msra.mxu0 0
  %9623 = vmatprep.subr.bf16.mxu0 0
  %9624 = vmatpush2.bf16.msra.mxu0 0
  %9625 = vmatprep.subr.bf16.mxu0 0
  %9626 = vmatpush2.bf16.msra.mxu0 0
  %9627 = vmatprep.subr.bf16.mxu0 0
  %9628 = vmatpush2.bf16.msra.mxu0 0
  %9629 = vmatprep.subr.bf16.mxu0 0
  %9630 = vmatpush2.bf16.msra.mxu0 0
  %9631 = vmatprep.subr.bf16.mxu0 0
  %9632 = vmatpush2.bf16.msra.mxu0 0
  %9633 = vmatprep.subr.bf16.mxu0 0
  %9634 = vmatpush2.bf16.msra.mxu0 0
  %9635 = vmatprep.mubr.bf16.mxu0 0
  %9636 = vmatmul.mubr.bf16.gmra.mxu0 %v9601
  %v9637 = vpop.f32.mrf.mxu0
  %v9638 = vadd.f32 %v9568, %v9637
  %v9639 = vpop.f32.mrf.mxu0
  %v9640 = vpop.f32.mrf.mxu0
  %v9641 = vpop.f32.mrf.mxu0
  %9642 = vdwg.mxu0
  %v9643 = vld [vmem:[%s20] sm:$0xf]
  %v9644 = vld [vmem:[%s20 + $0x4] sm:$0xf]
  %v9645 = vld [vmem:[%s20 + $0x8] sm:$0xf]
  %v9646 = vld [vmem:[%s20 + $0xc] sm:$0xf]
  %v9647 = vld [vmem:[%s20 + $0x10] sm:$0xf]
  %v9648 = vld [vmem:[%s20 + $0x14] sm:$0xf]
  %v9649 = vld [vmem:[%s20 + $0x18] sm:$0xf]
  %v9650 = vld [vmem:[%s20 + $0x1c] sm:$0xf]
  %v9651 = vld [vmem:[%s20 + $0x20] sm:$0xf]
  %v9652 = vld [vmem:[%s20 + $0x24] sm:$0xf]
  %v9653 = vpack.c.bf16 %v9551, %v9551
  %v9654 = vld [vmem:[%s2 + $0x76] sm:$0x1]
  %v9656 = vlaneseq
  %v9657 = vshrl.u32 %v9656, 7
  %v9658 = vsub.s32 0, %v9657
  %v9659 = vrot.slane %v9654, %v9658
  %9663 = vrot.lane.b32.xlu0 %v9562, 48
  %v9664 = vpop.permute.xlu0 %9663
  %9665 = vrot.lane.b32.xlu0 %v9653, 48
  %v9666 = vpop.permute.xlu0 %9665
  %v9667 = vsel %vm2347, %v9664, %v9666
  %v9678 = vunpack.c.l.b16 %v9643
  %v9679 = vunpack.c.l.b16 %v9644
  %v9680 = vunpack.c.l.b16 %v9645
  %v9681 = vunpack.c.l.b16 %v9646
  %v9682 = vunpack.c.l.b16 %v9647
  %v9683 = vunpack.c.l.b16 %v9648
  %v9684 = vunpack.c.l.b16 %v9649
  %v9685 = vunpack.c.l.b16 %v9650
  %v9686 = vunpack.c.l.b16 %v9651
  %v9687 = vunpack.c.l.b16 %v9652
  %v9688 = vpack.c.b16 %v9679, %v9678
  %v9689 = vpack.c.b16 %v9681, %v9680
  %v9690 = vpack.c.b16 %v9683, %v9682
  %v9691 = vpack.c.b16 %v9685, %v9684
  %v9692 = vpack.c.b16 %v9687, %v9686
  %v9699 = vsel %vm2100, %v9667, 0
  %9701 = vmatprep.subr.bf16.mxu0 0
  %9702 = vmatpush1.bf16.msra.mxu0 0
  %9703 = vmatprep.subr.bf16.mxu0 0
  %9704 = vmatpush1.bf16.msra.mxu0 0
  %9705 = vmatprep.subr.bf16.mxu0 0
  %9706 = vmatpush1.bf16.msra.mxu0 0
  %9707 = vmatprep.subr.bf16.mxu0 0
  %9708 = vmatpush1.bf16.msra.mxu0 %v9692
  %9709 = vmatprep.subr.bf16.mxu0 0
  %9710 = vmatpush1.bf16.msra.mxu0 %v9691
  %9711 = vmatprep.subr.bf16.mxu0 0
  %9712 = vmatpush1.bf16.msra.mxu0 %v9690
  %9713 = vmatprep.subr.bf16.mxu0 0
  %9714 = vmatpush1.bf16.msra.mxu0 %v9689
  %9715 = vmatprep.subr.bf16.mxu0 0
  %9716 = vmatpush1.bf16.msra.mxu0 %v9688
  %9717 = vmatprep.subr.bf16.mxu0 0
  %9718 = vmatpush2.bf16.msra.mxu0 0
  %9719 = vmatprep.subr.bf16.mxu0 0
  %9720 = vmatpush2.bf16.msra.mxu0 0
  %9721 = vmatprep.subr.bf16.mxu0 0
  %9722 = vmatpush2.bf16.msra.mxu0 0
  %9723 = vmatprep.subr.bf16.mxu0 0
  %9724 = vmatpush2.bf16.msra.mxu0 0
  %9725 = vmatprep.subr.bf16.mxu0 0
  %9726 = vmatpush2.bf16.msra.mxu0 0
  %9727 = vmatprep.subr.bf16.mxu0 0
  %9728 = vmatpush2.bf16.msra.mxu0 0
  %9729 = vmatprep.subr.bf16.mxu0 0
  %9730 = vmatpush2.bf16.msra.mxu0 0
  %9731 = vmatprep.subr.bf16.mxu0 0
  %9732 = vmatpush2.bf16.msra.mxu0 0
  %9733 = vmatprep.mubr.bf16.mxu0 0
  %9734 = vmatmul.mubr.bf16.gmra.mxu0 %v9699
  %v9735 = vpop.f32.mrf.mxu0
  %v9736 = vadd.f32 %v9659, %v9735
  %v9737 = vpop.f32.mrf.mxu0
  %v9738 = vpop.f32.mrf.mxu0
  %v9739 = vpop.f32.mrf.mxu0
  %9740 = vdwg.mxu0
  %vm9741 = vcmask 392192
  %v9742 = vsel %vm9741, %v1876, 0.0
  %v9743 = vsel %vm1670, %v9736, 0.0
  %v9744 = vsel %vm1670, %v9638, 0.0
  %v9745 = vsel %vm1670, %v1634, 0.0
  %9747 = vrot.lane.b32.xlu0 %v9743, 64
  %v9748 = vpop.permute.xlu0 %9747
  %9751 = vrot.lane.b32.xlu0 %v9745, 64
  %v9752 = vpop.permute.xlu0 %9751
  %v9754 = vsel %vm1199, %v9742, %v9748
  %v9755 = vsel %vm1199, %v9744, %v9752
  %v9758 = vcombine.low %v9754, %v9755
  %v9760 = vunpack.c.l.s4 1983009808
  %v9761 = vunpack.c.0.s8 %v9760
  %v9762 = vlaneseq
  %v9763 = vshrl.u32 %v9762, 7
  %v9764 = vsub.s32 %v9761, %v9763
  %v9765 = vrot.slane %v9758, %v9764
  %9767 = vst [vmem:[%s25] sm:$0xf] %v9765
  // Predicated region
  $region222: #{ae_forward.1} parent=0 // pred_check
    _
  $region223: #{ae_forward.1} parent=0 // pred_check_branch
    %9769 = sbr.rel (0) target = $region225
  $region224: #{ae_forward.1} parent=0 // pred_region
    _
  $region225: #{ae_forward.1} parent=0 // pred_fallthru
    _
  // Predicated region
  $region226: #{ae_forward.1} parent=0 // pred_check
    _
  $region227: #{ae_forward.1} parent=0 // pred_check_branch
    %9771 = sbr.rel (0) target = $region229
  $region228: #{ae_forward.1} parent=0 // pred_region
    _
  $region229: #{ae_forward.1} parent=0 // pred_fallthru
    _
  %9772 = vsyncmov [#allocation6]
  %s9773 = vpop.sfrf %9772
  %p9774 = scmp.eq.s32.totalorder %s9773, 0
  %p9775 = pneg %p9774
  %9777 = shalt.err (%p9775)
  %s9778 = scalar_lea.sflag [#allocation6], 1
  %9779 = vsyncmov %s9778
  %s9780 = vpop.sfrf %9779
  %p9781 = scmp.eq.s32.totalorder %s9780, 0
  %p9782 = pneg %p9781
  %9784 = shalt.err (%p9782)
  %s9785 = scalar_lea.sflag [#allocation6], 2
  %9786 = vsyncmov %s9785
  %s9787 = vpop.sfrf %9786
  %p9788 = scmp.eq.s32.totalorder %s9787, 0
  %p9789 = pneg %p9788
  %9791 = shalt.err (%p9789)
  %s9792 = scalar_lea.sflag [#allocation6], 3
  %9793 = vsyncmov %s9792
  %s9794 = vpop.sfrf %9793
  %p9795 = scmp.eq.s32.totalorder %s9794, 0
  %p9796 = pneg %p9795
  %9798 = shalt.err (%p9796)

</llo_original>
